<compile_context>
chip_gen: v6e
topology: v6e:2x2x1
jax: 0.10.0
libtpu: 0.0.40
codegen_flags: <defaults>
</compile_context>

<pallas_src>
import jax
import jax.numpy as jnp
from jax.experimental import pallas as pl
from jax.experimental.pallas import tpu as pltpu

HISTORY_LENGTH = 4   # args.history_length
LANE = 128
N_PI = 18            # fc_pi output width
COUT1, COUT2, COUT3 = 32, 64, 64


# ---------------------------------------------------------------------------
# Pallas kernels
# ---------------------------------------------------------------------------
def _conv_gemm_kernel(x_ref, w_ref, scale_ref, shift_ref, o_ref):
    # Single K-step GEMM + folded BN affine + ReLU.  Lane-dense N (=128).
    y = jnp.dot(x_ref[...], w_ref[...], preferred_element_type=jnp.float32)
    y = y * scale_ref[...] + shift_ref[...]
    o_ref[...] = jnp.maximum(y, 0.0).astype(o_ref.dtype)


def _conv_gemm_dual_kernel(x_ref, w_ref, scale_ref, shift_ref, o_bf_ref, o_f32_ref):
    # Same as above but emits both bf16 (next-layer input) and f32 (phi) slabs.
    y = jnp.dot(x_ref[...], w_ref[...], preferred_element_type=jnp.float32)
    y = jnp.maximum(y * scale_ref[...] + shift_ref[...], 0.0)
    o_f32_ref[...] = y
    o_bf_ref[...] = y.astype(jnp.bfloat16)


def conv_gemm(x, w, scale, shift, *, dual=False):
    """relu((x @ w) * scale + shift); x:(M,K) bf16, w:(K,128) bf16.

    M is padded to a multiple of 16 so a 2-way 8-aligned 'parallel' M split is always
    legal (both TensorCores on v7x); padded rows are sliced off before returning.
    """
    M, K = x.shape
    K2, N = w.shape
    assert K == K2 and N % LANE == 0
    Mp = ((M + 15) // 16) * 16
    if Mp != M:
        x = jnp.pad(x, ((0, Mp - M), (0, 0)))
    tm = Mp // 2

    in_specs = [
        pl.BlockSpec((tm, K), lambda m: (m, 0)),
        pl.BlockSpec((K, N), lambda m: (0, 0)),
        pl.BlockSpec((1, N), lambda m: (0, 0)),
        pl.BlockSpec((1, N), lambda m: (0, 0)),
    ]
    if dual:
        kernel = _conv_gemm_dual_kernel
        out_shape = (jax.ShapeDtypeStruct((Mp, N), jnp.bfloat16),
                     jax.ShapeDtypeStruct((Mp, N), jnp.float32))
        out_specs = [pl.BlockSpec((tm, N), lambda m: (m, 0)),
                     pl.BlockSpec((tm, N), lambda m: (m, 0))]
    else:
        kernel = _conv_gemm_kernel
        out_shape = jax.ShapeDtypeStruct((Mp, N), jnp.bfloat16)
        out_specs = pl.BlockSpec((tm, N), lambda m: (m, 0))

    out = pl.pallas_call(
        kernel,
        out_shape=out_shape,
        grid_spec=pltpu.PrefetchScalarGridSpec(
            num_scalar_prefetch=0,
            grid=(2,),
            in_specs=in_specs,
            out_specs=out_specs,
        ),
        compiler_params=pltpu.CompilerParams(dimension_semantics=("parallel",)),
    )(x, w, scale, shift)

    if dual:
        y_bf, y_f32 = out
        return y_bf[:M], y_f32[:M]
    return out[:M]


def _fc_head_kernel(x_ref, wh_ref, scale_ref, shift_ref, wpi_ref, pi_ref, h_acc):
    # Fused cnn_h (K-tiled) + folded BN affine + ReLU + fc_pi (w_q_s folded into col 18).
    # h lives only in VMEM scratch; pi partial (this core's Nh half) written in epilogue.
    k = pl.program_id(1)

    @pl.when(k == 0)
    def _():
        h_acc[...] = jnp.zeros_like(h_acc)

    h_acc[...] += jnp.dot(x_ref[...], wh_ref[...], preferred_element_type=jnp.float32)

    @pl.when(k == pl.num_programs(1) - 1)
    def _():
        h = jnp.maximum(h_acc[...] * scale_ref[...] + shift_ref[...], 0.0)
        pi_ref[...] = jnp.dot(h.astype(wpi_ref.dtype), wpi_ref[...],
                              preferred_element_type=jnp.float32)


def fc_head(x, wh, scale, shift, wpi, *, tk=3200):
    """Fused cnn_h / bn_h / ReLU / (fc_pi + folded w_q_s) chain.

    Grid = (2, K//tk): leading 'parallel' axis splits Nh=512 into 2x256 halves so both
    v7x TensorCores stream half of the 6.5 MB weight; the two (Mp, 128) pi partials are
    summed here in XLA (exact, since pi = h[:, :256] @ wpi[:256] + h[:, 256:] @ wpi[256:]).
    Returns (Mp, 128) f32 with Mp = batch padded up to 8; bias NOT added.
    """
    B, K = x.shape
    K2, Nh = wh.shape
    Nh2, Npi = wpi.shape
    assert K == K2 and Nh == Nh2 and K % tk == 0 and Nh % 2 == 0
    Mp = max(8, ((B + 7) // 8) * 8)
    if Mp != B:
        x = jnp.pad(x, ((0, Mp - B), (0, 0)))
    nh_half = Nh // 2

    out = pl.pallas_call(
        _fc_head_kernel,
        out_shape=jax.ShapeDtypeStruct((2 * Mp, Npi), jnp.float32),
        grid_spec=pltpu.PrefetchScalarGridSpec(
            num_scalar_prefetch=0,
            grid=(2, K // tk),
            in_specs=[
                pl.BlockSpec((Mp, tk), lambda n, k: (0, k)),
                pl.BlockSpec((tk, nh_half), lambda n, k: (k, n)),
                pl.BlockSpec((1, nh_half), lambda n, k: (0, n)),
                pl.BlockSpec((1, nh_half), lambda n, k: (0, n)),
                pl.BlockSpec((nh_half, Npi), lambda n, k: (n, 0)),
            ],
            out_specs=pl.BlockSpec((Mp, Npi), lambda n, k: (n, 0)),
            scratch_shapes=[pltpu.VMEM((Mp, nh_half), jnp.float32)],
        ),
        compiler_params=pltpu.CompilerParams(
            dimension_semantics=("parallel", "arbitrary")),
    )(x, wh, scale, shift, wpi)

    return out[:Mp] + out[Mp:]          # sum the two Nh-half partials -> (Mp, Npi)


# ---------------------------------------------------------------------------
# JAX glue: NHWC im2col, BN folding, parameter init / fold
# ---------------------------------------------------------------------------
def im2col_nhwc(x, kh, kw, stride, pad):
    # x: (B, H, W, C) -> (B*Ho*Wo, kh*kw*C); feature order (kh, kw, C). Slices only.
    x = jnp.pad(x, ((0, 0), (pad, pad), (pad, pad), (0, 0)))
    B, Hp, Wp, C = x.shape
    Ho = (Hp - kh) // stride + 1
    Wo = (Wp - kw) // stride + 1
    cols = [
        x[:, i:i + stride * Ho:stride, j:j + stride * Wo:stride, :]
        for i in range(kh) for j in range(kw)
    ]
    cols = jnp.concatenate(cols, axis=-1)                    # (B, Ho, Wo, kh*kw*C)
    return cols.reshape(B * Ho * Wo, kh * kw * C), Ho, Wo


def bn_fold(gamma, beta, mean, var, eps=1e-5):
    scale = gamma / jnp.sqrt(var + eps)
    shift = beta - mean * scale
    return scale, shift


def _pad_cols(x2d, n):
    p = n - x2d.shape[1]
    return x2d if p == 0 else jnp.pad(x2d, ((0, 0), (0, p)))


def _pad_vec(v, n):
    p = n - v.shape[0]
    return v if p == 0 else jnp.pad(v, (0, p))


def init_params(key):
    ks = iter(jax.random.split(key, 40))

    def normal(shape, std=0.05):
        return std * jax.random.normal(next(ks), shape, jnp.float32)

    def bn(n):
        return dict(
            gamma=jax.random.uniform(next(ks), (n,), jnp.float32, 0.5, 1.5),
            beta=normal((n,), 0.1),
            mean=normal((n,), 0.1),
            var=jax.random.uniform(next(ks), (n,), jnp.float32, 0.5, 1.5),
        )

    p = {}
    p["conv1_w"] = normal((8, 8, HISTORY_LENGTH, COUT1))   # (kh, kw, Cin, Cout); bias zeroed
    p["bn1"] = bn(COUT1)
    p["conv2_w"] = normal((4, 4, COUT1, COUT2))
    p["bn2"] = bn(COUT2)
    p["conv3_w"] = normal((3, 3, COUT2, COUT3))
    p["bn3"] = bn(COUT3)
    # cnn_h weight stored as (K=6400, 512) with rows in NHWC flatten order (h, w, c).
    p["cnn_h_w"] = normal((6400, 512), 0.01)
    p["cnn_h_b"] = normal((512,), 0.01)
    p["bn_h"] = bn(512)
    p["fc_pi_w"] = normal((512, N_PI), 0.02)
    p["fc_pi_b"] = normal((N_PI,), 0.02)
    p["fc_q_w"] = normal((1024, 1), 0.02)                  # input order [h(512) | a_emb(512)]
    p["fc_q_b"] = normal((1,), 0.02)
    p["emb_f"] = normal((2, 172), 1.0)
    p["emb_v"] = normal((3, 170), 1.0)
    p["emb_h"] = normal((3, 170), 1.0)
    p["bn_emb"] = bn(512)
    return p


def fold_params(p):
    """Fold biases + eval-mode BN into scale/shift, cast GEMM weights to bf16, pad all
    output lane dims to 128.  NOTE: contains only jnp arrays (no Python ints) so it can
    be passed straight through jax.jit."""
    fp = {}

    def conv_fold(w, bn_p):
        kh, kw, cin, cout = w.shape
        scale, shift = bn_fold(**bn_p)                        # conv bias is zeroed in __init__
        wmat = w.reshape(kh * kw * cin, cout).astype(jnp.bfloat16)
        return dict(
            w=_pad_cols(wmat, LANE),
            scale=_pad_vec(scale, LANE)[None, :],
            shift=_pad_vec(shift, LANE)[None, :],
        )

    fp["conv1"] = conv_fold(p["conv1_w"], p["bn1"])
    fp["conv2"] = conv_fold(p["conv2_w"], p["bn2"])
    fp["conv3"] = conv_fold(p["conv3_w"], p["bn3"])

    # cnn_h: fold the Linear bias into the BN shift; bf16 weight (dominant HBM read).
    scale_h, shift_h = bn_fold(**p["bn_h"])
    shift_h = shift_h + scale_h * p["cnn_h_b"]

    # fc_pi weight padded to 128 columns; fc_q's state half rides free in column 18.
    wpi = jnp.zeros((512, LANE), jnp.float32)
    wpi = wpi.at[:, :N_PI].set(p["fc_pi_w"])
    wpi = wpi.at[:, N_PI:N_PI + 1].set(p["fc_q_w"][:512])
    bpi = jnp.zeros((LANE,), jnp.float32).at[:N_PI].set(p["fc_pi_b"])   # col 18 bias stays 0

    fp["head"] = dict(
        wh=p["cnn_h_w"].astype(jnp.bfloat16),                 # (6400, 512)
        scale=scale_h[None, :],
        shift=shift_h[None, :],
        wpi=wpi.astype(jnp.bfloat16),
        bpi=bpi[None, :],
    )

    # emb_o BatchNorm folded column-wise into the three embedding tables.
    scale_e, shift_e = bn_fold(**p["bn_emb"])
    fp["emb_f"] = p["emb_f"] * scale_e[:172] + shift_e[:172]
    fp["emb_v"] = p["emb_v"] * scale_e[172:342] + shift_e[172:342]
    fp["emb_h"] = p["emb_h"] * scale_e[342:] + shift_e[342:]

    # fc_q action half + bias (state half already folded into wpi col 18).
    fp["w_q_a"] = p["fc_q_w"][512:]                           # (512, 1)
    fp["b_q"] = p["fc_q_b"]
    return fp


# ---------------------------------------------------------------------------
# Forward pass
# ---------------------------------------------------------------------------
def conv_bn_relu(x_nhwc, cw, kh, kw, stride, pad, cout, *, dual=False):
    B = x_nhwc.shape[0]
    cols, Ho, Wo = im2col_nhwc(x_nhwc, kh, kw, stride, pad)
    out = conv_gemm(cols.astype(jnp.bfloat16), cw["w"], cw["scale"], cw["shift"], dual=dual)
    if dual:
        y_bf, y_f32 = out
        return (y_bf[:, :cout].reshape(B, Ho, Wo, cout),
                y_f32[:, :cout].reshape(B, Ho, Wo, cout))
    return out[:, :cout].reshape(B, Ho, Wo, cout)


def forward(fp, s, a):
    B = s.shape[0]

    x = jnp.transpose(s, (0, 2, 3, 1))                        # NCHW -> NHWC, once
    x = conv_bn_relu(x, fp["conv1"], 8, 8, 4, 2, COUT1)       # (B, 20, 20, 32) bf16
    x = conv_bn_relu(x, fp["conv2"], 4, 4, 2, 1, COUT2)       # (B, 10, 10, 64) bf16
    x_bf, x_f32 = conv_bn_relu(x, fp["conv3"], 3, 3, 1, 1, COUT3, dual=True)
    phi = jax.lax.stop_gradient(jnp.transpose(x_f32, (0, 3, 1, 2)))  # s.detach(), NCHW, f32

    # Fused cnn_h + bn_h + ReLU + fc_pi (+ folded w_q_s column); h never leaves VMEM.
    flat = x_bf.reshape(B, -1)                                # (B, 6400) bf16, (h, w, c) order
    hd = fp["head"]
    pi_pad = fc_head(flat, hd["wh"], hd["scale"], hd["shift"], hd["wpi"])[:B] + hd["bpi"]
    pi = pi_pad[:, :N_PI]                                     # (B, 18)
    q_s = pi_pad[:, N_PI:N_PI + 1]                            # (B, 1) = h @ w_q_s

    # Embedding lookup with emb_o BatchNorm already folded into the tables.
    a_f = a[:, :, 0].astype(jnp.int32)
    a_v = a[:, :, 1].astype(jnp.int32)
    a_h = a[:, :, 2].astype(jnp.int32)
    a_emb = jnp.concatenate(
        [fp["emb_f"][a_f], fp["emb_v"][a_v], fp["emb_h"][a_h]], axis=2)  # (B, A, 512)

    # q = relu([h | a_emb] @ W_q + b) in split form — no concat, no h broadcast.
    q_a = jnp.einsum("bac,co->bao", a_emb, fp["w_q_a"])       # (B, A, 1)
    q = jnp.maximum(q_s[:, None, :] + q_a + fp["b_q"], 0.0)   # (B, A, 1)

    v = jnp.zeros((32, 1), jnp.float32)                       # Variable(torch.zeros(32, 1))
    adv = jnp.zeros((32, 18, 1), jnp.float32)                 # Variable(torch.zeros(32, 18, 1))
    return pi, v, q, adv, phi


# ---------------------------------------------------------------------------
if __name__ == "__main__":
    key = jax.random.PRNGKey(0)
    kp, ksx, ka1, ka2, ka3 = jax.random.split(key, 5)
    params = init_params(kp)
    fparams = fold_params(params)

    B, A = 2, 18
    # Spatial size 80x80 is required by the cnn_h Linear(10*10*64, 512).
    s = jax.random.normal(ksx, (B, HISTORY_LENGTH, 80, 80), jnp.float32)
    a = jnp.stack(
        [
            jax.random.randint(ka1, (B, A), 0, 2),
            jax.random.randint(ka2, (B, A), 0, 3),
            jax.random.randint(ka3, (B, A), 0, 3),
        ],
        axis=2,
    )

    pi, v, q, adv, phi = jax.jit(forward)(fparams, s, a)
    jax.tree_util.tree_map(jax.block_until_ready, (pi, v, q, adv, phi))

    assert pi.shape == (B, 18)
    assert v.shape == (32, 1)
    assert q.shape == (B, A, 1)
    assert adv.shape == (32, 18, 1)
    assert phi.shape == (B, 64, 10, 10)
    assert bool(jnp.all(jnp.isfinite(pi))) and bool(jnp.all(jnp.isfinite(q)))
    assert bool(jnp.all(jnp.isfinite(phi)))
    print("KERNEL_OK")
</pallas_src>

<mosaic_0001>
module attributes {stable_mosaic.version = 11 : i64} {
  func.func @_conv_gemm_kernel(%arg0: i32, %arg1: memref<400x256xbf16, #tpu.memory_space<vmem>>, %arg2: memref<256x128xbf16, #tpu.memory_space<vmem>>, %arg3: memref<1x128xf32, #tpu.memory_space<vmem>>, %arg4: memref<1x128xf32, #tpu.memory_space<vmem>>, %arg5: memref<400x128xbf16, #tpu.memory_space<vmem>>) attributes {dimension_semantics = [#tpu.dimension_semantics<parallel>], iteration_bounds = array<i64: 2>, scalar_prefetch = 0 : i64, scratch_operands = 0 : i64, tpu.core_type = #tpu.core_type<tc>, window_params = [{transform_indices = @transform_0, window_bounds = array<i64: 400, 256>}, {pipeline_mode = #tpu.pipeline_mode<synchronous>, transform_indices = @transform_1, window_bounds = array<i64: 256, 128>}, {pipeline_mode = #tpu.pipeline_mode<synchronous>, transform_indices = @transform_2, window_bounds = array<i64: 1, 128>}, {pipeline_mode = #tpu.pipeline_mode<synchronous>, transform_indices = @transform_3, window_bounds = array<i64: 1, 128>}, {transform_indices = @transform_4, window_bounds = array<i64: 400, 128>}]} {
    %c0 = arith.constant 0 : index
    %c0_0 = arith.constant 0 : index
    %0 = vector.load %arg1[%c0, %c0_0] : memref<400x256xbf16, #tpu.memory_space<vmem>>, vector<400x256xbf16>
    %c0_1 = arith.constant 0 : index
    %c0_2 = arith.constant 0 : index
    %1 = vector.load %arg2[%c0_1, %c0_2] : memref<256x128xbf16, #tpu.memory_space<vmem>>, vector<256x128xbf16>
    %cst = arith.constant dense<0.000000e+00> : vector<400x128xf32>
    %2 = tpu.matmul %0, %1, %cst {dimension_numbers = #tpu.dot_dimension_numbers<[1], [0], [0], [1], [0, 0, 1, 1], [], []>} : vector<400x256xbf16>, vector<256x128xbf16>, vector<400x128xf32> -> vector<400x128xf32>
    %c0_3 = arith.constant 0 : index
    %c0_4 = arith.constant 0 : index
    %3 = vector.load %arg3[%c0_3, %c0_4] : memref<1x128xf32, #tpu.memory_space<vmem>>, vector<1x128xf32>
    %4 = vector.broadcast %3 : vector<1x128xf32> to vector<400x128xf32>
    %5 = arith.mulf %2, %4 : vector<400x128xf32>
    %c0_5 = arith.constant 0 : index
    %c0_6 = arith.constant 0 : index
    %6 = vector.load %arg4[%c0_5, %c0_6] : memref<1x128xf32, #tpu.memory_space<vmem>>, vector<1x128xf32>
    %7 = vector.broadcast %6 : vector<1x128xf32> to vector<400x128xf32>
    %8 = arith.addf %5, %7 : vector<400x128xf32>
    %cst_7 = arith.constant 0.000000e+00 : f32
    %9 = vector.broadcast %cst_7 : f32 to vector<400x128xf32>
    %10 = arith.maximumf %8, %9 : vector<400x128xf32>
    %11 = arith.truncf %10 : vector<400x128xf32> to vector<400x128xbf16>
    %c0_8 = arith.constant 0 : index
    %c0_9 = arith.constant 0 : index
    %12 = vector.load %arg5[%c0_8, %c0_9] : memref<400x128xbf16, #tpu.memory_space<vmem>>, vector<400x128xbf16>
    tpu.vector_store %arg5[%c0_8, %c0_9], %11 {strides = array<i32>} : memref<400x128xbf16, #tpu.memory_space<vmem>>, vector<400x128xbf16>,
    return
  }
  func.func @transform_0(%arg0: i32) -> (i32, i32) {
    %c0_i32 = arith.constant 0 : i32
    %c0_i32_0 = arith.constant 0 : i32
    return %arg0, %c0_i32 : i32, i32
  }
  func.func @transform_1(%arg0: i32) -> (i32, i32) {
    %c0_i32 = arith.constant 0 : i32
    %c0_i32_0 = arith.constant 0 : i32
    %c0_i32_1 = arith.constant 0 : i32
    return %c0_i32, %c0_i32_0 : i32, i32
  }
  func.func @transform_2(%arg0: i32) -> (i32, i32) {
    %c0_i32 = arith.constant 0 : i32
    %c0_i32_0 = arith.constant 0 : i32
    %c0_i32_1 = arith.constant 0 : i32
    return %c0_i32, %c0_i32_0 : i32, i32
  }
  func.func @transform_3(%arg0: i32) -> (i32, i32) {
    %c0_i32 = arith.constant 0 : i32
    %c0_i32_0 = arith.constant 0 : i32
    %c0_i32_1 = arith.constant 0 : i32
    return %c0_i32, %c0_i32_0 : i32, i32
  }
  func.func @transform_4(%arg0: i32) -> (i32, i32) {
    %c0_i32 = arith.constant 0 : i32
    %c0_i32_0 = arith.constant 0 : i32
    return %arg0, %c0_i32 : i32, i32
  }
}

module attributes {stable_mosaic.version = 11 : i64} {
  func.func @_conv_gemm_kernel(%arg0: i32, %arg1: memref<104x512xbf16, #tpu.memory_space<vmem>>, %arg2: memref<512x128xbf16, #tpu.memory_space<vmem>>, %arg3: memref<1x128xf32, #tpu.memory_space<vmem>>, %arg4: memref<1x128xf32, #tpu.memory_space<vmem>>, %arg5: memref<104x128xbf16, #tpu.memory_space<vmem>>) attributes {dimension_semantics = [#tpu.dimension_semantics<parallel>], iteration_bounds = array<i64: 2>, scalar_prefetch = 0 : i64, scratch_operands = 0 : i64, tpu.core_type = #tpu.core_type<tc>, window_params = [{transform_indices = @transform_0, window_bounds = array<i64: 104, 512>}, {pipeline_mode = #tpu.pipeline_mode<synchronous>, transform_indices = @transform_1, window_bounds = array<i64: 512, 128>}, {pipeline_mode = #tpu.pipeline_mode<synchronous>, transform_indices = @transform_2, window_bounds = array<i64: 1, 128>}, {pipeline_mode = #tpu.pipeline_mode<synchronous>, transform_indices = @transform_3, window_bounds = array<i64: 1, 128>}, {transform_indices = @transform_4, window_bounds = array<i64: 104, 128>}]} {
    %c0 = arith.constant 0 : index
    %c0_0 = arith.constant 0 : index
    %0 = vector.load %arg1[%c0, %c0_0] : memref<104x512xbf16, #tpu.memory_space<vmem>>, vector<104x512xbf16>
    %c0_1 = arith.constant 0 : index
    %c0_2 = arith.constant 0 : index
    %1 = vector.load %arg2[%c0_1, %c0_2] : memref<512x128xbf16, #tpu.memory_space<vmem>>, vector<512x128xbf16>
    %cst = arith.constant dense<0.000000e+00> : vector<104x128xf32>
    %2 = tpu.matmul %0, %1, %cst {dimension_numbers = #tpu.dot_dimension_numbers<[1], [0], [0], [1], [0, 0, 1, 1], [], []>} : vector<104x512xbf16>, vector<512x128xbf16>, vector<104x128xf32> -> vector<104x128xf32>
    %c0_3 = arith.constant 0 : index
    %c0_4 = arith.constant 0 : index
    %3 = vector.load %arg3[%c0_3, %c0_4] : memref<1x128xf32, #tpu.memory_space<vmem>>, vector<1x128xf32>
    %4 = vector.broadcast %3 : vector<1x128xf32> to vector<104x128xf32>
    %5 = arith.mulf %2, %4 : vector<104x128xf32>
    %c0_5 = arith.constant 0 : index
    %c0_6 = arith.constant 0 : index
    %6 = vector.load %arg4[%c0_5, %c0_6] : memref<1x128xf32, #tpu.memory_space<vmem>>, vector<1x128xf32>
    %7 = vector.broadcast %6 : vector<1x128xf32> to vector<104x128xf32>
    %8 = arith.addf %5, %7 : vector<104x128xf32>
    %cst_7 = arith.constant 0.000000e+00 : f32
    %9 = vector.broadcast %cst_7 : f32 to vector<104x128xf32>
    %10 = arith.maximumf %8, %9 : vector<104x128xf32>
    %11 = arith.truncf %10 : vector<104x128xf32> to vector<104x128xbf16>
    %c0_8 = arith.constant 0 : index
    %c0_9 = arith.constant 0 : index
    %12 = vector.load %arg5[%c0_8, %c0_9] : memref<104x128xbf16, #tpu.memory_space<vmem>>, vector<104x128xbf16>
    tpu.vector_store %arg5[%c0_8, %c0_9], %11 {strides = array<i32>} : memref<104x128xbf16, #tpu.memory_space<vmem>>, vector<104x128xbf16>,
    return
  }
  func.func @transform_0(%arg0: i32) -> (i32, i32) {
    %c0_i32 = arith.constant 0 : i32
    %c0_i32_0 = arith.constant 0 : i32
    return %arg0, %c0_i32 : i32, i32
  }
  func.func @transform_1(%arg0: i32) -> (i32, i32) {
    %c0_i32 = arith.constant 0 : i32
    %c0_i32_0 = arith.constant 0 : i32
    %c0_i32_1 = arith.constant 0 : i32
    return %c0_i32, %c0_i32_0 : i32, i32
  }
  func.func @transform_2(%arg0: i32) -> (i32, i32) {
    %c0_i32 = arith.constant 0 : i32
    %c0_i32_0 = arith.constant 0 : i32
    %c0_i32_1 = arith.constant 0 : i32
    return %c0_i32, %c0_i32_0 : i32, i32
  }
  func.func @transform_3(%arg0: i32) -> (i32, i32) {
    %c0_i32 = arith.constant 0 : i32
    %c0_i32_0 = arith.constant 0 : i32
    %c0_i32_1 = arith.constant 0 : i32
    return %c0_i32, %c0_i32_0 : i32, i32
  }
  func.func @transform_4(%arg0: i32) -> (i32, i32) {
    %c0_i32 = arith.constant 0 : i32
    %c0_i32_0 = arith.constant 0 : i32
    return %arg0, %c0_i32 : i32, i32
  }
}

module attributes {stable_mosaic.version = 11 : i64} {
  func.func @_conv_gemm_dual_kernel(%arg0: i32, %arg1: memref<104x576xbf16, #tpu.memory_space<vmem>>, %arg2: memref<576x128xbf16, #tpu.memory_space<vmem>>, %arg3: memref<1x128xf32, #tpu.memory_space<vmem>>, %arg4: memref<1x128xf32, #tpu.memory_space<vmem>>, %arg5: memref<104x128xbf16, #tpu.memory_space<vmem>>, %arg6: memref<104x128xf32, #tpu.memory_space<vmem>>) attributes {dimension_semantics = [#tpu.dimension_semantics<parallel>], iteration_bounds = array<i64: 2>, scalar_prefetch = 0 : i64, scratch_operands = 0 : i64, tpu.core_type = #tpu.core_type<tc>, window_params = [{transform_indices = @transform_0, window_bounds = array<i64: 104, 576>}, {pipeline_mode = #tpu.pipeline_mode<synchronous>, transform_indices = @transform_1, window_bounds = array<i64: 576, 128>}, {pipeline_mode = #tpu.pipeline_mode<synchronous>, transform_indices = @transform_2, window_bounds = array<i64: 1, 128>}, {pipeline_mode = #tpu.pipeline_mode<synchronous>, transform_indices = @transform_3, window_bounds = array<i64: 1, 128>}, {transform_indices = @transform_4, window_bounds = array<i64: 104, 128>}, {transform_indices = @transform_5, window_bounds = array<i64: 104, 128>}]} {
    %c0 = arith.constant 0 : index
    %c0_0 = arith.constant 0 : index
    %0 = vector.load %arg1[%c0, %c0_0] : memref<104x576xbf16, #tpu.memory_space<vmem>>, vector<104x576xbf16>
    %c0_1 = arith.constant 0 : index
    %c0_2 = arith.constant 0 : index
    %1 = vector.load %arg2[%c0_1, %c0_2] : memref<576x128xbf16, #tpu.memory_space<vmem>>, vector<576x128xbf16>
    %cst = arith.constant dense<0.000000e+00> : vector<104x128xf32>
    %2 = tpu.matmul %0, %1, %cst {dimension_numbers = #tpu.dot_dimension_numbers<[1], [0], [0], [1], [0, 0, 1, 1], [], []>} : vector<104x576xbf16>, vector<576x128xbf16>, vector<104x128xf32> -> vector<104x128xf32>
    %c0_3 = arith.constant 0 : index
    %c0_4 = arith.constant 0 : index
    %3 = vector.load %arg3[%c0_3, %c0_4] : memref<1x128xf32, #tpu.memory_space<vmem>>, vector<1x128xf32>
    %4 = vector.broadcast %3 : vector<1x128xf32> to vector<104x128xf32>
    %5 = arith.mulf %2, %4 : vector<104x128xf32>
    %c0_5 = arith.constant 0 : index
    %c0_6 = arith.constant 0 : index
    %6 = vector.load %arg4[%c0_5, %c0_6] : memref<1x128xf32, #tpu.memory_space<vmem>>, vector<1x128xf32>
    %7 = vector.broadcast %6 : vector<1x128xf32> to vector<104x128xf32>
    %8 = arith.addf %5, %7 : vector<104x128xf32>
    %cst_7 = arith.constant 0.000000e+00 : f32
    %9 = vector.broadcast %cst_7 : f32 to vector<104x128xf32>
    %10 = arith.maximumf %8, %9 : vector<104x128xf32>
    %c0_8 = arith.constant 0 : index
    %c0_9 = arith.constant 0 : index
    %11 = vector.load %arg6[%c0_8, %c0_9] : memref<104x128xf32, #tpu.memory_space<vmem>>, vector<104x128xf32>
    tpu.vector_store %arg6[%c0_8, %c0_9], %10 {strides = array<i32>} : memref<104x128xf32, #tpu.memory_space<vmem>>, vector<104x128xf32>,
    %12 = arith.truncf %10 : vector<104x128xf32> to vector<104x128xbf16>
    %c0_10 = arith.constant 0 : index
    %c0_11 = arith.constant 0 : index
    %13 = vector.load %arg5[%c0_10, %c0_11] : memref<104x128xbf16, #tpu.memory_space<vmem>>, vector<104x128xbf16>
    tpu.vector_store %arg5[%c0_10, %c0_11], %12 {strides = array<i32>} : memref<104x128xbf16, #tpu.memory_space<vmem>>, vector<104x128xbf16>,
    return
  }
  func.func @transform_0(%arg0: i32) -> (i32, i32) {
    %c0_i32 = arith.constant 0 : i32
    %c0_i32_0 = arith.constant 0 : i32
    return %arg0, %c0_i32 : i32, i32
  }
  func.func @transform_1(%arg0: i32) -> (i32, i32) {
    %c0_i32 = arith.constant 0 : i32
    %c0_i32_0 = arith.constant 0 : i32
    %c0_i32_1 = arith.constant 0 : i32
    return %c0_i32, %c0_i32_0 : i32, i32
  }
  func.func @transform_2(%arg0: i32) -> (i32, i32) {
    %c0_i32 = arith.constant 0 : i32
    %c0_i32_0 = arith.constant 0 : i32
    %c0_i32_1 = arith.constant 0 : i32
    return %c0_i32, %c0_i32_0 : i32, i32
  }
  func.func @transform_3(%arg0: i32) -> (i32, i32) {
    %c0_i32 = arith.constant 0 : i32
    %c0_i32_0 = arith.constant 0 : i32
    %c0_i32_1 = arith.constant 0 : i32
    return %c0_i32, %c0_i32_0 : i32, i32
  }
  func.func @transform_4(%arg0: i32) -> (i32, i32) {
    %c0_i32 = arith.constant 0 : i32
    %c0_i32_0 = arith.constant 0 : i32
    return %arg0, %c0_i32 : i32, i32
  }
  func.func @transform_5(%arg0: i32) -> (i32, i32) {
    %c0_i32 = arith.constant 0 : i32
    %c0_i32_0 = arith.constant 0 : i32
    return %arg0, %c0_i32 : i32, i32
  }
}

module attributes {stable_mosaic.version = 11 : i64} {
  func.func @_fc_head_kernel(%arg0: i32, %arg1: i32, %arg2: memref<8x3200xbf16, #tpu.memory_space<vmem>>, %arg3: memref<3200x256xbf16, #tpu.memory_space<vmem>>, %arg4: memref<1x256xf32, #tpu.memory_space<vmem>>, %arg5: memref<1x256xf32, #tpu.memory_space<vmem>>, %arg6: memref<256x128xbf16, #tpu.memory_space<vmem>>, %arg7: memref<8x128xf32, #tpu.memory_space<vmem>>, %arg8: memref<8x256xf32, #tpu.memory_space<vmem>>) attributes {dimension_semantics = [#tpu.dimension_semantics<parallel>, #tpu.dimension_semantics<arbitrary>], iteration_bounds = array<i64: 2, 2>, scalar_prefetch = 0 : i64, scratch_operands = 1 : i64, tpu.core_type = #tpu.core_type<tc>, window_params = [{transform_indices = @transform_0, window_bounds = array<i64: 8, 3200>}, {transform_indices = @transform_1, window_bounds = array<i64: 3200, 256>}, {transform_indices = @transform_2, window_bounds = array<i64: 1, 256>}, {transform_indices = @transform_3, window_bounds = array<i64: 1, 256>}, {transform_indices = @transform_4, window_bounds = array<i64: 256, 128>}, {transform_indices = @transform_5, window_bounds = array<i64: 8, 128>}]} {
    %c0_i32 = arith.constant 0 : i32
    %0 = arith.cmpi eq, %arg1, %c0_i32 : i32
    %1 = arith.extui %0 : i1 to i32
    %c0_i32_0 = arith.constant 0 : i32
    %2 = arith.cmpi ne, %1, %c0_i32_0 : i32
    scf.if %2 {
      %cst_9 = arith.constant 0.000000e+00 : f32
      %12 = vector.broadcast %cst_9 : f32 to vector<8x256xf32>
      %c0_10 = arith.constant 0 : index
      %c0_11 = arith.constant 0 : index
      %13 = vector.load %arg8[%c0_10, %c0_11] : memref<8x256xf32, #tpu.memory_space<vmem>>, vector<8x256xf32>
      tpu.vector_store %arg8[%c0_10, %c0_11], %12 {strides = array<i32>} : memref<8x256xf32, #tpu.memory_space<vmem>>, vector<8x256xf32>,
    } else {
    }
    %c0 = arith.constant 0 : index
    %c0_1 = arith.constant 0 : index
    %3 = vector.load %arg8[%c0, %c0_1] : memref<8x256xf32, #tpu.memory_space<vmem>>, vector<8x256xf32>
    %c0_2 = arith.constant 0 : index
    %c0_3 = arith.constant 0 : index
    %4 = vector.load %arg2[%c0_2, %c0_3] : memref<8x3200xbf16, #tpu.memory_space<vmem>>, vector<8x3200xbf16>
    %c0_4 = arith.constant 0 : index
    %c0_5 = arith.constant 0 : index
    %5 = vector.load %arg3[%c0_4, %c0_5] : memref<3200x256xbf16, #tpu.memory_space<vmem>>, vector<3200x256xbf16>
    %cst = arith.constant dense<0.000000e+00> : vector<8x256xf32>
    %6 = tpu.matmul %4, %5, %cst {dimension_numbers = #tpu.dot_dimension_numbers<[1], [0], [0], [1], [0, 0, 1, 1], [], []>} : vector<8x3200xbf16>, vector<3200x256xbf16>, vector<8x256xf32> -> vector<8x256xf32>
    %7 = arith.addf %3, %6 : vector<8x256xf32>
    %c0_6 = arith.constant 0 : index
    %c0_7 = arith.constant 0 : index
    %8 = vector.load %arg8[%c0_6, %c0_7] : memref<8x256xf32, #tpu.memory_space<vmem>>, vector<8x256xf32>
    tpu.vector_store %arg8[%c0_6, %c0_7], %7 {strides = array<i32>} : memref<8x256xf32, #tpu.memory_space<vmem>>, vector<8x256xf32>,
    %c1_i32 = arith.constant 1 : i32
    %9 = arith.cmpi eq, %arg1, %c1_i32 : i32
    %10 = arith.extui %9 : i1 to i32
    %c0_i32_8 = arith.constant 0 : i32
    %11 = arith.cmpi ne, %10, %c0_i32_8 : i32
    scf.if %11 {
      %c0_9 = arith.constant 0 : index
      %c0_10 = arith.constant 0 : index
      %12 = vector.load %arg8[%c0_9, %c0_10] : memref<8x256xf32, #tpu.memory_space<vmem>>, vector<8x256xf32>
      %c0_11 = arith.constant 0 : index
      %c0_12 = arith.constant 0 : index
      %13 = vector.load %arg4[%c0_11, %c0_12] : memref<1x256xf32, #tpu.memory_space<vmem>>, vector<1x256xf32>
      %14 = vector.broadcast %13 : vector<1x256xf32> to vector<8x256xf32>
      %15 = arith.mulf %12, %14 : vector<8x256xf32>
      %c0_13 = arith.constant 0 : index
      %c0_14 = arith.constant 0 : index
      %16 = vector.load %arg5[%c0_13, %c0_14] : memref<1x256xf32, #tpu.memory_space<vmem>>, vector<1x256xf32>
      %17 = vector.broadcast %16 : vector<1x256xf32> to vector<8x256xf32>
      %18 = arith.addf %15, %17 : vector<8x256xf32>
      %cst_15 = arith.constant 0.000000e+00 : f32
      %19 = vector.broadcast %cst_15 : f32 to vector<8x256xf32>
      %20 = arith.maximumf %18, %19 : vector<8x256xf32>
      %21 = arith.truncf %20 : vector<8x256xf32> to vector<8x256xbf16>
      %c0_16 = arith.constant 0 : index
      %c0_17 = arith.constant 0 : index
      %22 = vector.load %arg6[%c0_16, %c0_17] : memref<256x128xbf16, #tpu.memory_space<vmem>>, vector<256x128xbf16>
      %cst_18 = arith.constant dense<0.000000e+00> : vector<8x128xf32>
      %23 = tpu.matmul %21, %22, %cst_18 {dimension_numbers = #tpu.dot_dimension_numbers<[1], [0], [0], [1], [0, 0, 1, 1], [], []>} : vector<8x256xbf16>, vector<256x128xbf16>, vector<8x128xf32> -> vector<8x128xf32>
      %c0_19 = arith.constant 0 : index
      %c0_20 = arith.constant 0 : index
      %24 = vector.load %arg7[%c0_19, %c0_20] : memref<8x128xf32, #tpu.memory_space<vmem>>, vector<8x128xf32>
      tpu.vector_store %arg7[%c0_19, %c0_20], %23 {strides = array<i32>} : memref<8x128xf32, #tpu.memory_space<vmem>>, vector<8x128xf32>,
    } else {
    }
    return
  }
  func.func @transform_0(%arg0: i32, %arg1: i32) -> (i32, i32) {
    %c0_i32 = arith.constant 0 : i32
    %c0_i32_0 = arith.constant 0 : i32
    return %c0_i32, %arg1 : i32, i32
  }
  func.func @transform_1(%arg0: i32, %arg1: i32) -> (i32, i32) {
    %c0_i32 = arith.constant 0 : i32
    return %arg1, %arg0 : i32, i32
  }
  func.func @transform_2(%arg0: i32, %arg1: i32) -> (i32, i32) {
    %c0_i32 = arith.constant 0 : i32
    %c0_i32_0 = arith.constant 0 : i32
    return %c0_i32, %arg0 : i32, i32
  }
  func.func @transform_3(%arg0: i32, %arg1: i32) -> (i32, i32) {
    %c0_i32 = arith.constant 0 : i32
    %c0_i32_0 = arith.constant 0 : i32
    return %c0_i32, %arg0 : i32, i32
  }
  func.func @transform_4(%arg0: i32, %arg1: i32) -> (i32, i32) {
    %c0_i32 = arith.constant 0 : i32
    %c0_i32_0 = arith.constant 0 : i32
    return %arg0, %c0_i32 : i32, i32
  }
  func.func @transform_5(%arg0: i32, %arg1: i32) -> (i32, i32) {
    %c0_i32 = arith.constant 0 : i32
    %c0_i32_0 = arith.constant 0 : i32
    return %arg0, %c0_i32 : i32, i32
  }
}

</mosaic_0001>

<llo_original>
// kernel: forward.4
$region0: #{forward.4}
  #allocation0 [shape = 'u32[]', space=smem, size = 0x4, offset = 0x4, fixed_abs, tag = 'smem constant byte address 0x4 - core index']
  #allocation1 [shape = 'u32[144,128]{1,0:T(1,128)}', space=vmem, size = 0x12000, scoped, tag = 'internal scratch']
  %s0 = inlined_call_operand.vmem [shape: bf16[800,256], index: 0, kind: input, shape index: {}]
  %s1 = inlined_call_operand.vmem [shape: bf16[256,128], index: 1, kind: input, shape index: {}]
  %s2 = inlined_call_operand.vmem [shape: f32[1,128], index: 2, kind: input, shape index: {}]
  %s3 = inlined_call_operand.vmem [shape: f32[1,128], index: 3, kind: input, shape index: {}]
  %s4 = inlined_call_operand.vmem [shape: bf16[800,128], index: 4, kind: output, shape index: {}]
  %s5 = sld [smem:[#allocation0]]
  $region49: #{forward.4} parent=0
    _
  %s7 = ssub.s32 1, %s5
  %s8 = scalar_select 0, %s7, %s5
  loop: start=0, step=1, limit=4
  $region2: #{forward.4} parent=0 // loop_pre_header
    _
  $region3: #{forward.4} parent=0 // loop_header
    %s10 = sphi 0, %s14
    %p11 = scmp.ge.s32.totalorder %s10, 4
    %s20 = sphi 0, %s22
    %s23 = sphi 0, %s20
    %s24 = sphi 0, %s23
    %s40 = sphi 0, %s24
    %s44 = sphi 0, %s44
    %s46 = sphi 0, %s44
    %s47 = sphi 0, %s46
    %s61 = sphi 0, %s47
    %s65 = sphi 0, %s65
    %s67 = sphi 0, %s65
    %s68 = sphi 0, %s67
    %s82 = sphi 0, %s68
    %s86 = sphi 0, %s86
    %s88 = sphi 0, %s86
    %s89 = sphi 0, %s88
    %s103 = sphi 0, %s89
    %s109 = sphi 0, %s111
    %s112 = sphi 0, %s109
    %s113 = sphi 0, %s112
    %s129 = sphi 0, %s113
  $region4: #{forward.4} parent=0 // loop_header_branch
    %13 = sbr.rel (%p11) target = $region8
  $region5: #{forward.4} parent=0 // loop_body
    %s15 = ssub.s32 %s10, 1
    %s16 = ssub.s32 %s10, 2
    %s17 = sadd.s32 %s10, 1
    %s18 = ssub.s32 %s10, %s17
    %p19 = scmp.eq.s32.totalorder %s18, 0
    %s21 = sadd.s32 %s20, 1
    %s22 = scalar_select %p19, %s20, %s21
    %p25 = pneg %p19
    %p26 = scmp.eq.s32.totalorder %s10, 1
    %p27 = por %p25, %p26
    %p28 = scmp.ne.s32.totalorder %s20, %s23
    %p29 = scmp.eq.s32.totalorder %s10, 0
    %p30 = por %p28, %p29
    %p31 = scmp.ne.s32.totalorder %s20, %s23
    %p32 = scmp.eq.s32.totalorder %s15, 1
    %p33 = por %p31, %p32
    %p34 = scmp.ne.s32.totalorder %s23, %s24
    %p35 = scmp.eq.s32.totalorder %s15, 0
    %p36 = por %p34, %p35
    %p37 = scmp.ne.s32.totalorder %s23, %s24
    %p38 = scmp.eq.s32.totalorder %s16, 1
    %p39 = por %p37, %p38
    %p41 = scmp.ne.s32.totalorder %s24, %s40
    %p42 = scmp.eq.s32.totalorder %s16, 0
    %p43 = por %p41, %p42
    %s45 = sadd.s32 %s44, 1
    %p48 = scmp.eq.s32.totalorder %s10, 1
    %p49 = scmp.ne.s32.totalorder %s44, %s46
    %p50 = scmp.eq.s32.totalorder %s10, 0
    %p51 = por %p49, %p50
    %p52 = scmp.ne.s32.totalorder %s44, %s46
    %p53 = scmp.eq.s32.totalorder %s15, 1
    %p54 = por %p52, %p53
    %p55 = scmp.ne.s32.totalorder %s46, %s47
    %p56 = scmp.eq.s32.totalorder %s15, 0
    %p57 = por %p55, %p56
    %p58 = scmp.ne.s32.totalorder %s46, %s47
    %p59 = scmp.eq.s32.totalorder %s16, 1
    %p60 = por %p58, %p59
    %p62 = scmp.ne.s32.totalorder %s47, %s61
    %p63 = scmp.eq.s32.totalorder %s16, 0
    %p64 = por %p62, %p63
    %s66 = sadd.s32 %s65, 1
    %p69 = scmp.eq.s32.totalorder %s10, 1
    %p70 = scmp.ne.s32.totalorder %s65, %s67
    %p71 = scmp.eq.s32.totalorder %s10, 0
    %p72 = por %p70, %p71
    %p73 = scmp.ne.s32.totalorder %s65, %s67
    %p74 = scmp.eq.s32.totalorder %s15, 1
    %p75 = por %p73, %p74
    %p76 = scmp.ne.s32.totalorder %s67, %s68
    %p77 = scmp.eq.s32.totalorder %s15, 0
    %p78 = por %p76, %p77
    %p79 = scmp.ne.s32.totalorder %s67, %s68
    %p80 = scmp.eq.s32.totalorder %s16, 1
    %p81 = por %p79, %p80
    %p83 = scmp.ne.s32.totalorder %s68, %s82
    %p84 = scmp.eq.s32.totalorder %s16, 0
    %p85 = por %p83, %p84
    %s87 = sadd.s32 %s86, 1
    %p90 = scmp.eq.s32.totalorder %s10, 1
    %p91 = scmp.ne.s32.totalorder %s86, %s88
    %p92 = scmp.eq.s32.totalorder %s10, 0
    %p93 = por %p91, %p92
    %p94 = scmp.ne.s32.totalorder %s86, %s88
    %p95 = scmp.eq.s32.totalorder %s15, 1
    %p96 = por %p94, %p95
    %p97 = scmp.ne.s32.totalorder %s88, %s89
    %p98 = scmp.eq.s32.totalorder %s15, 0
    %p99 = por %p97, %p98
    %p100 = scmp.ne.s32.totalorder %s88, %s89
    %p101 = scmp.eq.s32.totalorder %s16, 1
    %p102 = por %p100, %p101
    %p104 = scmp.ne.s32.totalorder %s89, %s103
    %p105 = scmp.eq.s32.totalorder %s16, 0
    %p106 = por %p104, %p105
    %s107 = ssub.s32 %s10, %s17
    %p108 = scmp.eq.s32.totalorder %s107, 0
    %s110 = sadd.s32 %s109, 1
    %s111 = scalar_select %p108, %s109, %s110
    %p114 = pneg %p108
    %p115 = scmp.eq.s32.totalorder %s10, 1
    %p116 = por %p114, %p115
    %p117 = scmp.ne.s32.totalorder %s109, %s112
    %p118 = scmp.eq.s32.totalorder %s10, 0
    %p119 = por %p117, %p118
    %p120 = scmp.ne.s32.totalorder %s109, %s112
    %p121 = scmp.eq.s32.totalorder %s15, 1
    %p122 = por %p120, %p121
    %p123 = scmp.ne.s32.totalorder %s112, %s113
    %p124 = scmp.eq.s32.totalorder %s15, 0
    %p125 = por %p123, %p124
    %p126 = scmp.ne.s32.totalorder %s112, %s113
    %p127 = scmp.eq.s32.totalorder %s16, 1
    %p128 = por %p126, %p127
    %p130 = scmp.ne.s32.totalorder %s113, %s129
    %p131 = scmp.eq.s32.totalorder %s16, 0
    %p132 = por %p130, %p131
    %p133 = scmp.le.s32.totalorder 1, %s10
    %p134 = scmp.lt.s32.totalorder %s10, 3
    %p135 = pnand %p133, %p134
    %p136 = pneg %p135
    // Predicated region
    $region9: #{forward.4} parent=5 // pred_check
      _
    $region10: #{forward.4} parent=5 // pred_check_branch
      %138 = sbr.rel (%p135) target = $region12
    $region11: #{forward.4} parent=5 // pred_region
      %s139 = ssub.s32 %s10, 1
      // Predicated region
      $region13: #{forward.4} parent=11 // pred_check
        %p140 = pneg %p57
      $region14: #{forward.4} parent=11 // pred_check_branch
        %142 = sbr.rel (%p140) target = $region16
      $region15: #{forward.4} parent=11 // pred_region
        _
      $region16: #{forward.4} parent=11 // pred_fallthru
        _
      // Predicated region
      $region17: #{forward.4} parent=11 // pred_check
        %p143 = pneg %p78
      $region18: #{forward.4} parent=11 // pred_check_branch
        %145 = sbr.rel (%p143) target = $region20
      $region19: #{forward.4} parent=11 // pred_region
        _
      $region20: #{forward.4} parent=11 // pred_fallthru
        _
      // Predicated region
      $region21: #{forward.4} parent=11 // pred_check
        %p146 = pneg %p99
      $region22: #{forward.4} parent=11 // pred_check_branch
        %148 = sbr.rel (%p146) target = $region24
      $region23: #{forward.4} parent=11 // pred_region
        _
      $region24: #{forward.4} parent=11 // pred_fallthru
        _
    $region12: #{forward.4} parent=5 // pred_fallthru
      _
    %p149 = scmp.lt.s32.totalorder %s10, 2
    // Predicated region
    $region25: #{forward.4} parent=5 // pred_check
      %p150 = pneg %p149
    $region26: #{forward.4} parent=5 // pred_check_branch
      %152 = sbr.rel (%p150) target = $region28
    $region27: #{forward.4} parent=5 // pred_region
      // Predicated region
      $region29: #{forward.4} parent=27 // pred_check
        %p153 = pneg %p30
      $region30: #{forward.4} parent=27 // pred_check_branch
        %155 = sbr.rel (%p153) target = $region32
      $region31: #{forward.4} parent=27 // pred_region
        %s156 = smul.u32 50, %s10
        %p157 = scmp.lt.s32.totalorder %s156, 99
        %s158 = scalar_select %p157, %s156, 99
        %s159 = smul.addr %s158, 2
        %s160 = smul.addr %s159, 4
        %s161 = scalar_lea.vmem %s0, %s160
        %s162 = smul.u32 50, %s10
      $region32: #{forward.4} parent=27 // pred_fallthru
        _
    $region28: #{forward.4} parent=5 // pred_fallthru
      _
    %p163 = scmp.le.s32.totalorder 1, %s10
    %p164 = scmp.lt.s32.totalorder %s10, 3
    %p165 = pnand %p163, %p164
    %p166 = pneg %p165
    // Predicated region
    $region33: #{forward.4} parent=5 // pred_check
      _
    $region34: #{forward.4} parent=5 // pred_check_branch
      %168 = sbr.rel (%p165) target = $region36
    $region35: #{forward.4} parent=5 // pred_region
      %s169 = ssub.s32 %s10, 1
      %s170 = smul.u32 50, %s15
      %p171 = scmp.lt.s32.totalorder %s170, 99
      %s172 = scalar_select %p171, %s170, 99
      %s173 = smul.addr %s172, 2
      %s174 = smul.addr %s173, 4
      %s175 = scalar_lea.vmem %s0, %s174
      %p176 = pneg %p36
      %p177 = pneg %p33
      %p178 = pneg %p57
      %p179 = pneg %p54
      %p180 = pneg %p78
      %p181 = pneg %p75
      %p182 = pneg %p99
      %p183 = pneg %p96
      %p184 = pneg %p125
      %p185 = pneg %p122
      %s186 = smul.u32 50, %s15
      %p187 = scmp.lt.s32.totalorder %s186, 99
      %s188 = scalar_select %p187, %s186, 99
      %s189 = smul.addr %s188, 4
      %s190 = scalar_lea.vmem %s4, %s189
      %s191 = smul.u32 50, %s15
      %p192 = scmp.lt.s32.totalorder %s191, 99
      %s193 = scalar_select %p192, %s191, 99
      %s194 = smul.addr %s193, 2
      %s195 = smul.addr %s194, 4
      %s196 = scalar_lea.vmem %s0, %s195
      %s197 = smul.u32 50, %s15
      %s198 = smul.u32 50, %s15
      %p199 = scmp.lt.s32.totalorder %s198, 99
      %s200 = scalar_select %p199, %s198, 99
      %s201 = smul.addr %s200, 4
      %s202 = scalar_lea.vmem %s4, %s201
      %s203 = smul.u32 50, %s15
      %v205 = vld [vmem:[%s196] sm:$0xff]
      %v206 = vld [vmem:[%s196 + $0x8] sm:$0xff]
      %v207 = vld [vmem:[%s196 + $0x10] sm:$0xff]
      %v208 = vld [vmem:[%s196 + $0x18] sm:$0xff]
      %v209 = vld [vmem:[%s196 + $0x20] sm:$0xff]
      %v210 = vld [vmem:[%s196 + $0x28] sm:$0xff]
      %v211 = vld [vmem:[%s196 + $0x30] sm:$0xff]
      %v212 = vld [vmem:[%s196 + $0x38] sm:$0xff]
      %v213 = vld [vmem:[%s196 + $0x40] sm:$0xff]
      %v214 = vld [vmem:[%s196 + $0x48] sm:$0xff]
      %v215 = vld [vmem:[%s196 + $0x50] sm:$0xff]
      %v216 = vld [vmem:[%s196 + $0x58] sm:$0xff]
      %v217 = vld [vmem:[%s196 + $0x60] sm:$0xff]
      %v218 = vld [vmem:[%s196 + $0x68] sm:$0xff]
      %v219 = vld [vmem:[%s196 + $0x70] sm:$0xff]
      %v220 = vld [vmem:[%s196 + $0x78] sm:$0xff]
      %v221 = vld [vmem:[%s196 + $0x80] sm:$0xff]
      %v222 = vld [vmem:[%s196 + $0x88] sm:$0xff]
      %v223 = vld [vmem:[%s196 + $0x90] sm:$0xff]
      %v224 = vld [vmem:[%s196 + $0x98] sm:$0xff]
      %v225 = vld [vmem:[%s196 + $0xa0] sm:$0xff]
      %v226 = vld [vmem:[%s196 + $0xa8] sm:$0xff]
      %v227 = vld [vmem:[%s196 + $0xb0] sm:$0xff]
      %v228 = vld [vmem:[%s196 + $0xb8] sm:$0xff]
      %v229 = vld [vmem:[%s196 + $0xc0] sm:$0xff]
      %v230 = vld [vmem:[%s196 + $0xc8] sm:$0xff]
      %v231 = vld [vmem:[%s196 + $0xd0] sm:$0xff]
      %v232 = vld [vmem:[%s196 + $0xd8] sm:$0xff]
      %v233 = vld [vmem:[%s196 + $0xe0] sm:$0xff]
      %v234 = vld [vmem:[%s196 + $0xe8] sm:$0xff]
      %v235 = vld [vmem:[%s196 + $0xf0] sm:$0xff]
      %v236 = vld [vmem:[%s196 + $0xf8] sm:$0xff]
      %v237 = vld [vmem:[%s196 + $0x100] sm:$0xff]
      %v238 = vld [vmem:[%s196 + $0x108] sm:$0xff]
      %v239 = vld [vmem:[%s196 + $0x110] sm:$0xff]
      %v240 = vld [vmem:[%s196 + $0x118] sm:$0xff]
      %v241 = vld [vmem:[%s196 + $0x120] sm:$0xff]
      %v242 = vld [vmem:[%s196 + $0x128] sm:$0xff]
      %v243 = vld [vmem:[%s196 + $0x130] sm:$0xff]
      %v244 = vld [vmem:[%s196 + $0x138] sm:$0xff]
      %v245 = vld [vmem:[%s196 + $0x140] sm:$0xff]
      %v246 = vld [vmem:[%s196 + $0x148] sm:$0xff]
      %v247 = vld [vmem:[%s196 + $0x150] sm:$0xff]
      %v248 = vld [vmem:[%s196 + $0x158] sm:$0xff]
      %v249 = vld [vmem:[%s196 + $0x160] sm:$0xff]
      %v250 = vld [vmem:[%s196 + $0x168] sm:$0xff]
      %v251 = vld [vmem:[%s196 + $0x170] sm:$0xff]
      %v252 = vld [vmem:[%s196 + $0x178] sm:$0xff]
      %v253 = vld [vmem:[%s196 + $0x180] sm:$0xff]
      %v254 = vld [vmem:[%s196 + $0x188] sm:$0xff]
      %v255 = vld [vmem:[%s1] sm:$0xf]
      %v256 = vld [vmem:[%s1 + $0x4] sm:$0xf]
      %v257 = vld [vmem:[%s1 + $0x8] sm:$0xf]
      %v258 = vld [vmem:[%s1 + $0xc] sm:$0xf]
      %v259 = vld [vmem:[%s1 + $0x10] sm:$0xf]
      %v260 = vld [vmem:[%s1 + $0x14] sm:$0xf]
      %v261 = vld [vmem:[%s1 + $0x18] sm:$0xf]
      %v262 = vld [vmem:[%s1 + $0x1c] sm:$0xf]
      %v263 = vld [vmem:[%s1 + $0x20] sm:$0xf]
      %v264 = vld [vmem:[%s1 + $0x24] sm:$0xf]
      %v265 = vld [vmem:[%s1 + $0x28] sm:$0xf]
      %v266 = vld [vmem:[%s1 + $0x2c] sm:$0xf]
      %v267 = vld [vmem:[%s1 + $0x30] sm:$0xf]
      %v268 = vld [vmem:[%s1 + $0x34] sm:$0xf]
      %v269 = vld [vmem:[%s1 + $0x38] sm:$0xf]
      %v270 = vld [vmem:[%s1 + $0x3c] sm:$0xf]
      %v271 = vld [vmem:[%s1 + $0x40] sm:$0xf]
      %v272 = vld [vmem:[%s1 + $0x44] sm:$0xf]
      %v273 = vld [vmem:[%s1 + $0x48] sm:$0xf]
      %v274 = vld [vmem:[%s1 + $0x4c] sm:$0xf]
      %v275 = vld [vmem:[%s1 + $0x50] sm:$0xf]
      %v276 = vld [vmem:[%s1 + $0x54] sm:$0xf]
      %v277 = vld [vmem:[%s1 + $0x58] sm:$0xf]
      %v278 = vld [vmem:[%s1 + $0x5c] sm:$0xf]
      %v279 = vld [vmem:[%s1 + $0x60] sm:$0xf]
      %v280 = vld [vmem:[%s1 + $0x64] sm:$0xf]
      %v281 = vld [vmem:[%s1 + $0x68] sm:$0xf]
      %v282 = vld [vmem:[%s1 + $0x6c] sm:$0xf]
      %v283 = vld [vmem:[%s1 + $0x70] sm:$0xf]
      %v284 = vld [vmem:[%s1 + $0x74] sm:$0xf]
      %v285 = vld [vmem:[%s1 + $0x78] sm:$0xf]
      %v286 = vld [vmem:[%s1 + $0x7c] sm:$0xf]
      %v337 = vunpack.c.l.b16 %v205
      %v338 = vunpack.c.h.b16 %v205
      %v339 = vunpack.c.l.b16 %v206
      %v340 = vunpack.c.h.b16 %v206
      %v341 = vunpack.c.l.b16 %v207
      %v342 = vunpack.c.h.b16 %v207
      %v343 = vunpack.c.l.b16 %v208
      %v344 = vunpack.c.h.b16 %v208
      %v345 = vunpack.c.l.b16 %v209
      %v346 = vunpack.c.h.b16 %v209
      %v347 = vunpack.c.l.b16 %v210
      %v348 = vunpack.c.h.b16 %v210
      %v349 = vunpack.c.l.b16 %v211
      %v350 = vunpack.c.h.b16 %v211
      %v351 = vunpack.c.l.b16 %v212
      %v352 = vunpack.c.h.b16 %v212
      %v353 = vunpack.c.l.b16 %v213
      %v354 = vunpack.c.h.b16 %v213
      %v355 = vunpack.c.l.b16 %v214
      %v356 = vunpack.c.h.b16 %v214
      %v357 = vunpack.c.l.b16 %v215
      %v358 = vunpack.c.h.b16 %v215
      %v359 = vunpack.c.l.b16 %v216
      %v360 = vunpack.c.h.b16 %v216
      %v361 = vunpack.c.l.b16 %v217
      %v362 = vunpack.c.h.b16 %v217
      %v363 = vunpack.c.l.b16 %v218
      %v364 = vunpack.c.h.b16 %v218
      %v365 = vunpack.c.l.b16 %v219
      %v366 = vunpack.c.h.b16 %v219
      %v367 = vunpack.c.l.b16 %v220
      %v368 = vunpack.c.h.b16 %v220
      %v369 = vunpack.c.l.b16 %v221
      %v370 = vunpack.c.h.b16 %v221
      %v371 = vunpack.c.l.b16 %v222
      %v372 = vunpack.c.h.b16 %v222
      %v373 = vunpack.c.l.b16 %v223
      %v374 = vunpack.c.h.b16 %v223
      %v375 = vunpack.c.l.b16 %v224
      %v376 = vunpack.c.h.b16 %v224
      %v377 = vunpack.c.l.b16 %v225
      %v378 = vunpack.c.h.b16 %v225
      %v379 = vunpack.c.l.b16 %v226
      %v380 = vunpack.c.h.b16 %v226
      %v381 = vunpack.c.l.b16 %v227
      %v382 = vunpack.c.h.b16 %v227
      %v383 = vunpack.c.l.b16 %v228
      %v384 = vunpack.c.h.b16 %v228
      %v385 = vunpack.c.l.b16 %v229
      %v386 = vunpack.c.h.b16 %v229
      %v387 = vunpack.c.l.b16 %v230
      %v388 = vunpack.c.h.b16 %v230
      %v389 = vunpack.c.l.b16 %v231
      %v390 = vunpack.c.h.b16 %v231
      %v391 = vunpack.c.l.b16 %v232
      %v392 = vunpack.c.h.b16 %v232
      %v393 = vunpack.c.l.b16 %v233
      %v394 = vunpack.c.h.b16 %v233
      %v395 = vunpack.c.l.b16 %v234
      %v396 = vunpack.c.h.b16 %v234
      %v397 = vunpack.c.l.b16 %v235
      %v398 = vunpack.c.h.b16 %v235
      %v399 = vunpack.c.l.b16 %v236
      %v400 = vunpack.c.h.b16 %v236
      %v401 = vunpack.c.l.b16 %v237
      %v402 = vunpack.c.h.b16 %v237
      %v403 = vunpack.c.l.b16 %v238
      %v404 = vunpack.c.h.b16 %v238
      %v405 = vunpack.c.l.b16 %v239
      %v406 = vunpack.c.h.b16 %v239
      %v407 = vunpack.c.l.b16 %v240
      %v408 = vunpack.c.h.b16 %v240
      %v409 = vunpack.c.l.b16 %v241
      %v410 = vunpack.c.h.b16 %v241
      %v411 = vunpack.c.l.b16 %v242
      %v412 = vunpack.c.h.b16 %v242
      %v413 = vunpack.c.l.b16 %v243
      %v414 = vunpack.c.h.b16 %v243
      %v415 = vunpack.c.l.b16 %v244
      %v416 = vunpack.c.h.b16 %v244
      %v417 = vunpack.c.l.b16 %v245
      %v418 = vunpack.c.h.b16 %v245
      %v419 = vunpack.c.l.b16 %v246
      %v420 = vunpack.c.h.b16 %v246
      %v421 = vunpack.c.l.b16 %v247
      %v422 = vunpack.c.h.b16 %v247
      %v423 = vunpack.c.l.b16 %v248
      %v424 = vunpack.c.h.b16 %v248
      %v425 = vunpack.c.l.b16 %v249
      %v426 = vunpack.c.h.b16 %v249
      %v427 = vunpack.c.l.b16 %v250
      %v428 = vunpack.c.h.b16 %v250
      %v429 = vunpack.c.l.b16 %v251
      %v430 = vunpack.c.h.b16 %v251
      %v431 = vunpack.c.l.b16 %v252
      %v432 = vunpack.c.h.b16 %v252
      %v433 = vunpack.c.l.b16 %v253
      %v434 = vunpack.c.h.b16 %v253
      %v435 = vunpack.c.l.b16 %v254
      %v436 = vunpack.c.h.b16 %v254
      %v437 = vpack.c.b16 %v339, %v337
      %v438 = vpack.c.b16 %v340, %v338
      %v439 = vpack.c.b16 %v343, %v341
      %v440 = vpack.c.b16 %v344, %v342
      %v441 = vpack.c.b16 %v347, %v345
      %v442 = vpack.c.b16 %v348, %v346
      %v443 = vpack.c.b16 %v351, %v349
      %v444 = vpack.c.b16 %v352, %v350
      %v445 = vpack.c.b16 %v355, %v353
      %v446 = vpack.c.b16 %v356, %v354
      %v447 = vpack.c.b16 %v359, %v357
      %v448 = vpack.c.b16 %v360, %v358
      %v449 = vpack.c.b16 %v363, %v361
      %v450 = vpack.c.b16 %v364, %v362
      %v451 = vpack.c.b16 %v367, %v365
      %v452 = vpack.c.b16 %v368, %v366
      %v453 = vpack.c.b16 %v371, %v369
      %v454 = vpack.c.b16 %v372, %v370
      %v455 = vpack.c.b16 %v375, %v373
      %v456 = vpack.c.b16 %v376, %v374
      %v457 = vpack.c.b16 %v379, %v377
      %v458 = vpack.c.b16 %v380, %v378
      %v459 = vpack.c.b16 %v383, %v381
      %v460 = vpack.c.b16 %v384, %v382
      %v461 = vpack.c.b16 %v387, %v385
      %v462 = vpack.c.b16 %v388, %v386
      %v463 = vpack.c.b16 %v391, %v389
      %v464 = vpack.c.b16 %v392, %v390
      %v465 = vpack.c.b16 %v395, %v393
      %v466 = vpack.c.b16 %v396, %v394
      %v467 = vpack.c.b16 %v399, %v397
      %v468 = vpack.c.b16 %v400, %v398
      %v469 = vpack.c.b16 %v403, %v401
      %v470 = vpack.c.b16 %v404, %v402
      %v471 = vpack.c.b16 %v407, %v405
      %v472 = vpack.c.b16 %v408, %v406
      %v473 = vpack.c.b16 %v411, %v409
      %v474 = vpack.c.b16 %v412, %v410
      %v475 = vpack.c.b16 %v415, %v413
      %v476 = vpack.c.b16 %v416, %v414
      %v477 = vpack.c.b16 %v419, %v417
      %v478 = vpack.c.b16 %v420, %v418
      %v479 = vpack.c.b16 %v423, %v421
      %v480 = vpack.c.b16 %v424, %v422
      %v481 = vpack.c.b16 %v427, %v425
      %v482 = vpack.c.b16 %v428, %v426
      %v483 = vpack.c.b16 %v431, %v429
      %v484 = vpack.c.b16 %v432, %v430
      %v485 = vpack.c.b16 %v435, %v433
      %v486 = vpack.c.b16 %v436, %v434
      %v569 = vunpack.c.l.b16 %v255
      %v570 = vunpack.c.l.b16 %v256
      %v571 = vunpack.c.l.b16 %v257
      %v572 = vunpack.c.l.b16 %v258
      %v573 = vunpack.c.l.b16 %v259
      %v574 = vunpack.c.l.b16 %v260
      %v575 = vunpack.c.l.b16 %v261
      %v576 = vunpack.c.l.b16 %v262
      %v577 = vunpack.c.l.b16 %v263
      %v578 = vunpack.c.l.b16 %v264
      %v579 = vunpack.c.l.b16 %v265
      %v580 = vunpack.c.l.b16 %v266
      %v581 = vunpack.c.l.b16 %v267
      %v582 = vunpack.c.l.b16 %v268
      %v583 = vunpack.c.l.b16 %v269
      %v584 = vunpack.c.l.b16 %v270
      %v585 = vunpack.c.l.b16 %v271
      %v586 = vunpack.c.l.b16 %v272
      %v587 = vunpack.c.l.b16 %v273
      %v588 = vunpack.c.l.b16 %v274
      %v589 = vunpack.c.l.b16 %v275
      %v590 = vunpack.c.l.b16 %v276
      %v591 = vunpack.c.l.b16 %v277
      %v592 = vunpack.c.l.b16 %v278
      %v593 = vunpack.c.l.b16 %v279
      %v594 = vunpack.c.l.b16 %v280
      %v595 = vunpack.c.l.b16 %v281
      %v596 = vunpack.c.l.b16 %v282
      %v597 = vunpack.c.l.b16 %v283
      %v598 = vunpack.c.l.b16 %v284
      %v599 = vunpack.c.l.b16 %v285
      %v600 = vunpack.c.l.b16 %v286
      %v601 = vpack.c.b16 %v570, %v569
      %v602 = vpack.c.b16 %v572, %v571
      %v603 = vpack.c.b16 %v574, %v573
      %v604 = vpack.c.b16 %v576, %v575
      %v605 = vpack.c.b16 %v578, %v577
      %v606 = vpack.c.b16 %v580, %v579
      %v607 = vpack.c.b16 %v582, %v581
      %v608 = vpack.c.b16 %v584, %v583
      %v609 = vpack.c.b16 %v586, %v585
      %v610 = vpack.c.b16 %v588, %v587
      %v611 = vpack.c.b16 %v590, %v589
      %v612 = vpack.c.b16 %v592, %v591
      %v613 = vpack.c.b16 %v594, %v593
      %v614 = vpack.c.b16 %v596, %v595
      %v615 = vpack.c.b16 %v598, %v597
      %v616 = vpack.c.b16 %v600, %v599
      %633 = vmatprep.subr.bf16.mxu0 0
      %634 = vmatpush1.bf16.msra.mxu0 %v608
      %635 = vmatprep.subr.bf16.mxu0 0
      %636 = vmatpush1.bf16.msra.mxu0 %v607
      %637 = vmatprep.subr.bf16.mxu0 0
      %638 = vmatpush1.bf16.msra.mxu0 %v606
      %639 = vmatprep.subr.bf16.mxu0 0
      %640 = vmatpush1.bf16.msra.mxu0 %v605
      %641 = vmatprep.subr.bf16.mxu0 0
      %642 = vmatpush1.bf16.msra.mxu0 %v604
      %643 = vmatprep.subr.bf16.mxu0 0
      %644 = vmatpush1.bf16.msra.mxu0 %v603
      %645 = vmatprep.subr.bf16.mxu0 0
      %646 = vmatpush1.bf16.msra.mxu0 %v602
      %647 = vmatprep.subr.bf16.mxu0 0
      %648 = vmatpush1.bf16.msra.mxu0 %v601
      %649 = vmatprep.subr.bf16.mxu0 0
      %650 = vmatpush2.bf16.msra.mxu0 %v616
      %651 = vmatprep.subr.bf16.mxu0 0
      %652 = vmatpush2.bf16.msra.mxu0 %v615
      %653 = vmatprep.subr.bf16.mxu0 0
      %654 = vmatpush2.bf16.msra.mxu0 %v614
      %655 = vmatprep.subr.bf16.mxu0 0
      %656 = vmatpush2.bf16.msra.mxu0 %v613
      %657 = vmatprep.subr.bf16.mxu0 0
      %658 = vmatpush2.bf16.msra.mxu0 %v612
      %659 = vmatprep.subr.bf16.mxu0 0
      %660 = vmatpush2.bf16.msra.mxu0 %v611
      %661 = vmatprep.subr.bf16.mxu0 0
      %662 = vmatpush2.bf16.msra.mxu0 %v610
      %663 = vmatprep.subr.bf16.mxu0 0
      %664 = vmatpush2.bf16.msra.mxu0 %v609
      %665 = vmatprep.mubr.bf16.mxu0 %v438
      %666 = vmatmul.mubr.bf16.gmra.mxu0 %v437
      %v667 = vpop.f32.mrf.mxu0
      %v668 = vadd.f32 0.0, %v667
      %v669 = vpop.f32.mrf.mxu0
      %v670 = vpop.f32.mrf.mxu0
      %v671 = vadd.f32 0.0, %v670
      %v672 = vpop.f32.mrf.mxu0
      %673 = vmatprep.mubr.bf16.mxu0 %v440
      %674 = vmatmul.mubr.bf16.gmra.mxu0 %v439
      %v675 = vpop.f32.mrf.mxu0
      %v676 = vadd.f32 0.0, %v675
      %v677 = vpop.f32.mrf.mxu0
      %v678 = vpop.f32.mrf.mxu0
      %v679 = vadd.f32 0.0, %v678
      %v680 = vpop.f32.mrf.mxu0
      %681 = vmatprep.mubr.bf16.mxu0 %v442
      %682 = vmatmul.mubr.bf16.gmra.mxu0 %v441
      %v683 = vpop.f32.mrf.mxu0
      %v684 = vadd.f32 0.0, %v683
      %v685 = vpop.f32.mrf.mxu0
      %v686 = vpop.f32.mrf.mxu0
      %v687 = vadd.f32 0.0, %v686
      %v688 = vpop.f32.mrf.mxu0
      %689 = vmatprep.mubr.bf16.mxu0 %v444
      %690 = vmatmul.mubr.bf16.gmra.mxu0 %v443
      %v691 = vpop.f32.mrf.mxu0
      %v692 = vadd.f32 0.0, %v691
      %v693 = vpop.f32.mrf.mxu0
      %v694 = vpop.f32.mrf.mxu0
      %v695 = vadd.f32 0.0, %v694
      %v696 = vpop.f32.mrf.mxu0
      %697 = vmatprep.mubr.bf16.mxu0 %v446
      %698 = vmatmul.mubr.bf16.gmra.mxu0 %v445
      %v699 = vpop.f32.mrf.mxu0
      %v700 = vadd.f32 0.0, %v699
      %v701 = vpop.f32.mrf.mxu0
      %v702 = vpop.f32.mrf.mxu0
      %v703 = vadd.f32 0.0, %v702
      %v704 = vpop.f32.mrf.mxu0
      %705 = vmatprep.mubr.bf16.mxu0 %v448
      %706 = vmatmul.mubr.bf16.gmra.mxu0 %v447
      %v707 = vpop.f32.mrf.mxu0
      %v708 = vadd.f32 0.0, %v707
      %v709 = vpop.f32.mrf.mxu0
      %v710 = vpop.f32.mrf.mxu0
      %v711 = vadd.f32 0.0, %v710
      %v712 = vpop.f32.mrf.mxu0
      %713 = vmatprep.mubr.bf16.mxu0 %v450
      %714 = vmatmul.mubr.bf16.gmra.mxu0 %v449
      %v715 = vpop.f32.mrf.mxu0
      %v716 = vadd.f32 0.0, %v715
      %v717 = vpop.f32.mrf.mxu0
      %v718 = vpop.f32.mrf.mxu0
      %v719 = vadd.f32 0.0, %v718
      %v720 = vpop.f32.mrf.mxu0
      %721 = vmatprep.mubr.bf16.mxu0 %v452
      %722 = vmatmul.mubr.bf16.gmra.mxu0 %v451
      %v723 = vpop.f32.mrf.mxu0
      %v724 = vadd.f32 0.0, %v723
      %v725 = vpop.f32.mrf.mxu0
      %v726 = vpop.f32.mrf.mxu0
      %v727 = vadd.f32 0.0, %v726
      %v728 = vpop.f32.mrf.mxu0
      %729 = vmatprep.mubr.bf16.mxu0 %v454
      %730 = vmatmul.mubr.bf16.gmra.mxu0 %v453
      %v731 = vpop.f32.mrf.mxu0
      %v732 = vadd.f32 0.0, %v731
      %v733 = vpop.f32.mrf.mxu0
      %v734 = vpop.f32.mrf.mxu0
      %v735 = vadd.f32 0.0, %v734
      %v736 = vpop.f32.mrf.mxu0
      %737 = vmatprep.mubr.bf16.mxu0 %v456
      %738 = vmatmul.mubr.bf16.gmra.mxu0 %v455
      %v739 = vpop.f32.mrf.mxu0
      %v740 = vadd.f32 0.0, %v739
      %v741 = vpop.f32.mrf.mxu0
      %v742 = vpop.f32.mrf.mxu0
      %v743 = vadd.f32 0.0, %v742
      %v744 = vpop.f32.mrf.mxu0
      %745 = vmatprep.mubr.bf16.mxu0 %v458
      %746 = vmatmul.mubr.bf16.gmra.mxu0 %v457
      %v747 = vpop.f32.mrf.mxu0
      %v748 = vadd.f32 0.0, %v747
      %v749 = vpop.f32.mrf.mxu0
      %v750 = vpop.f32.mrf.mxu0
      %v751 = vadd.f32 0.0, %v750
      %v752 = vpop.f32.mrf.mxu0
      %753 = vmatprep.mubr.bf16.mxu0 %v460
      %754 = vmatmul.mubr.bf16.gmra.mxu0 %v459
      %v755 = vpop.f32.mrf.mxu0
      %v756 = vadd.f32 0.0, %v755
      %v757 = vpop.f32.mrf.mxu0
      %v758 = vpop.f32.mrf.mxu0
      %v759 = vadd.f32 0.0, %v758
      %v760 = vpop.f32.mrf.mxu0
      %761 = vmatprep.mubr.bf16.mxu0 %v462
      %762 = vmatmul.mubr.bf16.gmra.mxu0 %v461
      %v763 = vpop.f32.mrf.mxu0
      %v764 = vadd.f32 0.0, %v763
      %v765 = vpop.f32.mrf.mxu0
      %v766 = vpop.f32.mrf.mxu0
      %v767 = vadd.f32 0.0, %v766
      %v768 = vpop.f32.mrf.mxu0
      %769 = vmatprep.mubr.bf16.mxu0 %v464
      %770 = vmatmul.mubr.bf16.gmra.mxu0 %v463
      %v771 = vpop.f32.mrf.mxu0
      %v772 = vadd.f32 0.0, %v771
      %v773 = vpop.f32.mrf.mxu0
      %v774 = vpop.f32.mrf.mxu0
      %v775 = vadd.f32 0.0, %v774
      %v776 = vpop.f32.mrf.mxu0
      %777 = vmatprep.mubr.bf16.mxu0 %v466
      %778 = vmatmul.mubr.bf16.gmra.mxu0 %v465
      %v779 = vpop.f32.mrf.mxu0
      %v780 = vadd.f32 0.0, %v779
      %v781 = vpop.f32.mrf.mxu0
      %v782 = vpop.f32.mrf.mxu0
      %v783 = vadd.f32 0.0, %v782
      %v784 = vpop.f32.mrf.mxu0
      %785 = vmatprep.mubr.bf16.mxu0 %v468
      %786 = vmatmul.mubr.bf16.gmra.mxu0 %v467
      %v787 = vpop.f32.mrf.mxu0
      %v788 = vadd.f32 0.0, %v787
      %v789 = vpop.f32.mrf.mxu0
      %v790 = vpop.f32.mrf.mxu0
      %v791 = vadd.f32 0.0, %v790
      %v792 = vpop.f32.mrf.mxu0
      %793 = vmatprep.mubr.bf16.mxu0 %v470
      %794 = vmatmul.mubr.bf16.gmra.mxu0 %v469
      %v795 = vpop.f32.mrf.mxu0
      %v796 = vadd.f32 0.0, %v795
      %v797 = vpop.f32.mrf.mxu0
      %v798 = vpop.f32.mrf.mxu0
      %v799 = vadd.f32 0.0, %v798
      %v800 = vpop.f32.mrf.mxu0
      %801 = vmatprep.mubr.bf16.mxu0 %v472
      %802 = vmatmul.mubr.bf16.gmra.mxu0 %v471
      %v803 = vpop.f32.mrf.mxu0
      %v804 = vadd.f32 0.0, %v803
      %v805 = vpop.f32.mrf.mxu0
      %v806 = vpop.f32.mrf.mxu0
      %v807 = vadd.f32 0.0, %v806
      %v808 = vpop.f32.mrf.mxu0
      %809 = vmatprep.mubr.bf16.mxu0 %v474
      %810 = vmatmul.mubr.bf16.gmra.mxu0 %v473
      %v811 = vpop.f32.mrf.mxu0
      %v812 = vadd.f32 0.0, %v811
      %v813 = vpop.f32.mrf.mxu0
      %v814 = vpop.f32.mrf.mxu0
      %v815 = vadd.f32 0.0, %v814
      %v816 = vpop.f32.mrf.mxu0
      %817 = vmatprep.mubr.bf16.mxu0 %v476
      %818 = vmatmul.mubr.bf16.gmra.mxu0 %v475
      %v819 = vpop.f32.mrf.mxu0
      %v820 = vadd.f32 0.0, %v819
      %v821 = vpop.f32.mrf.mxu0
      %v822 = vpop.f32.mrf.mxu0
      %v823 = vadd.f32 0.0, %v822
      %v824 = vpop.f32.mrf.mxu0
      %825 = vmatprep.mubr.bf16.mxu0 %v478
      %826 = vmatmul.mubr.bf16.gmra.mxu0 %v477
      %v827 = vpop.f32.mrf.mxu0
      %v828 = vadd.f32 0.0, %v827
      %v829 = vpop.f32.mrf.mxu0
      %v830 = vpop.f32.mrf.mxu0
      %v831 = vadd.f32 0.0, %v830
      %v832 = vpop.f32.mrf.mxu0
      %833 = vmatprep.mubr.bf16.mxu0 %v480
      %834 = vmatmul.mubr.bf16.gmra.mxu0 %v479
      %v835 = vpop.f32.mrf.mxu0
      %v836 = vadd.f32 0.0, %v835
      %v837 = vpop.f32.mrf.mxu0
      %v838 = vpop.f32.mrf.mxu0
      %v839 = vadd.f32 0.0, %v838
      %v840 = vpop.f32.mrf.mxu0
      %841 = vmatprep.mubr.bf16.mxu0 %v482
      %842 = vmatmul.mubr.bf16.gmra.mxu0 %v481
      %v843 = vpop.f32.mrf.mxu0
      %v844 = vadd.f32 0.0, %v843
      %v845 = vpop.f32.mrf.mxu0
      %v846 = vpop.f32.mrf.mxu0
      %v847 = vadd.f32 0.0, %v846
      %v848 = vpop.f32.mrf.mxu0
      %849 = vmatprep.mubr.bf16.mxu0 %v484
      %850 = vmatmul.mubr.bf16.gmra.mxu0 %v483
      %v851 = vpop.f32.mrf.mxu0
      %v852 = vadd.f32 0.0, %v851
      %v853 = vpop.f32.mrf.mxu0
      %v854 = vpop.f32.mrf.mxu0
      %v855 = vadd.f32 0.0, %v854
      %v856 = vpop.f32.mrf.mxu0
      %857 = vmatprep.mubr.bf16.mxu0 %v486
      %858 = vmatmul.mubr.bf16.gmra.mxu0 %v485
      %v859 = vpop.f32.mrf.mxu0
      %v860 = vadd.f32 0.0, %v859
      %v861 = vpop.f32.mrf.mxu0
      %v862 = vpop.f32.mrf.mxu0
      %v863 = vadd.f32 0.0, %v862
      %v864 = vpop.f32.mrf.mxu0
      %865 = vdwg.mxu0
      %v866 = vld [vmem:[%s2] sm:$0x1]
      %v868 = vlaneseq
      %v869 = vshrl.u32 %v868, 7
      %v870 = vsub.s32 0, %v869
      %v871 = vrot.slane %v866, %v870
      %v873 = vmul.f32 %v668, %v871
      %v874 = vmul.f32 %v671, %v871
      %v875 = vmul.f32 %v676, %v871
      %v876 = vmul.f32 %v679, %v871
      %v877 = vmul.f32 %v684, %v871
      %v878 = vmul.f32 %v687, %v871
      %v879 = vmul.f32 %v692, %v871
      %v880 = vmul.f32 %v695, %v871
      %v881 = vmul.f32 %v700, %v871
      %v882 = vmul.f32 %v703, %v871
      %v883 = vmul.f32 %v708, %v871
      %v884 = vmul.f32 %v711, %v871
      %v885 = vmul.f32 %v716, %v871
      %v886 = vmul.f32 %v719, %v871
      %v887 = vmul.f32 %v724, %v871
      %v888 = vmul.f32 %v727, %v871
      %v889 = vmul.f32 %v732, %v871
      %v890 = vmul.f32 %v735, %v871
      %v891 = vmul.f32 %v740, %v871
      %v892 = vmul.f32 %v743, %v871
      %v893 = vmul.f32 %v748, %v871
      %v894 = vmul.f32 %v751, %v871
      %v895 = vmul.f32 %v756, %v871
      %v896 = vmul.f32 %v759, %v871
      %v897 = vmul.f32 %v764, %v871
      %v898 = vmul.f32 %v767, %v871
      %v899 = vmul.f32 %v772, %v871
      %v900 = vmul.f32 %v775, %v871
      %v901 = vmul.f32 %v780, %v871
      %v902 = vmul.f32 %v783, %v871
      %v903 = vmul.f32 %v788, %v871
      %v904 = vmul.f32 %v791, %v871
      %v905 = vmul.f32 %v796, %v871
      %v906 = vmul.f32 %v799, %v871
      %v907 = vmul.f32 %v804, %v871
      %v908 = vmul.f32 %v807, %v871
      %v909 = vmul.f32 %v812, %v871
      %v910 = vmul.f32 %v815, %v871
      %v911 = vmul.f32 %v820, %v871
      %v912 = vmul.f32 %v823, %v871
      %v913 = vmul.f32 %v828, %v871
      %v914 = vmul.f32 %v831, %v871
      %v915 = vmul.f32 %v836, %v871
      %v916 = vmul.f32 %v839, %v871
      %v917 = vmul.f32 %v844, %v871
      %v918 = vmul.f32 %v847, %v871
      %v919 = vmul.f32 %v852, %v871
      %v920 = vmul.f32 %v855, %v871
      %v921 = vmul.f32 %v860, %v871
      %v922 = vmul.f32 %v863, %v871
      %v923 = vld [vmem:[%s3] sm:$0x1]
      %v925 = vlaneseq
      %v926 = vshrl.u32 %v925, 7
      %v927 = vsub.s32 0, %v926
      %v928 = vrot.slane %v923, %v927
      %v930 = vadd.f32 %v873, %v928
      %v931 = vadd.f32 %v874, %v928
      %v932 = vadd.f32 %v875, %v928
      %v933 = vadd.f32 %v876, %v928
      %v934 = vadd.f32 %v877, %v928
      %v935 = vadd.f32 %v878, %v928
      %v936 = vadd.f32 %v879, %v928
      %v937 = vadd.f32 %v880, %v928
      %v938 = vadd.f32 %v881, %v928
      %v939 = vadd.f32 %v882, %v928
      %v940 = vadd.f32 %v883, %v928
      %v941 = vadd.f32 %v884, %v928
      %v942 = vadd.f32 %v885, %v928
      %v943 = vadd.f32 %v886, %v928
      %v944 = vadd.f32 %v887, %v928
      %v945 = vadd.f32 %v888, %v928
      %v946 = vadd.f32 %v889, %v928
      %v947 = vadd.f32 %v890, %v928
      %v948 = vadd.f32 %v891, %v928
      %v949 = vadd.f32 %v892, %v928
      %v950 = vadd.f32 %v893, %v928
      %v951 = vadd.f32 %v894, %v928
      %v952 = vadd.f32 %v895, %v928
      %v953 = vadd.f32 %v896, %v928
      %v954 = vadd.f32 %v897, %v928
      %v955 = vadd.f32 %v898, %v928
      %v956 = vadd.f32 %v899, %v928
      %v957 = vadd.f32 %v900, %v928
      %v958 = vadd.f32 %v901, %v928
      %v959 = vadd.f32 %v902, %v928
      %v960 = vadd.f32 %v903, %v928
      %v961 = vadd.f32 %v904, %v928
      %v962 = vadd.f32 %v905, %v928
      %v963 = vadd.f32 %v906, %v928
      %v964 = vadd.f32 %v907, %v928
      %v965 = vadd.f32 %v908, %v928
      %v966 = vadd.f32 %v909, %v928
      %v967 = vadd.f32 %v910, %v928
      %v968 = vadd.f32 %v911, %v928
      %v969 = vadd.f32 %v912, %v928
      %v970 = vadd.f32 %v913, %v928
      %v971 = vadd.f32 %v914, %v928
      %v972 = vadd.f32 %v915, %v928
      %v973 = vadd.f32 %v916, %v928
      %v974 = vadd.f32 %v917, %v928
      %v975 = vadd.f32 %v918, %v928
      %v976 = vadd.f32 %v919, %v928
      %v977 = vadd.f32 %v920, %v928
      %v978 = vadd.f32 %v921, %v928
      %v979 = vadd.f32 %v922, %v928
      %v980 = vmax.f32 %v930, 0.0
      %v981 = vmax.f32 %v931, 0.0
      %v982 = vmax.f32 %v932, 0.0
      %v983 = vmax.f32 %v933, 0.0
      %v984 = vmax.f32 %v934, 0.0
      %v985 = vmax.f32 %v935, 0.0
      %v986 = vmax.f32 %v936, 0.0
      %v987 = vmax.f32 %v937, 0.0
      %v988 = vmax.f32 %v938, 0.0
      %v989 = vmax.f32 %v939, 0.0
      %v990 = vmax.f32 %v940, 0.0
      %v991 = vmax.f32 %v941, 0.0
      %v992 = vmax.f32 %v942, 0.0
      %v993 = vmax.f32 %v943, 0.0
      %v994 = vmax.f32 %v944, 0.0
      %v995 = vmax.f32 %v945, 0.0
      %v996 = vmax.f32 %v946, 0.0
      %v997 = vmax.f32 %v947, 0.0
      %v998 = vmax.f32 %v948, 0.0
      %v999 = vmax.f32 %v949, 0.0
      %v1000 = vmax.f32 %v950, 0.0
      %v1001 = vmax.f32 %v951, 0.0
      %v1002 = vmax.f32 %v952, 0.0
      %v1003 = vmax.f32 %v953, 0.0
      %v1004 = vmax.f32 %v954, 0.0
      %v1005 = vmax.f32 %v955, 0.0
      %v1006 = vmax.f32 %v956, 0.0
      %v1007 = vmax.f32 %v957, 0.0
      %v1008 = vmax.f32 %v958, 0.0
      %v1009 = vmax.f32 %v959, 0.0
      %v1010 = vmax.f32 %v960, 0.0
      %v1011 = vmax.f32 %v961, 0.0
      %v1012 = vmax.f32 %v962, 0.0
      %v1013 = vmax.f32 %v963, 0.0
      %v1014 = vmax.f32 %v964, 0.0
      %v1015 = vmax.f32 %v965, 0.0
      %v1016 = vmax.f32 %v966, 0.0
      %v1017 = vmax.f32 %v967, 0.0
      %v1018 = vmax.f32 %v968, 0.0
      %v1019 = vmax.f32 %v969, 0.0
      %v1020 = vmax.f32 %v970, 0.0
      %v1021 = vmax.f32 %v971, 0.0
      %v1022 = vmax.f32 %v972, 0.0
      %v1023 = vmax.f32 %v973, 0.0
      %v1024 = vmax.f32 %v974, 0.0
      %v1025 = vmax.f32 %v975, 0.0
      %v1026 = vmax.f32 %v976, 0.0
      %v1027 = vmax.f32 %v977, 0.0
      %v1028 = vmax.f32 %v978, 0.0
      %v1029 = vmax.f32 %v979, 0.0
      %v1030 = vpack.c.bf16 %v981, %v980
      %v1031 = vpack.c.bf16 %v983, %v982
      %v1032 = vpack.c.bf16 %v985, %v984
      %v1033 = vpack.c.bf16 %v987, %v986
      %v1034 = vpack.c.bf16 %v989, %v988
      %v1035 = vpack.c.bf16 %v991, %v990
      %v1036 = vpack.c.bf16 %v993, %v992
      %v1037 = vpack.c.bf16 %v995, %v994
      %v1038 = vpack.c.bf16 %v997, %v996
      %v1039 = vpack.c.bf16 %v999, %v998
      %v1040 = vpack.c.bf16 %v1001, %v1000
      %v1041 = vpack.c.bf16 %v1003, %v1002
      %v1042 = vpack.c.bf16 %v1005, %v1004
      %v1043 = vpack.c.bf16 %v1007, %v1006
      %v1044 = vpack.c.bf16 %v1009, %v1008
      %v1045 = vpack.c.bf16 %v1011, %v1010
      %v1046 = vpack.c.bf16 %v1013, %v1012
      %v1047 = vpack.c.bf16 %v1015, %v1014
      %v1048 = vpack.c.bf16 %v1017, %v1016
      %v1049 = vpack.c.bf16 %v1019, %v1018
      %v1050 = vpack.c.bf16 %v1021, %v1020
      %v1051 = vpack.c.bf16 %v1023, %v1022
      %v1052 = vpack.c.bf16 %v1025, %v1024
      %v1053 = vpack.c.bf16 %v1027, %v1026
      %v1054 = vpack.c.bf16 %v1029, %v1028
      %v1080 = vunpack.c.l.b16 %v1030
      %v1081 = vunpack.c.h.b16 %v1030
      %v1082 = vunpack.c.l.b16 %v1031
      %v1083 = vunpack.c.h.b16 %v1031
      %v1084 = vunpack.c.l.b16 %v1032
      %v1085 = vunpack.c.h.b16 %v1032
      %v1086 = vunpack.c.l.b16 %v1033
      %v1087 = vunpack.c.h.b16 %v1033
      %v1088 = vunpack.c.l.b16 %v1034
      %v1089 = vunpack.c.h.b16 %v1034
      %v1090 = vunpack.c.l.b16 %v1035
      %v1091 = vunpack.c.h.b16 %v1035
      %v1092 = vunpack.c.l.b16 %v1036
      %v1093 = vunpack.c.h.b16 %v1036
      %v1094 = vunpack.c.l.b16 %v1037
      %v1095 = vunpack.c.h.b16 %v1037
      %v1096 = vunpack.c.l.b16 %v1038
      %v1097 = vunpack.c.h.b16 %v1038
      %v1098 = vunpack.c.l.b16 %v1039
      %v1099 = vunpack.c.h.b16 %v1039
      %v1100 = vunpack.c.l.b16 %v1040
      %v1101 = vunpack.c.h.b16 %v1040
      %v1102 = vunpack.c.l.b16 %v1041
      %v1103 = vunpack.c.h.b16 %v1041
      %v1104 = vunpack.c.l.b16 %v1042
      %v1105 = vunpack.c.h.b16 %v1042
      %v1106 = vunpack.c.l.b16 %v1043
      %v1107 = vunpack.c.h.b16 %v1043
      %v1108 = vunpack.c.l.b16 %v1044
      %v1109 = vunpack.c.h.b16 %v1044
      %v1110 = vunpack.c.l.b16 %v1045
      %v1111 = vunpack.c.h.b16 %v1045
      %v1112 = vunpack.c.l.b16 %v1046
      %v1113 = vunpack.c.h.b16 %v1046
      %v1114 = vunpack.c.l.b16 %v1047
      %v1115 = vunpack.c.h.b16 %v1047
      %v1116 = vunpack.c.l.b16 %v1048
      %v1117 = vunpack.c.h.b16 %v1048
      %v1118 = vunpack.c.l.b16 %v1049
      %v1119 = vunpack.c.h.b16 %v1049
      %v1120 = vunpack.c.l.b16 %v1050
      %v1121 = vunpack.c.h.b16 %v1050
      %v1122 = vunpack.c.l.b16 %v1051
      %v1123 = vunpack.c.h.b16 %v1051
      %v1124 = vunpack.c.l.b16 %v1052
      %v1125 = vunpack.c.h.b16 %v1052
      %v1126 = vunpack.c.l.b16 %v1053
      %v1127 = vunpack.c.h.b16 %v1053
      %v1128 = vunpack.c.l.b16 %v1054
      %v1129 = vunpack.c.h.b16 %v1054
      %v1130 = vpack.c.b16 %v1080, %v1080
      %v1131 = vpack.c.b16 %v1081, %v1081
      %v1132 = vpack.c.b16 %v1082, %v1082
      %v1133 = vpack.c.b16 %v1083, %v1083
      %v1134 = vpack.c.b16 %v1084, %v1084
      %v1135 = vpack.c.b16 %v1085, %v1085
      %v1136 = vpack.c.b16 %v1086, %v1086
      %v1137 = vpack.c.b16 %v1087, %v1087
      %v1138 = vpack.c.b16 %v1088, %v1088
      %v1139 = vpack.c.b16 %v1089, %v1089
      %v1140 = vpack.c.b16 %v1090, %v1090
      %v1141 = vpack.c.b16 %v1091, %v1091
      %v1142 = vpack.c.b16 %v1092, %v1092
      %v1143 = vpack.c.b16 %v1093, %v1093
      %v1144 = vpack.c.b16 %v1094, %v1094
      %v1145 = vpack.c.b16 %v1095, %v1095
      %v1146 = vpack.c.b16 %v1096, %v1096
      %v1147 = vpack.c.b16 %v1097, %v1097
      %v1148 = vpack.c.b16 %v1098, %v1098
      %v1149 = vpack.c.b16 %v1099, %v1099
      %v1150 = vpack.c.b16 %v1100, %v1100
      %v1151 = vpack.c.b16 %v1101, %v1101
      %v1152 = vpack.c.b16 %v1102, %v1102
      %v1153 = vpack.c.b16 %v1103, %v1103
      %v1154 = vpack.c.b16 %v1104, %v1104
      %v1155 = vpack.c.b16 %v1105, %v1105
      %v1156 = vpack.c.b16 %v1106, %v1106
      %v1157 = vpack.c.b16 %v1107, %v1107
      %v1158 = vpack.c.b16 %v1108, %v1108
      %v1159 = vpack.c.b16 %v1109, %v1109
      %v1160 = vpack.c.b16 %v1110, %v1110
      %v1161 = vpack.c.b16 %v1111, %v1111
      %v1162 = vpack.c.b16 %v1112, %v1112
      %v1163 = vpack.c.b16 %v1113, %v1113
      %v1164 = vpack.c.b16 %v1114, %v1114
      %v1165 = vpack.c.b16 %v1115, %v1115
      %v1166 = vpack.c.b16 %v1116, %v1116
      %v1167 = vpack.c.b16 %v1117, %v1117
      %v1168 = vpack.c.b16 %v1118, %v1118
      %v1169 = vpack.c.b16 %v1119, %v1119
      %v1170 = vpack.c.b16 %v1120, %v1120
      %v1171 = vpack.c.b16 %v1121, %v1121
      %v1172 = vpack.c.b16 %v1122, %v1122
      %v1173 = vpack.c.b16 %v1123, %v1123
      %v1174 = vpack.c.b16 %v1124, %v1124
      %v1175 = vpack.c.b16 %v1125, %v1125
      %v1176 = vpack.c.b16 %v1126, %v1126
      %v1177 = vpack.c.b16 %v1127, %v1127
      %v1178 = vpack.c.b16 %v1128, %v1128
      %v1179 = vpack.c.b16 %v1129, %v1129
      %1230 = vst [vmem:[%s202] sm:$0xf] %v1130
      %1231 = vst [vmem:[%s202 + $0x4] sm:$0xf] %v1131
      %1232 = vst [vmem:[%s202 + $0x8] sm:$0xf] %v1132
      %1233 = vst [vmem:[%s202 + $0xc] sm:$0xf] %v1133
      %1234 = vst [vmem:[%s202 + $0x10] sm:$0xf] %v1134
      %1235 = vst [vmem:[%s202 + $0x14] sm:$0xf] %v1135
      %1236 = vst [vmem:[%s202 + $0x18] sm:$0xf] %v1136
      %1237 = vst [vmem:[%s202 + $0x1c] sm:$0xf] %v1137
      %1238 = vst [vmem:[%s202 + $0x20] sm:$0xf] %v1138
      %1239 = vst [vmem:[%s202 + $0x24] sm:$0xf] %v1139
      %1240 = vst [vmem:[%s202 + $0x28] sm:$0xf] %v1140
      %1241 = vst [vmem:[%s202 + $0x2c] sm:$0xf] %v1141
      %1242 = vst [vmem:[%s202 + $0x30] sm:$0xf] %v1142
      %1243 = vst [vmem:[%s202 + $0x34] sm:$0xf] %v1143
      %1244 = vst [vmem:[%s202 + $0x38] sm:$0xf] %v1144
      %1245 = vst [vmem:[%s202 + $0x3c] sm:$0xf] %v1145
      %1246 = vst [vmem:[%s202 + $0x40] sm:$0xf] %v1146
      %1247 = vst [vmem:[%s202 + $0x44] sm:$0xf] %v1147
      %1248 = vst [vmem:[%s202 + $0x48] sm:$0xf] %v1148
      %1249 = vst [vmem:[%s202 + $0x4c] sm:$0xf] %v1149
      %1250 = vst [vmem:[%s202 + $0x50] sm:$0xf] %v1150
      %1251 = vst [vmem:[%s202 + $0x54] sm:$0xf] %v1151
      %1252 = vst [vmem:[%s202 + $0x58] sm:$0xf] %v1152
      %1253 = vst [vmem:[%s202 + $0x5c] sm:$0xf] %v1153
      %1254 = vst [vmem:[%s202 + $0x60] sm:$0xf] %v1154
      %1255 = vst [vmem:[%s202 + $0x64] sm:$0xf] %v1155
      %1256 = vst [vmem:[%s202 + $0x68] sm:$0xf] %v1156
      %1257 = vst [vmem:[%s202 + $0x6c] sm:$0xf] %v1157
      %1258 = vst [vmem:[%s202 + $0x70] sm:$0xf] %v1158
      %1259 = vst [vmem:[%s202 + $0x74] sm:$0xf] %v1159
      %1260 = vst [vmem:[%s202 + $0x78] sm:$0xf] %v1160
      %1261 = vst [vmem:[%s202 + $0x7c] sm:$0xf] %v1161
      %1262 = vst [vmem:[%s202 + $0x80] sm:$0xf] %v1162
      %1263 = vst [vmem:[%s202 + $0x84] sm:$0xf] %v1163
      %1264 = vst [vmem:[%s202 + $0x88] sm:$0xf] %v1164
      %1265 = vst [vmem:[%s202 + $0x8c] sm:$0xf] %v1165
      %1266 = vst [vmem:[%s202 + $0x90] sm:$0xf] %v1166
      %1267 = vst [vmem:[%s202 + $0x94] sm:$0xf] %v1167
      %1268 = vst [vmem:[%s202 + $0x98] sm:$0xf] %v1168
      %1269 = vst [vmem:[%s202 + $0x9c] sm:$0xf] %v1169
      %1270 = vst [vmem:[%s202 + $0xa0] sm:$0xf] %v1170
      %1271 = vst [vmem:[%s202 + $0xa4] sm:$0xf] %v1171
      %1272 = vst [vmem:[%s202 + $0xa8] sm:$0xf] %v1172
      %1273 = vst [vmem:[%s202 + $0xac] sm:$0xf] %v1173
      %1274 = vst [vmem:[%s202 + $0xb0] sm:$0xf] %v1174
      %1275 = vst [vmem:[%s202 + $0xb4] sm:$0xf] %v1175
      %1276 = vst [vmem:[%s202 + $0xb8] sm:$0xf] %v1176
      %1277 = vst [vmem:[%s202 + $0xbc] sm:$0xf] %v1177
      %1278 = vst [vmem:[%s202 + $0xc0] sm:$0xf] %v1178
      %1279 = vst [vmem:[%s202 + $0xc4] sm:$0xf] %v1179
      %s1280 = smul.u32 50, %s15
      %p1281 = scmp.lt.s32.totalorder %s1280, 99
      %s1282 = scalar_select %p1281, %s1280, 99
      %s1283 = smul.addr %s1282, 4
      %s1284 = scalar_lea.vmem %s4, %s1283
      // Predicated region
      $region37: #{forward.4} parent=35 // pred_check
        %p1285 = pneg %p122
      $region38: #{forward.4} parent=35 // pred_check_branch
        %1287 = sbr.rel (%p1285) target = $region40
      $region39: #{forward.4} parent=35 // pred_region
        %s1288 = smul.u32 50, %s15
      $region40: #{forward.4} parent=35 // pred_fallthru
        _
    $region36: #{forward.4} parent=5 // pred_fallthru
      _
    %p1289 = scmp.le.s32.totalorder 2, %s10
    // Predicated region
    $region41: #{forward.4} parent=5 // pred_check
      %p1290 = pneg %p1289
    $region42: #{forward.4} parent=5 // pred_check_branch
      %1292 = sbr.rel (%p1290) target = $region44
    $region43: #{forward.4} parent=5 // pred_region
      %s1293 = ssub.s32 %s10, 2
      // Predicated region
      $region45: #{forward.4} parent=43 // pred_check
        %p1294 = pneg %p128
      $region46: #{forward.4} parent=43 // pred_check_branch
        %1296 = sbr.rel (%p1294) target = $region48
      $region47: #{forward.4} parent=43 // pred_region
        %s1297 = smul.u32 50, %s16
        %p1298 = scmp.lt.s32.totalorder %s1297, 99
        %s1299 = scalar_select %p1298, %s1297, 99
        %s1300 = smul.addr %s1299, 4
        %s1301 = scalar_lea.vmem %s4, %s1300
      $region48: #{forward.4} parent=43 // pred_fallthru
        _
    $region44: #{forward.4} parent=5 // pred_fallthru
      _
  $region6: #{forward.4} parent=0 // loop_footer
    %s14 = sadd.s32 1, %s10
  $region7: #{forward.4} parent=0 // loop_footer_branch
    %9 = sbr.rel target = $region3
  $region8: #{forward.4} parent=0 // loop_exit
    _

// kernel: forward.5
$region0: #{forward.5}
  #allocation0 [shape = 'u32[]', space=smem, size = 0x4, offset = 0x4, fixed_abs, tag = 'smem constant byte address 0x4 - core index']
  #allocation1 [shape = 'u32[144,128]{1,0:T(1,128)}', space=vmem, size = 0x12000, scoped, tag = 'internal scratch']
  %s0 = inlined_call_operand.vmem [shape: bf16[208,512], index: 0, kind: input, shape index: {}]
  %s1 = inlined_call_operand.vmem [shape: bf16[512,128], index: 1, kind: input, shape index: {}]
  %s2 = inlined_call_operand.vmem [shape: f32[1,128], index: 2, kind: input, shape index: {}]
  %s3 = inlined_call_operand.vmem [shape: f32[1,128], index: 3, kind: input, shape index: {}]
  %s4 = inlined_call_operand.vmem [shape: bf16[208,128], index: 4, kind: output, shape index: {}]
  %s5 = sld [smem:[#allocation0]]
  $region49: #{forward.5} parent=0
    _
  %s7 = ssub.s32 1, %s5
  %s8 = scalar_select 0, %s7, %s5
  loop: start=0, step=1, limit=4
  $region2: #{forward.5} parent=0 // loop_pre_header
    _
  $region3: #{forward.5} parent=0 // loop_header
    %s10 = sphi 0, %s14
    %p11 = scmp.ge.s32.totalorder %s10, 4
    %s20 = sphi 0, %s22
    %s23 = sphi 0, %s20
    %s24 = sphi 0, %s23
    %s40 = sphi 0, %s24
    %s44 = sphi 0, %s44
    %s46 = sphi 0, %s44
    %s47 = sphi 0, %s46
    %s61 = sphi 0, %s47
    %s65 = sphi 0, %s65
    %s67 = sphi 0, %s65
    %s68 = sphi 0, %s67
    %s82 = sphi 0, %s68
    %s86 = sphi 0, %s86
    %s88 = sphi 0, %s86
    %s89 = sphi 0, %s88
    %s103 = sphi 0, %s89
    %s109 = sphi 0, %s111
    %s112 = sphi 0, %s109
    %s113 = sphi 0, %s112
    %s129 = sphi 0, %s113
  $region4: #{forward.5} parent=0 // loop_header_branch
    %13 = sbr.rel (%p11) target = $region8
  $region5: #{forward.5} parent=0 // loop_body
    %s15 = ssub.s32 %s10, 1
    %s16 = ssub.s32 %s10, 2
    %s17 = sadd.s32 %s10, 1
    %s18 = ssub.s32 %s10, %s17
    %p19 = scmp.eq.s32.totalorder %s18, 0
    %s21 = sadd.s32 %s20, 1
    %s22 = scalar_select %p19, %s20, %s21
    %p25 = pneg %p19
    %p26 = scmp.eq.s32.totalorder %s10, 1
    %p27 = por %p25, %p26
    %p28 = scmp.ne.s32.totalorder %s20, %s23
    %p29 = scmp.eq.s32.totalorder %s10, 0
    %p30 = por %p28, %p29
    %p31 = scmp.ne.s32.totalorder %s20, %s23
    %p32 = scmp.eq.s32.totalorder %s15, 1
    %p33 = por %p31, %p32
    %p34 = scmp.ne.s32.totalorder %s23, %s24
    %p35 = scmp.eq.s32.totalorder %s15, 0
    %p36 = por %p34, %p35
    %p37 = scmp.ne.s32.totalorder %s23, %s24
    %p38 = scmp.eq.s32.totalorder %s16, 1
    %p39 = por %p37, %p38
    %p41 = scmp.ne.s32.totalorder %s24, %s40
    %p42 = scmp.eq.s32.totalorder %s16, 0
    %p43 = por %p41, %p42
    %s45 = sadd.s32 %s44, 1
    %p48 = scmp.eq.s32.totalorder %s10, 1
    %p49 = scmp.ne.s32.totalorder %s44, %s46
    %p50 = scmp.eq.s32.totalorder %s10, 0
    %p51 = por %p49, %p50
    %p52 = scmp.ne.s32.totalorder %s44, %s46
    %p53 = scmp.eq.s32.totalorder %s15, 1
    %p54 = por %p52, %p53
    %p55 = scmp.ne.s32.totalorder %s46, %s47
    %p56 = scmp.eq.s32.totalorder %s15, 0
    %p57 = por %p55, %p56
    %p58 = scmp.ne.s32.totalorder %s46, %s47
    %p59 = scmp.eq.s32.totalorder %s16, 1
    %p60 = por %p58, %p59
    %p62 = scmp.ne.s32.totalorder %s47, %s61
    %p63 = scmp.eq.s32.totalorder %s16, 0
    %p64 = por %p62, %p63
    %s66 = sadd.s32 %s65, 1
    %p69 = scmp.eq.s32.totalorder %s10, 1
    %p70 = scmp.ne.s32.totalorder %s65, %s67
    %p71 = scmp.eq.s32.totalorder %s10, 0
    %p72 = por %p70, %p71
    %p73 = scmp.ne.s32.totalorder %s65, %s67
    %p74 = scmp.eq.s32.totalorder %s15, 1
    %p75 = por %p73, %p74
    %p76 = scmp.ne.s32.totalorder %s67, %s68
    %p77 = scmp.eq.s32.totalorder %s15, 0
    %p78 = por %p76, %p77
    %p79 = scmp.ne.s32.totalorder %s67, %s68
    %p80 = scmp.eq.s32.totalorder %s16, 1
    %p81 = por %p79, %p80
    %p83 = scmp.ne.s32.totalorder %s68, %s82
    %p84 = scmp.eq.s32.totalorder %s16, 0
    %p85 = por %p83, %p84
    %s87 = sadd.s32 %s86, 1
    %p90 = scmp.eq.s32.totalorder %s10, 1
    %p91 = scmp.ne.s32.totalorder %s86, %s88
    %p92 = scmp.eq.s32.totalorder %s10, 0
    %p93 = por %p91, %p92
    %p94 = scmp.ne.s32.totalorder %s86, %s88
    %p95 = scmp.eq.s32.totalorder %s15, 1
    %p96 = por %p94, %p95
    %p97 = scmp.ne.s32.totalorder %s88, %s89
    %p98 = scmp.eq.s32.totalorder %s15, 0
    %p99 = por %p97, %p98
    %p100 = scmp.ne.s32.totalorder %s88, %s89
    %p101 = scmp.eq.s32.totalorder %s16, 1
    %p102 = por %p100, %p101
    %p104 = scmp.ne.s32.totalorder %s89, %s103
    %p105 = scmp.eq.s32.totalorder %s16, 0
    %p106 = por %p104, %p105
    %s107 = ssub.s32 %s10, %s17
    %p108 = scmp.eq.s32.totalorder %s107, 0
    %s110 = sadd.s32 %s109, 1
    %s111 = scalar_select %p108, %s109, %s110
    %p114 = pneg %p108
    %p115 = scmp.eq.s32.totalorder %s10, 1
    %p116 = por %p114, %p115
    %p117 = scmp.ne.s32.totalorder %s109, %s112
    %p118 = scmp.eq.s32.totalorder %s10, 0
    %p119 = por %p117, %p118
    %p120 = scmp.ne.s32.totalorder %s109, %s112
    %p121 = scmp.eq.s32.totalorder %s15, 1
    %p122 = por %p120, %p121
    %p123 = scmp.ne.s32.totalorder %s112, %s113
    %p124 = scmp.eq.s32.totalorder %s15, 0
    %p125 = por %p123, %p124
    %p126 = scmp.ne.s32.totalorder %s112, %s113
    %p127 = scmp.eq.s32.totalorder %s16, 1
    %p128 = por %p126, %p127
    %p130 = scmp.ne.s32.totalorder %s113, %s129
    %p131 = scmp.eq.s32.totalorder %s16, 0
    %p132 = por %p130, %p131
    %p133 = scmp.le.s32.totalorder 1, %s10
    %p134 = scmp.lt.s32.totalorder %s10, 3
    %p135 = pnand %p133, %p134
    %p136 = pneg %p135
    // Predicated region
    $region9: #{forward.5} parent=5 // pred_check
      _
    $region10: #{forward.5} parent=5 // pred_check_branch
      %138 = sbr.rel (%p135) target = $region12
    $region11: #{forward.5} parent=5 // pred_region
      %s139 = ssub.s32 %s10, 1
      // Predicated region
      $region13: #{forward.5} parent=11 // pred_check
        %p140 = pneg %p57
      $region14: #{forward.5} parent=11 // pred_check_branch
        %142 = sbr.rel (%p140) target = $region16
      $region15: #{forward.5} parent=11 // pred_region
        _
      $region16: #{forward.5} parent=11 // pred_fallthru
        _
      // Predicated region
      $region17: #{forward.5} parent=11 // pred_check
        %p143 = pneg %p78
      $region18: #{forward.5} parent=11 // pred_check_branch
        %145 = sbr.rel (%p143) target = $region20
      $region19: #{forward.5} parent=11 // pred_region
        _
      $region20: #{forward.5} parent=11 // pred_fallthru
        _
      // Predicated region
      $region21: #{forward.5} parent=11 // pred_check
        %p146 = pneg %p99
      $region22: #{forward.5} parent=11 // pred_check_branch
        %148 = sbr.rel (%p146) target = $region24
      $region23: #{forward.5} parent=11 // pred_region
        _
      $region24: #{forward.5} parent=11 // pred_fallthru
        _
    $region12: #{forward.5} parent=5 // pred_fallthru
      _
    %p149 = scmp.lt.s32.totalorder %s10, 2
    // Predicated region
    $region25: #{forward.5} parent=5 // pred_check
      %p150 = pneg %p149
    $region26: #{forward.5} parent=5 // pred_check_branch
      %152 = sbr.rel (%p150) target = $region28
    $region27: #{forward.5} parent=5 // pred_region
      // Predicated region
      $region29: #{forward.5} parent=27 // pred_check
        %p153 = pneg %p30
      $region30: #{forward.5} parent=27 // pred_check_branch
        %155 = sbr.rel (%p153) target = $region32
      $region31: #{forward.5} parent=27 // pred_region
        %s156 = smul.u32 13, %s10
        %p157 = scmp.lt.s32.totalorder %s156, 25
        %s158 = scalar_select %p157, %s156, 25
        %s159 = smul.addr %s158, 4
        %s160 = smul.addr %s159, 4
        %s161 = scalar_lea.vmem %s0, %s160
        %s162 = smul.u32 13, %s10
      $region32: #{forward.5} parent=27 // pred_fallthru
        _
    $region28: #{forward.5} parent=5 // pred_fallthru
      _
    %p163 = scmp.le.s32.totalorder 1, %s10
    %p164 = scmp.lt.s32.totalorder %s10, 3
    %p165 = pnand %p163, %p164
    %p166 = pneg %p165
    // Predicated region
    $region33: #{forward.5} parent=5 // pred_check
      _
    $region34: #{forward.5} parent=5 // pred_check_branch
      %168 = sbr.rel (%p165) target = $region36
    $region35: #{forward.5} parent=5 // pred_region
      %s169 = ssub.s32 %s10, 1
      %s170 = smul.u32 13, %s15
      %p171 = scmp.lt.s32.totalorder %s170, 25
      %s172 = scalar_select %p171, %s170, 25
      %s173 = smul.addr %s172, 4
      %s174 = smul.addr %s173, 4
      %s175 = scalar_lea.vmem %s0, %s174
      %p176 = pneg %p36
      %p177 = pneg %p33
      %p178 = pneg %p57
      %p179 = pneg %p54
      %p180 = pneg %p78
      %p181 = pneg %p75
      %p182 = pneg %p99
      %p183 = pneg %p96
      %p184 = pneg %p125
      %p185 = pneg %p122
      %s186 = smul.u32 13, %s15
      %p187 = scmp.lt.s32.totalorder %s186, 25
      %s188 = scalar_select %p187, %s186, 25
      %s189 = smul.addr %s188, 4
      %s190 = scalar_lea.vmem %s4, %s189
      %s191 = smul.u32 13, %s15
      %p192 = scmp.lt.s32.totalorder %s191, 25
      %s193 = scalar_select %p192, %s191, 25
      %s194 = smul.addr %s193, 4
      %s195 = smul.addr %s194, 4
      %s196 = scalar_lea.vmem %s0, %s195
      %s197 = smul.u32 13, %s15
      %s198 = smul.u32 13, %s15
      %p199 = scmp.lt.s32.totalorder %s198, 25
      %s200 = scalar_select %p199, %s198, 25
      %s201 = smul.addr %s200, 4
      %s202 = scalar_lea.vmem %s4, %s201
      %s203 = smul.u32 13, %s15
      %v205 = vld [vmem:[%s196] sm:$0xff]
      %v206 = vld [vmem:[%s196 + $0x8] sm:$0xff]
      %v207 = vld [vmem:[%s196 + $0x10] sm:$0xff]
      %v208 = vld [vmem:[%s196 + $0x18] sm:$0xff]
      %v209 = vld [vmem:[%s196 + $0x20] sm:$0xff]
      %v210 = vld [vmem:[%s196 + $0x28] sm:$0xff]
      %v211 = vld [vmem:[%s196 + $0x30] sm:$0xff]
      %v212 = vld [vmem:[%s196 + $0x38] sm:$0xff]
      %v213 = vld [vmem:[%s196 + $0x40] sm:$0xff]
      %v214 = vld [vmem:[%s196 + $0x48] sm:$0xff]
      %v215 = vld [vmem:[%s196 + $0x50] sm:$0xff]
      %v216 = vld [vmem:[%s196 + $0x58] sm:$0xff]
      %v217 = vld [vmem:[%s196 + $0x60] sm:$0xff]
      %v218 = vld [vmem:[%s196 + $0x68] sm:$0xff]
      %v219 = vld [vmem:[%s196 + $0x70] sm:$0xff]
      %v220 = vld [vmem:[%s196 + $0x78] sm:$0xff]
      %v221 = vld [vmem:[%s196 + $0x80] sm:$0xff]
      %v222 = vld [vmem:[%s196 + $0x88] sm:$0xff]
      %v223 = vld [vmem:[%s196 + $0x90] sm:$0xff]
      %v224 = vld [vmem:[%s196 + $0x98] sm:$0xff]
      %v225 = vld [vmem:[%s196 + $0xa0] sm:$0xff]
      %v226 = vld [vmem:[%s196 + $0xa8] sm:$0xff]
      %v227 = vld [vmem:[%s196 + $0xb0] sm:$0xff]
      %v228 = vld [vmem:[%s196 + $0xb8] sm:$0xff]
      %v229 = vld [vmem:[%s196 + $0xc0] sm:$0xff]
      %v230 = vld [vmem:[%s196 + $0xc8] sm:$0xff]
      %v231 = vld [vmem:[%s1] sm:$0xf]
      %v232 = vld [vmem:[%s1 + $0x4] sm:$0xf]
      %v233 = vld [vmem:[%s1 + $0x8] sm:$0xf]
      %v234 = vld [vmem:[%s1 + $0xc] sm:$0xf]
      %v235 = vld [vmem:[%s1 + $0x10] sm:$0xf]
      %v236 = vld [vmem:[%s1 + $0x14] sm:$0xf]
      %v237 = vld [vmem:[%s1 + $0x18] sm:$0xf]
      %v238 = vld [vmem:[%s1 + $0x1c] sm:$0xf]
      %v239 = vld [vmem:[%s1 + $0x20] sm:$0xf]
      %v240 = vld [vmem:[%s1 + $0x24] sm:$0xf]
      %v241 = vld [vmem:[%s1 + $0x28] sm:$0xf]
      %v242 = vld [vmem:[%s1 + $0x2c] sm:$0xf]
      %v243 = vld [vmem:[%s1 + $0x30] sm:$0xf]
      %v244 = vld [vmem:[%s1 + $0x34] sm:$0xf]
      %v245 = vld [vmem:[%s1 + $0x38] sm:$0xf]
      %v246 = vld [vmem:[%s1 + $0x3c] sm:$0xf]
      %v247 = vld [vmem:[%s1 + $0x40] sm:$0xf]
      %v248 = vld [vmem:[%s1 + $0x44] sm:$0xf]
      %v249 = vld [vmem:[%s1 + $0x48] sm:$0xf]
      %v250 = vld [vmem:[%s1 + $0x4c] sm:$0xf]
      %v251 = vld [vmem:[%s1 + $0x50] sm:$0xf]
      %v252 = vld [vmem:[%s1 + $0x54] sm:$0xf]
      %v253 = vld [vmem:[%s1 + $0x58] sm:$0xf]
      %v254 = vld [vmem:[%s1 + $0x5c] sm:$0xf]
      %v255 = vld [vmem:[%s1 + $0x60] sm:$0xf]
      %v256 = vld [vmem:[%s1 + $0x64] sm:$0xf]
      %v257 = vld [vmem:[%s1 + $0x68] sm:$0xf]
      %v258 = vld [vmem:[%s1 + $0x6c] sm:$0xf]
      %v259 = vld [vmem:[%s1 + $0x70] sm:$0xf]
      %v260 = vld [vmem:[%s1 + $0x74] sm:$0xf]
      %v261 = vld [vmem:[%s1 + $0x78] sm:$0xf]
      %v262 = vld [vmem:[%s1 + $0x7c] sm:$0xf]
      %v263 = vld [vmem:[%s1 + $0x80] sm:$0xf]
      %v264 = vld [vmem:[%s1 + $0x84] sm:$0xf]
      %v265 = vld [vmem:[%s1 + $0x88] sm:$0xf]
      %v266 = vld [vmem:[%s1 + $0x8c] sm:$0xf]
      %v267 = vld [vmem:[%s1 + $0x90] sm:$0xf]
      %v268 = vld [vmem:[%s1 + $0x94] sm:$0xf]
      %v269 = vld [vmem:[%s1 + $0x98] sm:$0xf]
      %v270 = vld [vmem:[%s1 + $0x9c] sm:$0xf]
      %v271 = vld [vmem:[%s1 + $0xa0] sm:$0xf]
      %v272 = vld [vmem:[%s1 + $0xa4] sm:$0xf]
      %v273 = vld [vmem:[%s1 + $0xa8] sm:$0xf]
      %v274 = vld [vmem:[%s1 + $0xac] sm:$0xf]
      %v275 = vld [vmem:[%s1 + $0xb0] sm:$0xf]
      %v276 = vld [vmem:[%s1 + $0xb4] sm:$0xf]
      %v277 = vld [vmem:[%s1 + $0xb8] sm:$0xf]
      %v278 = vld [vmem:[%s1 + $0xbc] sm:$0xf]
      %v279 = vld [vmem:[%s1 + $0xc0] sm:$0xf]
      %v280 = vld [vmem:[%s1 + $0xc4] sm:$0xf]
      %v281 = vld [vmem:[%s1 + $0xc8] sm:$0xf]
      %v282 = vld [vmem:[%s1 + $0xcc] sm:$0xf]
      %v283 = vld [vmem:[%s1 + $0xd0] sm:$0xf]
      %v284 = vld [vmem:[%s1 + $0xd4] sm:$0xf]
      %v285 = vld [vmem:[%s1 + $0xd8] sm:$0xf]
      %v286 = vld [vmem:[%s1 + $0xdc] sm:$0xf]
      %v287 = vld [vmem:[%s1 + $0xe0] sm:$0xf]
      %v288 = vld [vmem:[%s1 + $0xe4] sm:$0xf]
      %v289 = vld [vmem:[%s1 + $0xe8] sm:$0xf]
      %v290 = vld [vmem:[%s1 + $0xec] sm:$0xf]
      %v291 = vld [vmem:[%s1 + $0xf0] sm:$0xf]
      %v292 = vld [vmem:[%s1 + $0xf4] sm:$0xf]
      %v293 = vld [vmem:[%s1 + $0xf8] sm:$0xf]
      %v294 = vld [vmem:[%s1 + $0xfc] sm:$0xf]
      %v321 = vunpack.c.l.b16 %v205
      %v322 = vunpack.c.h.b16 %v205
      %v323 = vunpack.c.l.b16 %v206
      %v324 = vunpack.c.h.b16 %v206
      %v325 = vunpack.c.l.b16 %v207
      %v326 = vunpack.c.h.b16 %v207
      %v327 = vunpack.c.l.b16 %v208
      %v328 = vunpack.c.h.b16 %v208
      %v329 = vunpack.c.l.b16 %v209
      %v330 = vunpack.c.h.b16 %v209
      %v331 = vunpack.c.l.b16 %v210
      %v332 = vunpack.c.h.b16 %v210
      %v333 = vunpack.c.l.b16 %v211
      %v334 = vunpack.c.h.b16 %v211
      %v335 = vunpack.c.l.b16 %v212
      %v336 = vunpack.c.h.b16 %v212
      %v337 = vunpack.c.l.b16 %v213
      %v338 = vunpack.c.h.b16 %v213
      %v339 = vunpack.c.l.b16 %v214
      %v340 = vunpack.c.h.b16 %v214
      %v341 = vunpack.c.l.b16 %v215
      %v342 = vunpack.c.h.b16 %v215
      %v343 = vunpack.c.l.b16 %v216
      %v344 = vunpack.c.h.b16 %v216
      %v345 = vunpack.c.l.b16 %v217
      %v346 = vunpack.c.h.b16 %v217
      %v347 = vunpack.c.l.b16 %v218
      %v348 = vunpack.c.h.b16 %v218
      %v349 = vunpack.c.l.b16 %v219
      %v350 = vunpack.c.h.b16 %v219
      %v351 = vunpack.c.l.b16 %v220
      %v352 = vunpack.c.h.b16 %v220
      %v353 = vunpack.c.l.b16 %v221
      %v354 = vunpack.c.h.b16 %v221
      %v355 = vunpack.c.l.b16 %v222
      %v356 = vunpack.c.h.b16 %v222
      %v357 = vunpack.c.l.b16 %v223
      %v358 = vunpack.c.h.b16 %v223
      %v359 = vunpack.c.l.b16 %v224
      %v360 = vunpack.c.h.b16 %v224
      %v361 = vunpack.c.l.b16 %v225
      %v362 = vunpack.c.h.b16 %v225
      %v363 = vunpack.c.l.b16 %v226
      %v364 = vunpack.c.h.b16 %v226
      %v365 = vunpack.c.l.b16 %v227
      %v366 = vunpack.c.h.b16 %v227
      %v367 = vunpack.c.l.b16 %v228
      %v368 = vunpack.c.h.b16 %v228
      %v369 = vunpack.c.l.b16 %v229
      %v370 = vunpack.c.h.b16 %v229
      %v371 = vunpack.c.l.b16 %v230
      %v372 = vunpack.c.h.b16 %v230
      %v373 = vpack.c.b16 %v325, %v321
      %v374 = vpack.c.b16 %v326, %v322
      %v375 = vpack.c.b16 %v327, %v323
      %v376 = vpack.c.b16 %v328, %v324
      %v377 = vpack.c.b16 %v333, %v329
      %v378 = vpack.c.b16 %v334, %v330
      %v379 = vpack.c.b16 %v335, %v331
      %v380 = vpack.c.b16 %v336, %v332
      %v381 = vpack.c.b16 %v341, %v337
      %v382 = vpack.c.b16 %v342, %v338
      %v383 = vpack.c.b16 %v343, %v339
      %v384 = vpack.c.b16 %v344, %v340
      %v385 = vpack.c.b16 %v349, %v345
      %v386 = vpack.c.b16 %v350, %v346
      %v387 = vpack.c.b16 %v351, %v347
      %v388 = vpack.c.b16 %v352, %v348
      %v389 = vpack.c.b16 %v357, %v353
      %v390 = vpack.c.b16 %v358, %v354
      %v391 = vpack.c.b16 %v359, %v355
      %v392 = vpack.c.b16 %v360, %v356
      %v393 = vpack.c.b16 %v365, %v361
      %v394 = vpack.c.b16 %v366, %v362
      %v395 = vpack.c.b16 %v367, %v363
      %v396 = vpack.c.b16 %v368, %v364
      %v397 = vpack.c.b16 %v369, %v369
      %v398 = vpack.c.b16 %v370, %v370
      %v399 = vpack.c.b16 %v371, %v371
      %v400 = vpack.c.b16 %v372, %v372
      %v493 = vunpack.c.l.b16 %v231
      %v494 = vunpack.c.l.b16 %v232
      %v495 = vunpack.c.l.b16 %v233
      %v496 = vunpack.c.l.b16 %v234
      %v497 = vunpack.c.l.b16 %v235
      %v498 = vunpack.c.l.b16 %v236
      %v499 = vunpack.c.l.b16 %v237
      %v500 = vunpack.c.l.b16 %v238
      %v501 = vunpack.c.l.b16 %v239
      %v502 = vunpack.c.l.b16 %v240
      %v503 = vunpack.c.l.b16 %v241
      %v504 = vunpack.c.l.b16 %v242
      %v505 = vunpack.c.l.b16 %v243
      %v506 = vunpack.c.l.b16 %v244
      %v507 = vunpack.c.l.b16 %v245
      %v508 = vunpack.c.l.b16 %v246
      %v509 = vunpack.c.l.b16 %v247
      %v510 = vunpack.c.l.b16 %v248
      %v511 = vunpack.c.l.b16 %v249
      %v512 = vunpack.c.l.b16 %v250
      %v513 = vunpack.c.l.b16 %v251
      %v514 = vunpack.c.l.b16 %v252
      %v515 = vunpack.c.l.b16 %v253
      %v516 = vunpack.c.l.b16 %v254
      %v517 = vunpack.c.l.b16 %v255
      %v518 = vunpack.c.l.b16 %v256
      %v519 = vunpack.c.l.b16 %v257
      %v520 = vunpack.c.l.b16 %v258
      %v521 = vunpack.c.l.b16 %v259
      %v522 = vunpack.c.l.b16 %v260
      %v523 = vunpack.c.l.b16 %v261
      %v524 = vunpack.c.l.b16 %v262
      %v525 = vunpack.c.l.b16 %v263
      %v526 = vunpack.c.l.b16 %v264
      %v527 = vunpack.c.l.b16 %v265
      %v528 = vunpack.c.l.b16 %v266
      %v529 = vunpack.c.l.b16 %v267
      %v530 = vunpack.c.l.b16 %v268
      %v531 = vunpack.c.l.b16 %v269
      %v532 = vunpack.c.l.b16 %v270
      %v533 = vunpack.c.l.b16 %v271
      %v534 = vunpack.c.l.b16 %v272
      %v535 = vunpack.c.l.b16 %v273
      %v536 = vunpack.c.l.b16 %v274
      %v537 = vunpack.c.l.b16 %v275
      %v538 = vunpack.c.l.b16 %v276
      %v539 = vunpack.c.l.b16 %v277
      %v540 = vunpack.c.l.b16 %v278
      %v541 = vunpack.c.l.b16 %v279
      %v542 = vunpack.c.l.b16 %v280
      %v543 = vunpack.c.l.b16 %v281
      %v544 = vunpack.c.l.b16 %v282
      %v545 = vunpack.c.l.b16 %v283
      %v546 = vunpack.c.l.b16 %v284
      %v547 = vunpack.c.l.b16 %v285
      %v548 = vunpack.c.l.b16 %v286
      %v549 = vunpack.c.l.b16 %v287
      %v550 = vunpack.c.l.b16 %v288
      %v551 = vunpack.c.l.b16 %v289
      %v552 = vunpack.c.l.b16 %v290
      %v553 = vunpack.c.l.b16 %v291
      %v554 = vunpack.c.l.b16 %v292
      %v555 = vunpack.c.l.b16 %v293
      %v556 = vunpack.c.l.b16 %v294
      %v557 = vpack.c.b16 %v494, %v493
      %v558 = vpack.c.b16 %v496, %v495
      %v559 = vpack.c.b16 %v498, %v497
      %v560 = vpack.c.b16 %v500, %v499
      %v561 = vpack.c.b16 %v502, %v501
      %v562 = vpack.c.b16 %v504, %v503
      %v563 = vpack.c.b16 %v506, %v505
      %v564 = vpack.c.b16 %v508, %v507
      %v565 = vpack.c.b16 %v510, %v509
      %v566 = vpack.c.b16 %v512, %v511
      %v567 = vpack.c.b16 %v514, %v513
      %v568 = vpack.c.b16 %v516, %v515
      %v569 = vpack.c.b16 %v518, %v517
      %v570 = vpack.c.b16 %v520, %v519
      %v571 = vpack.c.b16 %v522, %v521
      %v572 = vpack.c.b16 %v524, %v523
      %v573 = vpack.c.b16 %v526, %v525
      %v574 = vpack.c.b16 %v528, %v527
      %v575 = vpack.c.b16 %v530, %v529
      %v576 = vpack.c.b16 %v532, %v531
      %v577 = vpack.c.b16 %v534, %v533
      %v578 = vpack.c.b16 %v536, %v535
      %v579 = vpack.c.b16 %v538, %v537
      %v580 = vpack.c.b16 %v540, %v539
      %v581 = vpack.c.b16 %v542, %v541
      %v582 = vpack.c.b16 %v544, %v543
      %v583 = vpack.c.b16 %v546, %v545
      %v584 = vpack.c.b16 %v548, %v547
      %v585 = vpack.c.b16 %v550, %v549
      %v586 = vpack.c.b16 %v552, %v551
      %v587 = vpack.c.b16 %v554, %v553
      %v588 = vpack.c.b16 %v556, %v555
      %621 = vmatprep.subr.bf16.mxu0 0
      %622 = vmatpush1.bf16.msra.mxu0 %v564
      %623 = vmatprep.subr.bf16.mxu0 0
      %624 = vmatpush1.bf16.msra.mxu0 %v563
      %625 = vmatprep.subr.bf16.mxu0 0
      %626 = vmatpush1.bf16.msra.mxu0 %v562
      %627 = vmatprep.subr.bf16.mxu0 0
      %628 = vmatpush1.bf16.msra.mxu0 %v561
      %629 = vmatprep.subr.bf16.mxu0 0
      %630 = vmatpush1.bf16.msra.mxu0 %v560
      %631 = vmatprep.subr.bf16.mxu0 0
      %632 = vmatpush1.bf16.msra.mxu0 %v559
      %633 = vmatprep.subr.bf16.mxu0 0
      %634 = vmatpush1.bf16.msra.mxu0 %v558
      %635 = vmatprep.subr.bf16.mxu0 0
      %636 = vmatpush1.bf16.msra.mxu0 %v557
      %637 = vmatprep.subr.bf16.mxu0 0
      %638 = vmatpush2.bf16.msra.mxu0 %v572
      %639 = vmatprep.subr.bf16.mxu0 0
      %640 = vmatpush2.bf16.msra.mxu0 %v571
      %641 = vmatprep.subr.bf16.mxu0 0
      %642 = vmatpush2.bf16.msra.mxu0 %v570
      %643 = vmatprep.subr.bf16.mxu0 0
      %644 = vmatpush2.bf16.msra.mxu0 %v569
      %645 = vmatprep.subr.bf16.mxu0 0
      %646 = vmatpush2.bf16.msra.mxu0 %v568
      %647 = vmatprep.subr.bf16.mxu0 0
      %648 = vmatpush2.bf16.msra.mxu0 %v567
      %649 = vmatprep.subr.bf16.mxu0 0
      %650 = vmatpush2.bf16.msra.mxu0 %v566
      %651 = vmatprep.subr.bf16.mxu0 0
      %652 = vmatpush2.bf16.msra.mxu0 %v565
      %653 = vmatprep.mubr.bf16.mxu0 %v374
      %654 = vmatmul.mubr.bf16.gmra.mxu0 %v373
      %v655 = vpop.f32.mrf.mxu0
      %v656 = vadd.f32 0.0, %v655
      %v657 = vpop.f32.mrf.mxu0
      %v658 = vpop.f32.mrf.mxu0
      %v659 = vadd.f32 0.0, %v658
      %v660 = vpop.f32.mrf.mxu0
      %661 = vmatprep.mubr.bf16.mxu0 %v378
      %662 = vmatmul.mubr.bf16.gmra.mxu0 %v377
      %v663 = vpop.f32.mrf.mxu0
      %v664 = vadd.f32 0.0, %v663
      %v665 = vpop.f32.mrf.mxu0
      %v666 = vpop.f32.mrf.mxu0
      %v667 = vadd.f32 0.0, %v666
      %v668 = vpop.f32.mrf.mxu0
      %669 = vmatprep.mubr.bf16.mxu0 %v382
      %670 = vmatmul.mubr.bf16.gmra.mxu0 %v381
      %v671 = vpop.f32.mrf.mxu0
      %v672 = vadd.f32 0.0, %v671
      %v673 = vpop.f32.mrf.mxu0
      %v674 = vpop.f32.mrf.mxu0
      %v675 = vadd.f32 0.0, %v674
      %v676 = vpop.f32.mrf.mxu0
      %677 = vmatprep.mubr.bf16.mxu0 %v386
      %678 = vmatmul.mubr.bf16.gmra.mxu0 %v385
      %v679 = vpop.f32.mrf.mxu0
      %v680 = vadd.f32 0.0, %v679
      %v681 = vpop.f32.mrf.mxu0
      %v682 = vpop.f32.mrf.mxu0
      %v683 = vadd.f32 0.0, %v682
      %v684 = vpop.f32.mrf.mxu0
      %685 = vmatprep.mubr.bf16.mxu0 %v390
      %686 = vmatmul.mubr.bf16.gmra.mxu0 %v389
      %v687 = vpop.f32.mrf.mxu0
      %v688 = vadd.f32 0.0, %v687
      %v689 = vpop.f32.mrf.mxu0
      %v690 = vpop.f32.mrf.mxu0
      %v691 = vadd.f32 0.0, %v690
      %v692 = vpop.f32.mrf.mxu0
      %693 = vmatprep.mubr.bf16.mxu0 %v394
      %694 = vmatmul.mubr.bf16.gmra.mxu0 %v393
      %v695 = vpop.f32.mrf.mxu0
      %v696 = vadd.f32 0.0, %v695
      %v697 = vpop.f32.mrf.mxu0
      %v698 = vpop.f32.mrf.mxu0
      %v699 = vadd.f32 0.0, %v698
      %v700 = vpop.f32.mrf.mxu0
      %701 = vmatprep.mubr.bf16.mxu0 %v398
      %702 = vmatmul.mubr.bf16.gmra.mxu0 %v397
      %v703 = vpop.f32.mrf.mxu0
      %v704 = vadd.f32 0.0, %v703
      %v705 = vpop.f32.mrf.mxu0
      %v706 = vpop.f32.mrf.mxu0
      %v707 = vpop.f32.mrf.mxu0
      %708 = vdwg.mxu0
      %709 = vmatprep.subr.bf16.mxu0 0
      %710 = vmatpush1.bf16.msra.mxu0 %v580
      %711 = vmatprep.subr.bf16.mxu0 0
      %712 = vmatpush1.bf16.msra.mxu0 %v579
      %713 = vmatprep.subr.bf16.mxu0 0
      %714 = vmatpush1.bf16.msra.mxu0 %v578
      %715 = vmatprep.subr.bf16.mxu0 0
      %716 = vmatpush1.bf16.msra.mxu0 %v577
      %717 = vmatprep.subr.bf16.mxu0 0
      %718 = vmatpush1.bf16.msra.mxu0 %v576
      %719 = vmatprep.subr.bf16.mxu0 0
      %720 = vmatpush1.bf16.msra.mxu0 %v575
      %721 = vmatprep.subr.bf16.mxu0 0
      %722 = vmatpush1.bf16.msra.mxu0 %v574
      %723 = vmatprep.subr.bf16.mxu0 0
      %724 = vmatpush1.bf16.msra.mxu0 %v573
      %725 = vmatprep.subr.bf16.mxu0 0
      %726 = vmatpush2.bf16.msra.mxu0 %v588
      %727 = vmatprep.subr.bf16.mxu0 0
      %728 = vmatpush2.bf16.msra.mxu0 %v587
      %729 = vmatprep.subr.bf16.mxu0 0
      %730 = vmatpush2.bf16.msra.mxu0 %v586
      %731 = vmatprep.subr.bf16.mxu0 0
      %732 = vmatpush2.bf16.msra.mxu0 %v585
      %733 = vmatprep.subr.bf16.mxu0 0
      %734 = vmatpush2.bf16.msra.mxu0 %v584
      %735 = vmatprep.subr.bf16.mxu0 0
      %736 = vmatpush2.bf16.msra.mxu0 %v583
      %737 = vmatprep.subr.bf16.mxu0 0
      %738 = vmatpush2.bf16.msra.mxu0 %v582
      %739 = vmatprep.subr.bf16.mxu0 0
      %740 = vmatpush2.bf16.msra.mxu0 %v581
      %741 = vmatprep.mubr.bf16.mxu0 %v376
      %742 = vmatmul.mubr.bf16.gmra.mxu0 %v375
      %v743 = vpop.f32.mrf.mxu0
      %v744 = vadd.f32 %v656, %v743
      %v745 = vpop.f32.mrf.mxu0
      %v746 = vpop.f32.mrf.mxu0
      %v747 = vadd.f32 %v659, %v746
      %v748 = vpop.f32.mrf.mxu0
      %749 = vmatprep.mubr.bf16.mxu0 %v380
      %750 = vmatmul.mubr.bf16.gmra.mxu0 %v379
      %v751 = vpop.f32.mrf.mxu0
      %v752 = vadd.f32 %v664, %v751
      %v753 = vpop.f32.mrf.mxu0
      %v754 = vpop.f32.mrf.mxu0
      %v755 = vadd.f32 %v667, %v754
      %v756 = vpop.f32.mrf.mxu0
      %757 = vmatprep.mubr.bf16.mxu0 %v384
      %758 = vmatmul.mubr.bf16.gmra.mxu0 %v383
      %v759 = vpop.f32.mrf.mxu0
      %v760 = vadd.f32 %v672, %v759
      %v761 = vpop.f32.mrf.mxu0
      %v762 = vpop.f32.mrf.mxu0
      %v763 = vadd.f32 %v675, %v762
      %v764 = vpop.f32.mrf.mxu0
      %765 = vmatprep.mubr.bf16.mxu0 %v388
      %766 = vmatmul.mubr.bf16.gmra.mxu0 %v387
      %v767 = vpop.f32.mrf.mxu0
      %v768 = vadd.f32 %v680, %v767
      %v769 = vpop.f32.mrf.mxu0
      %v770 = vpop.f32.mrf.mxu0
      %v771 = vadd.f32 %v683, %v770
      %v772 = vpop.f32.mrf.mxu0
      %773 = vmatprep.mubr.bf16.mxu0 %v392
      %774 = vmatmul.mubr.bf16.gmra.mxu0 %v391
      %v775 = vpop.f32.mrf.mxu0
      %v776 = vadd.f32 %v688, %v775
      %v777 = vpop.f32.mrf.mxu0
      %v778 = vpop.f32.mrf.mxu0
      %v779 = vadd.f32 %v691, %v778
      %v780 = vpop.f32.mrf.mxu0
      %781 = vmatprep.mubr.bf16.mxu0 %v396
      %782 = vmatmul.mubr.bf16.gmra.mxu0 %v395
      %v783 = vpop.f32.mrf.mxu0
      %v784 = vadd.f32 %v696, %v783
      %v785 = vpop.f32.mrf.mxu0
      %v786 = vpop.f32.mrf.mxu0
      %v787 = vadd.f32 %v699, %v786
      %v788 = vpop.f32.mrf.mxu0
      %789 = vmatprep.mubr.bf16.mxu0 %v400
      %790 = vmatmul.mubr.bf16.gmra.mxu0 %v399
      %v791 = vpop.f32.mrf.mxu0
      %v792 = vadd.f32 %v704, %v791
      %v793 = vpop.f32.mrf.mxu0
      %v794 = vpop.f32.mrf.mxu0
      %v795 = vpop.f32.mrf.mxu0
      %796 = vdwg.mxu0
      %v797 = vld [vmem:[%s2] sm:$0x1]
      %v799 = vlaneseq
      %v800 = vshrl.u32 %v799, 7
      %v801 = vsub.s32 0, %v800
      %v802 = vrot.slane %v797, %v801
      %v804 = vmul.f32 %v744, %v802
      %v805 = vmul.f32 %v747, %v802
      %v806 = vmul.f32 %v752, %v802
      %v807 = vmul.f32 %v755, %v802
      %v808 = vmul.f32 %v760, %v802
      %v809 = vmul.f32 %v763, %v802
      %v810 = vmul.f32 %v768, %v802
      %v811 = vmul.f32 %v771, %v802
      %v812 = vmul.f32 %v776, %v802
      %v813 = vmul.f32 %v779, %v802
      %v814 = vmul.f32 %v784, %v802
      %v815 = vmul.f32 %v787, %v802
      %v816 = vmul.f32 %v792, %v802
      %v817 = vld [vmem:[%s3] sm:$0x1]
      %v819 = vlaneseq
      %v820 = vshrl.u32 %v819, 7
      %v821 = vsub.s32 0, %v820
      %v822 = vrot.slane %v817, %v821
      %v824 = vadd.f32 %v804, %v822
      %v825 = vadd.f32 %v805, %v822
      %v826 = vadd.f32 %v806, %v822
      %v827 = vadd.f32 %v807, %v822
      %v828 = vadd.f32 %v808, %v822
      %v829 = vadd.f32 %v809, %v822
      %v830 = vadd.f32 %v810, %v822
      %v831 = vadd.f32 %v811, %v822
      %v832 = vadd.f32 %v812, %v822
      %v833 = vadd.f32 %v813, %v822
      %v834 = vadd.f32 %v814, %v822
      %v835 = vadd.f32 %v815, %v822
      %v836 = vadd.f32 %v816, %v822
      %v837 = vmax.f32 %v824, 0.0
      %v838 = vmax.f32 %v825, 0.0
      %v839 = vmax.f32 %v826, 0.0
      %v840 = vmax.f32 %v827, 0.0
      %v841 = vmax.f32 %v828, 0.0
      %v842 = vmax.f32 %v829, 0.0
      %v843 = vmax.f32 %v830, 0.0
      %v844 = vmax.f32 %v831, 0.0
      %v845 = vmax.f32 %v832, 0.0
      %v846 = vmax.f32 %v833, 0.0
      %v847 = vmax.f32 %v834, 0.0
      %v848 = vmax.f32 %v835, 0.0
      %v849 = vmax.f32 %v836, 0.0
      %v850 = vpack.c.bf16 %v838, %v837
      %v851 = vpack.c.bf16 %v840, %v839
      %v852 = vpack.c.bf16 %v842, %v841
      %v853 = vpack.c.bf16 %v844, %v843
      %v854 = vpack.c.bf16 %v846, %v845
      %v855 = vpack.c.bf16 %v848, %v847
      %v856 = vpack.c.bf16 %v849, %v849
      %v864 = vunpack.c.l.b16 %v850
      %v865 = vunpack.c.h.b16 %v850
      %v866 = vunpack.c.l.b16 %v851
      %v867 = vunpack.c.h.b16 %v851
      %v868 = vunpack.c.l.b16 %v852
      %v869 = vunpack.c.h.b16 %v852
      %v870 = vunpack.c.l.b16 %v853
      %v871 = vunpack.c.h.b16 %v853
      %v872 = vunpack.c.l.b16 %v854
      %v873 = vunpack.c.h.b16 %v854
      %v874 = vunpack.c.l.b16 %v855
      %v875 = vunpack.c.h.b16 %v855
      %v876 = vunpack.c.l.b16 %v856
      %v877 = vpack.c.b16 %v864, %v864
      %v878 = vpack.c.b16 %v865, %v865
      %v879 = vpack.c.b16 %v866, %v866
      %v880 = vpack.c.b16 %v867, %v867
      %v881 = vpack.c.b16 %v868, %v868
      %v882 = vpack.c.b16 %v869, %v869
      %v883 = vpack.c.b16 %v870, %v870
      %v884 = vpack.c.b16 %v871, %v871
      %v885 = vpack.c.b16 %v872, %v872
      %v886 = vpack.c.b16 %v873, %v873
      %v887 = vpack.c.b16 %v874, %v874
      %v888 = vpack.c.b16 %v875, %v875
      %v889 = vpack.c.b16 %v876, %v876
      %903 = vst [vmem:[%s202] sm:$0xf] %v877
      %904 = vst [vmem:[%s202 + $0x4] sm:$0xf] %v878
      %905 = vst [vmem:[%s202 + $0x8] sm:$0xf] %v879
      %906 = vst [vmem:[%s202 + $0xc] sm:$0xf] %v880
      %907 = vst [vmem:[%s202 + $0x10] sm:$0xf] %v881
      %908 = vst [vmem:[%s202 + $0x14] sm:$0xf] %v882
      %909 = vst [vmem:[%s202 + $0x18] sm:$0xf] %v883
      %910 = vst [vmem:[%s202 + $0x1c] sm:$0xf] %v884
      %911 = vst [vmem:[%s202 + $0x20] sm:$0xf] %v885
      %912 = vst [vmem:[%s202 + $0x24] sm:$0xf] %v886
      %913 = vst [vmem:[%s202 + $0x28] sm:$0xf] %v887
      %914 = vst [vmem:[%s202 + $0x2c] sm:$0xf] %v888
      %915 = vst [vmem:[%s202 + $0x30] sm:$0xf] %v889
      %s916 = smul.u32 13, %s15
      %p917 = scmp.lt.s32.totalorder %s916, 25
      %s918 = scalar_select %p917, %s916, 25
      %s919 = smul.addr %s918, 4
      %s920 = scalar_lea.vmem %s4, %s919
      // Predicated region
      $region37: #{forward.5} parent=35 // pred_check
        %p921 = pneg %p122
      $region38: #{forward.5} parent=35 // pred_check_branch
        %923 = sbr.rel (%p921) target = $region40
      $region39: #{forward.5} parent=35 // pred_region
        %s924 = smul.u32 13, %s15
      $region40: #{forward.5} parent=35 // pred_fallthru
        _
    $region36: #{forward.5} parent=5 // pred_fallthru
      _
    %p925 = scmp.le.s32.totalorder 2, %s10
    // Predicated region
    $region41: #{forward.5} parent=5 // pred_check
      %p926 = pneg %p925
    $region42: #{forward.5} parent=5 // pred_check_branch
      %928 = sbr.rel (%p926) target = $region44
    $region43: #{forward.5} parent=5 // pred_region
      %s929 = ssub.s32 %s10, 2
      // Predicated region
      $region45: #{forward.5} parent=43 // pred_check
        %p930 = pneg %p128
      $region46: #{forward.5} parent=43 // pred_check_branch
        %932 = sbr.rel (%p930) target = $region48
      $region47: #{forward.5} parent=43 // pred_region
        %s933 = smul.u32 13, %s16
        %p934 = scmp.lt.s32.totalorder %s933, 25
        %s935 = scalar_select %p934, %s933, 25
        %s936 = smul.addr %s935, 4
        %s937 = scalar_lea.vmem %s4, %s936
      $region48: #{forward.5} parent=43 // pred_fallthru
        _
    $region44: #{forward.5} parent=5 // pred_fallthru
      _
  $region6: #{forward.5} parent=0 // loop_footer
    %s14 = sadd.s32 1, %s10
  $region7: #{forward.5} parent=0 // loop_footer_branch
    %9 = sbr.rel target = $region3
  $region8: #{forward.5} parent=0 // loop_exit
    _

// kernel: forward.6
$region0: #{forward.6}
  #allocation0 [shape = 'u32[]', space=smem, size = 0x4, offset = 0x4, fixed_abs, tag = 'smem constant byte address 0x4 - core index']
  #allocation1 [shape = 'u32[144,128]{1,0:T(1,128)}', space=vmem, size = 0x12000, scoped, tag = 'internal scratch']
  %s0 = inlined_call_operand.vmem [shape: bf16[208,576], index: 0, kind: input, shape index: {}]
  %s1 = inlined_call_operand.vmem [shape: bf16[576,128], index: 1, kind: input, shape index: {}]
  %s2 = inlined_call_operand.vmem [shape: f32[1,128], index: 2, kind: input, shape index: {}]
  %s3 = inlined_call_operand.vmem [shape: f32[1,128], index: 3, kind: input, shape index: {}]
  %s4 = inlined_call_operand.vmem [shape: bf16[208,128], index: 4, kind: output, shape index: {0}]
  %s5 = inlined_call_operand.vmem [shape: f32[208,128], index: 5, kind: output, shape index: {1}]
  %6 = xla_tuple %s4, %s5
  %s7 = sld [smem:[#allocation0]]
  $region57: #{forward.6} parent=0
    _
  %s9 = ssub.s32 1, %s7
  %s10 = scalar_select 0, %s9, %s7
  loop: start=0, step=1, limit=4
  $region2: #{forward.6} parent=0 // loop_pre_header
    _
  $region3: #{forward.6} parent=0 // loop_header
    %s12 = sphi 0, %s16
    %p13 = scmp.ge.s32.totalorder %s12, 4
    %s22 = sphi 0, %s24
    %s25 = sphi 0, %s22
    %s26 = sphi 0, %s25
    %s42 = sphi 0, %s26
    %s46 = sphi 0, %s46
    %s48 = sphi 0, %s46
    %s49 = sphi 0, %s48
    %s63 = sphi 0, %s49
    %s67 = sphi 0, %s67
    %s69 = sphi 0, %s67
    %s70 = sphi 0, %s69
    %s84 = sphi 0, %s70
    %s88 = sphi 0, %s88
    %s90 = sphi 0, %s88
    %s91 = sphi 0, %s90
    %s105 = sphi 0, %s91
    %s111 = sphi 0, %s113
    %s114 = sphi 0, %s111
    %s115 = sphi 0, %s114
    %s131 = sphi 0, %s115
    %s137 = sphi 0, %s139
    %s140 = sphi 0, %s137
    %s141 = sphi 0, %s140
    %s157 = sphi 0, %s141
  $region4: #{forward.6} parent=0 // loop_header_branch
    %15 = sbr.rel (%p13) target = $region8
  $region5: #{forward.6} parent=0 // loop_body
    %s17 = ssub.s32 %s12, 1
    %s18 = ssub.s32 %s12, 2
    %s19 = sadd.s32 %s12, 1
    %s20 = ssub.s32 %s12, %s19
    %p21 = scmp.eq.s32.totalorder %s20, 0
    %s23 = sadd.s32 %s22, 1
    %s24 = scalar_select %p21, %s22, %s23
    %p27 = pneg %p21
    %p28 = scmp.eq.s32.totalorder %s12, 1
    %p29 = por %p27, %p28
    %p30 = scmp.ne.s32.totalorder %s22, %s25
    %p31 = scmp.eq.s32.totalorder %s12, 0
    %p32 = por %p30, %p31
    %p33 = scmp.ne.s32.totalorder %s22, %s25
    %p34 = scmp.eq.s32.totalorder %s17, 1
    %p35 = por %p33, %p34
    %p36 = scmp.ne.s32.totalorder %s25, %s26
    %p37 = scmp.eq.s32.totalorder %s17, 0
    %p38 = por %p36, %p37
    %p39 = scmp.ne.s32.totalorder %s25, %s26
    %p40 = scmp.eq.s32.totalorder %s18, 1
    %p41 = por %p39, %p40
    %p43 = scmp.ne.s32.totalorder %s26, %s42
    %p44 = scmp.eq.s32.totalorder %s18, 0
    %p45 = por %p43, %p44
    %s47 = sadd.s32 %s46, 1
    %p50 = scmp.eq.s32.totalorder %s12, 1
    %p51 = scmp.ne.s32.totalorder %s46, %s48
    %p52 = scmp.eq.s32.totalorder %s12, 0
    %p53 = por %p51, %p52
    %p54 = scmp.ne.s32.totalorder %s46, %s48
    %p55 = scmp.eq.s32.totalorder %s17, 1
    %p56 = por %p54, %p55
    %p57 = scmp.ne.s32.totalorder %s48, %s49
    %p58 = scmp.eq.s32.totalorder %s17, 0
    %p59 = por %p57, %p58
    %p60 = scmp.ne.s32.totalorder %s48, %s49
    %p61 = scmp.eq.s32.totalorder %s18, 1
    %p62 = por %p60, %p61
    %p64 = scmp.ne.s32.totalorder %s49, %s63
    %p65 = scmp.eq.s32.totalorder %s18, 0
    %p66 = por %p64, %p65
    %s68 = sadd.s32 %s67, 1
    %p71 = scmp.eq.s32.totalorder %s12, 1
    %p72 = scmp.ne.s32.totalorder %s67, %s69
    %p73 = scmp.eq.s32.totalorder %s12, 0
    %p74 = por %p72, %p73
    %p75 = scmp.ne.s32.totalorder %s67, %s69
    %p76 = scmp.eq.s32.totalorder %s17, 1
    %p77 = por %p75, %p76
    %p78 = scmp.ne.s32.totalorder %s69, %s70
    %p79 = scmp.eq.s32.totalorder %s17, 0
    %p80 = por %p78, %p79
    %p81 = scmp.ne.s32.totalorder %s69, %s70
    %p82 = scmp.eq.s32.totalorder %s18, 1
    %p83 = por %p81, %p82
    %p85 = scmp.ne.s32.totalorder %s70, %s84
    %p86 = scmp.eq.s32.totalorder %s18, 0
    %p87 = por %p85, %p86
    %s89 = sadd.s32 %s88, 1
    %p92 = scmp.eq.s32.totalorder %s12, 1
    %p93 = scmp.ne.s32.totalorder %s88, %s90
    %p94 = scmp.eq.s32.totalorder %s12, 0
    %p95 = por %p93, %p94
    %p96 = scmp.ne.s32.totalorder %s88, %s90
    %p97 = scmp.eq.s32.totalorder %s17, 1
    %p98 = por %p96, %p97
    %p99 = scmp.ne.s32.totalorder %s90, %s91
    %p100 = scmp.eq.s32.totalorder %s17, 0
    %p101 = por %p99, %p100
    %p102 = scmp.ne.s32.totalorder %s90, %s91
    %p103 = scmp.eq.s32.totalorder %s18, 1
    %p104 = por %p102, %p103
    %p106 = scmp.ne.s32.totalorder %s91, %s105
    %p107 = scmp.eq.s32.totalorder %s18, 0
    %p108 = por %p106, %p107
    %s109 = ssub.s32 %s12, %s19
    %p110 = scmp.eq.s32.totalorder %s109, 0
    %s112 = sadd.s32 %s111, 1
    %s113 = scalar_select %p110, %s111, %s112
    %p116 = pneg %p110
    %p117 = scmp.eq.s32.totalorder %s12, 1
    %p118 = por %p116, %p117
    %p119 = scmp.ne.s32.totalorder %s111, %s114
    %p120 = scmp.eq.s32.totalorder %s12, 0
    %p121 = por %p119, %p120
    %p122 = scmp.ne.s32.totalorder %s111, %s114
    %p123 = scmp.eq.s32.totalorder %s17, 1
    %p124 = por %p122, %p123
    %p125 = scmp.ne.s32.totalorder %s114, %s115
    %p126 = scmp.eq.s32.totalorder %s17, 0
    %p127 = por %p125, %p126
    %p128 = scmp.ne.s32.totalorder %s114, %s115
    %p129 = scmp.eq.s32.totalorder %s18, 1
    %p130 = por %p128, %p129
    %p132 = scmp.ne.s32.totalorder %s115, %s131
    %p133 = scmp.eq.s32.totalorder %s18, 0
    %p134 = por %p132, %p133
    %s135 = ssub.s32 %s12, %s19
    %p136 = scmp.eq.s32.totalorder %s135, 0
    %s138 = sadd.s32 %s137, 1
    %s139 = scalar_select %p136, %s137, %s138
    %p142 = pneg %p136
    %p143 = scmp.eq.s32.totalorder %s12, 1
    %p144 = por %p142, %p143
    %p145 = scmp.ne.s32.totalorder %s137, %s140
    %p146 = scmp.eq.s32.totalorder %s12, 0
    %p147 = por %p145, %p146
    %p148 = scmp.ne.s32.totalorder %s137, %s140
    %p149 = scmp.eq.s32.totalorder %s17, 1
    %p150 = por %p148, %p149
    %p151 = scmp.ne.s32.totalorder %s140, %s141
    %p152 = scmp.eq.s32.totalorder %s17, 0
    %p153 = por %p151, %p152
    %p154 = scmp.ne.s32.totalorder %s140, %s141
    %p155 = scmp.eq.s32.totalorder %s18, 1
    %p156 = por %p154, %p155
    %p158 = scmp.ne.s32.totalorder %s141, %s157
    %p159 = scmp.eq.s32.totalorder %s18, 0
    %p160 = por %p158, %p159
    %p161 = scmp.le.s32.totalorder 1, %s12
    %p162 = scmp.lt.s32.totalorder %s12, 3
    %p163 = pnand %p161, %p162
    %p164 = pneg %p163
    // Predicated region
    $region9: #{forward.6} parent=5 // pred_check
      _
    $region10: #{forward.6} parent=5 // pred_check_branch
      %166 = sbr.rel (%p163) target = $region12
    $region11: #{forward.6} parent=5 // pred_region
      %s167 = ssub.s32 %s12, 1
      // Predicated region
      $region13: #{forward.6} parent=11 // pred_check
        %p168 = pneg %p59
      $region14: #{forward.6} parent=11 // pred_check_branch
        %170 = sbr.rel (%p168) target = $region16
      $region15: #{forward.6} parent=11 // pred_region
        _
      $region16: #{forward.6} parent=11 // pred_fallthru
        _
      // Predicated region
      $region17: #{forward.6} parent=11 // pred_check
        %p171 = pneg %p80
      $region18: #{forward.6} parent=11 // pred_check_branch
        %173 = sbr.rel (%p171) target = $region20
      $region19: #{forward.6} parent=11 // pred_region
        _
      $region20: #{forward.6} parent=11 // pred_fallthru
        _
      // Predicated region
      $region21: #{forward.6} parent=11 // pred_check
        %p174 = pneg %p101
      $region22: #{forward.6} parent=11 // pred_check_branch
        %176 = sbr.rel (%p174) target = $region24
      $region23: #{forward.6} parent=11 // pred_region
        _
      $region24: #{forward.6} parent=11 // pred_fallthru
        _
    $region12: #{forward.6} parent=5 // pred_fallthru
      _
    %p177 = scmp.lt.s32.totalorder %s12, 2
    // Predicated region
    $region25: #{forward.6} parent=5 // pred_check
      %p178 = pneg %p177
    $region26: #{forward.6} parent=5 // pred_check_branch
      %180 = sbr.rel (%p178) target = $region28
    $region27: #{forward.6} parent=5 // pred_region
      // Predicated region
      $region29: #{forward.6} parent=27 // pred_check
        %p181 = pneg %p32
      $region30: #{forward.6} parent=27 // pred_check_branch
        %183 = sbr.rel (%p181) target = $region32
      $region31: #{forward.6} parent=27 // pred_region
        %s184 = smul.u32 13, %s12
        %p185 = scmp.lt.s32.totalorder %s184, 25
        %s186 = scalar_select %p185, %s184, 25
        %s187 = smul.addr %s186, 5
        %s188 = smul.addr %s187, 4
        %s189 = scalar_lea.vmem %s0, %s188
        %s190 = smul.u32 13, %s12
      $region32: #{forward.6} parent=27 // pred_fallthru
        _
    $region28: #{forward.6} parent=5 // pred_fallthru
      _
    %p191 = scmp.le.s32.totalorder 1, %s12
    %p192 = scmp.lt.s32.totalorder %s12, 3
    %p193 = pnand %p191, %p192
    %p194 = pneg %p193
    // Predicated region
    $region33: #{forward.6} parent=5 // pred_check
      _
    $region34: #{forward.6} parent=5 // pred_check_branch
      %196 = sbr.rel (%p193) target = $region36
    $region35: #{forward.6} parent=5 // pred_region
      %s197 = ssub.s32 %s12, 1
      %s198 = smul.u32 13, %s17
      %p199 = scmp.lt.s32.totalorder %s198, 25
      %s200 = scalar_select %p199, %s198, 25
      %s201 = smul.addr %s200, 5
      %s202 = smul.addr %s201, 4
      %s203 = scalar_lea.vmem %s0, %s202
      %p204 = pneg %p38
      %p205 = pneg %p35
      %p206 = pneg %p59
      %p207 = pneg %p56
      %p208 = pneg %p80
      %p209 = pneg %p77
      %p210 = pneg %p101
      %p211 = pneg %p98
      %p212 = pneg %p127
      %p213 = pneg %p124
      %s214 = smul.u32 13, %s17
      %p215 = scmp.lt.s32.totalorder %s214, 25
      %s216 = scalar_select %p215, %s214, 25
      %s217 = smul.addr %s216, 4
      %s218 = scalar_lea.vmem %s4, %s217
      %p219 = pneg %p153
      %p220 = pneg %p150
      %s221 = smul.u32 13, %s17
      %p222 = scmp.lt.s32.totalorder %s221, 25
      %s223 = scalar_select %p222, %s221, 25
      %s224 = smul.addr %s223, 8
      %s225 = scalar_lea.vmem %s5, %s224
      %s226 = smul.u32 13, %s17
      %p227 = scmp.lt.s32.totalorder %s226, 25
      %s228 = scalar_select %p227, %s226, 25
      %s229 = smul.addr %s228, 5
      %s230 = smul.addr %s229, 4
      %s231 = scalar_lea.vmem %s0, %s230
      %s232 = smul.u32 13, %s17
      %s233 = smul.u32 13, %s17
      %p234 = scmp.lt.s32.totalorder %s233, 25
      %s235 = scalar_select %p234, %s233, 25
      %s236 = smul.addr %s235, 4
      %s237 = scalar_lea.vmem %s4, %s236
      %s238 = smul.u32 13, %s17
      %s239 = smul.u32 13, %s17
      %p240 = scmp.lt.s32.totalorder %s239, 25
      %s241 = scalar_select %p240, %s239, 25
      %s242 = smul.addr %s241, 8
      %s243 = scalar_lea.vmem %s5, %s242
      %s244 = smul.u32 13, %s17
      %v246 = vld [vmem:[%s231] sm:$0xff]
      %v247 = vld [vmem:[%s231 + $0x8] sm:$0xff]
      %v248 = vld [vmem:[%s231 + $0x10] sm:$0xf]
      %v249 = vld [vmem:[%s231 + $0x14] sm:$0xff]
      %v250 = vld [vmem:[%s231 + $0x1c] sm:$0xff]
      %v251 = vld [vmem:[%s231 + $0x24] sm:$0xf]
      %v252 = vld [vmem:[%s231 + $0x28] sm:$0xff]
      %v253 = vld [vmem:[%s231 + $0x30] sm:$0xff]
      %v254 = vld [vmem:[%s231 + $0x38] sm:$0xf]
      %v255 = vld [vmem:[%s231 + $0x3c] sm:$0xff]
      %v256 = vld [vmem:[%s231 + $0x44] sm:$0xff]
      %v257 = vld [vmem:[%s231 + $0x4c] sm:$0xf]
      %v258 = vld [vmem:[%s231 + $0x50] sm:$0xff]
      %v259 = vld [vmem:[%s231 + $0x58] sm:$0xff]
      %v260 = vld [vmem:[%s231 + $0x60] sm:$0xf]
      %v261 = vld [vmem:[%s231 + $0x64] sm:$0xff]
      %v262 = vld [vmem:[%s231 + $0x6c] sm:$0xff]
      %v263 = vld [vmem:[%s231 + $0x74] sm:$0xf]
      %v264 = vld [vmem:[%s231 + $0x78] sm:$0xff]
      %v265 = vld [vmem:[%s231 + $0x80] sm:$0xff]
      %v266 = vld [vmem:[%s231 + $0x88] sm:$0xf]
      %v267 = vld [vmem:[%s231 + $0x8c] sm:$0xff]
      %v268 = vld [vmem:[%s231 + $0x94] sm:$0xff]
      %v269 = vld [vmem:[%s231 + $0x9c] sm:$0xf]
      %v270 = vld [vmem:[%s231 + $0xa0] sm:$0xff]
      %v271 = vld [vmem:[%s231 + $0xa8] sm:$0xff]
      %v272 = vld [vmem:[%s231 + $0xb0] sm:$0xf]
      %v273 = vld [vmem:[%s231 + $0xb4] sm:$0xff]
      %v274 = vld [vmem:[%s231 + $0xbc] sm:$0xff]
      %v275 = vld [vmem:[%s231 + $0xc4] sm:$0xf]
      %v276 = vld [vmem:[%s231 + $0xc8] sm:$0xff]
      %v277 = vld [vmem:[%s231 + $0xd0] sm:$0xff]
      %v278 = vld [vmem:[%s231 + $0xd8] sm:$0xf]
      %v279 = vld [vmem:[%s231 + $0xdc] sm:$0xff]
      %v280 = vld [vmem:[%s231 + $0xe4] sm:$0xff]
      %v281 = vld [vmem:[%s231 + $0xec] sm:$0xf]
      %v282 = vld [vmem:[%s231 + $0xf0] sm:$0xff]
      %v283 = vld [vmem:[%s231 + $0xf8] sm:$0xff]
      %v284 = vld [vmem:[%s231 + $0x100] sm:$0xf]
      %v285 = vld [vmem:[%s1] sm:$0xf]
      %v286 = vld [vmem:[%s1 + $0x4] sm:$0xf]
      %v287 = vld [vmem:[%s1 + $0x8] sm:$0xf]
      %v288 = vld [vmem:[%s1 + $0xc] sm:$0xf]
      %v289 = vld [vmem:[%s1 + $0x10] sm:$0xf]
      %v290 = vld [vmem:[%s1 + $0x14] sm:$0xf]
      %v291 = vld [vmem:[%s1 + $0x18] sm:$0xf]
      %v292 = vld [vmem:[%s1 + $0x1c] sm:$0xf]
      %v293 = vld [vmem:[%s1 + $0x20] sm:$0xf]
      %v294 = vld [vmem:[%s1 + $0x24] sm:$0xf]
      %v295 = vld [vmem:[%s1 + $0x28] sm:$0xf]
      %v296 = vld [vmem:[%s1 + $0x2c] sm:$0xf]
      %v297 = vld [vmem:[%s1 + $0x30] sm:$0xf]
      %v298 = vld [vmem:[%s1 + $0x34] sm:$0xf]
      %v299 = vld [vmem:[%s1 + $0x38] sm:$0xf]
      %v300 = vld [vmem:[%s1 + $0x3c] sm:$0xf]
      %v301 = vld [vmem:[%s1 + $0x40] sm:$0xf]
      %v302 = vld [vmem:[%s1 + $0x44] sm:$0xf]
      %v303 = vld [vmem:[%s1 + $0x48] sm:$0xf]
      %v304 = vld [vmem:[%s1 + $0x4c] sm:$0xf]
      %v305 = vld [vmem:[%s1 + $0x50] sm:$0xf]
      %v306 = vld [vmem:[%s1 + $0x54] sm:$0xf]
      %v307 = vld [vmem:[%s1 + $0x58] sm:$0xf]
      %v308 = vld [vmem:[%s1 + $0x5c] sm:$0xf]
      %v309 = vld [vmem:[%s1 + $0x60] sm:$0xf]
      %v310 = vld [vmem:[%s1 + $0x64] sm:$0xf]
      %v311 = vld [vmem:[%s1 + $0x68] sm:$0xf]
      %v312 = vld [vmem:[%s1 + $0x6c] sm:$0xf]
      %v313 = vld [vmem:[%s1 + $0x70] sm:$0xf]
      %v314 = vld [vmem:[%s1 + $0x74] sm:$0xf]
      %v315 = vld [vmem:[%s1 + $0x78] sm:$0xf]
      %v316 = vld [vmem:[%s1 + $0x7c] sm:$0xf]
      %v317 = vld [vmem:[%s1 + $0x80] sm:$0xf]
      %v318 = vld [vmem:[%s1 + $0x84] sm:$0xf]
      %v319 = vld [vmem:[%s1 + $0x88] sm:$0xf]
      %v320 = vld [vmem:[%s1 + $0x8c] sm:$0xf]
      %v321 = vld [vmem:[%s1 + $0x90] sm:$0xf]
      %v322 = vld [vmem:[%s1 + $0x94] sm:$0xf]
      %v323 = vld [vmem:[%s1 + $0x98] sm:$0xf]
      %v324 = vld [vmem:[%s1 + $0x9c] sm:$0xf]
      %v325 = vld [vmem:[%s1 + $0xa0] sm:$0xf]
      %v326 = vld [vmem:[%s1 + $0xa4] sm:$0xf]
      %v327 = vld [vmem:[%s1 + $0xa8] sm:$0xf]
      %v328 = vld [vmem:[%s1 + $0xac] sm:$0xf]
      %v329 = vld [vmem:[%s1 + $0xb0] sm:$0xf]
      %v330 = vld [vmem:[%s1 + $0xb4] sm:$0xf]
      %v331 = vld [vmem:[%s1 + $0xb8] sm:$0xf]
      %v332 = vld [vmem:[%s1 + $0xbc] sm:$0xf]
      %v333 = vld [vmem:[%s1 + $0xc0] sm:$0xf]
      %v334 = vld [vmem:[%s1 + $0xc4] sm:$0xf]
      %v335 = vld [vmem:[%s1 + $0xc8] sm:$0xf]
      %v336 = vld [vmem:[%s1 + $0xcc] sm:$0xf]
      %v337 = vld [vmem:[%s1 + $0xd0] sm:$0xf]
      %v338 = vld [vmem:[%s1 + $0xd4] sm:$0xf]
      %v339 = vld [vmem:[%s1 + $0xd8] sm:$0xf]
      %v340 = vld [vmem:[%s1 + $0xdc] sm:$0xf]
      %v341 = vld [vmem:[%s1 + $0xe0] sm:$0xf]
      %v342 = vld [vmem:[%s1 + $0xe4] sm:$0xf]
      %v343 = vld [vmem:[%s1 + $0xe8] sm:$0xf]
      %v344 = vld [vmem:[%s1 + $0xec] sm:$0xf]
      %v345 = vld [vmem:[%s1 + $0xf0] sm:$0xf]
      %v346 = vld [vmem:[%s1 + $0xf4] sm:$0xf]
      %v347 = vld [vmem:[%s1 + $0xf8] sm:$0xf]
      %v348 = vld [vmem:[%s1 + $0xfc] sm:$0xf]
      %v349 = vld [vmem:[%s1 + $0x100] sm:$0xf]
      %v350 = vld [vmem:[%s1 + $0x104] sm:$0xf]
      %v351 = vld [vmem:[%s1 + $0x108] sm:$0xf]
      %v352 = vld [vmem:[%s1 + $0x10c] sm:$0xf]
      %v353 = vld [vmem:[%s1 + $0x110] sm:$0xf]
      %v354 = vld [vmem:[%s1 + $0x114] sm:$0xf]
      %v355 = vld [vmem:[%s1 + $0x118] sm:$0xf]
      %v356 = vld [vmem:[%s1 + $0x11c] sm:$0xf]
      %v396 = vunpack.c.l.b16 %v246
      %v397 = vunpack.c.h.b16 %v246
      %v398 = vunpack.c.l.b16 %v247
      %v399 = vunpack.c.h.b16 %v247
      %v400 = vunpack.c.l.b16 %v248
      %v401 = vunpack.c.l.b16 %v249
      %v402 = vunpack.c.h.b16 %v249
      %v403 = vunpack.c.l.b16 %v250
      %v404 = vunpack.c.h.b16 %v250
      %v405 = vunpack.c.l.b16 %v251
      %v406 = vunpack.c.l.b16 %v252
      %v407 = vunpack.c.h.b16 %v252
      %v408 = vunpack.c.l.b16 %v253
      %v409 = vunpack.c.h.b16 %v253
      %v410 = vunpack.c.l.b16 %v254
      %v411 = vunpack.c.l.b16 %v255
      %v412 = vunpack.c.h.b16 %v255
      %v413 = vunpack.c.l.b16 %v256
      %v414 = vunpack.c.h.b16 %v256
      %v415 = vunpack.c.l.b16 %v257
      %v416 = vunpack.c.l.b16 %v258
      %v417 = vunpack.c.h.b16 %v258
      %v418 = vunpack.c.l.b16 %v259
      %v419 = vunpack.c.h.b16 %v259
      %v420 = vunpack.c.l.b16 %v260
      %v421 = vunpack.c.l.b16 %v261
      %v422 = vunpack.c.h.b16 %v261
      %v423 = vunpack.c.l.b16 %v262
      %v424 = vunpack.c.h.b16 %v262
      %v425 = vunpack.c.l.b16 %v263
      %v426 = vunpack.c.l.b16 %v264
      %v427 = vunpack.c.h.b16 %v264
      %v428 = vunpack.c.l.b16 %v265
      %v429 = vunpack.c.h.b16 %v265
      %v430 = vunpack.c.l.b16 %v266
      %v431 = vunpack.c.l.b16 %v267
      %v432 = vunpack.c.h.b16 %v267
      %v433 = vunpack.c.l.b16 %v268
      %v434 = vunpack.c.h.b16 %v268
      %v435 = vunpack.c.l.b16 %v269
      %v436 = vunpack.c.l.b16 %v270
      %v437 = vunpack.c.h.b16 %v270
      %v438 = vunpack.c.l.b16 %v271
      %v439 = vunpack.c.h.b16 %v271
      %v440 = vunpack.c.l.b16 %v272
      %v441 = vunpack.c.l.b16 %v273
      %v442 = vunpack.c.h.b16 %v273
      %v443 = vunpack.c.l.b16 %v274
      %v444 = vunpack.c.h.b16 %v274
      %v445 = vunpack.c.l.b16 %v275
      %v446 = vunpack.c.l.b16 %v276
      %v447 = vunpack.c.h.b16 %v276
      %v448 = vunpack.c.l.b16 %v277
      %v449 = vunpack.c.h.b16 %v277
      %v450 = vunpack.c.l.b16 %v278
      %v451 = vunpack.c.l.b16 %v279
      %v452 = vunpack.c.h.b16 %v279
      %v453 = vunpack.c.l.b16 %v280
      %v454 = vunpack.c.h.b16 %v280
      %v455 = vunpack.c.l.b16 %v281
      %v456 = vunpack.c.l.b16 %v282
      %v457 = vunpack.c.h.b16 %v282
      %v458 = vunpack.c.l.b16 %v283
      %v459 = vunpack.c.h.b16 %v283
      %v460 = vunpack.c.l.b16 %v284
      %v461 = vpack.c.b16 %v401, %v396
      %v462 = vpack.c.b16 %v402, %v397
      %v463 = vpack.c.b16 %v403, %v398
      %v464 = vpack.c.b16 %v404, %v399
      %v465 = vpack.c.b16 %v405, %v400
      %v466 = vpack.c.b16 %v411, %v406
      %v467 = vpack.c.b16 %v412, %v407
      %v468 = vpack.c.b16 %v413, %v408
      %v469 = vpack.c.b16 %v414, %v409
      %v470 = vpack.c.b16 %v415, %v410
      %v471 = vpack.c.b16 %v421, %v416
      %v472 = vpack.c.b16 %v422, %v417
      %v473 = vpack.c.b16 %v423, %v418
      %v474 = vpack.c.b16 %v424, %v419
      %v475 = vpack.c.b16 %v425, %v420
      %v476 = vpack.c.b16 %v431, %v426
      %v477 = vpack.c.b16 %v432, %v427
      %v478 = vpack.c.b16 %v433, %v428
      %v479 = vpack.c.b16 %v434, %v429
      %v480 = vpack.c.b16 %v435, %v430
      %v481 = vpack.c.b16 %v441, %v436
      %v482 = vpack.c.b16 %v442, %v437
      %v483 = vpack.c.b16 %v443, %v438
      %v484 = vpack.c.b16 %v444, %v439
      %v485 = vpack.c.b16 %v445, %v440
      %v486 = vpack.c.b16 %v451, %v446
      %v487 = vpack.c.b16 %v452, %v447
      %v488 = vpack.c.b16 %v453, %v448
      %v489 = vpack.c.b16 %v454, %v449
      %v490 = vpack.c.b16 %v455, %v450
      %v491 = vpack.c.b16 %v456, %v456
      %v492 = vpack.c.b16 %v457, %v457
      %v493 = vpack.c.b16 %v458, %v458
      %v494 = vpack.c.b16 %v459, %v459
      %v495 = vpack.c.b16 %v460, %v460
      %v596 = vunpack.c.l.b16 %v285
      %v597 = vunpack.c.l.b16 %v286
      %v598 = vunpack.c.l.b16 %v287
      %v599 = vunpack.c.l.b16 %v288
      %v600 = vunpack.c.l.b16 %v289
      %v601 = vunpack.c.l.b16 %v290
      %v602 = vunpack.c.l.b16 %v291
      %v603 = vunpack.c.l.b16 %v292
      %v604 = vunpack.c.l.b16 %v293
      %v605 = vunpack.c.l.b16 %v294
      %v606 = vunpack.c.l.b16 %v295
      %v607 = vunpack.c.l.b16 %v296
      %v608 = vunpack.c.l.b16 %v297
      %v609 = vunpack.c.l.b16 %v298
      %v610 = vunpack.c.l.b16 %v299
      %v611 = vunpack.c.l.b16 %v300
      %v612 = vunpack.c.l.b16 %v301
      %v613 = vunpack.c.l.b16 %v302
      %v614 = vunpack.c.l.b16 %v303
      %v615 = vunpack.c.l.b16 %v304
      %v616 = vunpack.c.l.b16 %v305
      %v617 = vunpack.c.l.b16 %v306
      %v618 = vunpack.c.l.b16 %v307
      %v619 = vunpack.c.l.b16 %v308
      %v620 = vunpack.c.l.b16 %v309
      %v621 = vunpack.c.l.b16 %v310
      %v622 = vunpack.c.l.b16 %v311
      %v623 = vunpack.c.l.b16 %v312
      %v624 = vunpack.c.l.b16 %v313
      %v625 = vunpack.c.l.b16 %v314
      %v626 = vunpack.c.l.b16 %v315
      %v627 = vunpack.c.l.b16 %v316
      %v628 = vunpack.c.l.b16 %v317
      %v629 = vunpack.c.l.b16 %v318
      %v630 = vunpack.c.l.b16 %v319
      %v631 = vunpack.c.l.b16 %v320
      %v632 = vunpack.c.l.b16 %v321
      %v633 = vunpack.c.l.b16 %v322
      %v634 = vunpack.c.l.b16 %v323
      %v635 = vunpack.c.l.b16 %v324
      %v636 = vunpack.c.l.b16 %v325
      %v637 = vunpack.c.l.b16 %v326
      %v638 = vunpack.c.l.b16 %v327
      %v639 = vunpack.c.l.b16 %v328
      %v640 = vunpack.c.l.b16 %v329
      %v641 = vunpack.c.l.b16 %v330
      %v642 = vunpack.c.l.b16 %v331
      %v643 = vunpack.c.l.b16 %v332
      %v644 = vunpack.c.l.b16 %v333
      %v645 = vunpack.c.l.b16 %v334
      %v646 = vunpack.c.l.b16 %v335
      %v647 = vunpack.c.l.b16 %v336
      %v648 = vunpack.c.l.b16 %v337
      %v649 = vunpack.c.l.b16 %v338
      %v650 = vunpack.c.l.b16 %v339
      %v651 = vunpack.c.l.b16 %v340
      %v652 = vunpack.c.l.b16 %v341
      %v653 = vunpack.c.l.b16 %v342
      %v654 = vunpack.c.l.b16 %v343
      %v655 = vunpack.c.l.b16 %v344
      %v656 = vunpack.c.l.b16 %v345
      %v657 = vunpack.c.l.b16 %v346
      %v658 = vunpack.c.l.b16 %v347
      %v659 = vunpack.c.l.b16 %v348
      %v660 = vunpack.c.l.b16 %v349
      %v661 = vunpack.c.l.b16 %v350
      %v662 = vunpack.c.l.b16 %v351
      %v663 = vunpack.c.l.b16 %v352
      %v664 = vunpack.c.l.b16 %v353
      %v665 = vunpack.c.l.b16 %v354
      %v666 = vunpack.c.l.b16 %v355
      %v667 = vunpack.c.l.b16 %v356
      %v668 = vpack.c.b16 %v597, %v596
      %v669 = vpack.c.b16 %v599, %v598
      %v670 = vpack.c.b16 %v601, %v600
      %v671 = vpack.c.b16 %v603, %v602
      %v672 = vpack.c.b16 %v605, %v604
      %v673 = vpack.c.b16 %v607, %v606
      %v674 = vpack.c.b16 %v609, %v608
      %v675 = vpack.c.b16 %v611, %v610
      %v676 = vpack.c.b16 %v613, %v612
      %v677 = vpack.c.b16 %v615, %v614
      %v678 = vpack.c.b16 %v617, %v616
      %v679 = vpack.c.b16 %v619, %v618
      %v680 = vpack.c.b16 %v621, %v620
      %v681 = vpack.c.b16 %v623, %v622
      %v682 = vpack.c.b16 %v625, %v624
      %v683 = vpack.c.b16 %v627, %v626
      %v684 = vpack.c.b16 %v629, %v628
      %v685 = vpack.c.b16 %v631, %v630
      %v686 = vpack.c.b16 %v633, %v632
      %v687 = vpack.c.b16 %v635, %v634
      %v688 = vpack.c.b16 %v637, %v636
      %v689 = vpack.c.b16 %v639, %v638
      %v690 = vpack.c.b16 %v641, %v640
      %v691 = vpack.c.b16 %v643, %v642
      %v692 = vpack.c.b16 %v645, %v644
      %v693 = vpack.c.b16 %v647, %v646
      %v694 = vpack.c.b16 %v649, %v648
      %v695 = vpack.c.b16 %v651, %v650
      %v696 = vpack.c.b16 %v653, %v652
      %v697 = vpack.c.b16 %v655, %v654
      %v698 = vpack.c.b16 %v657, %v656
      %v699 = vpack.c.b16 %v659, %v658
      %v700 = vpack.c.b16 %v661, %v660
      %v701 = vpack.c.b16 %v663, %v662
      %v702 = vpack.c.b16 %v665, %v664
      %v703 = vpack.c.b16 %v667, %v666
      %vm740 = vcmask 523264
      %v742 = vsel %vm740, %v465, 0
      %v745 = vsel %vm740, %v470, 0
      %v748 = vsel %vm740, %v475, 0
      %v751 = vsel %vm740, %v480, 0
      %v754 = vsel %vm740, %v485, 0
      %v757 = vsel %vm740, %v490, 0
      %v760 = vsel %vm740, %v495, 0
      %762 = vmatprep.subr.bf16.mxu0 0
      %763 = vmatpush1.bf16.msra.mxu0 %v675
      %764 = vmatprep.subr.bf16.mxu0 0
      %765 = vmatpush1.bf16.msra.mxu0 %v674
      %766 = vmatprep.subr.bf16.mxu0 0
      %767 = vmatpush1.bf16.msra.mxu0 %v673
      %768 = vmatprep.subr.bf16.mxu0 0
      %769 = vmatpush1.bf16.msra.mxu0 %v672
      %770 = vmatprep.subr.bf16.mxu0 0
      %771 = vmatpush1.bf16.msra.mxu0 %v671
      %772 = vmatprep.subr.bf16.mxu0 0
      %773 = vmatpush1.bf16.msra.mxu0 %v670
      %774 = vmatprep.subr.bf16.mxu0 0
      %775 = vmatpush1.bf16.msra.mxu0 %v669
      %776 = vmatprep.subr.bf16.mxu0 0
      %777 = vmatpush1.bf16.msra.mxu0 %v668
      %778 = vmatprep.subr.bf16.mxu0 0
      %779 = vmatpush2.bf16.msra.mxu0 %v683
      %780 = vmatprep.subr.bf16.mxu0 0
      %781 = vmatpush2.bf16.msra.mxu0 %v682
      %782 = vmatprep.subr.bf16.mxu0 0
      %783 = vmatpush2.bf16.msra.mxu0 %v681
      %784 = vmatprep.subr.bf16.mxu0 0
      %785 = vmatpush2.bf16.msra.mxu0 %v680
      %786 = vmatprep.subr.bf16.mxu0 0
      %787 = vmatpush2.bf16.msra.mxu0 %v679
      %788 = vmatprep.subr.bf16.mxu0 0
      %789 = vmatpush2.bf16.msra.mxu0 %v678
      %790 = vmatprep.subr.bf16.mxu0 0
      %791 = vmatpush2.bf16.msra.mxu0 %v677
      %792 = vmatprep.subr.bf16.mxu0 0
      %793 = vmatpush2.bf16.msra.mxu0 %v676
      %794 = vmatprep.mubr.bf16.mxu0 %v462
      %795 = vmatmul.mubr.bf16.gmra.mxu0 %v461
      %v796 = vpop.f32.mrf.mxu0
      %v797 = vadd.f32 0.0, %v796
      %v798 = vpop.f32.mrf.mxu0
      %v799 = vpop.f32.mrf.mxu0
      %v800 = vadd.f32 0.0, %v799
      %v801 = vpop.f32.mrf.mxu0
      %802 = vmatprep.mubr.bf16.mxu0 %v467
      %803 = vmatmul.mubr.bf16.gmra.mxu0 %v466
      %v804 = vpop.f32.mrf.mxu0
      %v805 = vadd.f32 0.0, %v804
      %v806 = vpop.f32.mrf.mxu0
      %v807 = vpop.f32.mrf.mxu0
      %v808 = vadd.f32 0.0, %v807
      %v809 = vpop.f32.mrf.mxu0
      %810 = vmatprep.mubr.bf16.mxu0 %v472
      %811 = vmatmul.mubr.bf16.gmra.mxu0 %v471
      %v812 = vpop.f32.mrf.mxu0
      %v813 = vadd.f32 0.0, %v812
      %v814 = vpop.f32.mrf.mxu0
      %v815 = vpop.f32.mrf.mxu0
      %v816 = vadd.f32 0.0, %v815
      %v817 = vpop.f32.mrf.mxu0
      %818 = vmatprep.mubr.bf16.mxu0 %v477
      %819 = vmatmul.mubr.bf16.gmra.mxu0 %v476
      %v820 = vpop.f32.mrf.mxu0
      %v821 = vadd.f32 0.0, %v820
      %v822 = vpop.f32.mrf.mxu0
      %v823 = vpop.f32.mrf.mxu0
      %v824 = vadd.f32 0.0, %v823
      %v825 = vpop.f32.mrf.mxu0
      %826 = vmatprep.mubr.bf16.mxu0 %v482
      %827 = vmatmul.mubr.bf16.gmra.mxu0 %v481
      %v828 = vpop.f32.mrf.mxu0
      %v829 = vadd.f32 0.0, %v828
      %v830 = vpop.f32.mrf.mxu0
      %v831 = vpop.f32.mrf.mxu0
      %v832 = vadd.f32 0.0, %v831
      %v833 = vpop.f32.mrf.mxu0
      %834 = vmatprep.mubr.bf16.mxu0 %v487
      %835 = vmatmul.mubr.bf16.gmra.mxu0 %v486
      %v836 = vpop.f32.mrf.mxu0
      %v837 = vadd.f32 0.0, %v836
      %v838 = vpop.f32.mrf.mxu0
      %v839 = vpop.f32.mrf.mxu0
      %v840 = vadd.f32 0.0, %v839
      %v841 = vpop.f32.mrf.mxu0
      %842 = vmatprep.mubr.bf16.mxu0 %v492
      %843 = vmatmul.mubr.bf16.gmra.mxu0 %v491
      %v844 = vpop.f32.mrf.mxu0
      %v845 = vadd.f32 0.0, %v844
      %v846 = vpop.f32.mrf.mxu0
      %v847 = vpop.f32.mrf.mxu0
      %v848 = vpop.f32.mrf.mxu0
      %849 = vdwg.mxu0
      %850 = vmatprep.subr.bf16.mxu0 0
      %851 = vmatpush1.bf16.msra.mxu0 %v691
      %852 = vmatprep.subr.bf16.mxu0 0
      %853 = vmatpush1.bf16.msra.mxu0 %v690
      %854 = vmatprep.subr.bf16.mxu0 0
      %855 = vmatpush1.bf16.msra.mxu0 %v689
      %856 = vmatprep.subr.bf16.mxu0 0
      %857 = vmatpush1.bf16.msra.mxu0 %v688
      %858 = vmatprep.subr.bf16.mxu0 0
      %859 = vmatpush1.bf16.msra.mxu0 %v687
      %860 = vmatprep.subr.bf16.mxu0 0
      %861 = vmatpush1.bf16.msra.mxu0 %v686
      %862 = vmatprep.subr.bf16.mxu0 0
      %863 = vmatpush1.bf16.msra.mxu0 %v685
      %864 = vmatprep.subr.bf16.mxu0 0
      %865 = vmatpush1.bf16.msra.mxu0 %v684
      %866 = vmatprep.subr.bf16.mxu0 0
      %867 = vmatpush2.bf16.msra.mxu0 %v699
      %868 = vmatprep.subr.bf16.mxu0 0
      %869 = vmatpush2.bf16.msra.mxu0 %v698
      %870 = vmatprep.subr.bf16.mxu0 0
      %871 = vmatpush2.bf16.msra.mxu0 %v697
      %872 = vmatprep.subr.bf16.mxu0 0
      %873 = vmatpush2.bf16.msra.mxu0 %v696
      %874 = vmatprep.subr.bf16.mxu0 0
      %875 = vmatpush2.bf16.msra.mxu0 %v695
      %876 = vmatprep.subr.bf16.mxu0 0
      %877 = vmatpush2.bf16.msra.mxu0 %v694
      %878 = vmatprep.subr.bf16.mxu0 0
      %879 = vmatpush2.bf16.msra.mxu0 %v693
      %880 = vmatprep.subr.bf16.mxu0 0
      %881 = vmatpush2.bf16.msra.mxu0 %v692
      %882 = vmatprep.mubr.bf16.mxu0 %v464
      %883 = vmatmul.mubr.bf16.gmra.mxu0 %v463
      %v884 = vpop.f32.mrf.mxu0
      %v885 = vadd.f32 %v797, %v884
      %v886 = vpop.f32.mrf.mxu0
      %v887 = vpop.f32.mrf.mxu0
      %v888 = vadd.f32 %v800, %v887
      %v889 = vpop.f32.mrf.mxu0
      %890 = vmatprep.mubr.bf16.mxu0 %v469
      %891 = vmatmul.mubr.bf16.gmra.mxu0 %v468
      %v892 = vpop.f32.mrf.mxu0
      %v893 = vadd.f32 %v805, %v892
      %v894 = vpop.f32.mrf.mxu0
      %v895 = vpop.f32.mrf.mxu0
      %v896 = vadd.f32 %v808, %v895
      %v897 = vpop.f32.mrf.mxu0
      %898 = vmatprep.mubr.bf16.mxu0 %v474
      %899 = vmatmul.mubr.bf16.gmra.mxu0 %v473
      %v900 = vpop.f32.mrf.mxu0
      %v901 = vadd.f32 %v813, %v900
      %v902 = vpop.f32.mrf.mxu0
      %v903 = vpop.f32.mrf.mxu0
      %v904 = vadd.f32 %v816, %v903
      %v905 = vpop.f32.mrf.mxu0
      %906 = vmatprep.mubr.bf16.mxu0 %v479
      %907 = vmatmul.mubr.bf16.gmra.mxu0 %v478
      %v908 = vpop.f32.mrf.mxu0
      %v909 = vadd.f32 %v821, %v908
      %v910 = vpop.f32.mrf.mxu0
      %v911 = vpop.f32.mrf.mxu0
      %v912 = vadd.f32 %v824, %v911
      %v913 = vpop.f32.mrf.mxu0
      %914 = vmatprep.mubr.bf16.mxu0 %v484
      %915 = vmatmul.mubr.bf16.gmra.mxu0 %v483
      %v916 = vpop.f32.mrf.mxu0
      %v917 = vadd.f32 %v829, %v916
      %v918 = vpop.f32.mrf.mxu0
      %v919 = vpop.f32.mrf.mxu0
      %v920 = vadd.f32 %v832, %v919
      %v921 = vpop.f32.mrf.mxu0
      %922 = vmatprep.mubr.bf16.mxu0 %v489
      %923 = vmatmul.mubr.bf16.gmra.mxu0 %v488
      %v924 = vpop.f32.mrf.mxu0
      %v925 = vadd.f32 %v837, %v924
      %v926 = vpop.f32.mrf.mxu0
      %v927 = vpop.f32.mrf.mxu0
      %v928 = vadd.f32 %v840, %v927
      %v929 = vpop.f32.mrf.mxu0
      %930 = vmatprep.mubr.bf16.mxu0 %v494
      %931 = vmatmul.mubr.bf16.gmra.mxu0 %v493
      %v932 = vpop.f32.mrf.mxu0
      %v933 = vadd.f32 %v845, %v932
      %v934 = vpop.f32.mrf.mxu0
      %v935 = vpop.f32.mrf.mxu0
      %v936 = vpop.f32.mrf.mxu0
      %937 = vdwg.mxu0
      %938 = vmatprep.subr.bf16.mxu0 0
      %939 = vmatpush1.bf16.msra.mxu0 0
      %940 = vmatprep.subr.bf16.mxu0 0
      %941 = vmatpush1.bf16.msra.mxu0 0
      %942 = vmatprep.subr.bf16.mxu0 0
      %943 = vmatpush1.bf16.msra.mxu0 0
      %944 = vmatprep.subr.bf16.mxu0 0
      %945 = vmatpush1.bf16.msra.mxu0 0
      %946 = vmatprep.subr.bf16.mxu0 0
      %947 = vmatpush1.bf16.msra.mxu0 %v703
      %948 = vmatprep.subr.bf16.mxu0 0
      %949 = vmatpush1.bf16.msra.mxu0 %v702
      %950 = vmatprep.subr.bf16.mxu0 0
      %951 = vmatpush1.bf16.msra.mxu0 %v701
      %952 = vmatprep.subr.bf16.mxu0 0
      %953 = vmatpush1.bf16.msra.mxu0 %v700
      %954 = vmatprep.subr.bf16.mxu0 0
      %955 = vmatpush2.bf16.msra.mxu0 0
      %956 = vmatprep.subr.bf16.mxu0 0
      %957 = vmatpush2.bf16.msra.mxu0 0
      %958 = vmatprep.subr.bf16.mxu0 0
      %959 = vmatpush2.bf16.msra.mxu0 0
      %960 = vmatprep.subr.bf16.mxu0 0
      %961 = vmatpush2.bf16.msra.mxu0 0
      %962 = vmatprep.subr.bf16.mxu0 0
      %963 = vmatpush2.bf16.msra.mxu0 0
      %964 = vmatprep.subr.bf16.mxu0 0
      %965 = vmatpush2.bf16.msra.mxu0 0
      %966 = vmatprep.subr.bf16.mxu0 0
      %967 = vmatpush2.bf16.msra.mxu0 0
      %968 = vmatprep.subr.bf16.mxu0 0
      %969 = vmatpush2.bf16.msra.mxu0 0
      %970 = vmatprep.mubr.bf16.mxu0 0
      %971 = vmatmul.mubr.bf16.gmra.mxu0 %v742
      %v972 = vpop.f32.mrf.mxu0
      %v973 = vadd.f32 %v885, %v972
      %v974 = vpop.f32.mrf.mxu0
      %v975 = vpop.f32.mrf.mxu0
      %v976 = vadd.f32 %v888, %v975
      %v977 = vpop.f32.mrf.mxu0
      %978 = vmatprep.mubr.bf16.mxu0 0
      %979 = vmatmul.mubr.bf16.gmra.mxu0 %v745
      %v980 = vpop.f32.mrf.mxu0
      %v981 = vadd.f32 %v893, %v980
      %v982 = vpop.f32.mrf.mxu0
      %v983 = vpop.f32.mrf.mxu0
      %v984 = vadd.f32 %v896, %v983
      %v985 = vpop.f32.mrf.mxu0
      %986 = vmatprep.mubr.bf16.mxu0 0
      %987 = vmatmul.mubr.bf16.gmra.mxu0 %v748
      %v988 = vpop.f32.mrf.mxu0
      %v989 = vadd.f32 %v901, %v988
      %v990 = vpop.f32.mrf.mxu0
      %v991 = vpop.f32.mrf.mxu0
      %v992 = vadd.f32 %v904, %v991
      %v993 = vpop.f32.mrf.mxu0
      %994 = vmatprep.mubr.bf16.mxu0 0
      %995 = vmatmul.mubr.bf16.gmra.mxu0 %v751
      %v996 = vpop.f32.mrf.mxu0
      %v997 = vadd.f32 %v909, %v996
      %v998 = vpop.f32.mrf.mxu0
      %v999 = vpop.f32.mrf.mxu0
      %v1000 = vadd.f32 %v912, %v999
      %v1001 = vpop.f32.mrf.mxu0
      %1002 = vmatprep.mubr.bf16.mxu0 0
      %1003 = vmatmul.mubr.bf16.gmra.mxu0 %v754
      %v1004 = vpop.f32.mrf.mxu0
      %v1005 = vadd.f32 %v917, %v1004
      %v1006 = vpop.f32.mrf.mxu0
      %v1007 = vpop.f32.mrf.mxu0
      %v1008 = vadd.f32 %v920, %v1007
      %v1009 = vpop.f32.mrf.mxu0
      %1010 = vmatprep.mubr.bf16.mxu0 0
      %1011 = vmatmul.mubr.bf16.gmra.mxu0 %v757
      %v1012 = vpop.f32.mrf.mxu0
      %v1013 = vadd.f32 %v925, %v1012
      %v1014 = vpop.f32.mrf.mxu0
      %v1015 = vpop.f32.mrf.mxu0
      %v1016 = vadd.f32 %v928, %v1015
      %v1017 = vpop.f32.mrf.mxu0
      %1018 = vmatprep.mubr.bf16.mxu0 0
      %1019 = vmatmul.mubr.bf16.gmra.mxu0 %v760
      %v1020 = vpop.f32.mrf.mxu0
      %v1021 = vadd.f32 %v933, %v1020
      %v1022 = vpop.f32.mrf.mxu0
      %v1023 = vpop.f32.mrf.mxu0
      %v1024 = vpop.f32.mrf.mxu0
      %1025 = vdwg.mxu0
      %v1026 = vld [vmem:[%s2] sm:$0x1]
      %v1028 = vlaneseq
      %v1029 = vshrl.u32 %v1028, 7
      %v1030 = vsub.s32 0, %v1029
      %v1031 = vrot.slane %v1026, %v1030
      %v1033 = vmul.f32 %v973, %v1031
      %v1034 = vmul.f32 %v976, %v1031
      %v1035 = vmul.f32 %v981, %v1031
      %v1036 = vmul.f32 %v984, %v1031
      %v1037 = vmul.f32 %v989, %v1031
      %v1038 = vmul.f32 %v992, %v1031
      %v1039 = vmul.f32 %v997, %v1031
      %v1040 = vmul.f32 %v1000, %v1031
      %v1041 = vmul.f32 %v1005, %v1031
      %v1042 = vmul.f32 %v1008, %v1031
      %v1043 = vmul.f32 %v1013, %v1031
      %v1044 = vmul.f32 %v1016, %v1031
      %v1045 = vmul.f32 %v1021, %v1031
      %v1046 = vld [vmem:[%s3] sm:$0x1]
      %v1048 = vlaneseq
      %v1049 = vshrl.u32 %v1048, 7
      %v1050 = vsub.s32 0, %v1049
      %v1051 = vrot.slane %v1046, %v1050
      %v1053 = vadd.f32 %v1033, %v1051
      %v1054 = vadd.f32 %v1034, %v1051
      %v1055 = vadd.f32 %v1035, %v1051
      %v1056 = vadd.f32 %v1036, %v1051
      %v1057 = vadd.f32 %v1037, %v1051
      %v1058 = vadd.f32 %v1038, %v1051
      %v1059 = vadd.f32 %v1039, %v1051
      %v1060 = vadd.f32 %v1040, %v1051
      %v1061 = vadd.f32 %v1041, %v1051
      %v1062 = vadd.f32 %v1042, %v1051
      %v1063 = vadd.f32 %v1043, %v1051
      %v1064 = vadd.f32 %v1044, %v1051
      %v1065 = vadd.f32 %v1045, %v1051
      %v1066 = vmax.f32 %v1053, 0.0
      %v1067 = vmax.f32 %v1054, 0.0
      %v1068 = vmax.f32 %v1055, 0.0
      %v1069 = vmax.f32 %v1056, 0.0
      %v1070 = vmax.f32 %v1057, 0.0
      %v1071 = vmax.f32 %v1058, 0.0
      %v1072 = vmax.f32 %v1059, 0.0
      %v1073 = vmax.f32 %v1060, 0.0
      %v1074 = vmax.f32 %v1061, 0.0
      %v1075 = vmax.f32 %v1062, 0.0
      %v1076 = vmax.f32 %v1063, 0.0
      %v1077 = vmax.f32 %v1064, 0.0
      %v1078 = vmax.f32 %v1065, 0.0
      %1079 = vst [vmem:[%s243] sm:$0xff] %v1066
      %1080 = vst [vmem:[%s243 + $0x8] sm:$0xff] %v1067
      %1081 = vst [vmem:[%s243 + $0x10] sm:$0xff] %v1068
      %1082 = vst [vmem:[%s243 + $0x18] sm:$0xff] %v1069
      %1083 = vst [vmem:[%s243 + $0x20] sm:$0xff] %v1070
      %1084 = vst [vmem:[%s243 + $0x28] sm:$0xff] %v1071
      %1085 = vst [vmem:[%s243 + $0x30] sm:$0xff] %v1072
      %1086 = vst [vmem:[%s243 + $0x38] sm:$0xff] %v1073
      %1087 = vst [vmem:[%s243 + $0x40] sm:$0xff] %v1074
      %1088 = vst [vmem:[%s243 + $0x48] sm:$0xff] %v1075
      %1089 = vst [vmem:[%s243 + $0x50] sm:$0xff] %v1076
      %1090 = vst [vmem:[%s243 + $0x58] sm:$0xff] %v1077
      %1091 = vst [vmem:[%s243 + $0x60] sm:$0xff] %v1078
      %v1092 = vpack.c.bf16 %v1067, %v1066
      %v1093 = vpack.c.bf16 %v1069, %v1068
      %v1094 = vpack.c.bf16 %v1071, %v1070
      %v1095 = vpack.c.bf16 %v1073, %v1072
      %v1096 = vpack.c.bf16 %v1075, %v1074
      %v1097 = vpack.c.bf16 %v1077, %v1076
      %v1098 = vpack.c.bf16 %v1078, %v1078
      %v1106 = vunpack.c.l.b16 %v1092
      %v1107 = vunpack.c.h.b16 %v1092
      %v1108 = vunpack.c.l.b16 %v1093
      %v1109 = vunpack.c.h.b16 %v1093
      %v1110 = vunpack.c.l.b16 %v1094
      %v1111 = vunpack.c.h.b16 %v1094
      %v1112 = vunpack.c.l.b16 %v1095
      %v1113 = vunpack.c.h.b16 %v1095
      %v1114 = vunpack.c.l.b16 %v1096
      %v1115 = vunpack.c.h.b16 %v1096
      %v1116 = vunpack.c.l.b16 %v1097
      %v1117 = vunpack.c.h.b16 %v1097
      %v1118 = vunpack.c.l.b16 %v1098
      %v1119 = vpack.c.b16 %v1106, %v1106
      %v1120 = vpack.c.b16 %v1107, %v1107
      %v1121 = vpack.c.b16 %v1108, %v1108
      %v1122 = vpack.c.b16 %v1109, %v1109
      %v1123 = vpack.c.b16 %v1110, %v1110
      %v1124 = vpack.c.b16 %v1111, %v1111
      %v1125 = vpack.c.b16 %v1112, %v1112
      %v1126 = vpack.c.b16 %v1113, %v1113
      %v1127 = vpack.c.b16 %v1114, %v1114
      %v1128 = vpack.c.b16 %v1115, %v1115
      %v1129 = vpack.c.b16 %v1116, %v1116
      %v1130 = vpack.c.b16 %v1117, %v1117
      %v1131 = vpack.c.b16 %v1118, %v1118
      %1145 = vst [vmem:[%s237] sm:$0xf] %v1119
      %1146 = vst [vmem:[%s237 + $0x4] sm:$0xf] %v1120
      %1147 = vst [vmem:[%s237 + $0x8] sm:$0xf] %v1121
      %1148 = vst [vmem:[%s237 + $0xc] sm:$0xf] %v1122
      %1149 = vst [vmem:[%s237 + $0x10] sm:$0xf] %v1123
      %1150 = vst [vmem:[%s237 + $0x14] sm:$0xf] %v1124
      %1151 = vst [vmem:[%s237 + $0x18] sm:$0xf] %v1125
      %1152 = vst [vmem:[%s237 + $0x1c] sm:$0xf] %v1126
      %1153 = vst [vmem:[%s237 + $0x20] sm:$0xf] %v1127
      %1154 = vst [vmem:[%s237 + $0x24] sm:$0xf] %v1128
      %1155 = vst [vmem:[%s237 + $0x28] sm:$0xf] %v1129
      %1156 = vst [vmem:[%s237 + $0x2c] sm:$0xf] %v1130
      %1157 = vst [vmem:[%s237 + $0x30] sm:$0xf] %v1131
      %s1158 = smul.u32 13, %s17
      %p1159 = scmp.lt.s32.totalorder %s1158, 25
      %s1160 = scalar_select %p1159, %s1158, 25
      %s1161 = smul.addr %s1160, 4
      %s1162 = scalar_lea.vmem %s4, %s1161
      %s1163 = smul.u32 13, %s17
      %p1164 = scmp.lt.s32.totalorder %s1163, 25
      %s1165 = scalar_select %p1164, %s1163, 25
      %s1166 = smul.addr %s1165, 8
      %s1167 = scalar_lea.vmem %s5, %s1166
      // Predicated region
      $region37: #{forward.6} parent=35 // pred_check
        %p1168 = pneg %p124
      $region38: #{forward.6} parent=35 // pred_check_branch
        %1170 = sbr.rel (%p1168) target = $region40
      $region39: #{forward.6} parent=35 // pred_region
        %s1171 = smul.u32 13, %s17
      $region40: #{forward.6} parent=35 // pred_fallthru
        _
      // Predicated region
      $region41: #{forward.6} parent=35 // pred_check
        %p1172 = pneg %p150
      $region42: #{forward.6} parent=35 // pred_check_branch
        %1174 = sbr.rel (%p1172) target = $region44
      $region43: #{forward.6} parent=35 // pred_region
        %s1175 = smul.u32 13, %s17
      $region44: #{forward.6} parent=35 // pred_fallthru
        _
    $region36: #{forward.6} parent=5 // pred_fallthru
      _
    %p1176 = scmp.le.s32.totalorder 2, %s12
    // Predicated region
    $region45: #{forward.6} parent=5 // pred_check
      %p1177 = pneg %p1176
    $region46: #{forward.6} parent=5 // pred_check_branch
      %1179 = sbr.rel (%p1177) target = $region48
    $region47: #{forward.6} parent=5 // pred_region
      %s1180 = ssub.s32 %s12, 2
      // Predicated region
      $region49: #{forward.6} parent=47 // pred_check
        %p1181 = pneg %p130
      $region50: #{forward.6} parent=47 // pred_check_branch
        %1183 = sbr.rel (%p1181) target = $region52
      $region51: #{forward.6} parent=47 // pred_region
        %s1184 = smul.u32 13, %s18
        %p1185 = scmp.lt.s32.totalorder %s1184, 25
        %s1186 = scalar_select %p1185, %s1184, 25
        %s1187 = smul.addr %s1186, 4
        %s1188 = scalar_lea.vmem %s4, %s1187
      $region52: #{forward.6} parent=47 // pred_fallthru
        _
      // Predicated region
      $region53: #{forward.6} parent=47 // pred_check
        %p1189 = pneg %p156
      $region54: #{forward.6} parent=47 // pred_check_branch
        %1191 = sbr.rel (%p1189) target = $region56
      $region55: #{forward.6} parent=47 // pred_region
        %s1192 = smul.u32 13, %s18
        %p1193 = scmp.lt.s32.totalorder %s1192, 25
        %s1194 = scalar_select %p1193, %s1192, 25
        %s1195 = smul.addr %s1194, 8
        %s1196 = scalar_lea.vmem %s5, %s1195
      $region56: #{forward.6} parent=47 // pred_fallthru
        _
    $region48: #{forward.6} parent=5 // pred_fallthru
      _
  $region6: #{forward.6} parent=0 // loop_footer
    %s16 = sadd.s32 1, %s12
  $region7: #{forward.6} parent=0 // loop_footer_branch
    %11 = sbr.rel target = $region3
  $region8: #{forward.6} parent=0 // loop_exit
    _

// kernel: forward.7
$region0: #{forward.7}
  #allocation0 [shape = 'u32[]', space=smem, size = 0x4, offset = 0x4, fixed_abs, tag = 'smem constant byte address 0x4 - core index']
  #allocation1 [shape = 'u32[144,128]{1,0:T(1,128)}', space=vmem, size = 0x12000, scoped, tag = 'internal scratch']
  #allocation2 [shape = 'f32[8,256]{1,0:T(8,128)}', space=vmem, size = 0x2000, scoped, tag = 'scratch operand']
  %s0 = inlined_call_operand.vmem [shape: bf16[8,6400], index: 0, kind: input, shape index: {}]
  %s1 = inlined_call_operand.vmem [shape: bf16[6400,512], index: 1, kind: input, shape index: {}]
  %s2 = inlined_call_operand.vmem [shape: f32[1,512], index: 2, kind: input, shape index: {}]
  %s3 = inlined_call_operand.vmem [shape: f32[1,512], index: 3, kind: input, shape index: {}]
  %s4 = inlined_call_operand.vmem [shape: bf16[512,128], index: 4, kind: input, shape index: {}]
  %s5 = inlined_call_operand.vmem [shape: f32[16,128], index: 5, kind: output, shape index: {}]
  %s6 = sld [smem:[#allocation0]]
  $region99: #{forward.7} parent=0
    _
  %s8 = ssub.s32 1, %s6
  %s9 = scalar_select 0, %s8, %s6
  $region1: #{forward.7} parent=0
    #allocation3 [shape = 'u8[3276800]{0}', space=vmem, size = 0x320000, scoped, tag = 'input window, operand 1']
    loop: start=0, step=1, limit=6
    $region2: #{forward.7} parent=1 // loop_pre_header
      _
    $region3: #{forward.7} parent=1 // loop_header
      %s11 = sphi 0, %s15
      %p12 = scmp.ge.s32.totalorder %s11, 6
      %s18 = sphi 0, %s30
      %s19 = sphi 0, %s26
      %s20 = sphi 0, %s18
      %s21 = sphi 0, %s19
      %s22 = sphi 0, %s20
      %s23 = sphi 0, %s21
      %s33 = sphi 0, %s35
      %s36 = sphi 0, %s33
      %s37 = sphi 0, %s36
      %s53 = sphi 0, %s37
      %s61 = sphi 0, %s63
      %s64 = sphi 0, %s61
      %s65 = sphi 0, %s64
      %s81 = sphi 0, %s65
      %s87 = sphi 0, %s89
      %s90 = sphi 0, %s87
      %s91 = sphi 0, %s90
      %s107 = sphi 0, %s91
      %s113 = sphi 0, %s115
      %s116 = sphi 0, %s113
      %s117 = sphi 0, %s116
      %s133 = sphi 0, %s117
      %s139 = sphi 0, %s141
      %s142 = sphi 0, %s139
      %s143 = sphi 0, %s142
      %s159 = sphi 0, %s143
      %s165 = sphi 0, %s167
      %s168 = sphi 0, %s165
      %s169 = sphi 0, %s168
      %s185 = sphi 0, %s169
    $region4: #{forward.7} parent=1 // loop_header_branch
      %14 = sbr.rel (%p12) target = $region8
    $region5: #{forward.7} parent=1 // loop_body
      %s16 = ssub.s32 %s11, 1
      %s17 = ssub.s32 %s11, 2
      %s24 = sadd.s32 1, %s19
      %p25 = scmp.ge.s32.totalorder %s24, 2
      %s26 = scalar_select %p25, 0, %s24
      %s27 = sadd.s32 1, %s18
      %s28 = scalar_select %p25, %s27, %s18
      %p29 = scmp.ge.s32.totalorder %s28, 2
      %s30 = scalar_select %p29, 0, %s28
      %s31 = ssub.s32 %s19, %s26
      %p32 = scmp.eq.s32.totalorder %s31, 0
      %s34 = sadd.s32 %s33, 1
      %s35 = scalar_select %p32, %s33, %s34
      %p38 = pneg %p32
      %p39 = scmp.eq.s32.totalorder %s11, 3
      %p40 = por %p38, %p39
      %p41 = scmp.ne.s32.totalorder %s33, %s36
      %p42 = scmp.eq.s32.totalorder %s11, 0
      %p43 = por %p41, %p42
      %p44 = scmp.ne.s32.totalorder %s33, %s36
      %p45 = scmp.eq.s32.totalorder %s16, 3
      %p46 = por %p44, %p45
      %p47 = scmp.ne.s32.totalorder %s36, %s37
      %p48 = scmp.eq.s32.totalorder %s16, 0
      %p49 = por %p47, %p48
      %p50 = scmp.ne.s32.totalorder %s36, %s37
      %p51 = scmp.eq.s32.totalorder %s17, 3
      %p52 = por %p50, %p51
      %p54 = scmp.ne.s32.totalorder %s37, %s53
      %p55 = scmp.eq.s32.totalorder %s17, 0
      %p56 = por %p54, %p55
      %s57 = ssub.s32 %s19, %s26
      %s58 = ssub.s32 %s18, %s30
      %s59 = sor.u32 %s57, %s58
      %p60 = scmp.eq.s32.totalorder %s59, 0
      %s62 = sadd.s32 %s61, 1
      %s63 = scalar_select %p60, %s61, %s62
      %p66 = pneg %p60
      %p67 = scmp.eq.s32.totalorder %s11, 3
      %p68 = por %p66, %p67
      %p69 = scmp.ne.s32.totalorder %s61, %s64
      %p70 = scmp.eq.s32.totalorder %s11, 0
      %p71 = por %p69, %p70
      %p72 = scmp.ne.s32.totalorder %s61, %s64
      %p73 = scmp.eq.s32.totalorder %s16, 3
      %p74 = por %p72, %p73
      %p75 = scmp.ne.s32.totalorder %s64, %s65
      %p76 = scmp.eq.s32.totalorder %s16, 0
      %p77 = por %p75, %p76
      %p78 = scmp.ne.s32.totalorder %s64, %s65
      %p79 = scmp.eq.s32.totalorder %s17, 3
      %p80 = por %p78, %p79
      %p82 = scmp.ne.s32.totalorder %s65, %s81
      %p83 = scmp.eq.s32.totalorder %s17, 0
      %p84 = por %p82, %p83
      %s85 = ssub.s32 %s18, %s30
      %p86 = scmp.eq.s32.totalorder %s85, 0
      %s88 = sadd.s32 %s87, 1
      %s89 = scalar_select %p86, %s87, %s88
      %p92 = pneg %p86
      %p93 = scmp.eq.s32.totalorder %s11, 3
      %p94 = por %p92, %p93
      %p95 = scmp.ne.s32.totalorder %s87, %s90
      %p96 = scmp.eq.s32.totalorder %s11, 0
      %p97 = por %p95, %p96
      %p98 = scmp.ne.s32.totalorder %s87, %s90
      %p99 = scmp.eq.s32.totalorder %s16, 3
      %p100 = por %p98, %p99
      %p101 = scmp.ne.s32.totalorder %s90, %s91
      %p102 = scmp.eq.s32.totalorder %s16, 0
      %p103 = por %p101, %p102
      %p104 = scmp.ne.s32.totalorder %s90, %s91
      %p105 = scmp.eq.s32.totalorder %s17, 3
      %p106 = por %p104, %p105
      %p108 = scmp.ne.s32.totalorder %s91, %s107
      %p109 = scmp.eq.s32.totalorder %s17, 0
      %p110 = por %p108, %p109
      %s111 = ssub.s32 %s18, %s30
      %p112 = scmp.eq.s32.totalorder %s111, 0
      %s114 = sadd.s32 %s113, 1
      %s115 = scalar_select %p112, %s113, %s114
      %p118 = pneg %p112
      %p119 = scmp.eq.s32.totalorder %s11, 3
      %p120 = por %p118, %p119
      %p121 = scmp.ne.s32.totalorder %s113, %s116
      %p122 = scmp.eq.s32.totalorder %s11, 0
      %p123 = por %p121, %p122
      %p124 = scmp.ne.s32.totalorder %s113, %s116
      %p125 = scmp.eq.s32.totalorder %s16, 3
      %p126 = por %p124, %p125
      %p127 = scmp.ne.s32.totalorder %s116, %s117
      %p128 = scmp.eq.s32.totalorder %s16, 0
      %p129 = por %p127, %p128
      %p130 = scmp.ne.s32.totalorder %s116, %s117
      %p131 = scmp.eq.s32.totalorder %s17, 3
      %p132 = por %p130, %p131
      %p134 = scmp.ne.s32.totalorder %s117, %s133
      %p135 = scmp.eq.s32.totalorder %s17, 0
      %p136 = por %p134, %p135
      %s137 = ssub.s32 %s18, %s30
      %p138 = scmp.eq.s32.totalorder %s137, 0
      %s140 = sadd.s32 %s139, 1
      %s141 = scalar_select %p138, %s139, %s140
      %p144 = pneg %p138
      %p145 = scmp.eq.s32.totalorder %s11, 3
      %p146 = por %p144, %p145
      %p147 = scmp.ne.s32.totalorder %s139, %s142
      %p148 = scmp.eq.s32.totalorder %s11, 0
      %p149 = por %p147, %p148
      %p150 = scmp.ne.s32.totalorder %s139, %s142
      %p151 = scmp.eq.s32.totalorder %s16, 3
      %p152 = por %p150, %p151
      %p153 = scmp.ne.s32.totalorder %s142, %s143
      %p154 = scmp.eq.s32.totalorder %s16, 0
      %p155 = por %p153, %p154
      %p156 = scmp.ne.s32.totalorder %s142, %s143
      %p157 = scmp.eq.s32.totalorder %s17, 3
      %p158 = por %p156, %p157
      %p160 = scmp.ne.s32.totalorder %s143, %s159
      %p161 = scmp.eq.s32.totalorder %s17, 0
      %p162 = por %p160, %p161
      %s163 = ssub.s32 %s18, %s30
      %p164 = scmp.eq.s32.totalorder %s163, 0
      %s166 = sadd.s32 %s165, 1
      %s167 = scalar_select %p164, %s165, %s166
      %p170 = pneg %p164
      %p171 = scmp.eq.s32.totalorder %s11, 3
      %p172 = por %p170, %p171
      %p173 = scmp.ne.s32.totalorder %s165, %s168
      %p174 = scmp.eq.s32.totalorder %s11, 0
      %p175 = por %p173, %p174
      %p176 = scmp.ne.s32.totalorder %s165, %s168
      %p177 = scmp.eq.s32.totalorder %s16, 3
      %p178 = por %p176, %p177
      %p179 = scmp.ne.s32.totalorder %s168, %s169
      %p180 = scmp.eq.s32.totalorder %s16, 0
      %p181 = por %p179, %p180
      %p182 = scmp.ne.s32.totalorder %s168, %s169
      %p183 = scmp.eq.s32.totalorder %s17, 3
      %p184 = por %p182, %p183
      %p186 = scmp.ne.s32.totalorder %s169, %s185
      %p187 = scmp.eq.s32.totalorder %s17, 0
      %p188 = por %p186, %p187
      %p189 = scmp.le.s32.totalorder 1, %s11
      %p190 = scmp.lt.s32.totalorder %s11, 5
      %p191 = pnand %p189, %p190
      %p192 = pneg %p191
      // Predicated region
      $region9: #{forward.7} parent=5 // pred_check
        _
      $region10: #{forward.7} parent=5 // pred_check_branch
        %194 = sbr.rel (%p191) target = $region12
      $region11: #{forward.7} parent=5 // pred_region
        %s195 = ssub.s32 %s11, 1
      $region12: #{forward.7} parent=5 // pred_fallthru
        _
      %p196 = scmp.lt.s32.totalorder %s11, 4
      // Predicated region
      $region13: #{forward.7} parent=5 // pred_check
        %p197 = pneg %p196
      $region14: #{forward.7} parent=5 // pred_check_branch
        %199 = sbr.rel (%p197) target = $region16
      $region15: #{forward.7} parent=5 // pred_region
        // Predicated region
        $region17: #{forward.7} parent=15 // pred_check
          %p200 = pneg %p43
        $region18: #{forward.7} parent=15 // pred_check_branch
          %202 = sbr.rel (%p200) target = $region20
        $region19: #{forward.7} parent=15 // pred_region
          %s203 = smul.u32 25, %s19
          %p204 = scmp.lt.s32.totalorder %s203, 49
          %s205 = scalar_select %p204, %s203, 49
          %s206 = smul.addr %s205, 4
          %s207 = scalar_lea.vmem %s0, %s206
          %s208 = smul.u32 25, %s19
        $region20: #{forward.7} parent=15 // pred_fallthru
          _
        // Predicated region
        $region21: #{forward.7} parent=15 // pred_check
          %p209 = pneg %p71
        $region22: #{forward.7} parent=15 // pred_check_branch
          %211 = sbr.rel (%p209) target = $region24
        $region23: #{forward.7} parent=15 // pred_region
          %s212 = sand.u32 %s61, 1
          %s213 = sand.u32 %s61, 1
          %s214 = smul.addr %s213, 3200
          %s215 = scalar_lea.vmem [#allocation3], %s214
          %s216 = smul.u32 400, %s19
          %s217 = smul.u32 2, %s18
          %s218 = smul.addr %s216, 4
          %s219 = sadd.s32 %s217, %s218
          %s220 = smul.addr %s219, 4
          %s221 = scalar_lea.vmem %s1, %s220
          // Predicated region
          $region25: #{forward.7} parent=23 // pred_check
            _
          $region26: #{forward.7} parent=23 // pred_check_branch
            %223 = sbr.rel (0) target = $region28
          $region27: #{forward.7} parent=23 // pred_region
            // Predicated region
            $region29: #{forward.7} parent=27 // pred_check
              _
            $region30: #{forward.7} parent=27 // pred_check_branch
              %225 = sbr.rel (0) target = $region32
            $region31: #{forward.7} parent=27 // pred_region
              // Predicated region
              $region44: #{forward.7} parent=31 // pred_check
                _
              $region45: #{forward.7} parent=31 // pred_check_branch
                %1039 = sbr.rel (0) target = $region47
              $region46: #{forward.7} parent=31 // pred_region
                loop: start=0, step=1, limit=1
                $region48: #{forward.7} parent=46 // loop_pre_header
                  _
                $region49: #{forward.7} parent=46 // loop_header
                  %s1041 = sphi 0, %s1045
                  %p1042 = scmp.ge.s32.totalorder %s1041, 1
                  %s1046 = sphi %s221, %s221
                  %s1047 = sphi %s215, %s215
                $region50: #{forward.7} parent=46 // loop_header_branch
                  %1044 = sbr.rel (%p1042) target = $region54
                $region51: #{forward.7} parent=46 // loop_body
                  %v1048 = vld [vmem:[%s1046] sm:$0xff]
                  %1049 = vst [vmem:[%s1047] sm:$0xff] %v1048
                  %v1050 = vld [vmem:[%s1046 + $0x10] sm:$0xff]
                  %1051 = vst [vmem:[%s1047 + $0x8] sm:$0xff] %v1050
                  %v1052 = vld [vmem:[%s1046 + $0x20] sm:$0xff]
                  %1053 = vst [vmem:[%s1047 + $0x10] sm:$0xff] %v1052
                  %v1054 = vld [vmem:[%s1046 + $0x30] sm:$0xff]
                  %1055 = vst [vmem:[%s1047 + $0x18] sm:$0xff] %v1054
                  %v1056 = vld [vmem:[%s1046 + $0x40] sm:$0xff]
                  %1057 = vst [vmem:[%s1047 + $0x20] sm:$0xff] %v1056
                  %v1058 = vld [vmem:[%s1046 + $0x50] sm:$0xff]
                  %1059 = vst [vmem:[%s1047 + $0x28] sm:$0xff] %v1058
                  %v1060 = vld [vmem:[%s1046 + $0x60] sm:$0xff]
                  %1061 = vst [vmem:[%s1047 + $0x30] sm:$0xff] %v1060
                  %v1062 = vld [vmem:[%s1046 + $0x70] sm:$0xff]
                  %1063 = vst [vmem:[%s1047 + $0x38] sm:$0xff] %v1062
                  %v1064 = vld [vmem:[%s1046 + $0x80] sm:$0xff]
                  %1065 = vst [vmem:[%s1047 + $0x40] sm:$0xff] %v1064
                  %v1066 = vld [vmem:[%s1046 + $0x90] sm:$0xff]
                  %1067 = vst [vmem:[%s1047 + $0x48] sm:$0xff] %v1066
                  %v1068 = vld [vmem:[%s1046 + $0xa0] sm:$0xff]
                  %1069 = vst [vmem:[%s1047 + $0x50] sm:$0xff] %v1068
                  %v1070 = vld [vmem:[%s1046 + $0xb0] sm:$0xff]
                  %1071 = vst [vmem:[%s1047 + $0x58] sm:$0xff] %v1070
                  %v1072 = vld [vmem:[%s1046 + $0xc0] sm:$0xff]
                  %1073 = vst [vmem:[%s1047 + $0x60] sm:$0xff] %v1072
                  %v1074 = vld [vmem:[%s1046 + $0xd0] sm:$0xff]
                  %1075 = vst [vmem:[%s1047 + $0x68] sm:$0xff] %v1074
                  %v1076 = vld [vmem:[%s1046 + $0xe0] sm:$0xff]
                  %1077 = vst [vmem:[%s1047 + $0x70] sm:$0xff] %v1076
                  %v1078 = vld [vmem:[%s1046 + $0xf0] sm:$0xff]
                  %1079 = vst [vmem:[%s1047 + $0x78] sm:$0xff] %v1078
                  %v1080 = vld [vmem:[%s1046 + $0x100] sm:$0xff]
                  %1081 = vst [vmem:[%s1047 + $0x80] sm:$0xff] %v1080
                  %v1082 = vld [vmem:[%s1046 + $0x110] sm:$0xff]
                  %1083 = vst [vmem:[%s1047 + $0x88] sm:$0xff] %v1082
                  %v1084 = vld [vmem:[%s1046 + $0x120] sm:$0xff]
                  %1085 = vst [vmem:[%s1047 + $0x90] sm:$0xff] %v1084
                  %v1086 = vld [vmem:[%s1046 + $0x130] sm:$0xff]
                  %1087 = vst [vmem:[%s1047 + $0x98] sm:$0xff] %v1086
                  %v1088 = vld [vmem:[%s1046 + $0x140] sm:$0xff]
                  %1089 = vst [vmem:[%s1047 + $0xa0] sm:$0xff] %v1088
                  %v1090 = vld [vmem:[%s1046 + $0x150] sm:$0xff]
                  %1091 = vst [vmem:[%s1047 + $0xa8] sm:$0xff] %v1090
                  %v1092 = vld [vmem:[%s1046 + $0x160] sm:$0xff]
                  %1093 = vst [vmem:[%s1047 + $0xb0] sm:$0xff] %v1092
                  %v1094 = vld [vmem:[%s1046 + $0x170] sm:$0xff]
                  %1095 = vst [vmem:[%s1047 + $0xb8] sm:$0xff] %v1094
                  %v1096 = vld [vmem:[%s1046 + $0x180] sm:$0xff]
                  %1097 = vst [vmem:[%s1047 + $0xc0] sm:$0xff] %v1096
                  %v1098 = vld [vmem:[%s1046 + $0x190] sm:$0xff]
                  %1099 = vst [vmem:[%s1047 + $0xc8] sm:$0xff] %v1098
                  %v1100 = vld [vmem:[%s1046 + $0x1a0] sm:$0xff]
                  %1101 = vst [vmem:[%s1047 + $0xd0] sm:$0xff] %v1100
                  %v1102 = vld [vmem:[%s1046 + $0x1b0] sm:$0xff]
                  %1103 = vst [vmem:[%s1047 + $0xd8] sm:$0xff] %v1102
                  %v1104 = vld [vmem:[%s1046 + $0x1c0] sm:$0xff]
                  %1105 = vst [vmem:[%s1047 + $0xe0] sm:$0xff] %v1104
                  %v1106 = vld [vmem:[%s1046 + $0x1d0] sm:$0xff]
                  %1107 = vst [vmem:[%s1047 + $0xe8] sm:$0xff] %v1106
                  %v1108 = vld [vmem:[%s1046 + $0x1e0] sm:$0xff]
                  %1109 = vst [vmem:[%s1047 + $0xf0] sm:$0xff] %v1108
                  %v1110 = vld [vmem:[%s1046 + $0x1f0] sm:$0xff]
                  %1111 = vst [vmem:[%s1047 + $0xf8] sm:$0xff] %v1110
                  %v1112 = vld [vmem:[%s1046 + $0x200] sm:$0xff]
                  %1113 = vst [vmem:[%s1047 + $0x100] sm:$0xff] %v1112
                  %v1114 = vld [vmem:[%s1046 + $0x210] sm:$0xff]
                  %1115 = vst [vmem:[%s1047 + $0x108] sm:$0xff] %v1114
                  %v1116 = vld [vmem:[%s1046 + $0x220] sm:$0xff]
                  %1117 = vst [vmem:[%s1047 + $0x110] sm:$0xff] %v1116
                  %v1118 = vld [vmem:[%s1046 + $0x230] sm:$0xff]
                  %1119 = vst [vmem:[%s1047 + $0x118] sm:$0xff] %v1118
                  %v1120 = vld [vmem:[%s1046 + $0x240] sm:$0xff]
                  %1121 = vst [vmem:[%s1047 + $0x120] sm:$0xff] %v1120
                  %v1122 = vld [vmem:[%s1046 + $0x250] sm:$0xff]
                  %1123 = vst [vmem:[%s1047 + $0x128] sm:$0xff] %v1122
                  %v1124 = vld [vmem:[%s1046 + $0x260] sm:$0xff]
                  %1125 = vst [vmem:[%s1047 + $0x130] sm:$0xff] %v1124
                  %v1126 = vld [vmem:[%s1046 + $0x270] sm:$0xff]
                  %1127 = vst [vmem:[%s1047 + $0x138] sm:$0xff] %v1126
                  %v1128 = vld [vmem:[%s1046 + $0x280] sm:$0xff]
                  %1129 = vst [vmem:[%s1047 + $0x140] sm:$0xff] %v1128
                  %v1130 = vld [vmem:[%s1046 + $0x290] sm:$0xff]
                  %1131 = vst [vmem:[%s1047 + $0x148] sm:$0xff] %v1130
                  %v1132 = vld [vmem:[%s1046 + $0x2a0] sm:$0xff]
                  %1133 = vst [vmem:[%s1047 + $0x150] sm:$0xff] %v1132
                  %v1134 = vld [vmem:[%s1046 + $0x2b0] sm:$0xff]
                  %1135 = vst [vmem:[%s1047 + $0x158] sm:$0xff] %v1134
                  %v1136 = vld [vmem:[%s1046 + $0x2c0] sm:$0xff]
                  %1137 = vst [vmem:[%s1047 + $0x160] sm:$0xff] %v1136
                  %v1138 = vld [vmem:[%s1046 + $0x2d0] sm:$0xff]
                  %1139 = vst [vmem:[%s1047 + $0x168] sm:$0xff] %v1138
                  %v1140 = vld [vmem:[%s1046 + $0x2e0] sm:$0xff]
                  %1141 = vst [vmem:[%s1047 + $0x170] sm:$0xff] %v1140
                  %v1142 = vld [vmem:[%s1046 + $0x2f0] sm:$0xff]
                  %1143 = vst [vmem:[%s1047 + $0x178] sm:$0xff] %v1142
                  %v1144 = vld [vmem:[%s1046 + $0x300] sm:$0xff]
                  %1145 = vst [vmem:[%s1047 + $0x180] sm:$0xff] %v1144
                  %v1146 = vld [vmem:[%s1046 + $0x310] sm:$0xff]
                  %1147 = vst [vmem:[%s1047 + $0x188] sm:$0xff] %v1146
                  %v1148 = vld [vmem:[%s1046 + $0x320] sm:$0xff]
                  %1149 = vst [vmem:[%s1047 + $0x190] sm:$0xff] %v1148
                  %v1150 = vld [vmem:[%s1046 + $0x330] sm:$0xff]
                  %1151 = vst [vmem:[%s1047 + $0x198] sm:$0xff] %v1150
                  %v1152 = vld [vmem:[%s1046 + $0x340] sm:$0xff]
                  %1153 = vst [vmem:[%s1047 + $0x1a0] sm:$0xff] %v1152
                  %v1154 = vld [vmem:[%s1046 + $0x350] sm:$0xff]
                  %1155 = vst [vmem:[%s1047 + $0x1a8] sm:$0xff] %v1154
                  %v1156 = vld [vmem:[%s1046 + $0x360] sm:$0xff]
                  %1157 = vst [vmem:[%s1047 + $0x1b0] sm:$0xff] %v1156
                  %v1158 = vld [vmem:[%s1046 + $0x370] sm:$0xff]
                  %1159 = vst [vmem:[%s1047 + $0x1b8] sm:$0xff] %v1158
                  %v1160 = vld [vmem:[%s1046 + $0x380] sm:$0xff]
                  %1161 = vst [vmem:[%s1047 + $0x1c0] sm:$0xff] %v1160
                  %v1162 = vld [vmem:[%s1046 + $0x390] sm:$0xff]
                  %1163 = vst [vmem:[%s1047 + $0x1c8] sm:$0xff] %v1162
                  %v1164 = vld [vmem:[%s1046 + $0x3a0] sm:$0xff]
                  %1165 = vst [vmem:[%s1047 + $0x1d0] sm:$0xff] %v1164
                  %v1166 = vld [vmem:[%s1046 + $0x3b0] sm:$0xff]
                  %1167 = vst [vmem:[%s1047 + $0x1d8] sm:$0xff] %v1166
                  %v1168 = vld [vmem:[%s1046 + $0x3c0] sm:$0xff]
                  %1169 = vst [vmem:[%s1047 + $0x1e0] sm:$0xff] %v1168
                  %v1170 = vld [vmem:[%s1046 + $0x3d0] sm:$0xff]
                  %1171 = vst [vmem:[%s1047 + $0x1e8] sm:$0xff] %v1170
                  %v1172 = vld [vmem:[%s1046 + $0x3e0] sm:$0xff]
                  %1173 = vst [vmem:[%s1047 + $0x1f0] sm:$0xff] %v1172
                  %v1174 = vld [vmem:[%s1046 + $0x3f0] sm:$0xff]
                  %1175 = vst [vmem:[%s1047 + $0x1f8] sm:$0xff] %v1174
                  %v1176 = vld [vmem:[%s1046 + $0x400] sm:$0xff]
                  %1177 = vst [vmem:[%s1047 + $0x200] sm:$0xff] %v1176
                  %v1178 = vld [vmem:[%s1046 + $0x410] sm:$0xff]
                  %1179 = vst [vmem:[%s1047 + $0x208] sm:$0xff] %v1178
                  %v1180 = vld [vmem:[%s1046 + $0x420] sm:$0xff]
                  %1181 = vst [vmem:[%s1047 + $0x210] sm:$0xff] %v1180
                  %v1182 = vld [vmem:[%s1046 + $0x430] sm:$0xff]
                  %1183 = vst [vmem:[%s1047 + $0x218] sm:$0xff] %v1182
                  %v1184 = vld [vmem:[%s1046 + $0x440] sm:$0xff]
                  %1185 = vst [vmem:[%s1047 + $0x220] sm:$0xff] %v1184
                  %v1186 = vld [vmem:[%s1046 + $0x450] sm:$0xff]
                  %1187 = vst [vmem:[%s1047 + $0x228] sm:$0xff] %v1186
                  %v1188 = vld [vmem:[%s1046 + $0x460] sm:$0xff]
                  %1189 = vst [vmem:[%s1047 + $0x230] sm:$0xff] %v1188
                  %v1190 = vld [vmem:[%s1046 + $0x470] sm:$0xff]
                  %1191 = vst [vmem:[%s1047 + $0x238] sm:$0xff] %v1190
                  %v1192 = vld [vmem:[%s1046 + $0x480] sm:$0xff]
                  %1193 = vst [vmem:[%s1047 + $0x240] sm:$0xff] %v1192
                  %v1194 = vld [vmem:[%s1046 + $0x490] sm:$0xff]
                  %1195 = vst [vmem:[%s1047 + $0x248] sm:$0xff] %v1194
                  %v1196 = vld [vmem:[%s1046 + $0x4a0] sm:$0xff]
                  %1197 = vst [vmem:[%s1047 + $0x250] sm:$0xff] %v1196
                  %v1198 = vld [vmem:[%s1046 + $0x4b0] sm:$0xff]
                  %1199 = vst [vmem:[%s1047 + $0x258] sm:$0xff] %v1198
                  %v1200 = vld [vmem:[%s1046 + $0x4c0] sm:$0xff]
                  %1201 = vst [vmem:[%s1047 + $0x260] sm:$0xff] %v1200
                  %v1202 = vld [vmem:[%s1046 + $0x4d0] sm:$0xff]
                  %1203 = vst [vmem:[%s1047 + $0x268] sm:$0xff] %v1202
                  %v1204 = vld [vmem:[%s1046 + $0x4e0] sm:$0xff]
                  %1205 = vst [vmem:[%s1047 + $0x270] sm:$0xff] %v1204
                  %v1206 = vld [vmem:[%s1046 + $0x4f0] sm:$0xff]
                  %1207 = vst [vmem:[%s1047 + $0x278] sm:$0xff] %v1206
                  %v1208 = vld [vmem:[%s1046 + $0x500] sm:$0xff]
                  %1209 = vst [vmem:[%s1047 + $0x280] sm:$0xff] %v1208
                  %v1210 = vld [vmem:[%s1046 + $0x510] sm:$0xff]
                  %1211 = vst [vmem:[%s1047 + $0x288] sm:$0xff] %v1210
                  %v1212 = vld [vmem:[%s1046 + $0x520] sm:$0xff]
                  %1213 = vst [vmem:[%s1047 + $0x290] sm:$0xff] %v1212
                  %v1214 = vld [vmem:[%s1046 + $0x530] sm:$0xff]
                  %1215 = vst [vmem:[%s1047 + $0x298] sm:$0xff] %v1214
                  %v1216 = vld [vmem:[%s1046 + $0x540] sm:$0xff]
                  %1217 = vst [vmem:[%s1047 + $0x2a0] sm:$0xff] %v1216
                  %v1218 = vld [vmem:[%s1046 + $0x550] sm:$0xff]
                  %1219 = vst [vmem:[%s1047 + $0x2a8] sm:$0xff] %v1218
                  %v1220 = vld [vmem:[%s1046 + $0x560] sm:$0xff]
                  %1221 = vst [vmem:[%s1047 + $0x2b0] sm:$0xff] %v1220
                  %v1222 = vld [vmem:[%s1046 + $0x570] sm:$0xff]
                  %1223 = vst [vmem:[%s1047 + $0x2b8] sm:$0xff] %v1222
                  %v1224 = vld [vmem:[%s1046 + $0x580] sm:$0xff]
                  %1225 = vst [vmem:[%s1047 + $0x2c0] sm:$0xff] %v1224
                  %v1226 = vld [vmem:[%s1046 + $0x590] sm:$0xff]
                  %1227 = vst [vmem:[%s1047 + $0x2c8] sm:$0xff] %v1226
                  %v1228 = vld [vmem:[%s1046 + $0x5a0] sm:$0xff]
                  %1229 = vst [vmem:[%s1047 + $0x2d0] sm:$0xff] %v1228
                  %v1230 = vld [vmem:[%s1046 + $0x5b0] sm:$0xff]
                  %1231 = vst [vmem:[%s1047 + $0x2d8] sm:$0xff] %v1230
                  %v1232 = vld [vmem:[%s1046 + $0x5c0] sm:$0xff]
                  %1233 = vst [vmem:[%s1047 + $0x2e0] sm:$0xff] %v1232
                  %v1234 = vld [vmem:[%s1046 + $0x5d0] sm:$0xff]
                  %1235 = vst [vmem:[%s1047 + $0x2e8] sm:$0xff] %v1234
                  %v1236 = vld [vmem:[%s1046 + $0x5e0] sm:$0xff]
                  %1237 = vst [vmem:[%s1047 + $0x2f0] sm:$0xff] %v1236
                  %v1238 = vld [vmem:[%s1046 + $0x5f0] sm:$0xff]
                  %1239 = vst [vmem:[%s1047 + $0x2f8] sm:$0xff] %v1238
                  %v1240 = vld [vmem:[%s1046 + $0x600] sm:$0xff]
                  %1241 = vst [vmem:[%s1047 + $0x300] sm:$0xff] %v1240
                  %v1242 = vld [vmem:[%s1046 + $0x610] sm:$0xff]
                  %1243 = vst [vmem:[%s1047 + $0x308] sm:$0xff] %v1242
                  %v1244 = vld [vmem:[%s1046 + $0x620] sm:$0xff]
                  %1245 = vst [vmem:[%s1047 + $0x310] sm:$0xff] %v1244
                  %v1246 = vld [vmem:[%s1046 + $0x630] sm:$0xff]
                  %1247 = vst [vmem:[%s1047 + $0x318] sm:$0xff] %v1246
                  %v1248 = vld [vmem:[%s1046 + $0x640] sm:$0xff]
                  %1249 = vst [vmem:[%s1047 + $0x320] sm:$0xff] %v1248
                  %v1250 = vld [vmem:[%s1046 + $0x650] sm:$0xff]
                  %1251 = vst [vmem:[%s1047 + $0x328] sm:$0xff] %v1250
                  %v1252 = vld [vmem:[%s1046 + $0x660] sm:$0xff]
                  %1253 = vst [vmem:[%s1047 + $0x330] sm:$0xff] %v1252
                  %v1254 = vld [vmem:[%s1046 + $0x670] sm:$0xff]
                  %1255 = vst [vmem:[%s1047 + $0x338] sm:$0xff] %v1254
                  %v1256 = vld [vmem:[%s1046 + $0x680] sm:$0xff]
                  %1257 = vst [vmem:[%s1047 + $0x340] sm:$0xff] %v1256
                  %v1258 = vld [vmem:[%s1046 + $0x690] sm:$0xff]
                  %1259 = vst [vmem:[%s1047 + $0x348] sm:$0xff] %v1258
                  %v1260 = vld [vmem:[%s1046 + $0x6a0] sm:$0xff]
                  %1261 = vst [vmem:[%s1047 + $0x350] sm:$0xff] %v1260
                  %v1262 = vld [vmem:[%s1046 + $0x6b0] sm:$0xff]
                  %1263 = vst [vmem:[%s1047 + $0x358] sm:$0xff] %v1262
                  %v1264 = vld [vmem:[%s1046 + $0x6c0] sm:$0xff]
                  %1265 = vst [vmem:[%s1047 + $0x360] sm:$0xff] %v1264
                  %v1266 = vld [vmem:[%s1046 + $0x6d0] sm:$0xff]
                  %1267 = vst [vmem:[%s1047 + $0x368] sm:$0xff] %v1266
                  %v1268 = vld [vmem:[%s1046 + $0x6e0] sm:$0xff]
                  %1269 = vst [vmem:[%s1047 + $0x370] sm:$0xff] %v1268
                  %v1270 = vld [vmem:[%s1046 + $0x6f0] sm:$0xff]
                  %1271 = vst [vmem:[%s1047 + $0x378] sm:$0xff] %v1270
                  %v1272 = vld [vmem:[%s1046 + $0x700] sm:$0xff]
                  %1273 = vst [vmem:[%s1047 + $0x380] sm:$0xff] %v1272
                  %v1274 = vld [vmem:[%s1046 + $0x710] sm:$0xff]
                  %1275 = vst [vmem:[%s1047 + $0x388] sm:$0xff] %v1274
                  %v1276 = vld [vmem:[%s1046 + $0x720] sm:$0xff]
                  %1277 = vst [vmem:[%s1047 + $0x390] sm:$0xff] %v1276
                  %v1278 = vld [vmem:[%s1046 + $0x730] sm:$0xff]
                  %1279 = vst [vmem:[%s1047 + $0x398] sm:$0xff] %v1278
                  %v1280 = vld [vmem:[%s1046 + $0x740] sm:$0xff]
                  %1281 = vst [vmem:[%s1047 + $0x3a0] sm:$0xff] %v1280
                  %v1282 = vld [vmem:[%s1046 + $0x750] sm:$0xff]
                  %1283 = vst [vmem:[%s1047 + $0x3a8] sm:$0xff] %v1282
                  %v1284 = vld [vmem:[%s1046 + $0x760] sm:$0xff]
                  %1285 = vst [vmem:[%s1047 + $0x3b0] sm:$0xff] %v1284
                  %v1286 = vld [vmem:[%s1046 + $0x770] sm:$0xff]
                  %1287 = vst [vmem:[%s1047 + $0x3b8] sm:$0xff] %v1286
                  %v1288 = vld [vmem:[%s1046 + $0x780] sm:$0xff]
                  %1289 = vst [vmem:[%s1047 + $0x3c0] sm:$0xff] %v1288
                  %v1290 = vld [vmem:[%s1046 + $0x790] sm:$0xff]
                  %1291 = vst [vmem:[%s1047 + $0x3c8] sm:$0xff] %v1290
                  %v1292 = vld [vmem:[%s1046 + $0x7a0] sm:$0xff]
                  %1293 = vst [vmem:[%s1047 + $0x3d0] sm:$0xff] %v1292
                  %v1294 = vld [vmem:[%s1046 + $0x7b0] sm:$0xff]
                  %1295 = vst [vmem:[%s1047 + $0x3d8] sm:$0xff] %v1294
                  %v1296 = vld [vmem:[%s1046 + $0x7c0] sm:$0xff]
                  %1297 = vst [vmem:[%s1047 + $0x3e0] sm:$0xff] %v1296
                  %v1298 = vld [vmem:[%s1046 + $0x7d0] sm:$0xff]
                  %1299 = vst [vmem:[%s1047 + $0x3e8] sm:$0xff] %v1298
                  %v1300 = vld [vmem:[%s1046 + $0x7e0] sm:$0xff]
                  %1301 = vst [vmem:[%s1047 + $0x3f0] sm:$0xff] %v1300
                  %v1302 = vld [vmem:[%s1046 + $0x7f0] sm:$0xff]
                  %1303 = vst [vmem:[%s1047 + $0x3f8] sm:$0xff] %v1302
                  %v1304 = vld [vmem:[%s1046 + $0x800] sm:$0xff]
                  %1305 = vst [vmem:[%s1047 + $0x400] sm:$0xff] %v1304
                  %v1306 = vld [vmem:[%s1046 + $0x810] sm:$0xff]
                  %1307 = vst [vmem:[%s1047 + $0x408] sm:$0xff] %v1306
                  %v1308 = vld [vmem:[%s1046 + $0x820] sm:$0xff]
                  %1309 = vst [vmem:[%s1047 + $0x410] sm:$0xff] %v1308
                  %v1310 = vld [vmem:[%s1046 + $0x830] sm:$0xff]
                  %1311 = vst [vmem:[%s1047 + $0x418] sm:$0xff] %v1310
                  %v1312 = vld [vmem:[%s1046 + $0x840] sm:$0xff]
                  %1313 = vst [vmem:[%s1047 + $0x420] sm:$0xff] %v1312
                  %v1314 = vld [vmem:[%s1046 + $0x850] sm:$0xff]
                  %1315 = vst [vmem:[%s1047 + $0x428] sm:$0xff] %v1314
                  %v1316 = vld [vmem:[%s1046 + $0x860] sm:$0xff]
                  %1317 = vst [vmem:[%s1047 + $0x430] sm:$0xff] %v1316
                  %v1318 = vld [vmem:[%s1046 + $0x870] sm:$0xff]
                  %1319 = vst [vmem:[%s1047 + $0x438] sm:$0xff] %v1318
                  %v1320 = vld [vmem:[%s1046 + $0x880] sm:$0xff]
                  %1321 = vst [vmem:[%s1047 + $0x440] sm:$0xff] %v1320
                  %v1322 = vld [vmem:[%s1046 + $0x890] sm:$0xff]
                  %1323 = vst [vmem:[%s1047 + $0x448] sm:$0xff] %v1322
                  %v1324 = vld [vmem:[%s1046 + $0x8a0] sm:$0xff]
                  %1325 = vst [vmem:[%s1047 + $0x450] sm:$0xff] %v1324
                  %v1326 = vld [vmem:[%s1046 + $0x8b0] sm:$0xff]
                  %1327 = vst [vmem:[%s1047 + $0x458] sm:$0xff] %v1326
                  %v1328 = vld [vmem:[%s1046 + $0x8c0] sm:$0xff]
                  %1329 = vst [vmem:[%s1047 + $0x460] sm:$0xff] %v1328
                  %v1330 = vld [vmem:[%s1046 + $0x8d0] sm:$0xff]
                  %1331 = vst [vmem:[%s1047 + $0x468] sm:$0xff] %v1330
                  %v1332 = vld [vmem:[%s1046 + $0x8e0] sm:$0xff]
                  %1333 = vst [vmem:[%s1047 + $0x470] sm:$0xff] %v1332
                  %v1334 = vld [vmem:[%s1046 + $0x8f0] sm:$0xff]
                  %1335 = vst [vmem:[%s1047 + $0x478] sm:$0xff] %v1334
                  %v1336 = vld [vmem:[%s1046 + $0x900] sm:$0xff]
                  %1337 = vst [vmem:[%s1047 + $0x480] sm:$0xff] %v1336
                  %v1338 = vld [vmem:[%s1046 + $0x910] sm:$0xff]
                  %1339 = vst [vmem:[%s1047 + $0x488] sm:$0xff] %v1338
                  %v1340 = vld [vmem:[%s1046 + $0x920] sm:$0xff]
                  %1341 = vst [vmem:[%s1047 + $0x490] sm:$0xff] %v1340
                  %v1342 = vld [vmem:[%s1046 + $0x930] sm:$0xff]
                  %1343 = vst [vmem:[%s1047 + $0x498] sm:$0xff] %v1342
                  %v1344 = vld [vmem:[%s1046 + $0x940] sm:$0xff]
                  %1345 = vst [vmem:[%s1047 + $0x4a0] sm:$0xff] %v1344
                  %v1346 = vld [vmem:[%s1046 + $0x950] sm:$0xff]
                  %1347 = vst [vmem:[%s1047 + $0x4a8] sm:$0xff] %v1346
                  %v1348 = vld [vmem:[%s1046 + $0x960] sm:$0xff]
                  %1349 = vst [vmem:[%s1047 + $0x4b0] sm:$0xff] %v1348
                  %v1350 = vld [vmem:[%s1046 + $0x970] sm:$0xff]
                  %1351 = vst [vmem:[%s1047 + $0x4b8] sm:$0xff] %v1350
                  %v1352 = vld [vmem:[%s1046 + $0x980] sm:$0xff]
                  %1353 = vst [vmem:[%s1047 + $0x4c0] sm:$0xff] %v1352
                  %v1354 = vld [vmem:[%s1046 + $0x990] sm:$0xff]
                  %1355 = vst [vmem:[%s1047 + $0x4c8] sm:$0xff] %v1354
                  %v1356 = vld [vmem:[%s1046 + $0x9a0] sm:$0xff]
                  %1357 = vst [vmem:[%s1047 + $0x4d0] sm:$0xff] %v1356
                  %v1358 = vld [vmem:[%s1046 + $0x9b0] sm:$0xff]
                  %1359 = vst [vmem:[%s1047 + $0x4d8] sm:$0xff] %v1358
                  %v1360 = vld [vmem:[%s1046 + $0x9c0] sm:$0xff]
                  %1361 = vst [vmem:[%s1047 + $0x4e0] sm:$0xff] %v1360
                  %v1362 = vld [vmem:[%s1046 + $0x9d0] sm:$0xff]
                  %1363 = vst [vmem:[%s1047 + $0x4e8] sm:$0xff] %v1362
                  %v1364 = vld [vmem:[%s1046 + $0x9e0] sm:$0xff]
                  %1365 = vst [vmem:[%s1047 + $0x4f0] sm:$0xff] %v1364
                  %v1366 = vld [vmem:[%s1046 + $0x9f0] sm:$0xff]
                  %1367 = vst [vmem:[%s1047 + $0x4f8] sm:$0xff] %v1366
                  %v1368 = vld [vmem:[%s1046 + $0xa00] sm:$0xff]
                  %1369 = vst [vmem:[%s1047 + $0x500] sm:$0xff] %v1368
                  %v1370 = vld [vmem:[%s1046 + $0xa10] sm:$0xff]
                  %1371 = vst [vmem:[%s1047 + $0x508] sm:$0xff] %v1370
                  %v1372 = vld [vmem:[%s1046 + $0xa20] sm:$0xff]
                  %1373 = vst [vmem:[%s1047 + $0x510] sm:$0xff] %v1372
                  %v1374 = vld [vmem:[%s1046 + $0xa30] sm:$0xff]
                  %1375 = vst [vmem:[%s1047 + $0x518] sm:$0xff] %v1374
                  %v1376 = vld [vmem:[%s1046 + $0xa40] sm:$0xff]
                  %1377 = vst [vmem:[%s1047 + $0x520] sm:$0xff] %v1376
                  %v1378 = vld [vmem:[%s1046 + $0xa50] sm:$0xff]
                  %1379 = vst [vmem:[%s1047 + $0x528] sm:$0xff] %v1378
                  %v1380 = vld [vmem:[%s1046 + $0xa60] sm:$0xff]
                  %1381 = vst [vmem:[%s1047 + $0x530] sm:$0xff] %v1380
                  %v1382 = vld [vmem:[%s1046 + $0xa70] sm:$0xff]
                  %1383 = vst [vmem:[%s1047 + $0x538] sm:$0xff] %v1382
                  %v1384 = vld [vmem:[%s1046 + $0xa80] sm:$0xff]
                  %1385 = vst [vmem:[%s1047 + $0x540] sm:$0xff] %v1384
                  %v1386 = vld [vmem:[%s1046 + $0xa90] sm:$0xff]
                  %1387 = vst [vmem:[%s1047 + $0x548] sm:$0xff] %v1386
                  %v1388 = vld [vmem:[%s1046 + $0xaa0] sm:$0xff]
                  %1389 = vst [vmem:[%s1047 + $0x550] sm:$0xff] %v1388
                  %v1390 = vld [vmem:[%s1046 + $0xab0] sm:$0xff]
                  %1391 = vst [vmem:[%s1047 + $0x558] sm:$0xff] %v1390
                  %v1392 = vld [vmem:[%s1046 + $0xac0] sm:$0xff]
                  %1393 = vst [vmem:[%s1047 + $0x560] sm:$0xff] %v1392
                  %v1394 = vld [vmem:[%s1046 + $0xad0] sm:$0xff]
                  %1395 = vst [vmem:[%s1047 + $0x568] sm:$0xff] %v1394
                  %v1396 = vld [vmem:[%s1046 + $0xae0] sm:$0xff]
                  %1397 = vst [vmem:[%s1047 + $0x570] sm:$0xff] %v1396
                  %v1398 = vld [vmem:[%s1046 + $0xaf0] sm:$0xff]
                  %1399 = vst [vmem:[%s1047 + $0x578] sm:$0xff] %v1398
                  %v1400 = vld [vmem:[%s1046 + $0xb00] sm:$0xff]
                  %1401 = vst [vmem:[%s1047 + $0x580] sm:$0xff] %v1400
                  %v1402 = vld [vmem:[%s1046 + $0xb10] sm:$0xff]
                  %1403 = vst [vmem:[%s1047 + $0x588] sm:$0xff] %v1402
                  %v1404 = vld [vmem:[%s1046 + $0xb20] sm:$0xff]
                  %1405 = vst [vmem:[%s1047 + $0x590] sm:$0xff] %v1404
                  %v1406 = vld [vmem:[%s1046 + $0xb30] sm:$0xff]
                  %1407 = vst [vmem:[%s1047 + $0x598] sm:$0xff] %v1406
                  %v1408 = vld [vmem:[%s1046 + $0xb40] sm:$0xff]
                  %1409 = vst [vmem:[%s1047 + $0x5a0] sm:$0xff] %v1408
                  %v1410 = vld [vmem:[%s1046 + $0xb50] sm:$0xff]
                  %1411 = vst [vmem:[%s1047 + $0x5a8] sm:$0xff] %v1410
                  %v1412 = vld [vmem:[%s1046 + $0xb60] sm:$0xff]
                  %1413 = vst [vmem:[%s1047 + $0x5b0] sm:$0xff] %v1412
                  %v1414 = vld [vmem:[%s1046 + $0xb70] sm:$0xff]
                  %1415 = vst [vmem:[%s1047 + $0x5b8] sm:$0xff] %v1414
                  %v1416 = vld [vmem:[%s1046 + $0xb80] sm:$0xff]
                  %1417 = vst [vmem:[%s1047 + $0x5c0] sm:$0xff] %v1416
                  %v1418 = vld [vmem:[%s1046 + $0xb90] sm:$0xff]
                  %1419 = vst [vmem:[%s1047 + $0x5c8] sm:$0xff] %v1418
                  %v1420 = vld [vmem:[%s1046 + $0xba0] sm:$0xff]
                  %1421 = vst [vmem:[%s1047 + $0x5d0] sm:$0xff] %v1420
                  %v1422 = vld [vmem:[%s1046 + $0xbb0] sm:$0xff]
                  %1423 = vst [vmem:[%s1047 + $0x5d8] sm:$0xff] %v1422
                  %v1424 = vld [vmem:[%s1046 + $0xbc0] sm:$0xff]
                  %1425 = vst [vmem:[%s1047 + $0x5e0] sm:$0xff] %v1424
                  %v1426 = vld [vmem:[%s1046 + $0xbd0] sm:$0xff]
                  %1427 = vst [vmem:[%s1047 + $0x5e8] sm:$0xff] %v1426
                  %v1428 = vld [vmem:[%s1046 + $0xbe0] sm:$0xff]
                  %1429 = vst [vmem:[%s1047 + $0x5f0] sm:$0xff] %v1428
                  %v1430 = vld [vmem:[%s1046 + $0xbf0] sm:$0xff]
                  %1431 = vst [vmem:[%s1047 + $0x5f8] sm:$0xff] %v1430
                  %v1432 = vld [vmem:[%s1046 + $0xc00] sm:$0xff]
                  %1433 = vst [vmem:[%s1047 + $0x600] sm:$0xff] %v1432
                  %v1434 = vld [vmem:[%s1046 + $0xc10] sm:$0xff]
                  %1435 = vst [vmem:[%s1047 + $0x608] sm:$0xff] %v1434
                  %v1436 = vld [vmem:[%s1046 + $0xc20] sm:$0xff]
                  %1437 = vst [vmem:[%s1047 + $0x610] sm:$0xff] %v1436
                  %v1438 = vld [vmem:[%s1046 + $0xc30] sm:$0xff]
                  %1439 = vst [vmem:[%s1047 + $0x618] sm:$0xff] %v1438
                  %v1440 = vld [vmem:[%s1046 + $0xc40] sm:$0xff]
                  %1441 = vst [vmem:[%s1047 + $0x620] sm:$0xff] %v1440
                  %v1442 = vld [vmem:[%s1046 + $0xc50] sm:$0xff]
                  %1443 = vst [vmem:[%s1047 + $0x628] sm:$0xff] %v1442
                  %v1444 = vld [vmem:[%s1046 + $0xc60] sm:$0xff]
                  %1445 = vst [vmem:[%s1047 + $0x630] sm:$0xff] %v1444
                  %v1446 = vld [vmem:[%s1046 + $0xc70] sm:$0xff]
                  %1447 = vst [vmem:[%s1047 + $0x638] sm:$0xff] %v1446
                  %v1448 = vld [vmem:[%s1046 + $0xc80] sm:$0xff]
                  %1449 = vst [vmem:[%s1047 + $0x640] sm:$0xff] %v1448
                  %v1450 = vld [vmem:[%s1046 + $0xc90] sm:$0xff]
                  %1451 = vst [vmem:[%s1047 + $0x648] sm:$0xff] %v1450
                  %v1452 = vld [vmem:[%s1046 + $0xca0] sm:$0xff]
                  %1453 = vst [vmem:[%s1047 + $0x650] sm:$0xff] %v1452
                  %v1454 = vld [vmem:[%s1046 + $0xcb0] sm:$0xff]
                  %1455 = vst [vmem:[%s1047 + $0x658] sm:$0xff] %v1454
                  %v1456 = vld [vmem:[%s1046 + $0xcc0] sm:$0xff]
                  %1457 = vst [vmem:[%s1047 + $0x660] sm:$0xff] %v1456
                  %v1458 = vld [vmem:[%s1046 + $0xcd0] sm:$0xff]
                  %1459 = vst [vmem:[%s1047 + $0x668] sm:$0xff] %v1458
                  %v1460 = vld [vmem:[%s1046 + $0xce0] sm:$0xff]
                  %1461 = vst [vmem:[%s1047 + $0x670] sm:$0xff] %v1460
                  %v1462 = vld [vmem:[%s1046 + $0xcf0] sm:$0xff]
                  %1463 = vst [vmem:[%s1047 + $0x678] sm:$0xff] %v1462
                  %v1464 = vld [vmem:[%s1046 + $0xd00] sm:$0xff]
                  %1465 = vst [vmem:[%s1047 + $0x680] sm:$0xff] %v1464
                  %v1466 = vld [vmem:[%s1046 + $0xd10] sm:$0xff]
                  %1467 = vst [vmem:[%s1047 + $0x688] sm:$0xff] %v1466
                  %v1468 = vld [vmem:[%s1046 + $0xd20] sm:$0xff]
                  %1469 = vst [vmem:[%s1047 + $0x690] sm:$0xff] %v1468
                  %v1470 = vld [vmem:[%s1046 + $0xd30] sm:$0xff]
                  %1471 = vst [vmem:[%s1047 + $0x698] sm:$0xff] %v1470
                  %v1472 = vld [vmem:[%s1046 + $0xd40] sm:$0xff]
                  %1473 = vst [vmem:[%s1047 + $0x6a0] sm:$0xff] %v1472
                  %v1474 = vld [vmem:[%s1046 + $0xd50] sm:$0xff]
                  %1475 = vst [vmem:[%s1047 + $0x6a8] sm:$0xff] %v1474
                  %v1476 = vld [vmem:[%s1046 + $0xd60] sm:$0xff]
                  %1477 = vst [vmem:[%s1047 + $0x6b0] sm:$0xff] %v1476
                  %v1478 = vld [vmem:[%s1046 + $0xd70] sm:$0xff]
                  %1479 = vst [vmem:[%s1047 + $0x6b8] sm:$0xff] %v1478
                  %v1480 = vld [vmem:[%s1046 + $0xd80] sm:$0xff]
                  %1481 = vst [vmem:[%s1047 + $0x6c0] sm:$0xff] %v1480
                  %v1482 = vld [vmem:[%s1046 + $0xd90] sm:$0xff]
                  %1483 = vst [vmem:[%s1047 + $0x6c8] sm:$0xff] %v1482
                  %v1484 = vld [vmem:[%s1046 + $0xda0] sm:$0xff]
                  %1485 = vst [vmem:[%s1047 + $0x6d0] sm:$0xff] %v1484
                  %v1486 = vld [vmem:[%s1046 + $0xdb0] sm:$0xff]
                  %1487 = vst [vmem:[%s1047 + $0x6d8] sm:$0xff] %v1486
                  %v1488 = vld [vmem:[%s1046 + $0xdc0] sm:$0xff]
                  %1489 = vst [vmem:[%s1047 + $0x6e0] sm:$0xff] %v1488
                  %v1490 = vld [vmem:[%s1046 + $0xdd0] sm:$0xff]
                  %1491 = vst [vmem:[%s1047 + $0x6e8] sm:$0xff] %v1490
                  %v1492 = vld [vmem:[%s1046 + $0xde0] sm:$0xff]
                  %1493 = vst [vmem:[%s1047 + $0x6f0] sm:$0xff] %v1492
                  %v1494 = vld [vmem:[%s1046 + $0xdf0] sm:$0xff]
                  %1495 = vst [vmem:[%s1047 + $0x6f8] sm:$0xff] %v1494
                  %v1496 = vld [vmem:[%s1046 + $0xe00] sm:$0xff]
                  %1497 = vst [vmem:[%s1047 + $0x700] sm:$0xff] %v1496
                  %v1498 = vld [vmem:[%s1046 + $0xe10] sm:$0xff]
                  %1499 = vst [vmem:[%s1047 + $0x708] sm:$0xff] %v1498
                  %v1500 = vld [vmem:[%s1046 + $0xe20] sm:$0xff]
                  %1501 = vst [vmem:[%s1047 + $0x710] sm:$0xff] %v1500
                  %v1502 = vld [vmem:[%s1046 + $0xe30] sm:$0xff]
                  %1503 = vst [vmem:[%s1047 + $0x718] sm:$0xff] %v1502
                  %v1504 = vld [vmem:[%s1046 + $0xe40] sm:$0xff]
                  %1505 = vst [vmem:[%s1047 + $0x720] sm:$0xff] %v1504
                  %v1506 = vld [vmem:[%s1046 + $0xe50] sm:$0xff]
                  %1507 = vst [vmem:[%s1047 + $0x728] sm:$0xff] %v1506
                  %v1508 = vld [vmem:[%s1046 + $0xe60] sm:$0xff]
                  %1509 = vst [vmem:[%s1047 + $0x730] sm:$0xff] %v1508
                  %v1510 = vld [vmem:[%s1046 + $0xe70] sm:$0xff]
                  %1511 = vst [vmem:[%s1047 + $0x738] sm:$0xff] %v1510
                  %v1512 = vld [vmem:[%s1046 + $0xe80] sm:$0xff]
                  %1513 = vst [vmem:[%s1047 + $0x740] sm:$0xff] %v1512
                  %v1514 = vld [vmem:[%s1046 + $0xe90] sm:$0xff]
                  %1515 = vst [vmem:[%s1047 + $0x748] sm:$0xff] %v1514
                  %v1516 = vld [vmem:[%s1046 + $0xea0] sm:$0xff]
                  %1517 = vst [vmem:[%s1047 + $0x750] sm:$0xff] %v1516
                  %v1518 = vld [vmem:[%s1046 + $0xeb0] sm:$0xff]
                  %1519 = vst [vmem:[%s1047 + $0x758] sm:$0xff] %v1518
                  %v1520 = vld [vmem:[%s1046 + $0xec0] sm:$0xff]
                  %1521 = vst [vmem:[%s1047 + $0x760] sm:$0xff] %v1520
                  %v1522 = vld [vmem:[%s1046 + $0xed0] sm:$0xff]
                  %1523 = vst [vmem:[%s1047 + $0x768] sm:$0xff] %v1522
                  %v1524 = vld [vmem:[%s1046 + $0xee0] sm:$0xff]
                  %1525 = vst [vmem:[%s1047 + $0x770] sm:$0xff] %v1524
                  %v1526 = vld [vmem:[%s1046 + $0xef0] sm:$0xff]
                  %1527 = vst [vmem:[%s1047 + $0x778] sm:$0xff] %v1526
                  %v1528 = vld [vmem:[%s1046 + $0xf00] sm:$0xff]
                  %1529 = vst [vmem:[%s1047 + $0x780] sm:$0xff] %v1528
                  %v1530 = vld [vmem:[%s1046 + $0xf10] sm:$0xff]
                  %1531 = vst [vmem:[%s1047 + $0x788] sm:$0xff] %v1530
                  %v1532 = vld [vmem:[%s1046 + $0xf20] sm:$0xff]
                  %1533 = vst [vmem:[%s1047 + $0x790] sm:$0xff] %v1532
                  %v1534 = vld [vmem:[%s1046 + $0xf30] sm:$0xff]
                  %1535 = vst [vmem:[%s1047 + $0x798] sm:$0xff] %v1534
                  %v1536 = vld [vmem:[%s1046 + $0xf40] sm:$0xff]
                  %1537 = vst [vmem:[%s1047 + $0x7a0] sm:$0xff] %v1536
                  %v1538 = vld [vmem:[%s1046 + $0xf50] sm:$0xff]
                  %1539 = vst [vmem:[%s1047 + $0x7a8] sm:$0xff] %v1538
                  %v1540 = vld [vmem:[%s1046 + $0xf60] sm:$0xff]
                  %1541 = vst [vmem:[%s1047 + $0x7b0] sm:$0xff] %v1540
                  %v1542 = vld [vmem:[%s1046 + $0xf70] sm:$0xff]
                  %1543 = vst [vmem:[%s1047 + $0x7b8] sm:$0xff] %v1542
                  %v1544 = vld [vmem:[%s1046 + $0xf80] sm:$0xff]
                  %1545 = vst [vmem:[%s1047 + $0x7c0] sm:$0xff] %v1544
                  %v1546 = vld [vmem:[%s1046 + $0xf90] sm:$0xff]
                  %1547 = vst [vmem:[%s1047 + $0x7c8] sm:$0xff] %v1546
                  %v1548 = vld [vmem:[%s1046 + $0xfa0] sm:$0xff]
                  %1549 = vst [vmem:[%s1047 + $0x7d0] sm:$0xff] %v1548
                  %v1550 = vld [vmem:[%s1046 + $0xfb0] sm:$0xff]
                  %1551 = vst [vmem:[%s1047 + $0x7d8] sm:$0xff] %v1550
                  %v1552 = vld [vmem:[%s1046 + $0xfc0] sm:$0xff]
                  %1553 = vst [vmem:[%s1047 + $0x7e0] sm:$0xff] %v1552
                  %v1554 = vld [vmem:[%s1046 + $0xfd0] sm:$0xff]
                  %1555 = vst [vmem:[%s1047 + $0x7e8] sm:$0xff] %v1554
                  %v1556 = vld [vmem:[%s1046 + $0xfe0] sm:$0xff]
                  %1557 = vst [vmem:[%s1047 + $0x7f0] sm:$0xff] %v1556
                  %v1558 = vld [vmem:[%s1046 + $0xff0] sm:$0xff]
                  %1559 = vst [vmem:[%s1047 + $0x7f8] sm:$0xff] %v1558
                  %v1560 = vld [vmem:[%s1046 + $0x1000] sm:$0xff]
                  %1561 = vst [vmem:[%s1047 + $0x800] sm:$0xff] %v1560
                  %v1562 = vld [vmem:[%s1046 + $0x1010] sm:$0xff]
                  %1563 = vst [vmem:[%s1047 + $0x808] sm:$0xff] %v1562
                  %v1564 = vld [vmem:[%s1046 + $0x1020] sm:$0xff]
                  %1565 = vst [vmem:[%s1047 + $0x810] sm:$0xff] %v1564
                  %v1566 = vld [vmem:[%s1046 + $0x1030] sm:$0xff]
                  %1567 = vst [vmem:[%s1047 + $0x818] sm:$0xff] %v1566
                  %v1568 = vld [vmem:[%s1046 + $0x1040] sm:$0xff]
                  %1569 = vst [vmem:[%s1047 + $0x820] sm:$0xff] %v1568
                  %v1570 = vld [vmem:[%s1046 + $0x1050] sm:$0xff]
                  %1571 = vst [vmem:[%s1047 + $0x828] sm:$0xff] %v1570
                  %v1572 = vld [vmem:[%s1046 + $0x1060] sm:$0xff]
                  %1573 = vst [vmem:[%s1047 + $0x830] sm:$0xff] %v1572
                  %v1574 = vld [vmem:[%s1046 + $0x1070] sm:$0xff]
                  %1575 = vst [vmem:[%s1047 + $0x838] sm:$0xff] %v1574
                  %v1576 = vld [vmem:[%s1046 + $0x1080] sm:$0xff]
                  %1577 = vst [vmem:[%s1047 + $0x840] sm:$0xff] %v1576
                  %v1578 = vld [vmem:[%s1046 + $0x1090] sm:$0xff]
                  %1579 = vst [vmem:[%s1047 + $0x848] sm:$0xff] %v1578
                  %v1580 = vld [vmem:[%s1046 + $0x10a0] sm:$0xff]
                  %1581 = vst [vmem:[%s1047 + $0x850] sm:$0xff] %v1580
                  %v1582 = vld [vmem:[%s1046 + $0x10b0] sm:$0xff]
                  %1583 = vst [vmem:[%s1047 + $0x858] sm:$0xff] %v1582
                  %v1584 = vld [vmem:[%s1046 + $0x10c0] sm:$0xff]
                  %1585 = vst [vmem:[%s1047 + $0x860] sm:$0xff] %v1584
                  %v1586 = vld [vmem:[%s1046 + $0x10d0] sm:$0xff]
                  %1587 = vst [vmem:[%s1047 + $0x868] sm:$0xff] %v1586
                  %v1588 = vld [vmem:[%s1046 + $0x10e0] sm:$0xff]
                  %1589 = vst [vmem:[%s1047 + $0x870] sm:$0xff] %v1588
                  %v1590 = vld [vmem:[%s1046 + $0x10f0] sm:$0xff]
                  %1591 = vst [vmem:[%s1047 + $0x878] sm:$0xff] %v1590
                  %v1592 = vld [vmem:[%s1046 + $0x1100] sm:$0xff]
                  %1593 = vst [vmem:[%s1047 + $0x880] sm:$0xff] %v1592
                  %v1594 = vld [vmem:[%s1046 + $0x1110] sm:$0xff]
                  %1595 = vst [vmem:[%s1047 + $0x888] sm:$0xff] %v1594
                  %v1596 = vld [vmem:[%s1046 + $0x1120] sm:$0xff]
                  %1597 = vst [vmem:[%s1047 + $0x890] sm:$0xff] %v1596
                  %v1598 = vld [vmem:[%s1046 + $0x1130] sm:$0xff]
                  %1599 = vst [vmem:[%s1047 + $0x898] sm:$0xff] %v1598
                  %v1600 = vld [vmem:[%s1046 + $0x1140] sm:$0xff]
                  %1601 = vst [vmem:[%s1047 + $0x8a0] sm:$0xff] %v1600
                  %v1602 = vld [vmem:[%s1046 + $0x1150] sm:$0xff]
                  %1603 = vst [vmem:[%s1047 + $0x8a8] sm:$0xff] %v1602
                  %v1604 = vld [vmem:[%s1046 + $0x1160] sm:$0xff]
                  %1605 = vst [vmem:[%s1047 + $0x8b0] sm:$0xff] %v1604
                  %v1606 = vld [vmem:[%s1046 + $0x1170] sm:$0xff]
                  %1607 = vst [vmem:[%s1047 + $0x8b8] sm:$0xff] %v1606
                  %v1608 = vld [vmem:[%s1046 + $0x1180] sm:$0xff]
                  %1609 = vst [vmem:[%s1047 + $0x8c0] sm:$0xff] %v1608
                  %v1610 = vld [vmem:[%s1046 + $0x1190] sm:$0xff]
                  %1611 = vst [vmem:[%s1047 + $0x8c8] sm:$0xff] %v1610
                  %v1612 = vld [vmem:[%s1046 + $0x11a0] sm:$0xff]
                  %1613 = vst [vmem:[%s1047 + $0x8d0] sm:$0xff] %v1612
                  %v1614 = vld [vmem:[%s1046 + $0x11b0] sm:$0xff]
                  %1615 = vst [vmem:[%s1047 + $0x8d8] sm:$0xff] %v1614
                  %v1616 = vld [vmem:[%s1046 + $0x11c0] sm:$0xff]
                  %1617 = vst [vmem:[%s1047 + $0x8e0] sm:$0xff] %v1616
                  %v1618 = vld [vmem:[%s1046 + $0x11d0] sm:$0xff]
                  %1619 = vst [vmem:[%s1047 + $0x8e8] sm:$0xff] %v1618
                  %v1620 = vld [vmem:[%s1046 + $0x11e0] sm:$0xff]
                  %1621 = vst [vmem:[%s1047 + $0x8f0] sm:$0xff] %v1620
                  %v1622 = vld [vmem:[%s1046 + $0x11f0] sm:$0xff]
                  %1623 = vst [vmem:[%s1047 + $0x8f8] sm:$0xff] %v1622
                  %v1624 = vld [vmem:[%s1046 + $0x1200] sm:$0xff]
                  %1625 = vst [vmem:[%s1047 + $0x900] sm:$0xff] %v1624
                  %v1626 = vld [vmem:[%s1046 + $0x1210] sm:$0xff]
                  %1627 = vst [vmem:[%s1047 + $0x908] sm:$0xff] %v1626
                  %v1628 = vld [vmem:[%s1046 + $0x1220] sm:$0xff]
                  %1629 = vst [vmem:[%s1047 + $0x910] sm:$0xff] %v1628
                  %v1630 = vld [vmem:[%s1046 + $0x1230] sm:$0xff]
                  %1631 = vst [vmem:[%s1047 + $0x918] sm:$0xff] %v1630
                  %v1632 = vld [vmem:[%s1046 + $0x1240] sm:$0xff]
                  %1633 = vst [vmem:[%s1047 + $0x920] sm:$0xff] %v1632
                  %v1634 = vld [vmem:[%s1046 + $0x1250] sm:$0xff]
                  %1635 = vst [vmem:[%s1047 + $0x928] sm:$0xff] %v1634
                  %v1636 = vld [vmem:[%s1046 + $0x1260] sm:$0xff]
                  %1637 = vst [vmem:[%s1047 + $0x930] sm:$0xff] %v1636
                  %v1638 = vld [vmem:[%s1046 + $0x1270] sm:$0xff]
                  %1639 = vst [vmem:[%s1047 + $0x938] sm:$0xff] %v1638
                  %v1640 = vld [vmem:[%s1046 + $0x1280] sm:$0xff]
                  %1641 = vst [vmem:[%s1047 + $0x940] sm:$0xff] %v1640
                  %v1642 = vld [vmem:[%s1046 + $0x1290] sm:$0xff]
                  %1643 = vst [vmem:[%s1047 + $0x948] sm:$0xff] %v1642
                  %v1644 = vld [vmem:[%s1046 + $0x12a0] sm:$0xff]
                  %1645 = vst [vmem:[%s1047 + $0x950] sm:$0xff] %v1644
                  %v1646 = vld [vmem:[%s1046 + $0x12b0] sm:$0xff]
                  %1647 = vst [vmem:[%s1047 + $0x958] sm:$0xff] %v1646
                  %v1648 = vld [vmem:[%s1046 + $0x12c0] sm:$0xff]
                  %1649 = vst [vmem:[%s1047 + $0x960] sm:$0xff] %v1648
                  %v1650 = vld [vmem:[%s1046 + $0x12d0] sm:$0xff]
                  %1651 = vst [vmem:[%s1047 + $0x968] sm:$0xff] %v1650
                  %v1652 = vld [vmem:[%s1046 + $0x12e0] sm:$0xff]
                  %1653 = vst [vmem:[%s1047 + $0x970] sm:$0xff] %v1652
                  %v1654 = vld [vmem:[%s1046 + $0x12f0] sm:$0xff]
                  %1655 = vst [vmem:[%s1047 + $0x978] sm:$0xff] %v1654
                  %v1656 = vld [vmem:[%s1046 + $0x1300] sm:$0xff]
                  %1657 = vst [vmem:[%s1047 + $0x980] sm:$0xff] %v1656
                  %v1658 = vld [vmem:[%s1046 + $0x1310] sm:$0xff]
                  %1659 = vst [vmem:[%s1047 + $0x988] sm:$0xff] %v1658
                  %v1660 = vld [vmem:[%s1046 + $0x1320] sm:$0xff]
                  %1661 = vst [vmem:[%s1047 + $0x990] sm:$0xff] %v1660
                  %v1662 = vld [vmem:[%s1046 + $0x1330] sm:$0xff]
                  %1663 = vst [vmem:[%s1047 + $0x998] sm:$0xff] %v1662
                  %v1664 = vld [vmem:[%s1046 + $0x1340] sm:$0xff]
                  %1665 = vst [vmem:[%s1047 + $0x9a0] sm:$0xff] %v1664
                  %v1666 = vld [vmem:[%s1046 + $0x1350] sm:$0xff]
                  %1667 = vst [vmem:[%s1047 + $0x9a8] sm:$0xff] %v1666
                  %v1668 = vld [vmem:[%s1046 + $0x1360] sm:$0xff]
                  %1669 = vst [vmem:[%s1047 + $0x9b0] sm:$0xff] %v1668
                  %v1670 = vld [vmem:[%s1046 + $0x1370] sm:$0xff]
                  %1671 = vst [vmem:[%s1047 + $0x9b8] sm:$0xff] %v1670
                  %v1672 = vld [vmem:[%s1046 + $0x1380] sm:$0xff]
                  %1673 = vst [vmem:[%s1047 + $0x9c0] sm:$0xff] %v1672
                  %v1674 = vld [vmem:[%s1046 + $0x1390] sm:$0xff]
                  %1675 = vst [vmem:[%s1047 + $0x9c8] sm:$0xff] %v1674
                  %v1676 = vld [vmem:[%s1046 + $0x13a0] sm:$0xff]
                  %1677 = vst [vmem:[%s1047 + $0x9d0] sm:$0xff] %v1676
                  %v1678 = vld [vmem:[%s1046 + $0x13b0] sm:$0xff]
                  %1679 = vst [vmem:[%s1047 + $0x9d8] sm:$0xff] %v1678
                  %v1680 = vld [vmem:[%s1046 + $0x13c0] sm:$0xff]
                  %1681 = vst [vmem:[%s1047 + $0x9e0] sm:$0xff] %v1680
                  %v1682 = vld [vmem:[%s1046 + $0x13d0] sm:$0xff]
                  %1683 = vst [vmem:[%s1047 + $0x9e8] sm:$0xff] %v1682
                  %v1684 = vld [vmem:[%s1046 + $0x13e0] sm:$0xff]
                  %1685 = vst [vmem:[%s1047 + $0x9f0] sm:$0xff] %v1684
                  %v1686 = vld [vmem:[%s1046 + $0x13f0] sm:$0xff]
                  %1687 = vst [vmem:[%s1047 + $0x9f8] sm:$0xff] %v1686
                  %v1688 = vld [vmem:[%s1046 + $0x1400] sm:$0xff]
                  %1689 = vst [vmem:[%s1047 + $0xa00] sm:$0xff] %v1688
                  %v1690 = vld [vmem:[%s1046 + $0x1410] sm:$0xff]
                  %1691 = vst [vmem:[%s1047 + $0xa08] sm:$0xff] %v1690
                  %v1692 = vld [vmem:[%s1046 + $0x1420] sm:$0xff]
                  %1693 = vst [vmem:[%s1047 + $0xa10] sm:$0xff] %v1692
                  %v1694 = vld [vmem:[%s1046 + $0x1430] sm:$0xff]
                  %1695 = vst [vmem:[%s1047 + $0xa18] sm:$0xff] %v1694
                  %v1696 = vld [vmem:[%s1046 + $0x1440] sm:$0xff]
                  %1697 = vst [vmem:[%s1047 + $0xa20] sm:$0xff] %v1696
                  %v1698 = vld [vmem:[%s1046 + $0x1450] sm:$0xff]
                  %1699 = vst [vmem:[%s1047 + $0xa28] sm:$0xff] %v1698
                  %v1700 = vld [vmem:[%s1046 + $0x1460] sm:$0xff]
                  %1701 = vst [vmem:[%s1047 + $0xa30] sm:$0xff] %v1700
                  %v1702 = vld [vmem:[%s1046 + $0x1470] sm:$0xff]
                  %1703 = vst [vmem:[%s1047 + $0xa38] sm:$0xff] %v1702
                  %v1704 = vld [vmem:[%s1046 + $0x1480] sm:$0xff]
                  %1705 = vst [vmem:[%s1047 + $0xa40] sm:$0xff] %v1704
                  %v1706 = vld [vmem:[%s1046 + $0x1490] sm:$0xff]
                  %1707 = vst [vmem:[%s1047 + $0xa48] sm:$0xff] %v1706
                  %v1708 = vld [vmem:[%s1046 + $0x14a0] sm:$0xff]
                  %1709 = vst [vmem:[%s1047 + $0xa50] sm:$0xff] %v1708
                  %v1710 = vld [vmem:[%s1046 + $0x14b0] sm:$0xff]
                  %1711 = vst [vmem:[%s1047 + $0xa58] sm:$0xff] %v1710
                  %v1712 = vld [vmem:[%s1046 + $0x14c0] sm:$0xff]
                  %1713 = vst [vmem:[%s1047 + $0xa60] sm:$0xff] %v1712
                  %v1714 = vld [vmem:[%s1046 + $0x14d0] sm:$0xff]
                  %1715 = vst [vmem:[%s1047 + $0xa68] sm:$0xff] %v1714
                  %v1716 = vld [vmem:[%s1046 + $0x14e0] sm:$0xff]
                  %1717 = vst [vmem:[%s1047 + $0xa70] sm:$0xff] %v1716
                  %v1718 = vld [vmem:[%s1046 + $0x14f0] sm:$0xff]
                  %1719 = vst [vmem:[%s1047 + $0xa78] sm:$0xff] %v1718
                  %v1720 = vld [vmem:[%s1046 + $0x1500] sm:$0xff]
                  %1721 = vst [vmem:[%s1047 + $0xa80] sm:$0xff] %v1720
                  %v1722 = vld [vmem:[%s1046 + $0x1510] sm:$0xff]
                  %1723 = vst [vmem:[%s1047 + $0xa88] sm:$0xff] %v1722
                  %v1724 = vld [vmem:[%s1046 + $0x1520] sm:$0xff]
                  %1725 = vst [vmem:[%s1047 + $0xa90] sm:$0xff] %v1724
                  %v1726 = vld [vmem:[%s1046 + $0x1530] sm:$0xff]
                  %1727 = vst [vmem:[%s1047 + $0xa98] sm:$0xff] %v1726
                  %v1728 = vld [vmem:[%s1046 + $0x1540] sm:$0xff]
                  %1729 = vst [vmem:[%s1047 + $0xaa0] sm:$0xff] %v1728
                  %v1730 = vld [vmem:[%s1046 + $0x1550] sm:$0xff]
                  %1731 = vst [vmem:[%s1047 + $0xaa8] sm:$0xff] %v1730
                  %v1732 = vld [vmem:[%s1046 + $0x1560] sm:$0xff]
                  %1733 = vst [vmem:[%s1047 + $0xab0] sm:$0xff] %v1732
                  %v1734 = vld [vmem:[%s1046 + $0x1570] sm:$0xff]
                  %1735 = vst [vmem:[%s1047 + $0xab8] sm:$0xff] %v1734
                  %v1736 = vld [vmem:[%s1046 + $0x1580] sm:$0xff]
                  %1737 = vst [vmem:[%s1047 + $0xac0] sm:$0xff] %v1736
                  %v1738 = vld [vmem:[%s1046 + $0x1590] sm:$0xff]
                  %1739 = vst [vmem:[%s1047 + $0xac8] sm:$0xff] %v1738
                  %v1740 = vld [vmem:[%s1046 + $0x15a0] sm:$0xff]
                  %1741 = vst [vmem:[%s1047 + $0xad0] sm:$0xff] %v1740
                  %v1742 = vld [vmem:[%s1046 + $0x15b0] sm:$0xff]
                  %1743 = vst [vmem:[%s1047 + $0xad8] sm:$0xff] %v1742
                  %v1744 = vld [vmem:[%s1046 + $0x15c0] sm:$0xff]
                  %1745 = vst [vmem:[%s1047 + $0xae0] sm:$0xff] %v1744
                  %v1746 = vld [vmem:[%s1046 + $0x15d0] sm:$0xff]
                  %1747 = vst [vmem:[%s1047 + $0xae8] sm:$0xff] %v1746
                  %v1748 = vld [vmem:[%s1046 + $0x15e0] sm:$0xff]
                  %1749 = vst [vmem:[%s1047 + $0xaf0] sm:$0xff] %v1748
                  %v1750 = vld [vmem:[%s1046 + $0x15f0] sm:$0xff]
                  %1751 = vst [vmem:[%s1047 + $0xaf8] sm:$0xff] %v1750
                  %v1752 = vld [vmem:[%s1046 + $0x1600] sm:$0xff]
                  %1753 = vst [vmem:[%s1047 + $0xb00] sm:$0xff] %v1752
                  %v1754 = vld [vmem:[%s1046 + $0x1610] sm:$0xff]
                  %1755 = vst [vmem:[%s1047 + $0xb08] sm:$0xff] %v1754
                  %v1756 = vld [vmem:[%s1046 + $0x1620] sm:$0xff]
                  %1757 = vst [vmem:[%s1047 + $0xb10] sm:$0xff] %v1756
                  %v1758 = vld [vmem:[%s1046 + $0x1630] sm:$0xff]
                  %1759 = vst [vmem:[%s1047 + $0xb18] sm:$0xff] %v1758
                  %v1760 = vld [vmem:[%s1046 + $0x1640] sm:$0xff]
                  %1761 = vst [vmem:[%s1047 + $0xb20] sm:$0xff] %v1760
                  %v1762 = vld [vmem:[%s1046 + $0x1650] sm:$0xff]
                  %1763 = vst [vmem:[%s1047 + $0xb28] sm:$0xff] %v1762
                  %v1764 = vld [vmem:[%s1046 + $0x1660] sm:$0xff]
                  %1765 = vst [vmem:[%s1047 + $0xb30] sm:$0xff] %v1764
                  %v1766 = vld [vmem:[%s1046 + $0x1670] sm:$0xff]
                  %1767 = vst [vmem:[%s1047 + $0xb38] sm:$0xff] %v1766
                  %v1768 = vld [vmem:[%s1046 + $0x1680] sm:$0xff]
                  %1769 = vst [vmem:[%s1047 + $0xb40] sm:$0xff] %v1768
                  %v1770 = vld [vmem:[%s1046 + $0x1690] sm:$0xff]
                  %1771 = vst [vmem:[%s1047 + $0xb48] sm:$0xff] %v1770
                  %v1772 = vld [vmem:[%s1046 + $0x16a0] sm:$0xff]
                  %1773 = vst [vmem:[%s1047 + $0xb50] sm:$0xff] %v1772
                  %v1774 = vld [vmem:[%s1046 + $0x16b0] sm:$0xff]
                  %1775 = vst [vmem:[%s1047 + $0xb58] sm:$0xff] %v1774
                  %v1776 = vld [vmem:[%s1046 + $0x16c0] sm:$0xff]
                  %1777 = vst [vmem:[%s1047 + $0xb60] sm:$0xff] %v1776
                  %v1778 = vld [vmem:[%s1046 + $0x16d0] sm:$0xff]
                  %1779 = vst [vmem:[%s1047 + $0xb68] sm:$0xff] %v1778
                  %v1780 = vld [vmem:[%s1046 + $0x16e0] sm:$0xff]
                  %1781 = vst [vmem:[%s1047 + $0xb70] sm:$0xff] %v1780
                  %v1782 = vld [vmem:[%s1046 + $0x16f0] sm:$0xff]
                  %1783 = vst [vmem:[%s1047 + $0xb78] sm:$0xff] %v1782
                  %v1784 = vld [vmem:[%s1046 + $0x1700] sm:$0xff]
                  %1785 = vst [vmem:[%s1047 + $0xb80] sm:$0xff] %v1784
                  %v1786 = vld [vmem:[%s1046 + $0x1710] sm:$0xff]
                  %1787 = vst [vmem:[%s1047 + $0xb88] sm:$0xff] %v1786
                  %v1788 = vld [vmem:[%s1046 + $0x1720] sm:$0xff]
                  %1789 = vst [vmem:[%s1047 + $0xb90] sm:$0xff] %v1788
                  %v1790 = vld [vmem:[%s1046 + $0x1730] sm:$0xff]
                  %1791 = vst [vmem:[%s1047 + $0xb98] sm:$0xff] %v1790
                  %v1792 = vld [vmem:[%s1046 + $0x1740] sm:$0xff]
                  %1793 = vst [vmem:[%s1047 + $0xba0] sm:$0xff] %v1792
                  %v1794 = vld [vmem:[%s1046 + $0x1750] sm:$0xff]
                  %1795 = vst [vmem:[%s1047 + $0xba8] sm:$0xff] %v1794
                  %v1796 = vld [vmem:[%s1046 + $0x1760] sm:$0xff]
                  %1797 = vst [vmem:[%s1047 + $0xbb0] sm:$0xff] %v1796
                  %v1798 = vld [vmem:[%s1046 + $0x1770] sm:$0xff]
                  %1799 = vst [vmem:[%s1047 + $0xbb8] sm:$0xff] %v1798
                  %v1800 = vld [vmem:[%s1046 + $0x1780] sm:$0xff]
                  %1801 = vst [vmem:[%s1047 + $0xbc0] sm:$0xff] %v1800
                  %v1802 = vld [vmem:[%s1046 + $0x1790] sm:$0xff]
                  %1803 = vst [vmem:[%s1047 + $0xbc8] sm:$0xff] %v1802
                  %v1804 = vld [vmem:[%s1046 + $0x17a0] sm:$0xff]
                  %1805 = vst [vmem:[%s1047 + $0xbd0] sm:$0xff] %v1804
                  %v1806 = vld [vmem:[%s1046 + $0x17b0] sm:$0xff]
                  %1807 = vst [vmem:[%s1047 + $0xbd8] sm:$0xff] %v1806
                  %v1808 = vld [vmem:[%s1046 + $0x17c0] sm:$0xff]
                  %1809 = vst [vmem:[%s1047 + $0xbe0] sm:$0xff] %v1808
                  %v1810 = vld [vmem:[%s1046 + $0x17d0] sm:$0xff]
                  %1811 = vst [vmem:[%s1047 + $0xbe8] sm:$0xff] %v1810
                  %v1812 = vld [vmem:[%s1046 + $0x17e0] sm:$0xff]
                  %1813 = vst [vmem:[%s1047 + $0xbf0] sm:$0xff] %v1812
                  %v1814 = vld [vmem:[%s1046 + $0x17f0] sm:$0xff]
                  %1815 = vst [vmem:[%s1047 + $0xbf8] sm:$0xff] %v1814
                  %v1816 = vld [vmem:[%s1046 + $0x1800] sm:$0xff]
                  %1817 = vst [vmem:[%s1047 + $0xc00] sm:$0xff] %v1816
                  %v1818 = vld [vmem:[%s1046 + $0x1810] sm:$0xff]
                  %1819 = vst [vmem:[%s1047 + $0xc08] sm:$0xff] %v1818
                  %v1820 = vld [vmem:[%s1046 + $0x1820] sm:$0xff]
                  %1821 = vst [vmem:[%s1047 + $0xc10] sm:$0xff] %v1820
                  %v1822 = vld [vmem:[%s1046 + $0x1830] sm:$0xff]
                  %1823 = vst [vmem:[%s1047 + $0xc18] sm:$0xff] %v1822
                  %v1824 = vld [vmem:[%s1046 + $0x1840] sm:$0xff]
                  %1825 = vst [vmem:[%s1047 + $0xc20] sm:$0xff] %v1824
                  %v1826 = vld [vmem:[%s1046 + $0x1850] sm:$0xff]
                  %1827 = vst [vmem:[%s1047 + $0xc28] sm:$0xff] %v1826
                  %v1828 = vld [vmem:[%s1046 + $0x1860] sm:$0xff]
                  %1829 = vst [vmem:[%s1047 + $0xc30] sm:$0xff] %v1828
                  %v1830 = vld [vmem:[%s1046 + $0x1870] sm:$0xff]
                  %1831 = vst [vmem:[%s1047 + $0xc38] sm:$0xff] %v1830
                  %v1832 = vld [vmem:[%s1046 + $0x1880] sm:$0xff]
                  %1833 = vst [vmem:[%s1047 + $0xc40] sm:$0xff] %v1832
                  %v1834 = vld [vmem:[%s1046 + $0x1890] sm:$0xff]
                  %1835 = vst [vmem:[%s1047 + $0xc48] sm:$0xff] %v1834
                  %v1836 = vld [vmem:[%s1046 + $0x18a0] sm:$0xff]
                  %1837 = vst [vmem:[%s1047 + $0xc50] sm:$0xff] %v1836
                  %v1838 = vld [vmem:[%s1046 + $0x18b0] sm:$0xff]
                  %1839 = vst [vmem:[%s1047 + $0xc58] sm:$0xff] %v1838
                  %v1840 = vld [vmem:[%s1046 + $0x18c0] sm:$0xff]
                  %1841 = vst [vmem:[%s1047 + $0xc60] sm:$0xff] %v1840
                  %v1842 = vld [vmem:[%s1046 + $0x18d0] sm:$0xff]
                  %1843 = vst [vmem:[%s1047 + $0xc68] sm:$0xff] %v1842
                  %v1844 = vld [vmem:[%s1046 + $0x18e0] sm:$0xff]
                  %1845 = vst [vmem:[%s1047 + $0xc70] sm:$0xff] %v1844
                  %v1846 = vld [vmem:[%s1046 + $0x18f0] sm:$0xff]
                  %1847 = vst [vmem:[%s1047 + $0xc78] sm:$0xff] %v1846
                $region52: #{forward.7} parent=46 // loop_footer
                  %s1045 = sadd.s32 1, %s1041
                $region53: #{forward.7} parent=46 // loop_footer_branch
                  %1040 = sbr.rel target = $region49
                $region54: #{forward.7} parent=46 // loop_exit
                  _
              $region47: #{forward.7} parent=31 // pred_fallthru
                _
              // Predicated region
              $region55: #{forward.7} parent=31 // pred_check
                _
              $region56: #{forward.7} parent=31 // pred_check_branch
                %1849 = sbr.rel target = $region58
              $region57: #{forward.7} parent=31 // pred_region
                _
              $region58: #{forward.7} parent=31 // pred_fallthru
                _
            $region32: #{forward.7} parent=27 // pred_fallthru
              _
            // Predicated region
            $region33: #{forward.7} parent=27 // pred_check
              _
            $region34: #{forward.7} parent=27 // pred_check_branch
              %227 = sbr.rel target = $region36
            $region35: #{forward.7} parent=27 // pred_region
              %s229 = ssub.s32 256, 1
              loop: start=0, step=1, limit=1
              $region37: #{forward.7} parent=35 // loop_pre_header
                _
              $region38: #{forward.7} parent=35 // loop_header
                %s231 = sphi 0, %s235
                %p232 = scmp.ge.s32.totalorder %s231, 1
                %s236 = sphi %s221, %s221
                %s237 = sphi %s215, %s215
              $region39: #{forward.7} parent=35 // loop_header_branch
                %234 = sbr.rel (%p232) target = $region43
              $region40: #{forward.7} parent=35 // loop_body
                %v238 = vld [vmem:[%s236] sm:%s229]
                %239 = vst [vmem:[%s237] sm:%s229] %v238
                %v240 = vld [vmem:[%s236 + $0x10] sm:%s229]
                %241 = vst [vmem:[%s237 + $0x8] sm:%s229] %v240
                %v242 = vld [vmem:[%s236 + $0x20] sm:%s229]
                %243 = vst [vmem:[%s237 + $0x10] sm:%s229] %v242
                %v244 = vld [vmem:[%s236 + $0x30] sm:%s229]
                %245 = vst [vmem:[%s237 + $0x18] sm:%s229] %v244
                %v246 = vld [vmem:[%s236 + $0x40] sm:%s229]
                %247 = vst [vmem:[%s237 + $0x20] sm:%s229] %v246
                %v248 = vld [vmem:[%s236 + $0x50] sm:%s229]
                %249 = vst [vmem:[%s237 + $0x28] sm:%s229] %v248
                %v250 = vld [vmem:[%s236 + $0x60] sm:%s229]
                %251 = vst [vmem:[%s237 + $0x30] sm:%s229] %v250
                %v252 = vld [vmem:[%s236 + $0x70] sm:%s229]
                %253 = vst [vmem:[%s237 + $0x38] sm:%s229] %v252
                %v254 = vld [vmem:[%s236 + $0x80] sm:%s229]
                %255 = vst [vmem:[%s237 + $0x40] sm:%s229] %v254
                %v256 = vld [vmem:[%s236 + $0x90] sm:%s229]
                %257 = vst [vmem:[%s237 + $0x48] sm:%s229] %v256
                %v258 = vld [vmem:[%s236 + $0xa0] sm:%s229]
                %259 = vst [vmem:[%s237 + $0x50] sm:%s229] %v258
                %v260 = vld [vmem:[%s236 + $0xb0] sm:%s229]
                %261 = vst [vmem:[%s237 + $0x58] sm:%s229] %v260
                %v262 = vld [vmem:[%s236 + $0xc0] sm:%s229]
                %263 = vst [vmem:[%s237 + $0x60] sm:%s229] %v262
                %v264 = vld [vmem:[%s236 + $0xd0] sm:%s229]
                %265 = vst [vmem:[%s237 + $0x68] sm:%s229] %v264
                %v266 = vld [vmem:[%s236 + $0xe0] sm:%s229]
                %267 = vst [vmem:[%s237 + $0x70] sm:%s229] %v266
                %v268 = vld [vmem:[%s236 + $0xf0] sm:%s229]
                %269 = vst [vmem:[%s237 + $0x78] sm:%s229] %v268
                %v270 = vld [vmem:[%s236 + $0x100] sm:%s229]
                %271 = vst [vmem:[%s237 + $0x80] sm:%s229] %v270
                %v272 = vld [vmem:[%s236 + $0x110] sm:%s229]
                %273 = vst [vmem:[%s237 + $0x88] sm:%s229] %v272
                %v274 = vld [vmem:[%s236 + $0x120] sm:%s229]
                %275 = vst [vmem:[%s237 + $0x90] sm:%s229] %v274
                %v276 = vld [vmem:[%s236 + $0x130] sm:%s229]
                %277 = vst [vmem:[%s237 + $0x98] sm:%s229] %v276
                %v278 = vld [vmem:[%s236 + $0x140] sm:%s229]
                %279 = vst [vmem:[%s237 + $0xa0] sm:%s229] %v278
                %v280 = vld [vmem:[%s236 + $0x150] sm:%s229]
                %281 = vst [vmem:[%s237 + $0xa8] sm:%s229] %v280
                %v282 = vld [vmem:[%s236 + $0x160] sm:%s229]
                %283 = vst [vmem:[%s237 + $0xb0] sm:%s229] %v282
                %v284 = vld [vmem:[%s236 + $0x170] sm:%s229]
                %285 = vst [vmem:[%s237 + $0xb8] sm:%s229] %v284
                %v286 = vld [vmem:[%s236 + $0x180] sm:%s229]
                %287 = vst [vmem:[%s237 + $0xc0] sm:%s229] %v286
                %v288 = vld [vmem:[%s236 + $0x190] sm:%s229]
                %289 = vst [vmem:[%s237 + $0xc8] sm:%s229] %v288
                %v290 = vld [vmem:[%s236 + $0x1a0] sm:%s229]
                %291 = vst [vmem:[%s237 + $0xd0] sm:%s229] %v290
                %v292 = vld [vmem:[%s236 + $0x1b0] sm:%s229]
                %293 = vst [vmem:[%s237 + $0xd8] sm:%s229] %v292
                %v294 = vld [vmem:[%s236 + $0x1c0] sm:%s229]
                %295 = vst [vmem:[%s237 + $0xe0] sm:%s229] %v294
                %v296 = vld [vmem:[%s236 + $0x1d0] sm:%s229]
                %297 = vst [vmem:[%s237 + $0xe8] sm:%s229] %v296
                %v298 = vld [vmem:[%s236 + $0x1e0] sm:%s229]
                %299 = vst [vmem:[%s237 + $0xf0] sm:%s229] %v298
                %v300 = vld [vmem:[%s236 + $0x1f0] sm:%s229]
                %301 = vst [vmem:[%s237 + $0xf8] sm:%s229] %v300
                %v302 = vld [vmem:[%s236 + $0x200] sm:%s229]
                %303 = vst [vmem:[%s237 + $0x100] sm:%s229] %v302
                %v304 = vld [vmem:[%s236 + $0x210] sm:%s229]
                %305 = vst [vmem:[%s237 + $0x108] sm:%s229] %v304
                %v306 = vld [vmem:[%s236 + $0x220] sm:%s229]
                %307 = vst [vmem:[%s237 + $0x110] sm:%s229] %v306
                %v308 = vld [vmem:[%s236 + $0x230] sm:%s229]
                %309 = vst [vmem:[%s237 + $0x118] sm:%s229] %v308
                %v310 = vld [vmem:[%s236 + $0x240] sm:%s229]
                %311 = vst [vmem:[%s237 + $0x120] sm:%s229] %v310
                %v312 = vld [vmem:[%s236 + $0x250] sm:%s229]
                %313 = vst [vmem:[%s237 + $0x128] sm:%s229] %v312
                %v314 = vld [vmem:[%s236 + $0x260] sm:%s229]
                %315 = vst [vmem:[%s237 + $0x130] sm:%s229] %v314
                %v316 = vld [vmem:[%s236 + $0x270] sm:%s229]
                %317 = vst [vmem:[%s237 + $0x138] sm:%s229] %v316
                %v318 = vld [vmem:[%s236 + $0x280] sm:%s229]
                %319 = vst [vmem:[%s237 + $0x140] sm:%s229] %v318
                %v320 = vld [vmem:[%s236 + $0x290] sm:%s229]
                %321 = vst [vmem:[%s237 + $0x148] sm:%s229] %v320
                %v322 = vld [vmem:[%s236 + $0x2a0] sm:%s229]
                %323 = vst [vmem:[%s237 + $0x150] sm:%s229] %v322
                %v324 = vld [vmem:[%s236 + $0x2b0] sm:%s229]
                %325 = vst [vmem:[%s237 + $0x158] sm:%s229] %v324
                %v326 = vld [vmem:[%s236 + $0x2c0] sm:%s229]
                %327 = vst [vmem:[%s237 + $0x160] sm:%s229] %v326
                %v328 = vld [vmem:[%s236 + $0x2d0] sm:%s229]
                %329 = vst [vmem:[%s237 + $0x168] sm:%s229] %v328
                %v330 = vld [vmem:[%s236 + $0x2e0] sm:%s229]
                %331 = vst [vmem:[%s237 + $0x170] sm:%s229] %v330
                %v332 = vld [vmem:[%s236 + $0x2f0] sm:%s229]
                %333 = vst [vmem:[%s237 + $0x178] sm:%s229] %v332
                %v334 = vld [vmem:[%s236 + $0x300] sm:%s229]
                %335 = vst [vmem:[%s237 + $0x180] sm:%s229] %v334
                %v336 = vld [vmem:[%s236 + $0x310] sm:%s229]
                %337 = vst [vmem:[%s237 + $0x188] sm:%s229] %v336
                %v338 = vld [vmem:[%s236 + $0x320] sm:%s229]
                %339 = vst [vmem:[%s237 + $0x190] sm:%s229] %v338
                %v340 = vld [vmem:[%s236 + $0x330] sm:%s229]
                %341 = vst [vmem:[%s237 + $0x198] sm:%s229] %v340
                %v342 = vld [vmem:[%s236 + $0x340] sm:%s229]
                %343 = vst [vmem:[%s237 + $0x1a0] sm:%s229] %v342
                %v344 = vld [vmem:[%s236 + $0x350] sm:%s229]
                %345 = vst [vmem:[%s237 + $0x1a8] sm:%s229] %v344
                %v346 = vld [vmem:[%s236 + $0x360] sm:%s229]
                %347 = vst [vmem:[%s237 + $0x1b0] sm:%s229] %v346
                %v348 = vld [vmem:[%s236 + $0x370] sm:%s229]
                %349 = vst [vmem:[%s237 + $0x1b8] sm:%s229] %v348
                %v350 = vld [vmem:[%s236 + $0x380] sm:%s229]
                %351 = vst [vmem:[%s237 + $0x1c0] sm:%s229] %v350
                %v352 = vld [vmem:[%s236 + $0x390] sm:%s229]
                %353 = vst [vmem:[%s237 + $0x1c8] sm:%s229] %v352
                %v354 = vld [vmem:[%s236 + $0x3a0] sm:%s229]
                %355 = vst [vmem:[%s237 + $0x1d0] sm:%s229] %v354
                %v356 = vld [vmem:[%s236 + $0x3b0] sm:%s229]
                %357 = vst [vmem:[%s237 + $0x1d8] sm:%s229] %v356
                %v358 = vld [vmem:[%s236 + $0x3c0] sm:%s229]
                %359 = vst [vmem:[%s237 + $0x1e0] sm:%s229] %v358
                %v360 = vld [vmem:[%s236 + $0x3d0] sm:%s229]
                %361 = vst [vmem:[%s237 + $0x1e8] sm:%s229] %v360
                %v362 = vld [vmem:[%s236 + $0x3e0] sm:%s229]
                %363 = vst [vmem:[%s237 + $0x1f0] sm:%s229] %v362
                %v364 = vld [vmem:[%s236 + $0x3f0] sm:%s229]
                %365 = vst [vmem:[%s237 + $0x1f8] sm:%s229] %v364
                %v366 = vld [vmem:[%s236 + $0x400] sm:%s229]
                %367 = vst [vmem:[%s237 + $0x200] sm:%s229] %v366
                %v368 = vld [vmem:[%s236 + $0x410] sm:%s229]
                %369 = vst [vmem:[%s237 + $0x208] sm:%s229] %v368
                %v370 = vld [vmem:[%s236 + $0x420] sm:%s229]
                %371 = vst [vmem:[%s237 + $0x210] sm:%s229] %v370
                %v372 = vld [vmem:[%s236 + $0x430] sm:%s229]
                %373 = vst [vmem:[%s237 + $0x218] sm:%s229] %v372
                %v374 = vld [vmem:[%s236 + $0x440] sm:%s229]
                %375 = vst [vmem:[%s237 + $0x220] sm:%s229] %v374
                %v376 = vld [vmem:[%s236 + $0x450] sm:%s229]
                %377 = vst [vmem:[%s237 + $0x228] sm:%s229] %v376
                %v378 = vld [vmem:[%s236 + $0x460] sm:%s229]
                %379 = vst [vmem:[%s237 + $0x230] sm:%s229] %v378
                %v380 = vld [vmem:[%s236 + $0x470] sm:%s229]
                %381 = vst [vmem:[%s237 + $0x238] sm:%s229] %v380
                %v382 = vld [vmem:[%s236 + $0x480] sm:%s229]
                %383 = vst [vmem:[%s237 + $0x240] sm:%s229] %v382
                %v384 = vld [vmem:[%s236 + $0x490] sm:%s229]
                %385 = vst [vmem:[%s237 + $0x248] sm:%s229] %v384
                %v386 = vld [vmem:[%s236 + $0x4a0] sm:%s229]
                %387 = vst [vmem:[%s237 + $0x250] sm:%s229] %v386
                %v388 = vld [vmem:[%s236 + $0x4b0] sm:%s229]
                %389 = vst [vmem:[%s237 + $0x258] sm:%s229] %v388
                %v390 = vld [vmem:[%s236 + $0x4c0] sm:%s229]
                %391 = vst [vmem:[%s237 + $0x260] sm:%s229] %v390
                %v392 = vld [vmem:[%s236 + $0x4d0] sm:%s229]
                %393 = vst [vmem:[%s237 + $0x268] sm:%s229] %v392
                %v394 = vld [vmem:[%s236 + $0x4e0] sm:%s229]
                %395 = vst [vmem:[%s237 + $0x270] sm:%s229] %v394
                %v396 = vld [vmem:[%s236 + $0x4f0] sm:%s229]
                %397 = vst [vmem:[%s237 + $0x278] sm:%s229] %v396
                %v398 = vld [vmem:[%s236 + $0x500] sm:%s229]
                %399 = vst [vmem:[%s237 + $0x280] sm:%s229] %v398
                %v400 = vld [vmem:[%s236 + $0x510] sm:%s229]
                %401 = vst [vmem:[%s237 + $0x288] sm:%s229] %v400
                %v402 = vld [vmem:[%s236 + $0x520] sm:%s229]
                %403 = vst [vmem:[%s237 + $0x290] sm:%s229] %v402
                %v404 = vld [vmem:[%s236 + $0x530] sm:%s229]
                %405 = vst [vmem:[%s237 + $0x298] sm:%s229] %v404
                %v406 = vld [vmem:[%s236 + $0x540] sm:%s229]
                %407 = vst [vmem:[%s237 + $0x2a0] sm:%s229] %v406
                %v408 = vld [vmem:[%s236 + $0x550] sm:%s229]
                %409 = vst [vmem:[%s237 + $0x2a8] sm:%s229] %v408
                %v410 = vld [vmem:[%s236 + $0x560] sm:%s229]
                %411 = vst [vmem:[%s237 + $0x2b0] sm:%s229] %v410
                %v412 = vld [vmem:[%s236 + $0x570] sm:%s229]
                %413 = vst [vmem:[%s237 + $0x2b8] sm:%s229] %v412
                %v414 = vld [vmem:[%s236 + $0x580] sm:%s229]
                %415 = vst [vmem:[%s237 + $0x2c0] sm:%s229] %v414
                %v416 = vld [vmem:[%s236 + $0x590] sm:%s229]
                %417 = vst [vmem:[%s237 + $0x2c8] sm:%s229] %v416
                %v418 = vld [vmem:[%s236 + $0x5a0] sm:%s229]
                %419 = vst [vmem:[%s237 + $0x2d0] sm:%s229] %v418
                %v420 = vld [vmem:[%s236 + $0x5b0] sm:%s229]
                %421 = vst [vmem:[%s237 + $0x2d8] sm:%s229] %v420
                %v422 = vld [vmem:[%s236 + $0x5c0] sm:%s229]
                %423 = vst [vmem:[%s237 + $0x2e0] sm:%s229] %v422
                %v424 = vld [vmem:[%s236 + $0x5d0] sm:%s229]
                %425 = vst [vmem:[%s237 + $0x2e8] sm:%s229] %v424
                %v426 = vld [vmem:[%s236 + $0x5e0] sm:%s229]
                %427 = vst [vmem:[%s237 + $0x2f0] sm:%s229] %v426
                %v428 = vld [vmem:[%s236 + $0x5f0] sm:%s229]
                %429 = vst [vmem:[%s237 + $0x2f8] sm:%s229] %v428
                %v430 = vld [vmem:[%s236 + $0x600] sm:%s229]
                %431 = vst [vmem:[%s237 + $0x300] sm:%s229] %v430
                %v432 = vld [vmem:[%s236 + $0x610] sm:%s229]
                %433 = vst [vmem:[%s237 + $0x308] sm:%s229] %v432
                %v434 = vld [vmem:[%s236 + $0x620] sm:%s229]
                %435 = vst [vmem:[%s237 + $0x310] sm:%s229] %v434
                %v436 = vld [vmem:[%s236 + $0x630] sm:%s229]
                %437 = vst [vmem:[%s237 + $0x318] sm:%s229] %v436
                %v438 = vld [vmem:[%s236 + $0x640] sm:%s229]
                %439 = vst [vmem:[%s237 + $0x320] sm:%s229] %v438
                %v440 = vld [vmem:[%s236 + $0x650] sm:%s229]
                %441 = vst [vmem:[%s237 + $0x328] sm:%s229] %v440
                %v442 = vld [vmem:[%s236 + $0x660] sm:%s229]
                %443 = vst [vmem:[%s237 + $0x330] sm:%s229] %v442
                %v444 = vld [vmem:[%s236 + $0x670] sm:%s229]
                %445 = vst [vmem:[%s237 + $0x338] sm:%s229] %v444
                %v446 = vld [vmem:[%s236 + $0x680] sm:%s229]
                %447 = vst [vmem:[%s237 + $0x340] sm:%s229] %v446
                %v448 = vld [vmem:[%s236 + $0x690] sm:%s229]
                %449 = vst [vmem:[%s237 + $0x348] sm:%s229] %v448
                %v450 = vld [vmem:[%s236 + $0x6a0] sm:%s229]
                %451 = vst [vmem:[%s237 + $0x350] sm:%s229] %v450
                %v452 = vld [vmem:[%s236 + $0x6b0] sm:%s229]
                %453 = vst [vmem:[%s237 + $0x358] sm:%s229] %v452
                %v454 = vld [vmem:[%s236 + $0x6c0] sm:%s229]
                %455 = vst [vmem:[%s237 + $0x360] sm:%s229] %v454
                %v456 = vld [vmem:[%s236 + $0x6d0] sm:%s229]
                %457 = vst [vmem:[%s237 + $0x368] sm:%s229] %v456
                %v458 = vld [vmem:[%s236 + $0x6e0] sm:%s229]
                %459 = vst [vmem:[%s237 + $0x370] sm:%s229] %v458
                %v460 = vld [vmem:[%s236 + $0x6f0] sm:%s229]
                %461 = vst [vmem:[%s237 + $0x378] sm:%s229] %v460
                %v462 = vld [vmem:[%s236 + $0x700] sm:%s229]
                %463 = vst [vmem:[%s237 + $0x380] sm:%s229] %v462
                %v464 = vld [vmem:[%s236 + $0x710] sm:%s229]
                %465 = vst [vmem:[%s237 + $0x388] sm:%s229] %v464
                %v466 = vld [vmem:[%s236 + $0x720] sm:%s229]
                %467 = vst [vmem:[%s237 + $0x390] sm:%s229] %v466
                %v468 = vld [vmem:[%s236 + $0x730] sm:%s229]
                %469 = vst [vmem:[%s237 + $0x398] sm:%s229] %v468
                %v470 = vld [vmem:[%s236 + $0x740] sm:%s229]
                %471 = vst [vmem:[%s237 + $0x3a0] sm:%s229] %v470
                %v472 = vld [vmem:[%s236 + $0x750] sm:%s229]
                %473 = vst [vmem:[%s237 + $0x3a8] sm:%s229] %v472
                %v474 = vld [vmem:[%s236 + $0x760] sm:%s229]
                %475 = vst [vmem:[%s237 + $0x3b0] sm:%s229] %v474
                %v476 = vld [vmem:[%s236 + $0x770] sm:%s229]
                %477 = vst [vmem:[%s237 + $0x3b8] sm:%s229] %v476
                %v478 = vld [vmem:[%s236 + $0x780] sm:%s229]
                %479 = vst [vmem:[%s237 + $0x3c0] sm:%s229] %v478
                %v480 = vld [vmem:[%s236 + $0x790] sm:%s229]
                %481 = vst [vmem:[%s237 + $0x3c8] sm:%s229] %v480
                %v482 = vld [vmem:[%s236 + $0x7a0] sm:%s229]
                %483 = vst [vmem:[%s237 + $0x3d0] sm:%s229] %v482
                %v484 = vld [vmem:[%s236 + $0x7b0] sm:%s229]
                %485 = vst [vmem:[%s237 + $0x3d8] sm:%s229] %v484
                %v486 = vld [vmem:[%s236 + $0x7c0] sm:%s229]
                %487 = vst [vmem:[%s237 + $0x3e0] sm:%s229] %v486
                %v488 = vld [vmem:[%s236 + $0x7d0] sm:%s229]
                %489 = vst [vmem:[%s237 + $0x3e8] sm:%s229] %v488
                %v490 = vld [vmem:[%s236 + $0x7e0] sm:%s229]
                %491 = vst [vmem:[%s237 + $0x3f0] sm:%s229] %v490
                %v492 = vld [vmem:[%s236 + $0x7f0] sm:%s229]
                %493 = vst [vmem:[%s237 + $0x3f8] sm:%s229] %v492
                %v494 = vld [vmem:[%s236 + $0x800] sm:%s229]
                %495 = vst [vmem:[%s237 + $0x400] sm:%s229] %v494
                %v496 = vld [vmem:[%s236 + $0x810] sm:%s229]
                %497 = vst [vmem:[%s237 + $0x408] sm:%s229] %v496
                %v498 = vld [vmem:[%s236 + $0x820] sm:%s229]
                %499 = vst [vmem:[%s237 + $0x410] sm:%s229] %v498
                %v500 = vld [vmem:[%s236 + $0x830] sm:%s229]
                %501 = vst [vmem:[%s237 + $0x418] sm:%s229] %v500
                %v502 = vld [vmem:[%s236 + $0x840] sm:%s229]
                %503 = vst [vmem:[%s237 + $0x420] sm:%s229] %v502
                %v504 = vld [vmem:[%s236 + $0x850] sm:%s229]
                %505 = vst [vmem:[%s237 + $0x428] sm:%s229] %v504
                %v506 = vld [vmem:[%s236 + $0x860] sm:%s229]
                %507 = vst [vmem:[%s237 + $0x430] sm:%s229] %v506
                %v508 = vld [vmem:[%s236 + $0x870] sm:%s229]
                %509 = vst [vmem:[%s237 + $0x438] sm:%s229] %v508
                %v510 = vld [vmem:[%s236 + $0x880] sm:%s229]
                %511 = vst [vmem:[%s237 + $0x440] sm:%s229] %v510
                %v512 = vld [vmem:[%s236 + $0x890] sm:%s229]
                %513 = vst [vmem:[%s237 + $0x448] sm:%s229] %v512
                %v514 = vld [vmem:[%s236 + $0x8a0] sm:%s229]
                %515 = vst [vmem:[%s237 + $0x450] sm:%s229] %v514
                %v516 = vld [vmem:[%s236 + $0x8b0] sm:%s229]
                %517 = vst [vmem:[%s237 + $0x458] sm:%s229] %v516
                %v518 = vld [vmem:[%s236 + $0x8c0] sm:%s229]
                %519 = vst [vmem:[%s237 + $0x460] sm:%s229] %v518
                %v520 = vld [vmem:[%s236 + $0x8d0] sm:%s229]
                %521 = vst [vmem:[%s237 + $0x468] sm:%s229] %v520
                %v522 = vld [vmem:[%s236 + $0x8e0] sm:%s229]
                %523 = vst [vmem:[%s237 + $0x470] sm:%s229] %v522
                %v524 = vld [vmem:[%s236 + $0x8f0] sm:%s229]
                %525 = vst [vmem:[%s237 + $0x478] sm:%s229] %v524
                %v526 = vld [vmem:[%s236 + $0x900] sm:%s229]
                %527 = vst [vmem:[%s237 + $0x480] sm:%s229] %v526
                %v528 = vld [vmem:[%s236 + $0x910] sm:%s229]
                %529 = vst [vmem:[%s237 + $0x488] sm:%s229] %v528
                %v530 = vld [vmem:[%s236 + $0x920] sm:%s229]
                %531 = vst [vmem:[%s237 + $0x490] sm:%s229] %v530
                %v532 = vld [vmem:[%s236 + $0x930] sm:%s229]
                %533 = vst [vmem:[%s237 + $0x498] sm:%s229] %v532
                %v534 = vld [vmem:[%s236 + $0x940] sm:%s229]
                %535 = vst [vmem:[%s237 + $0x4a0] sm:%s229] %v534
                %v536 = vld [vmem:[%s236 + $0x950] sm:%s229]
                %537 = vst [vmem:[%s237 + $0x4a8] sm:%s229] %v536
                %v538 = vld [vmem:[%s236 + $0x960] sm:%s229]
                %539 = vst [vmem:[%s237 + $0x4b0] sm:%s229] %v538
                %v540 = vld [vmem:[%s236 + $0x970] sm:%s229]
                %541 = vst [vmem:[%s237 + $0x4b8] sm:%s229] %v540
                %v542 = vld [vmem:[%s236 + $0x980] sm:%s229]
                %543 = vst [vmem:[%s237 + $0x4c0] sm:%s229] %v542
                %v544 = vld [vmem:[%s236 + $0x990] sm:%s229]
                %545 = vst [vmem:[%s237 + $0x4c8] sm:%s229] %v544
                %v546 = vld [vmem:[%s236 + $0x9a0] sm:%s229]
                %547 = vst [vmem:[%s237 + $0x4d0] sm:%s229] %v546
                %v548 = vld [vmem:[%s236 + $0x9b0] sm:%s229]
                %549 = vst [vmem:[%s237 + $0x4d8] sm:%s229] %v548
                %v550 = vld [vmem:[%s236 + $0x9c0] sm:%s229]
                %551 = vst [vmem:[%s237 + $0x4e0] sm:%s229] %v550
                %v552 = vld [vmem:[%s236 + $0x9d0] sm:%s229]
                %553 = vst [vmem:[%s237 + $0x4e8] sm:%s229] %v552
                %v554 = vld [vmem:[%s236 + $0x9e0] sm:%s229]
                %555 = vst [vmem:[%s237 + $0x4f0] sm:%s229] %v554
                %v556 = vld [vmem:[%s236 + $0x9f0] sm:%s229]
                %557 = vst [vmem:[%s237 + $0x4f8] sm:%s229] %v556
                %v558 = vld [vmem:[%s236 + $0xa00] sm:%s229]
                %559 = vst [vmem:[%s237 + $0x500] sm:%s229] %v558
                %v560 = vld [vmem:[%s236 + $0xa10] sm:%s229]
                %561 = vst [vmem:[%s237 + $0x508] sm:%s229] %v560
                %v562 = vld [vmem:[%s236 + $0xa20] sm:%s229]
                %563 = vst [vmem:[%s237 + $0x510] sm:%s229] %v562
                %v564 = vld [vmem:[%s236 + $0xa30] sm:%s229]
                %565 = vst [vmem:[%s237 + $0x518] sm:%s229] %v564
                %v566 = vld [vmem:[%s236 + $0xa40] sm:%s229]
                %567 = vst [vmem:[%s237 + $0x520] sm:%s229] %v566
                %v568 = vld [vmem:[%s236 + $0xa50] sm:%s229]
                %569 = vst [vmem:[%s237 + $0x528] sm:%s229] %v568
                %v570 = vld [vmem:[%s236 + $0xa60] sm:%s229]
                %571 = vst [vmem:[%s237 + $0x530] sm:%s229] %v570
                %v572 = vld [vmem:[%s236 + $0xa70] sm:%s229]
                %573 = vst [vmem:[%s237 + $0x538] sm:%s229] %v572
                %v574 = vld [vmem:[%s236 + $0xa80] sm:%s229]
                %575 = vst [vmem:[%s237 + $0x540] sm:%s229] %v574
                %v576 = vld [vmem:[%s236 + $0xa90] sm:%s229]
                %577 = vst [vmem:[%s237 + $0x548] sm:%s229] %v576
                %v578 = vld [vmem:[%s236 + $0xaa0] sm:%s229]
                %579 = vst [vmem:[%s237 + $0x550] sm:%s229] %v578
                %v580 = vld [vmem:[%s236 + $0xab0] sm:%s229]
                %581 = vst [vmem:[%s237 + $0x558] sm:%s229] %v580
                %v582 = vld [vmem:[%s236 + $0xac0] sm:%s229]
                %583 = vst [vmem:[%s237 + $0x560] sm:%s229] %v582
                %v584 = vld [vmem:[%s236 + $0xad0] sm:%s229]
                %585 = vst [vmem:[%s237 + $0x568] sm:%s229] %v584
                %v586 = vld [vmem:[%s236 + $0xae0] sm:%s229]
                %587 = vst [vmem:[%s237 + $0x570] sm:%s229] %v586
                %v588 = vld [vmem:[%s236 + $0xaf0] sm:%s229]
                %589 = vst [vmem:[%s237 + $0x578] sm:%s229] %v588
                %v590 = vld [vmem:[%s236 + $0xb00] sm:%s229]
                %591 = vst [vmem:[%s237 + $0x580] sm:%s229] %v590
                %v592 = vld [vmem:[%s236 + $0xb10] sm:%s229]
                %593 = vst [vmem:[%s237 + $0x588] sm:%s229] %v592
                %v594 = vld [vmem:[%s236 + $0xb20] sm:%s229]
                %595 = vst [vmem:[%s237 + $0x590] sm:%s229] %v594
                %v596 = vld [vmem:[%s236 + $0xb30] sm:%s229]
                %597 = vst [vmem:[%s237 + $0x598] sm:%s229] %v596
                %v598 = vld [vmem:[%s236 + $0xb40] sm:%s229]
                %599 = vst [vmem:[%s237 + $0x5a0] sm:%s229] %v598
                %v600 = vld [vmem:[%s236 + $0xb50] sm:%s229]
                %601 = vst [vmem:[%s237 + $0x5a8] sm:%s229] %v600
                %v602 = vld [vmem:[%s236 + $0xb60] sm:%s229]
                %603 = vst [vmem:[%s237 + $0x5b0] sm:%s229] %v602
                %v604 = vld [vmem:[%s236 + $0xb70] sm:%s229]
                %605 = vst [vmem:[%s237 + $0x5b8] sm:%s229] %v604
                %v606 = vld [vmem:[%s236 + $0xb80] sm:%s229]
                %607 = vst [vmem:[%s237 + $0x5c0] sm:%s229] %v606
                %v608 = vld [vmem:[%s236 + $0xb90] sm:%s229]
                %609 = vst [vmem:[%s237 + $0x5c8] sm:%s229] %v608
                %v610 = vld [vmem:[%s236 + $0xba0] sm:%s229]
                %611 = vst [vmem:[%s237 + $0x5d0] sm:%s229] %v610
                %v612 = vld [vmem:[%s236 + $0xbb0] sm:%s229]
                %613 = vst [vmem:[%s237 + $0x5d8] sm:%s229] %v612
                %v614 = vld [vmem:[%s236 + $0xbc0] sm:%s229]
                %615 = vst [vmem:[%s237 + $0x5e0] sm:%s229] %v614
                %v616 = vld [vmem:[%s236 + $0xbd0] sm:%s229]
                %617 = vst [vmem:[%s237 + $0x5e8] sm:%s229] %v616
                %v618 = vld [vmem:[%s236 + $0xbe0] sm:%s229]
                %619 = vst [vmem:[%s237 + $0x5f0] sm:%s229] %v618
                %v620 = vld [vmem:[%s236 + $0xbf0] sm:%s229]
                %621 = vst [vmem:[%s237 + $0x5f8] sm:%s229] %v620
                %v622 = vld [vmem:[%s236 + $0xc00] sm:%s229]
                %623 = vst [vmem:[%s237 + $0x600] sm:%s229] %v622
                %v624 = vld [vmem:[%s236 + $0xc10] sm:%s229]
                %625 = vst [vmem:[%s237 + $0x608] sm:%s229] %v624
                %v626 = vld [vmem:[%s236 + $0xc20] sm:%s229]
                %627 = vst [vmem:[%s237 + $0x610] sm:%s229] %v626
                %v628 = vld [vmem:[%s236 + $0xc30] sm:%s229]
                %629 = vst [vmem:[%s237 + $0x618] sm:%s229] %v628
                %v630 = vld [vmem:[%s236 + $0xc40] sm:%s229]
                %631 = vst [vmem:[%s237 + $0x620] sm:%s229] %v630
                %v632 = vld [vmem:[%s236 + $0xc50] sm:%s229]
                %633 = vst [vmem:[%s237 + $0x628] sm:%s229] %v632
                %v634 = vld [vmem:[%s236 + $0xc60] sm:%s229]
                %635 = vst [vmem:[%s237 + $0x630] sm:%s229] %v634
                %v636 = vld [vmem:[%s236 + $0xc70] sm:%s229]
                %637 = vst [vmem:[%s237 + $0x638] sm:%s229] %v636
                %v638 = vld [vmem:[%s236 + $0xc80] sm:%s229]
                %639 = vst [vmem:[%s237 + $0x640] sm:%s229] %v638
                %v640 = vld [vmem:[%s236 + $0xc90] sm:%s229]
                %641 = vst [vmem:[%s237 + $0x648] sm:%s229] %v640
                %v642 = vld [vmem:[%s236 + $0xca0] sm:%s229]
                %643 = vst [vmem:[%s237 + $0x650] sm:%s229] %v642
                %v644 = vld [vmem:[%s236 + $0xcb0] sm:%s229]
                %645 = vst [vmem:[%s237 + $0x658] sm:%s229] %v644
                %v646 = vld [vmem:[%s236 + $0xcc0] sm:%s229]
                %647 = vst [vmem:[%s237 + $0x660] sm:%s229] %v646
                %v648 = vld [vmem:[%s236 + $0xcd0] sm:%s229]
                %649 = vst [vmem:[%s237 + $0x668] sm:%s229] %v648
                %v650 = vld [vmem:[%s236 + $0xce0] sm:%s229]
                %651 = vst [vmem:[%s237 + $0x670] sm:%s229] %v650
                %v652 = vld [vmem:[%s236 + $0xcf0] sm:%s229]
                %653 = vst [vmem:[%s237 + $0x678] sm:%s229] %v652
                %v654 = vld [vmem:[%s236 + $0xd00] sm:%s229]
                %655 = vst [vmem:[%s237 + $0x680] sm:%s229] %v654
                %v656 = vld [vmem:[%s236 + $0xd10] sm:%s229]
                %657 = vst [vmem:[%s237 + $0x688] sm:%s229] %v656
                %v658 = vld [vmem:[%s236 + $0xd20] sm:%s229]
                %659 = vst [vmem:[%s237 + $0x690] sm:%s229] %v658
                %v660 = vld [vmem:[%s236 + $0xd30] sm:%s229]
                %661 = vst [vmem:[%s237 + $0x698] sm:%s229] %v660
                %v662 = vld [vmem:[%s236 + $0xd40] sm:%s229]
                %663 = vst [vmem:[%s237 + $0x6a0] sm:%s229] %v662
                %v664 = vld [vmem:[%s236 + $0xd50] sm:%s229]
                %665 = vst [vmem:[%s237 + $0x6a8] sm:%s229] %v664
                %v666 = vld [vmem:[%s236 + $0xd60] sm:%s229]
                %667 = vst [vmem:[%s237 + $0x6b0] sm:%s229] %v666
                %v668 = vld [vmem:[%s236 + $0xd70] sm:%s229]
                %669 = vst [vmem:[%s237 + $0x6b8] sm:%s229] %v668
                %v670 = vld [vmem:[%s236 + $0xd80] sm:%s229]
                %671 = vst [vmem:[%s237 + $0x6c0] sm:%s229] %v670
                %v672 = vld [vmem:[%s236 + $0xd90] sm:%s229]
                %673 = vst [vmem:[%s237 + $0x6c8] sm:%s229] %v672
                %v674 = vld [vmem:[%s236 + $0xda0] sm:%s229]
                %675 = vst [vmem:[%s237 + $0x6d0] sm:%s229] %v674
                %v676 = vld [vmem:[%s236 + $0xdb0] sm:%s229]
                %677 = vst [vmem:[%s237 + $0x6d8] sm:%s229] %v676
                %v678 = vld [vmem:[%s236 + $0xdc0] sm:%s229]
                %679 = vst [vmem:[%s237 + $0x6e0] sm:%s229] %v678
                %v680 = vld [vmem:[%s236 + $0xdd0] sm:%s229]
                %681 = vst [vmem:[%s237 + $0x6e8] sm:%s229] %v680
                %v682 = vld [vmem:[%s236 + $0xde0] sm:%s229]
                %683 = vst [vmem:[%s237 + $0x6f0] sm:%s229] %v682
                %v684 = vld [vmem:[%s236 + $0xdf0] sm:%s229]
                %685 = vst [vmem:[%s237 + $0x6f8] sm:%s229] %v684
                %v686 = vld [vmem:[%s236 + $0xe00] sm:%s229]
                %687 = vst [vmem:[%s237 + $0x700] sm:%s229] %v686
                %v688 = vld [vmem:[%s236 + $0xe10] sm:%s229]
                %689 = vst [vmem:[%s237 + $0x708] sm:%s229] %v688
                %v690 = vld [vmem:[%s236 + $0xe20] sm:%s229]
                %691 = vst [vmem:[%s237 + $0x710] sm:%s229] %v690
                %v692 = vld [vmem:[%s236 + $0xe30] sm:%s229]
                %693 = vst [vmem:[%s237 + $0x718] sm:%s229] %v692
                %v694 = vld [vmem:[%s236 + $0xe40] sm:%s229]
                %695 = vst [vmem:[%s237 + $0x720] sm:%s229] %v694
                %v696 = vld [vmem:[%s236 + $0xe50] sm:%s229]
                %697 = vst [vmem:[%s237 + $0x728] sm:%s229] %v696
                %v698 = vld [vmem:[%s236 + $0xe60] sm:%s229]
                %699 = vst [vmem:[%s237 + $0x730] sm:%s229] %v698
                %v700 = vld [vmem:[%s236 + $0xe70] sm:%s229]
                %701 = vst [vmem:[%s237 + $0x738] sm:%s229] %v700
                %v702 = vld [vmem:[%s236 + $0xe80] sm:%s229]
                %703 = vst [vmem:[%s237 + $0x740] sm:%s229] %v702
                %v704 = vld [vmem:[%s236 + $0xe90] sm:%s229]
                %705 = vst [vmem:[%s237 + $0x748] sm:%s229] %v704
                %v706 = vld [vmem:[%s236 + $0xea0] sm:%s229]
                %707 = vst [vmem:[%s237 + $0x750] sm:%s229] %v706
                %v708 = vld [vmem:[%s236 + $0xeb0] sm:%s229]
                %709 = vst [vmem:[%s237 + $0x758] sm:%s229] %v708
                %v710 = vld [vmem:[%s236 + $0xec0] sm:%s229]
                %711 = vst [vmem:[%s237 + $0x760] sm:%s229] %v710
                %v712 = vld [vmem:[%s236 + $0xed0] sm:%s229]
                %713 = vst [vmem:[%s237 + $0x768] sm:%s229] %v712
                %v714 = vld [vmem:[%s236 + $0xee0] sm:%s229]
                %715 = vst [vmem:[%s237 + $0x770] sm:%s229] %v714
                %v716 = vld [vmem:[%s236 + $0xef0] sm:%s229]
                %717 = vst [vmem:[%s237 + $0x778] sm:%s229] %v716
                %v718 = vld [vmem:[%s236 + $0xf00] sm:%s229]
                %719 = vst [vmem:[%s237 + $0x780] sm:%s229] %v718
                %v720 = vld [vmem:[%s236 + $0xf10] sm:%s229]
                %721 = vst [vmem:[%s237 + $0x788] sm:%s229] %v720
                %v722 = vld [vmem:[%s236 + $0xf20] sm:%s229]
                %723 = vst [vmem:[%s237 + $0x790] sm:%s229] %v722
                %v724 = vld [vmem:[%s236 + $0xf30] sm:%s229]
                %725 = vst [vmem:[%s237 + $0x798] sm:%s229] %v724
                %v726 = vld [vmem:[%s236 + $0xf40] sm:%s229]
                %727 = vst [vmem:[%s237 + $0x7a0] sm:%s229] %v726
                %v728 = vld [vmem:[%s236 + $0xf50] sm:%s229]
                %729 = vst [vmem:[%s237 + $0x7a8] sm:%s229] %v728
                %v730 = vld [vmem:[%s236 + $0xf60] sm:%s229]
                %731 = vst [vmem:[%s237 + $0x7b0] sm:%s229] %v730
                %v732 = vld [vmem:[%s236 + $0xf70] sm:%s229]
                %733 = vst [vmem:[%s237 + $0x7b8] sm:%s229] %v732
                %v734 = vld [vmem:[%s236 + $0xf80] sm:%s229]
                %735 = vst [vmem:[%s237 + $0x7c0] sm:%s229] %v734
                %v736 = vld [vmem:[%s236 + $0xf90] sm:%s229]
                %737 = vst [vmem:[%s237 + $0x7c8] sm:%s229] %v736
                %v738 = vld [vmem:[%s236 + $0xfa0] sm:%s229]
                %739 = vst [vmem:[%s237 + $0x7d0] sm:%s229] %v738
                %v740 = vld [vmem:[%s236 + $0xfb0] sm:%s229]
                %741 = vst [vmem:[%s237 + $0x7d8] sm:%s229] %v740
                %v742 = vld [vmem:[%s236 + $0xfc0] sm:%s229]
                %743 = vst [vmem:[%s237 + $0x7e0] sm:%s229] %v742
                %v744 = vld [vmem:[%s236 + $0xfd0] sm:%s229]
                %745 = vst [vmem:[%s237 + $0x7e8] sm:%s229] %v744
                %v746 = vld [vmem:[%s236 + $0xfe0] sm:%s229]
                %747 = vst [vmem:[%s237 + $0x7f0] sm:%s229] %v746
                %v748 = vld [vmem:[%s236 + $0xff0] sm:%s229]
                %749 = vst [vmem:[%s237 + $0x7f8] sm:%s229] %v748
                %v750 = vld [vmem:[%s236 + $0x1000] sm:%s229]
                %751 = vst [vmem:[%s237 + $0x800] sm:%s229] %v750
                %v752 = vld [vmem:[%s236 + $0x1010] sm:%s229]
                %753 = vst [vmem:[%s237 + $0x808] sm:%s229] %v752
                %v754 = vld [vmem:[%s236 + $0x1020] sm:%s229]
                %755 = vst [vmem:[%s237 + $0x810] sm:%s229] %v754
                %v756 = vld [vmem:[%s236 + $0x1030] sm:%s229]
                %757 = vst [vmem:[%s237 + $0x818] sm:%s229] %v756
                %v758 = vld [vmem:[%s236 + $0x1040] sm:%s229]
                %759 = vst [vmem:[%s237 + $0x820] sm:%s229] %v758
                %v760 = vld [vmem:[%s236 + $0x1050] sm:%s229]
                %761 = vst [vmem:[%s237 + $0x828] sm:%s229] %v760
                %v762 = vld [vmem:[%s236 + $0x1060] sm:%s229]
                %763 = vst [vmem:[%s237 + $0x830] sm:%s229] %v762
                %v764 = vld [vmem:[%s236 + $0x1070] sm:%s229]
                %765 = vst [vmem:[%s237 + $0x838] sm:%s229] %v764
                %v766 = vld [vmem:[%s236 + $0x1080] sm:%s229]
                %767 = vst [vmem:[%s237 + $0x840] sm:%s229] %v766
                %v768 = vld [vmem:[%s236 + $0x1090] sm:%s229]
                %769 = vst [vmem:[%s237 + $0x848] sm:%s229] %v768
                %v770 = vld [vmem:[%s236 + $0x10a0] sm:%s229]
                %771 = vst [vmem:[%s237 + $0x850] sm:%s229] %v770
                %v772 = vld [vmem:[%s236 + $0x10b0] sm:%s229]
                %773 = vst [vmem:[%s237 + $0x858] sm:%s229] %v772
                %v774 = vld [vmem:[%s236 + $0x10c0] sm:%s229]
                %775 = vst [vmem:[%s237 + $0x860] sm:%s229] %v774
                %v776 = vld [vmem:[%s236 + $0x10d0] sm:%s229]
                %777 = vst [vmem:[%s237 + $0x868] sm:%s229] %v776
                %v778 = vld [vmem:[%s236 + $0x10e0] sm:%s229]
                %779 = vst [vmem:[%s237 + $0x870] sm:%s229] %v778
                %v780 = vld [vmem:[%s236 + $0x10f0] sm:%s229]
                %781 = vst [vmem:[%s237 + $0x878] sm:%s229] %v780
                %v782 = vld [vmem:[%s236 + $0x1100] sm:%s229]
                %783 = vst [vmem:[%s237 + $0x880] sm:%s229] %v782
                %v784 = vld [vmem:[%s236 + $0x1110] sm:%s229]
                %785 = vst [vmem:[%s237 + $0x888] sm:%s229] %v784
                %v786 = vld [vmem:[%s236 + $0x1120] sm:%s229]
                %787 = vst [vmem:[%s237 + $0x890] sm:%s229] %v786
                %v788 = vld [vmem:[%s236 + $0x1130] sm:%s229]
                %789 = vst [vmem:[%s237 + $0x898] sm:%s229] %v788
                %v790 = vld [vmem:[%s236 + $0x1140] sm:%s229]
                %791 = vst [vmem:[%s237 + $0x8a0] sm:%s229] %v790
                %v792 = vld [vmem:[%s236 + $0x1150] sm:%s229]
                %793 = vst [vmem:[%s237 + $0x8a8] sm:%s229] %v792
                %v794 = vld [vmem:[%s236 + $0x1160] sm:%s229]
                %795 = vst [vmem:[%s237 + $0x8b0] sm:%s229] %v794
                %v796 = vld [vmem:[%s236 + $0x1170] sm:%s229]
                %797 = vst [vmem:[%s237 + $0x8b8] sm:%s229] %v796
                %v798 = vld [vmem:[%s236 + $0x1180] sm:%s229]
                %799 = vst [vmem:[%s237 + $0x8c0] sm:%s229] %v798
                %v800 = vld [vmem:[%s236 + $0x1190] sm:%s229]
                %801 = vst [vmem:[%s237 + $0x8c8] sm:%s229] %v800
                %v802 = vld [vmem:[%s236 + $0x11a0] sm:%s229]
                %803 = vst [vmem:[%s237 + $0x8d0] sm:%s229] %v802
                %v804 = vld [vmem:[%s236 + $0x11b0] sm:%s229]
                %805 = vst [vmem:[%s237 + $0x8d8] sm:%s229] %v804
                %v806 = vld [vmem:[%s236 + $0x11c0] sm:%s229]
                %807 = vst [vmem:[%s237 + $0x8e0] sm:%s229] %v806
                %v808 = vld [vmem:[%s236 + $0x11d0] sm:%s229]
                %809 = vst [vmem:[%s237 + $0x8e8] sm:%s229] %v808
                %v810 = vld [vmem:[%s236 + $0x11e0] sm:%s229]
                %811 = vst [vmem:[%s237 + $0x8f0] sm:%s229] %v810
                %v812 = vld [vmem:[%s236 + $0x11f0] sm:%s229]
                %813 = vst [vmem:[%s237 + $0x8f8] sm:%s229] %v812
                %v814 = vld [vmem:[%s236 + $0x1200] sm:%s229]
                %815 = vst [vmem:[%s237 + $0x900] sm:%s229] %v814
                %v816 = vld [vmem:[%s236 + $0x1210] sm:%s229]
                %817 = vst [vmem:[%s237 + $0x908] sm:%s229] %v816
                %v818 = vld [vmem:[%s236 + $0x1220] sm:%s229]
                %819 = vst [vmem:[%s237 + $0x910] sm:%s229] %v818
                %v820 = vld [vmem:[%s236 + $0x1230] sm:%s229]
                %821 = vst [vmem:[%s237 + $0x918] sm:%s229] %v820
                %v822 = vld [vmem:[%s236 + $0x1240] sm:%s229]
                %823 = vst [vmem:[%s237 + $0x920] sm:%s229] %v822
                %v824 = vld [vmem:[%s236 + $0x1250] sm:%s229]
                %825 = vst [vmem:[%s237 + $0x928] sm:%s229] %v824
                %v826 = vld [vmem:[%s236 + $0x1260] sm:%s229]
                %827 = vst [vmem:[%s237 + $0x930] sm:%s229] %v826
                %v828 = vld [vmem:[%s236 + $0x1270] sm:%s229]
                %829 = vst [vmem:[%s237 + $0x938] sm:%s229] %v828
                %v830 = vld [vmem:[%s236 + $0x1280] sm:%s229]
                %831 = vst [vmem:[%s237 + $0x940] sm:%s229] %v830
                %v832 = vld [vmem:[%s236 + $0x1290] sm:%s229]
                %833 = vst [vmem:[%s237 + $0x948] sm:%s229] %v832
                %v834 = vld [vmem:[%s236 + $0x12a0] sm:%s229]
                %835 = vst [vmem:[%s237 + $0x950] sm:%s229] %v834
                %v836 = vld [vmem:[%s236 + $0x12b0] sm:%s229]
                %837 = vst [vmem:[%s237 + $0x958] sm:%s229] %v836
                %v838 = vld [vmem:[%s236 + $0x12c0] sm:%s229]
                %839 = vst [vmem:[%s237 + $0x960] sm:%s229] %v838
                %v840 = vld [vmem:[%s236 + $0x12d0] sm:%s229]
                %841 = vst [vmem:[%s237 + $0x968] sm:%s229] %v840
                %v842 = vld [vmem:[%s236 + $0x12e0] sm:%s229]
                %843 = vst [vmem:[%s237 + $0x970] sm:%s229] %v842
                %v844 = vld [vmem:[%s236 + $0x12f0] sm:%s229]
                %845 = vst [vmem:[%s237 + $0x978] sm:%s229] %v844
                %v846 = vld [vmem:[%s236 + $0x1300] sm:%s229]
                %847 = vst [vmem:[%s237 + $0x980] sm:%s229] %v846
                %v848 = vld [vmem:[%s236 + $0x1310] sm:%s229]
                %849 = vst [vmem:[%s237 + $0x988] sm:%s229] %v848
                %v850 = vld [vmem:[%s236 + $0x1320] sm:%s229]
                %851 = vst [vmem:[%s237 + $0x990] sm:%s229] %v850
                %v852 = vld [vmem:[%s236 + $0x1330] sm:%s229]
                %853 = vst [vmem:[%s237 + $0x998] sm:%s229] %v852
                %v854 = vld [vmem:[%s236 + $0x1340] sm:%s229]
                %855 = vst [vmem:[%s237 + $0x9a0] sm:%s229] %v854
                %v856 = vld [vmem:[%s236 + $0x1350] sm:%s229]
                %857 = vst [vmem:[%s237 + $0x9a8] sm:%s229] %v856
                %v858 = vld [vmem:[%s236 + $0x1360] sm:%s229]
                %859 = vst [vmem:[%s237 + $0x9b0] sm:%s229] %v858
                %v860 = vld [vmem:[%s236 + $0x1370] sm:%s229]
                %861 = vst [vmem:[%s237 + $0x9b8] sm:%s229] %v860
                %v862 = vld [vmem:[%s236 + $0x1380] sm:%s229]
                %863 = vst [vmem:[%s237 + $0x9c0] sm:%s229] %v862
                %v864 = vld [vmem:[%s236 + $0x1390] sm:%s229]
                %865 = vst [vmem:[%s237 + $0x9c8] sm:%s229] %v864
                %v866 = vld [vmem:[%s236 + $0x13a0] sm:%s229]
                %867 = vst [vmem:[%s237 + $0x9d0] sm:%s229] %v866
                %v868 = vld [vmem:[%s236 + $0x13b0] sm:%s229]
                %869 = vst [vmem:[%s237 + $0x9d8] sm:%s229] %v868
                %v870 = vld [vmem:[%s236 + $0x13c0] sm:%s229]
                %871 = vst [vmem:[%s237 + $0x9e0] sm:%s229] %v870
                %v872 = vld [vmem:[%s236 + $0x13d0] sm:%s229]
                %873 = vst [vmem:[%s237 + $0x9e8] sm:%s229] %v872
                %v874 = vld [vmem:[%s236 + $0x13e0] sm:%s229]
                %875 = vst [vmem:[%s237 + $0x9f0] sm:%s229] %v874
                %v876 = vld [vmem:[%s236 + $0x13f0] sm:%s229]
                %877 = vst [vmem:[%s237 + $0x9f8] sm:%s229] %v876
                %v878 = vld [vmem:[%s236 + $0x1400] sm:%s229]
                %879 = vst [vmem:[%s237 + $0xa00] sm:%s229] %v878
                %v880 = vld [vmem:[%s236 + $0x1410] sm:%s229]
                %881 = vst [vmem:[%s237 + $0xa08] sm:%s229] %v880
                %v882 = vld [vmem:[%s236 + $0x1420] sm:%s229]
                %883 = vst [vmem:[%s237 + $0xa10] sm:%s229] %v882
                %v884 = vld [vmem:[%s236 + $0x1430] sm:%s229]
                %885 = vst [vmem:[%s237 + $0xa18] sm:%s229] %v884
                %v886 = vld [vmem:[%s236 + $0x1440] sm:%s229]
                %887 = vst [vmem:[%s237 + $0xa20] sm:%s229] %v886
                %v888 = vld [vmem:[%s236 + $0x1450] sm:%s229]
                %889 = vst [vmem:[%s237 + $0xa28] sm:%s229] %v888
                %v890 = vld [vmem:[%s236 + $0x1460] sm:%s229]
                %891 = vst [vmem:[%s237 + $0xa30] sm:%s229] %v890
                %v892 = vld [vmem:[%s236 + $0x1470] sm:%s229]
                %893 = vst [vmem:[%s237 + $0xa38] sm:%s229] %v892
                %v894 = vld [vmem:[%s236 + $0x1480] sm:%s229]
                %895 = vst [vmem:[%s237 + $0xa40] sm:%s229] %v894
                %v896 = vld [vmem:[%s236 + $0x1490] sm:%s229]
                %897 = vst [vmem:[%s237 + $0xa48] sm:%s229] %v896
                %v898 = vld [vmem:[%s236 + $0x14a0] sm:%s229]
                %899 = vst [vmem:[%s237 + $0xa50] sm:%s229] %v898
                %v900 = vld [vmem:[%s236 + $0x14b0] sm:%s229]
                %901 = vst [vmem:[%s237 + $0xa58] sm:%s229] %v900
                %v902 = vld [vmem:[%s236 + $0x14c0] sm:%s229]
                %903 = vst [vmem:[%s237 + $0xa60] sm:%s229] %v902
                %v904 = vld [vmem:[%s236 + $0x14d0] sm:%s229]
                %905 = vst [vmem:[%s237 + $0xa68] sm:%s229] %v904
                %v906 = vld [vmem:[%s236 + $0x14e0] sm:%s229]
                %907 = vst [vmem:[%s237 + $0xa70] sm:%s229] %v906
                %v908 = vld [vmem:[%s236 + $0x14f0] sm:%s229]
                %909 = vst [vmem:[%s237 + $0xa78] sm:%s229] %v908
                %v910 = vld [vmem:[%s236 + $0x1500] sm:%s229]
                %911 = vst [vmem:[%s237 + $0xa80] sm:%s229] %v910
                %v912 = vld [vmem:[%s236 + $0x1510] sm:%s229]
                %913 = vst [vmem:[%s237 + $0xa88] sm:%s229] %v912
                %v914 = vld [vmem:[%s236 + $0x1520] sm:%s229]
                %915 = vst [vmem:[%s237 + $0xa90] sm:%s229] %v914
                %v916 = vld [vmem:[%s236 + $0x1530] sm:%s229]
                %917 = vst [vmem:[%s237 + $0xa98] sm:%s229] %v916
                %v918 = vld [vmem:[%s236 + $0x1540] sm:%s229]
                %919 = vst [vmem:[%s237 + $0xaa0] sm:%s229] %v918
                %v920 = vld [vmem:[%s236 + $0x1550] sm:%s229]
                %921 = vst [vmem:[%s237 + $0xaa8] sm:%s229] %v920
                %v922 = vld [vmem:[%s236 + $0x1560] sm:%s229]
                %923 = vst [vmem:[%s237 + $0xab0] sm:%s229] %v922
                %v924 = vld [vmem:[%s236 + $0x1570] sm:%s229]
                %925 = vst [vmem:[%s237 + $0xab8] sm:%s229] %v924
                %v926 = vld [vmem:[%s236 + $0x1580] sm:%s229]
                %927 = vst [vmem:[%s237 + $0xac0] sm:%s229] %v926
                %v928 = vld [vmem:[%s236 + $0x1590] sm:%s229]
                %929 = vst [vmem:[%s237 + $0xac8] sm:%s229] %v928
                %v930 = vld [vmem:[%s236 + $0x15a0] sm:%s229]
                %931 = vst [vmem:[%s237 + $0xad0] sm:%s229] %v930
                %v932 = vld [vmem:[%s236 + $0x15b0] sm:%s229]
                %933 = vst [vmem:[%s237 + $0xad8] sm:%s229] %v932
                %v934 = vld [vmem:[%s236 + $0x15c0] sm:%s229]
                %935 = vst [vmem:[%s237 + $0xae0] sm:%s229] %v934
                %v936 = vld [vmem:[%s236 + $0x15d0] sm:%s229]
                %937 = vst [vmem:[%s237 + $0xae8] sm:%s229] %v936
                %v938 = vld [vmem:[%s236 + $0x15e0] sm:%s229]
                %939 = vst [vmem:[%s237 + $0xaf0] sm:%s229] %v938
                %v940 = vld [vmem:[%s236 + $0x15f0] sm:%s229]
                %941 = vst [vmem:[%s237 + $0xaf8] sm:%s229] %v940
                %v942 = vld [vmem:[%s236 + $0x1600] sm:%s229]
                %943 = vst [vmem:[%s237 + $0xb00] sm:%s229] %v942
                %v944 = vld [vmem:[%s236 + $0x1610] sm:%s229]
                %945 = vst [vmem:[%s237 + $0xb08] sm:%s229] %v944
                %v946 = vld [vmem:[%s236 + $0x1620] sm:%s229]
                %947 = vst [vmem:[%s237 + $0xb10] sm:%s229] %v946
                %v948 = vld [vmem:[%s236 + $0x1630] sm:%s229]
                %949 = vst [vmem:[%s237 + $0xb18] sm:%s229] %v948
                %v950 = vld [vmem:[%s236 + $0x1640] sm:%s229]
                %951 = vst [vmem:[%s237 + $0xb20] sm:%s229] %v950
                %v952 = vld [vmem:[%s236 + $0x1650] sm:%s229]
                %953 = vst [vmem:[%s237 + $0xb28] sm:%s229] %v952
                %v954 = vld [vmem:[%s236 + $0x1660] sm:%s229]
                %955 = vst [vmem:[%s237 + $0xb30] sm:%s229] %v954
                %v956 = vld [vmem:[%s236 + $0x1670] sm:%s229]
                %957 = vst [vmem:[%s237 + $0xb38] sm:%s229] %v956
                %v958 = vld [vmem:[%s236 + $0x1680] sm:%s229]
                %959 = vst [vmem:[%s237 + $0xb40] sm:%s229] %v958
                %v960 = vld [vmem:[%s236 + $0x1690] sm:%s229]
                %961 = vst [vmem:[%s237 + $0xb48] sm:%s229] %v960
                %v962 = vld [vmem:[%s236 + $0x16a0] sm:%s229]
                %963 = vst [vmem:[%s237 + $0xb50] sm:%s229] %v962
                %v964 = vld [vmem:[%s236 + $0x16b0] sm:%s229]
                %965 = vst [vmem:[%s237 + $0xb58] sm:%s229] %v964
                %v966 = vld [vmem:[%s236 + $0x16c0] sm:%s229]
                %967 = vst [vmem:[%s237 + $0xb60] sm:%s229] %v966
                %v968 = vld [vmem:[%s236 + $0x16d0] sm:%s229]
                %969 = vst [vmem:[%s237 + $0xb68] sm:%s229] %v968
                %v970 = vld [vmem:[%s236 + $0x16e0] sm:%s229]
                %971 = vst [vmem:[%s237 + $0xb70] sm:%s229] %v970
                %v972 = vld [vmem:[%s236 + $0x16f0] sm:%s229]
                %973 = vst [vmem:[%s237 + $0xb78] sm:%s229] %v972
                %v974 = vld [vmem:[%s236 + $0x1700] sm:%s229]
                %975 = vst [vmem:[%s237 + $0xb80] sm:%s229] %v974
                %v976 = vld [vmem:[%s236 + $0x1710] sm:%s229]
                %977 = vst [vmem:[%s237 + $0xb88] sm:%s229] %v976
                %v978 = vld [vmem:[%s236 + $0x1720] sm:%s229]
                %979 = vst [vmem:[%s237 + $0xb90] sm:%s229] %v978
                %v980 = vld [vmem:[%s236 + $0x1730] sm:%s229]
                %981 = vst [vmem:[%s237 + $0xb98] sm:%s229] %v980
                %v982 = vld [vmem:[%s236 + $0x1740] sm:%s229]
                %983 = vst [vmem:[%s237 + $0xba0] sm:%s229] %v982
                %v984 = vld [vmem:[%s236 + $0x1750] sm:%s229]
                %985 = vst [vmem:[%s237 + $0xba8] sm:%s229] %v984
                %v986 = vld [vmem:[%s236 + $0x1760] sm:%s229]
                %987 = vst [vmem:[%s237 + $0xbb0] sm:%s229] %v986
                %v988 = vld [vmem:[%s236 + $0x1770] sm:%s229]
                %989 = vst [vmem:[%s237 + $0xbb8] sm:%s229] %v988
                %v990 = vld [vmem:[%s236 + $0x1780] sm:%s229]
                %991 = vst [vmem:[%s237 + $0xbc0] sm:%s229] %v990
                %v992 = vld [vmem:[%s236 + $0x1790] sm:%s229]
                %993 = vst [vmem:[%s237 + $0xbc8] sm:%s229] %v992
                %v994 = vld [vmem:[%s236 + $0x17a0] sm:%s229]
                %995 = vst [vmem:[%s237 + $0xbd0] sm:%s229] %v994
                %v996 = vld [vmem:[%s236 + $0x17b0] sm:%s229]
                %997 = vst [vmem:[%s237 + $0xbd8] sm:%s229] %v996
                %v998 = vld [vmem:[%s236 + $0x17c0] sm:%s229]
                %999 = vst [vmem:[%s237 + $0xbe0] sm:%s229] %v998
                %v1000 = vld [vmem:[%s236 + $0x17d0] sm:%s229]
                %1001 = vst [vmem:[%s237 + $0xbe8] sm:%s229] %v1000
                %v1002 = vld [vmem:[%s236 + $0x17e0] sm:%s229]
                %1003 = vst [vmem:[%s237 + $0xbf0] sm:%s229] %v1002
                %v1004 = vld [vmem:[%s236 + $0x17f0] sm:%s229]
                %1005 = vst [vmem:[%s237 + $0xbf8] sm:%s229] %v1004
                %v1006 = vld [vmem:[%s236 + $0x1800] sm:%s229]
                %1007 = vst [vmem:[%s237 + $0xc00] sm:%s229] %v1006
                %v1008 = vld [vmem:[%s236 + $0x1810] sm:%s229]
                %1009 = vst [vmem:[%s237 + $0xc08] sm:%s229] %v1008
                %v1010 = vld [vmem:[%s236 + $0x1820] sm:%s229]
                %1011 = vst [vmem:[%s237 + $0xc10] sm:%s229] %v1010
                %v1012 = vld [vmem:[%s236 + $0x1830] sm:%s229]
                %1013 = vst [vmem:[%s237 + $0xc18] sm:%s229] %v1012
                %v1014 = vld [vmem:[%s236 + $0x1840] sm:%s229]
                %1015 = vst [vmem:[%s237 + $0xc20] sm:%s229] %v1014
                %v1016 = vld [vmem:[%s236 + $0x1850] sm:%s229]
                %1017 = vst [vmem:[%s237 + $0xc28] sm:%s229] %v1016
                %v1018 = vld [vmem:[%s236 + $0x1860] sm:%s229]
                %1019 = vst [vmem:[%s237 + $0xc30] sm:%s229] %v1018
                %v1020 = vld [vmem:[%s236 + $0x1870] sm:%s229]
                %1021 = vst [vmem:[%s237 + $0xc38] sm:%s229] %v1020
                %v1022 = vld [vmem:[%s236 + $0x1880] sm:%s229]
                %1023 = vst [vmem:[%s237 + $0xc40] sm:%s229] %v1022
                %v1024 = vld [vmem:[%s236 + $0x1890] sm:%s229]
                %1025 = vst [vmem:[%s237 + $0xc48] sm:%s229] %v1024
                %v1026 = vld [vmem:[%s236 + $0x18a0] sm:%s229]
                %1027 = vst [vmem:[%s237 + $0xc50] sm:%s229] %v1026
                %v1028 = vld [vmem:[%s236 + $0x18b0] sm:%s229]
                %1029 = vst [vmem:[%s237 + $0xc58] sm:%s229] %v1028
                %v1030 = vld [vmem:[%s236 + $0x18c0] sm:%s229]
                %1031 = vst [vmem:[%s237 + $0xc60] sm:%s229] %v1030
                %v1032 = vld [vmem:[%s236 + $0x18d0] sm:%s229]
                %1033 = vst [vmem:[%s237 + $0xc68] sm:%s229] %v1032
                %v1034 = vld [vmem:[%s236 + $0x18e0] sm:%s229]
                %1035 = vst [vmem:[%s237 + $0xc70] sm:%s229] %v1034
                %v1036 = vld [vmem:[%s236 + $0x18f0] sm:%s229]
                %1037 = vst [vmem:[%s237 + $0xc78] sm:%s229] %v1036
              $region41: #{forward.7} parent=35 // loop_footer
                %s235 = sadd.s32 1, %s231
              $region42: #{forward.7} parent=35 // loop_footer_branch
                %230 = sbr.rel target = $region38
              $region43: #{forward.7} parent=35 // loop_exit
                _
            $region36: #{forward.7} parent=27 // pred_fallthru
              _
          $region28: #{forward.7} parent=23 // pred_fallthru
            _
          %1850 = vnop
        $region24: #{forward.7} parent=15 // pred_fallthru
          _
        // Predicated region
        $region59: #{forward.7} parent=15 // pred_check
          %p1851 = pneg %p97
        $region60: #{forward.7} parent=15 // pred_check_branch
          %1853 = sbr.rel (%p1851) target = $region62
        $region61: #{forward.7} parent=15 // pred_region
          %s1854 = smul.u32 2, %s18
          %p1855 = scmp.lt.s32.totalorder %s1854, 3
          %s1856 = scalar_select %p1855, %s1854, 3
          %s1857 = scalar_lea.vmem %s2, %s1856
          %s1858 = smul.u32 2, %s18
        $region62: #{forward.7} parent=15 // pred_fallthru
          _
        // Predicated region
        $region63: #{forward.7} parent=15 // pred_check
          %p1859 = pneg %p123
        $region64: #{forward.7} parent=15 // pred_check_branch
          %1861 = sbr.rel (%p1859) target = $region66
        $region65: #{forward.7} parent=15 // pred_region
          %s1862 = smul.u32 2, %s18
          %p1863 = scmp.lt.s32.totalorder %s1862, 3
          %s1864 = scalar_select %p1863, %s1862, 3
          %s1865 = scalar_lea.vmem %s3, %s1864
          %s1866 = smul.u32 2, %s18
        $region66: #{forward.7} parent=15 // pred_fallthru
          _
        // Predicated region
        $region67: #{forward.7} parent=15 // pred_check
          %p1867 = pneg %p149
        $region68: #{forward.7} parent=15 // pred_check_branch
          %1869 = sbr.rel (%p1867) target = $region70
        $region69: #{forward.7} parent=15 // pred_region
          %s1870 = smul.u32 32, %s18
          %p1871 = scmp.lt.s32.totalorder %s1870, 63
          %s1872 = scalar_select %p1871, %s1870, 63
          %s1873 = smul.addr %s1872, 4
          %s1874 = scalar_lea.vmem %s4, %s1873
          %s1875 = smul.u32 32, %s18
        $region70: #{forward.7} parent=15 // pred_fallthru
          _
      $region16: #{forward.7} parent=5 // pred_fallthru
        _
      %p1876 = scmp.le.s32.totalorder 1, %s11
      %p1877 = scmp.lt.s32.totalorder %s11, 5
      %p1878 = pnand %p1876, %p1877
      %p1879 = pneg %p1878
      // Predicated region
      $region71: #{forward.7} parent=5 // pred_check
        _
      $region72: #{forward.7} parent=5 // pred_check_branch
        %1881 = sbr.rel (%p1878) target = $region74
      $region73: #{forward.7} parent=5 // pred_region
        %s1882 = ssub.s32 %s11, 1
        %s1883 = sand.u32 %s64, 1
        %s1884 = sand.u32 %s64, 1
        %s1885 = smul.addr %s1884, 3200
        %s1886 = scalar_lea.vmem [#allocation3], %s1885
        // Predicated region
        $region75: #{forward.7} parent=73 // pred_check
          %p1887 = pneg %p77
        $region76: #{forward.7} parent=73 // pred_check_branch
          %1889 = sbr.rel (%p1887) target = $region78
        $region77: #{forward.7} parent=73 // pred_region
          _
        $region78: #{forward.7} parent=73 // pred_fallthru
          _
        %s1890 = smul.u32 25, %s21
        %p1891 = scmp.lt.s32.totalorder %s1890, 49
        %s1892 = scalar_select %p1891, %s1890, 49
        %s1893 = smul.addr %s1892, 4
        %s1894 = scalar_lea.vmem %s0, %s1893
        %p1895 = pneg %p49
        %p1896 = pneg %p46
        %s1897 = sand.u32 %s64, 1
        %s1898 = sand.u32 %s64, 1
        %s1899 = smul.addr %s1898, 3200
        %s1900 = scalar_lea.vmem [#allocation3], %s1899
        %p1901 = pneg %p77
        %p1902 = pneg %p74
        %s1903 = smul.u32 2, %s20
        %p1904 = scmp.lt.s32.totalorder %s1903, 3
        %s1905 = scalar_select %p1904, %s1903, 3
        %s1906 = scalar_lea.vmem %s2, %s1905
        %p1907 = pneg %p103
        %p1908 = pneg %p100
        %s1909 = smul.u32 2, %s20
        %p1910 = scmp.lt.s32.totalorder %s1909, 3
        %s1911 = scalar_select %p1910, %s1909, 3
        %s1912 = scalar_lea.vmem %s3, %s1911
        %p1913 = pneg %p129
        %p1914 = pneg %p126
        %s1915 = smul.u32 32, %s20
        %p1916 = scmp.lt.s32.totalorder %s1915, 63
        %s1917 = scalar_select %p1916, %s1915, 63
        %s1918 = smul.addr %s1917, 4
        %s1919 = scalar_lea.vmem %s4, %s1918
        %p1920 = pneg %p155
        %p1921 = pneg %p152
        %p1922 = pneg %p181
        %p1923 = pneg %p178
        %p1924 = scmp.lt.s32.totalorder %s20, 1
        %s1925 = scalar_select %p1924, %s20, 1
        %s1926 = smul.addr %s1925, 8
        %s1927 = scalar_lea.vmem %s5, %s1926
        %s1928 = smul.u32 25, %s21
        %p1929 = scmp.lt.s32.totalorder %s1928, 49
        %s1930 = scalar_select %p1929, %s1928, 49
        %s1931 = smul.addr %s1930, 4
        %s1932 = scalar_lea.vmem %s0, %s1931
        %s1933 = smul.u32 25, %s21
        %s1934 = smul.u32 400, %s21
        %s1935 = smul.u32 2, %s20
        %s1936 = smul.u32 2, %s20
        %p1937 = scmp.lt.s32.totalorder %s1936, 3
        %s1938 = scalar_select %p1937, %s1936, 3
        %s1939 = scalar_lea.vmem %s2, %s1938
        %s1940 = smul.u32 2, %s20
        %s1941 = smul.u32 2, %s20
        %p1942 = scmp.lt.s32.totalorder %s1941, 3
        %s1943 = scalar_select %p1942, %s1941, 3
        %s1944 = scalar_lea.vmem %s3, %s1943
        %s1945 = smul.u32 2, %s20
        %s1946 = smul.u32 32, %s20
        %p1947 = scmp.lt.s32.totalorder %s1946, 63
        %s1948 = scalar_select %p1947, %s1946, 63
        %s1949 = smul.addr %s1948, 4
        %s1950 = scalar_lea.vmem %s4, %s1949
        %s1951 = smul.u32 32, %s20
        %p1952 = scmp.lt.s32.totalorder %s20, 1
        %s1953 = scalar_select %p1952, %s20, 1
        %s1954 = smul.addr %s1953, 8
        %s1955 = scalar_lea.vmem %s5, %s1954
        %p1957 = scmp.eq.s32.totalorder %s21, 0
        // Predicated region
        $region79: #{forward.7} parent=73 // pred_check
          %p1958 = pneg %p1957
        $region80: #{forward.7} parent=73 // pred_check_branch
          %1960 = sbr.rel (%p1958) target = $region82
        $region81: #{forward.7} parent=73 // pred_region
          %1961 = vst [vmem:[#allocation2] sm:$0xff] 0.0
          %1962 = vst [vmem:[#allocation2 + $0x8] sm:$0xff] 0.0
        $region82: #{forward.7} parent=73 // pred_fallthru
          _
        %v1963 = vld [vmem:[#allocation2] sm:$0xff]
        %v1964 = vld [vmem:[#allocation2 + $0x8] sm:$0xff]
        %v1965 = vld [vmem:[%s1932] sm:$0xff]
        %v1966 = vld [vmem:[%s1932 + $0x8] sm:$0xff]
        %v1967 = vld [vmem:[%s1932 + $0x10] sm:$0xff]
        %v1968 = vld [vmem:[%s1932 + $0x18] sm:$0xff]
        %v1969 = vld [vmem:[%s1932 + $0x20] sm:$0xff]
        %v1970 = vld [vmem:[%s1932 + $0x28] sm:$0xff]
        %v1971 = vld [vmem:[%s1932 + $0x30] sm:$0xff]
        %v1972 = vld [vmem:[%s1932 + $0x38] sm:$0xff]
        %v1973 = vld [vmem:[%s1932 + $0x40] sm:$0xff]
        %v1974 = vld [vmem:[%s1932 + $0x48] sm:$0xff]
        %v1975 = vld [vmem:[%s1932 + $0x50] sm:$0xff]
        %v1976 = vld [vmem:[%s1932 + $0x58] sm:$0xff]
        %v1977 = vld [vmem:[%s1932 + $0x60] sm:$0xf]
        %v1978 = vld [vmem:[%s1886] sm:$0xff]
        %v1979 = vld [vmem:[%s1886 + $0x8] sm:$0xff]
        %v1980 = vld [vmem:[%s1886 + $0x10] sm:$0xff]
        %v1981 = vld [vmem:[%s1886 + $0x18] sm:$0xff]
        %v1982 = vld [vmem:[%s1886 + $0x20] sm:$0xff]
        %v1983 = vld [vmem:[%s1886 + $0x28] sm:$0xff]
        %v1984 = vld [vmem:[%s1886 + $0x30] sm:$0xff]
        %v1985 = vld [vmem:[%s1886 + $0x38] sm:$0xff]
        %v1986 = vld [vmem:[%s1886 + $0x40] sm:$0xff]
        %v1987 = vld [vmem:[%s1886 + $0x48] sm:$0xff]
        %v1988 = vld [vmem:[%s1886 + $0x50] sm:$0xff]
        %v1989 = vld [vmem:[%s1886 + $0x58] sm:$0xff]
        %v1990 = vld [vmem:[%s1886 + $0x60] sm:$0xff]
        %v1991 = vld [vmem:[%s1886 + $0x68] sm:$0xff]
        %v1992 = vld [vmem:[%s1886 + $0x70] sm:$0xff]
        %v1993 = vld [vmem:[%s1886 + $0x78] sm:$0xff]
        %v1994 = vld [vmem:[%s1886 + $0x80] sm:$0xff]
        %v1995 = vld [vmem:[%s1886 + $0x88] sm:$0xff]
        %v1996 = vld [vmem:[%s1886 + $0x90] sm:$0xff]
        %v1997 = vld [vmem:[%s1886 + $0x98] sm:$0xff]
        %v1998 = vld [vmem:[%s1886 + $0xa0] sm:$0xff]
        %v1999 = vld [vmem:[%s1886 + $0xa8] sm:$0xff]
        %v2000 = vld [vmem:[%s1886 + $0xb0] sm:$0xff]
        %v2001 = vld [vmem:[%s1886 + $0xb8] sm:$0xff]
        %v2002 = vld [vmem:[%s1886 + $0xc0] sm:$0xff]
        %v2003 = vld [vmem:[%s1886 + $0xc8] sm:$0xff]
        %v2004 = vld [vmem:[%s1886 + $0xd0] sm:$0xff]
        %v2005 = vld [vmem:[%s1886 + $0xd8] sm:$0xff]
        %v2006 = vld [vmem:[%s1886 + $0xe0] sm:$0xff]
        %v2007 = vld [vmem:[%s1886 + $0xe8] sm:$0xff]
        %v2008 = vld [vmem:[%s1886 + $0xf0] sm:$0xff]
        %v2009 = vld [vmem:[%s1886 + $0xf8] sm:$0xff]
        %v2010 = vld [vmem:[%s1886 + $0x100] sm:$0xff]
        %v2011 = vld [vmem:[%s1886 + $0x108] sm:$0xff]
        %v2012 = vld [vmem:[%s1886 + $0x110] sm:$0xff]
        %v2013 = vld [vmem:[%s1886 + $0x118] sm:$0xff]
        %v2014 = vld [vmem:[%s1886 + $0x120] sm:$0xff]
        %v2015 = vld [vmem:[%s1886 + $0x128] sm:$0xff]
        %v2016 = vld [vmem:[%s1886 + $0x130] sm:$0xff]
        %v2017 = vld [vmem:[%s1886 + $0x138] sm:$0xff]
        %v2018 = vld [vmem:[%s1886 + $0x140] sm:$0xff]
        %v2019 = vld [vmem:[%s1886 + $0x148] sm:$0xff]
        %v2020 = vld [vmem:[%s1886 + $0x150] sm:$0xff]
        %v2021 = vld [vmem:[%s1886 + $0x158] sm:$0xff]
        %v2022 = vld [vmem:[%s1886 + $0x160] sm:$0xff]
        %v2023 = vld [vmem:[%s1886 + $0x168] sm:$0xff]
        %v2024 = vld [vmem:[%s1886 + $0x170] sm:$0xff]
        %v2025 = vld [vmem:[%s1886 + $0x178] sm:$0xff]
        %v2026 = vld [vmem:[%s1886 + $0x180] sm:$0xff]
        %v2027 = vld [vmem:[%s1886 + $0x188] sm:$0xff]
        %v2028 = vld [vmem:[%s1886 + $0x190] sm:$0xff]
        %v2029 = vld [vmem:[%s1886 + $0x198] sm:$0xff]
        %v2030 = vld [vmem:[%s1886 + $0x1a0] sm:$0xff]
        %v2031 = vld [vmem:[%s1886 + $0x1a8] sm:$0xff]
        %v2032 = vld [vmem:[%s1886 + $0x1b0] sm:$0xff]
        %v2033 = vld [vmem:[%s1886 + $0x1b8] sm:$0xff]
        %v2034 = vld [vmem:[%s1886 + $0x1c0] sm:$0xff]
        %v2035 = vld [vmem:[%s1886 + $0x1c8] sm:$0xff]
        %v2036 = vld [vmem:[%s1886 + $0x1d0] sm:$0xff]
        %v2037 = vld [vmem:[%s1886 + $0x1d8] sm:$0xff]
        %v2038 = vld [vmem:[%s1886 + $0x1e0] sm:$0xff]
        %v2039 = vld [vmem:[%s1886 + $0x1e8] sm:$0xff]
        %v2040 = vld [vmem:[%s1886 + $0x1f0] sm:$0xff]
        %v2041 = vld [vmem:[%s1886 + $0x1f8] sm:$0xff]
        %v2042 = vld [vmem:[%s1886 + $0x200] sm:$0xff]
        %v2043 = vld [vmem:[%s1886 + $0x208] sm:$0xff]
        %v2044 = vld [vmem:[%s1886 + $0x210] sm:$0xff]
        %v2045 = vld [vmem:[%s1886 + $0x218] sm:$0xff]
        %v2046 = vld [vmem:[%s1886 + $0x220] sm:$0xff]
        %v2047 = vld [vmem:[%s1886 + $0x228] sm:$0xff]
        %v2048 = vld [vmem:[%s1886 + $0x230] sm:$0xff]
        %v2049 = vld [vmem:[%s1886 + $0x238] sm:$0xff]
        %v2050 = vld [vmem:[%s1886 + $0x240] sm:$0xff]
        %v2051 = vld [vmem:[%s1886 + $0x248] sm:$0xff]
        %v2052 = vld [vmem:[%s1886 + $0x250] sm:$0xff]
        %v2053 = vld [vmem:[%s1886 + $0x258] sm:$0xff]
        %v2054 = vld [vmem:[%s1886 + $0x260] sm:$0xff]
        %v2055 = vld [vmem:[%s1886 + $0x268] sm:$0xff]
        %v2056 = vld [vmem:[%s1886 + $0x270] sm:$0xff]
        %v2057 = vld [vmem:[%s1886 + $0x278] sm:$0xff]
        %v2058 = vld [vmem:[%s1886 + $0x280] sm:$0xff]
        %v2059 = vld [vmem:[%s1886 + $0x288] sm:$0xff]
        %v2060 = vld [vmem:[%s1886 + $0x290] sm:$0xff]
        %v2061 = vld [vmem:[%s1886 + $0x298] sm:$0xff]
        %v2062 = vld [vmem:[%s1886 + $0x2a0] sm:$0xff]
        %v2063 = vld [vmem:[%s1886 + $0x2a8] sm:$0xff]
        %v2064 = vld [vmem:[%s1886 + $0x2b0] sm:$0xff]
        %v2065 = vld [vmem:[%s1886 + $0x2b8] sm:$0xff]
        %v2066 = vld [vmem:[%s1886 + $0x2c0] sm:$0xff]
        %v2067 = vld [vmem:[%s1886 + $0x2c8] sm:$0xff]
        %v2068 = vld [vmem:[%s1886 + $0x2d0] sm:$0xff]
        %v2069 = vld [vmem:[%s1886 + $0x2d8] sm:$0xff]
        %v2070 = vld [vmem:[%s1886 + $0x2e0] sm:$0xff]
        %v2071 = vld [vmem:[%s1886 + $0x2e8] sm:$0xff]
        %v2072 = vld [vmem:[%s1886 + $0x2f0] sm:$0xff]
        %v2073 = vld [vmem:[%s1886 + $0x2f8] sm:$0xff]
        %v2074 = vld [vmem:[%s1886 + $0x300] sm:$0xff]
        %v2075 = vld [vmem:[%s1886 + $0x308] sm:$0xff]
        %v2076 = vld [vmem:[%s1886 + $0x310] sm:$0xff]
        %v2077 = vld [vmem:[%s1886 + $0x318] sm:$0xff]
        %v2078 = vld [vmem:[%s1886 + $0x320] sm:$0xff]
        %v2079 = vld [vmem:[%s1886 + $0x328] sm:$0xff]
        %v2080 = vld [vmem:[%s1886 + $0x330] sm:$0xff]
        %v2081 = vld [vmem:[%s1886 + $0x338] sm:$0xff]
        %v2082 = vld [vmem:[%s1886 + $0x340] sm:$0xff]
        %v2083 = vld [vmem:[%s1886 + $0x348] sm:$0xff]
        %v2084 = vld [vmem:[%s1886 + $0x350] sm:$0xff]
        %v2085 = vld [vmem:[%s1886 + $0x358] sm:$0xff]
        %v2086 = vld [vmem:[%s1886 + $0x360] sm:$0xff]
        %v2087 = vld [vmem:[%s1886 + $0x368] sm:$0xff]
        %v2088 = vld [vmem:[%s1886 + $0x370] sm:$0xff]
        %v2089 = vld [vmem:[%s1886 + $0x378] sm:$0xff]
        %v2090 = vld [vmem:[%s1886 + $0x380] sm:$0xff]
        %v2091 = vld [vmem:[%s1886 + $0x388] sm:$0xff]
        %v2092 = vld [vmem:[%s1886 + $0x390] sm:$0xff]
        %v2093 = vld [vmem:[%s1886 + $0x398] sm:$0xff]
        %v2094 = vld [vmem:[%s1886 + $0x3a0] sm:$0xff]
        %v2095 = vld [vmem:[%s1886 + $0x3a8] sm:$0xff]
        %v2096 = vld [vmem:[%s1886 + $0x3b0] sm:$0xff]
        %v2097 = vld [vmem:[%s1886 + $0x3b8] sm:$0xff]
        %v2098 = vld [vmem:[%s1886 + $0x3c0] sm:$0xff]
        %v2099 = vld [vmem:[%s1886 + $0x3c8] sm:$0xff]
        %v2100 = vld [vmem:[%s1886 + $0x3d0] sm:$0xff]
        %v2101 = vld [vmem:[%s1886 + $0x3d8] sm:$0xff]
        %v2102 = vld [vmem:[%s1886 + $0x3e0] sm:$0xff]
        %v2103 = vld [vmem:[%s1886 + $0x3e8] sm:$0xff]
        %v2104 = vld [vmem:[%s1886 + $0x3f0] sm:$0xff]
        %v2105 = vld [vmem:[%s1886 + $0x3f8] sm:$0xff]
        %v2106 = vld [vmem:[%s1886 + $0x400] sm:$0xff]
        %v2107 = vld [vmem:[%s1886 + $0x408] sm:$0xff]
        %v2108 = vld [vmem:[%s1886 + $0x410] sm:$0xff]
        %v2109 = vld [vmem:[%s1886 + $0x418] sm:$0xff]
        %v2110 = vld [vmem:[%s1886 + $0x420] sm:$0xff]
        %v2111 = vld [vmem:[%s1886 + $0x428] sm:$0xff]
        %v2112 = vld [vmem:[%s1886 + $0x430] sm:$0xff]
        %v2113 = vld [vmem:[%s1886 + $0x438] sm:$0xff]
        %v2114 = vld [vmem:[%s1886 + $0x440] sm:$0xff]
        %v2115 = vld [vmem:[%s1886 + $0x448] sm:$0xff]
        %v2116 = vld [vmem:[%s1886 + $0x450] sm:$0xff]
        %v2117 = vld [vmem:[%s1886 + $0x458] sm:$0xff]
        %v2118 = vld [vmem:[%s1886 + $0x460] sm:$0xff]
        %v2119 = vld [vmem:[%s1886 + $0x468] sm:$0xff]
        %v2120 = vld [vmem:[%s1886 + $0x470] sm:$0xff]
        %v2121 = vld [vmem:[%s1886 + $0x478] sm:$0xff]
        %v2122 = vld [vmem:[%s1886 + $0x480] sm:$0xff]
        %v2123 = vld [vmem:[%s1886 + $0x488] sm:$0xff]
        %v2124 = vld [vmem:[%s1886 + $0x490] sm:$0xff]
        %v2125 = vld [vmem:[%s1886 + $0x498] sm:$0xff]
        %v2126 = vld [vmem:[%s1886 + $0x4a0] sm:$0xff]
        %v2127 = vld [vmem:[%s1886 + $0x4a8] sm:$0xff]
        %v2128 = vld [vmem:[%s1886 + $0x4b0] sm:$0xff]
        %v2129 = vld [vmem:[%s1886 + $0x4b8] sm:$0xff]
        %v2130 = vld [vmem:[%s1886 + $0x4c0] sm:$0xff]
        %v2131 = vld [vmem:[%s1886 + $0x4c8] sm:$0xff]
        %v2132 = vld [vmem:[%s1886 + $0x4d0] sm:$0xff]
        %v2133 = vld [vmem:[%s1886 + $0x4d8] sm:$0xff]
        %v2134 = vld [vmem:[%s1886 + $0x4e0] sm:$0xff]
        %v2135 = vld [vmem:[%s1886 + $0x4e8] sm:$0xff]
        %v2136 = vld [vmem:[%s1886 + $0x4f0] sm:$0xff]
        %v2137 = vld [vmem:[%s1886 + $0x4f8] sm:$0xff]
        %v2138 = vld [vmem:[%s1886 + $0x500] sm:$0xff]
        %v2139 = vld [vmem:[%s1886 + $0x508] sm:$0xff]
        %v2140 = vld [vmem:[%s1886 + $0x510] sm:$0xff]
        %v2141 = vld [vmem:[%s1886 + $0x518] sm:$0xff]
        %v2142 = vld [vmem:[%s1886 + $0x520] sm:$0xff]
        %v2143 = vld [vmem:[%s1886 + $0x528] sm:$0xff]
        %v2144 = vld [vmem:[%s1886 + $0x530] sm:$0xff]
        %v2145 = vld [vmem:[%s1886 + $0x538] sm:$0xff]
        %v2146 = vld [vmem:[%s1886 + $0x540] sm:$0xff]
        %v2147 = vld [vmem:[%s1886 + $0x548] sm:$0xff]
        %v2148 = vld [vmem:[%s1886 + $0x550] sm:$0xff]
        %v2149 = vld [vmem:[%s1886 + $0x558] sm:$0xff]
        %v2150 = vld [vmem:[%s1886 + $0x560] sm:$0xff]
        %v2151 = vld [vmem:[%s1886 + $0x568] sm:$0xff]
        %v2152 = vld [vmem:[%s1886 + $0x570] sm:$0xff]
        %v2153 = vld [vmem:[%s1886 + $0x578] sm:$0xff]
        %v2154 = vld [vmem:[%s1886 + $0x580] sm:$0xff]
        %v2155 = vld [vmem:[%s1886 + $0x588] sm:$0xff]
        %v2156 = vld [vmem:[%s1886 + $0x590] sm:$0xff]
        %v2157 = vld [vmem:[%s1886 + $0x598] sm:$0xff]
        %v2158 = vld [vmem:[%s1886 + $0x5a0] sm:$0xff]
        %v2159 = vld [vmem:[%s1886 + $0x5a8] sm:$0xff]
        %v2160 = vld [vmem:[%s1886 + $0x5b0] sm:$0xff]
        %v2161 = vld [vmem:[%s1886 + $0x5b8] sm:$0xff]
        %v2162 = vld [vmem:[%s1886 + $0x5c0] sm:$0xff]
        %v2163 = vld [vmem:[%s1886 + $0x5c8] sm:$0xff]
        %v2164 = vld [vmem:[%s1886 + $0x5d0] sm:$0xff]
        %v2165 = vld [vmem:[%s1886 + $0x5d8] sm:$0xff]
        %v2166 = vld [vmem:[%s1886 + $0x5e0] sm:$0xff]
        %v2167 = vld [vmem:[%s1886 + $0x5e8] sm:$0xff]
        %v2168 = vld [vmem:[%s1886 + $0x5f0] sm:$0xff]
        %v2169 = vld [vmem:[%s1886 + $0x5f8] sm:$0xff]
        %v2170 = vld [vmem:[%s1886 + $0x600] sm:$0xff]
        %v2171 = vld [vmem:[%s1886 + $0x608] sm:$0xff]
        %v2172 = vld [vmem:[%s1886 + $0x610] sm:$0xff]
        %v2173 = vld [vmem:[%s1886 + $0x618] sm:$0xff]
        %v2174 = vld [vmem:[%s1886 + $0x620] sm:$0xff]
        %v2175 = vld [vmem:[%s1886 + $0x628] sm:$0xff]
        %v2176 = vld [vmem:[%s1886 + $0x630] sm:$0xff]
        %v2177 = vld [vmem:[%s1886 + $0x638] sm:$0xff]
        %v2178 = vld [vmem:[%s1886 + $0x640] sm:$0xff]
        %v2179 = vld [vmem:[%s1886 + $0x648] sm:$0xff]
        %v2180 = vld [vmem:[%s1886 + $0x650] sm:$0xff]
        %v2181 = vld [vmem:[%s1886 + $0x658] sm:$0xff]
        %v2182 = vld [vmem:[%s1886 + $0x660] sm:$0xff]
        %v2183 = vld [vmem:[%s1886 + $0x668] sm:$0xff]
        %v2184 = vld [vmem:[%s1886 + $0x670] sm:$0xff]
        %v2185 = vld [vmem:[%s1886 + $0x678] sm:$0xff]
        %v2186 = vld [vmem:[%s1886 + $0x680] sm:$0xff]
        %v2187 = vld [vmem:[%s1886 + $0x688] sm:$0xff]
        %v2188 = vld [vmem:[%s1886 + $0x690] sm:$0xff]
        %v2189 = vld [vmem:[%s1886 + $0x698] sm:$0xff]
        %v2190 = vld [vmem:[%s1886 + $0x6a0] sm:$0xff]
        %v2191 = vld [vmem:[%s1886 + $0x6a8] sm:$0xff]
        %v2192 = vld [vmem:[%s1886 + $0x6b0] sm:$0xff]
        %v2193 = vld [vmem:[%s1886 + $0x6b8] sm:$0xff]
        %v2194 = vld [vmem:[%s1886 + $0x6c0] sm:$0xff]
        %v2195 = vld [vmem:[%s1886 + $0x6c8] sm:$0xff]
        %v2196 = vld [vmem:[%s1886 + $0x6d0] sm:$0xff]
        %v2197 = vld [vmem:[%s1886 + $0x6d8] sm:$0xff]
        %v2198 = vld [vmem:[%s1886 + $0x6e0] sm:$0xff]
        %v2199 = vld [vmem:[%s1886 + $0x6e8] sm:$0xff]
        %v2200 = vld [vmem:[%s1886 + $0x6f0] sm:$0xff]
        %v2201 = vld [vmem:[%s1886 + $0x6f8] sm:$0xff]
        %v2202 = vld [vmem:[%s1886 + $0x700] sm:$0xff]
        %v2203 = vld [vmem:[%s1886 + $0x708] sm:$0xff]
        %v2204 = vld [vmem:[%s1886 + $0x710] sm:$0xff]
        %v2205 = vld [vmem:[%s1886 + $0x718] sm:$0xff]
        %v2206 = vld [vmem:[%s1886 + $0x720] sm:$0xff]
        %v2207 = vld [vmem:[%s1886 + $0x728] sm:$0xff]
        %v2208 = vld [vmem:[%s1886 + $0x730] sm:$0xff]
        %v2209 = vld [vmem:[%s1886 + $0x738] sm:$0xff]
        %v2210 = vld [vmem:[%s1886 + $0x740] sm:$0xff]
        %v2211 = vld [vmem:[%s1886 + $0x748] sm:$0xff]
        %v2212 = vld [vmem:[%s1886 + $0x750] sm:$0xff]
        %v2213 = vld [vmem:[%s1886 + $0x758] sm:$0xff]
        %v2214 = vld [vmem:[%s1886 + $0x760] sm:$0xff]
        %v2215 = vld [vmem:[%s1886 + $0x768] sm:$0xff]
        %v2216 = vld [vmem:[%s1886 + $0x770] sm:$0xff]
        %v2217 = vld [vmem:[%s1886 + $0x778] sm:$0xff]
        %v2218 = vld [vmem:[%s1886 + $0x780] sm:$0xff]
        %v2219 = vld [vmem:[%s1886 + $0x788] sm:$0xff]
        %v2220 = vld [vmem:[%s1886 + $0x790] sm:$0xff]
        %v2221 = vld [vmem:[%s1886 + $0x798] sm:$0xff]
        %v2222 = vld [vmem:[%s1886 + $0x7a0] sm:$0xff]
        %v2223 = vld [vmem:[%s1886 + $0x7a8] sm:$0xff]
        %v2224 = vld [vmem:[%s1886 + $0x7b0] sm:$0xff]
        %v2225 = vld [vmem:[%s1886 + $0x7b8] sm:$0xff]
        %v2226 = vld [vmem:[%s1886 + $0x7c0] sm:$0xff]
        %v2227 = vld [vmem:[%s1886 + $0x7c8] sm:$0xff]
        %v2228 = vld [vmem:[%s1886 + $0x7d0] sm:$0xff]
        %v2229 = vld [vmem:[%s1886 + $0x7d8] sm:$0xff]
        %v2230 = vld [vmem:[%s1886 + $0x7e0] sm:$0xff]
        %v2231 = vld [vmem:[%s1886 + $0x7e8] sm:$0xff]
        %v2232 = vld [vmem:[%s1886 + $0x7f0] sm:$0xff]
        %v2233 = vld [vmem:[%s1886 + $0x7f8] sm:$0xff]
        %v2234 = vld [vmem:[%s1886 + $0x800] sm:$0xff]
        %v2235 = vld [vmem:[%s1886 + $0x808] sm:$0xff]
        %v2236 = vld [vmem:[%s1886 + $0x810] sm:$0xff]
        %v2237 = vld [vmem:[%s1886 + $0x818] sm:$0xff]
        %v2238 = vld [vmem:[%s1886 + $0x820] sm:$0xff]
        %v2239 = vld [vmem:[%s1886 + $0x828] sm:$0xff]
        %v2240 = vld [vmem:[%s1886 + $0x830] sm:$0xff]
        %v2241 = vld [vmem:[%s1886 + $0x838] sm:$0xff]
        %v2242 = vld [vmem:[%s1886 + $0x840] sm:$0xff]
        %v2243 = vld [vmem:[%s1886 + $0x848] sm:$0xff]
        %v2244 = vld [vmem:[%s1886 + $0x850] sm:$0xff]
        %v2245 = vld [vmem:[%s1886 + $0x858] sm:$0xff]
        %v2246 = vld [vmem:[%s1886 + $0x860] sm:$0xff]
        %v2247 = vld [vmem:[%s1886 + $0x868] sm:$0xff]
        %v2248 = vld [vmem:[%s1886 + $0x870] sm:$0xff]
        %v2249 = vld [vmem:[%s1886 + $0x878] sm:$0xff]
        %v2250 = vld [vmem:[%s1886 + $0x880] sm:$0xff]
        %v2251 = vld [vmem:[%s1886 + $0x888] sm:$0xff]
        %v2252 = vld [vmem:[%s1886 + $0x890] sm:$0xff]
        %v2253 = vld [vmem:[%s1886 + $0x898] sm:$0xff]
        %v2254 = vld [vmem:[%s1886 + $0x8a0] sm:$0xff]
        %v2255 = vld [vmem:[%s1886 + $0x8a8] sm:$0xff]
        %v2256 = vld [vmem:[%s1886 + $0x8b0] sm:$0xff]
        %v2257 = vld [vmem:[%s1886 + $0x8b8] sm:$0xff]
        %v2258 = vld [vmem:[%s1886 + $0x8c0] sm:$0xff]
        %v2259 = vld [vmem:[%s1886 + $0x8c8] sm:$0xff]
        %v2260 = vld [vmem:[%s1886 + $0x8d0] sm:$0xff]
        %v2261 = vld [vmem:[%s1886 + $0x8d8] sm:$0xff]
        %v2262 = vld [vmem:[%s1886 + $0x8e0] sm:$0xff]
        %v2263 = vld [vmem:[%s1886 + $0x8e8] sm:$0xff]
        %v2264 = vld [vmem:[%s1886 + $0x8f0] sm:$0xff]
        %v2265 = vld [vmem:[%s1886 + $0x8f8] sm:$0xff]
        %v2266 = vld [vmem:[%s1886 + $0x900] sm:$0xff]
        %v2267 = vld [vmem:[%s1886 + $0x908] sm:$0xff]
        %v2268 = vld [vmem:[%s1886 + $0x910] sm:$0xff]
        %v2269 = vld [vmem:[%s1886 + $0x918] sm:$0xff]
        %v2270 = vld [vmem:[%s1886 + $0x920] sm:$0xff]
        %v2271 = vld [vmem:[%s1886 + $0x928] sm:$0xff]
        %v2272 = vld [vmem:[%s1886 + $0x930] sm:$0xff]
        %v2273 = vld [vmem:[%s1886 + $0x938] sm:$0xff]
        %v2274 = vld [vmem:[%s1886 + $0x940] sm:$0xff]
        %v2275 = vld [vmem:[%s1886 + $0x948] sm:$0xff]
        %v2276 = vld [vmem:[%s1886 + $0x950] sm:$0xff]
        %v2277 = vld [vmem:[%s1886 + $0x958] sm:$0xff]
        %v2278 = vld [vmem:[%s1886 + $0x960] sm:$0xff]
        %v2279 = vld [vmem:[%s1886 + $0x968] sm:$0xff]
        %v2280 = vld [vmem:[%s1886 + $0x970] sm:$0xff]
        %v2281 = vld [vmem:[%s1886 + $0x978] sm:$0xff]
        %v2282 = vld [vmem:[%s1886 + $0x980] sm:$0xff]
        %v2283 = vld [vmem:[%s1886 + $0x988] sm:$0xff]
        %v2284 = vld [vmem:[%s1886 + $0x990] sm:$0xff]
        %v2285 = vld [vmem:[%s1886 + $0x998] sm:$0xff]
        %v2286 = vld [vmem:[%s1886 + $0x9a0] sm:$0xff]
        %v2287 = vld [vmem:[%s1886 + $0x9a8] sm:$0xff]
        %v2288 = vld [vmem:[%s1886 + $0x9b0] sm:$0xff]
        %v2289 = vld [vmem:[%s1886 + $0x9b8] sm:$0xff]
        %v2290 = vld [vmem:[%s1886 + $0x9c0] sm:$0xff]
        %v2291 = vld [vmem:[%s1886 + $0x9c8] sm:$0xff]
        %v2292 = vld [vmem:[%s1886 + $0x9d0] sm:$0xff]
        %v2293 = vld [vmem:[%s1886 + $0x9d8] sm:$0xff]
        %v2294 = vld [vmem:[%s1886 + $0x9e0] sm:$0xff]
        %v2295 = vld [vmem:[%s1886 + $0x9e8] sm:$0xff]
        %v2296 = vld [vmem:[%s1886 + $0x9f0] sm:$0xff]
        %v2297 = vld [vmem:[%s1886 + $0x9f8] sm:$0xff]
        %v2298 = vld [vmem:[%s1886 + $0xa00] sm:$0xff]
        %v2299 = vld [vmem:[%s1886 + $0xa08] sm:$0xff]
        %v2300 = vld [vmem:[%s1886 + $0xa10] sm:$0xff]
        %v2301 = vld [vmem:[%s1886 + $0xa18] sm:$0xff]
        %v2302 = vld [vmem:[%s1886 + $0xa20] sm:$0xff]
        %v2303 = vld [vmem:[%s1886 + $0xa28] sm:$0xff]
        %v2304 = vld [vmem:[%s1886 + $0xa30] sm:$0xff]
        %v2305 = vld [vmem:[%s1886 + $0xa38] sm:$0xff]
        %v2306 = vld [vmem:[%s1886 + $0xa40] sm:$0xff]
        %v2307 = vld [vmem:[%s1886 + $0xa48] sm:$0xff]
        %v2308 = vld [vmem:[%s1886 + $0xa50] sm:$0xff]
        %v2309 = vld [vmem:[%s1886 + $0xa58] sm:$0xff]
        %v2310 = vld [vmem:[%s1886 + $0xa60] sm:$0xff]
        %v2311 = vld [vmem:[%s1886 + $0xa68] sm:$0xff]
        %v2312 = vld [vmem:[%s1886 + $0xa70] sm:$0xff]
        %v2313 = vld [vmem:[%s1886 + $0xa78] sm:$0xff]
        %v2314 = vld [vmem:[%s1886 + $0xa80] sm:$0xff]
        %v2315 = vld [vmem:[%s1886 + $0xa88] sm:$0xff]
        %v2316 = vld [vmem:[%s1886 + $0xa90] sm:$0xff]
        %v2317 = vld [vmem:[%s1886 + $0xa98] sm:$0xff]
        %v2318 = vld [vmem:[%s1886 + $0xaa0] sm:$0xff]
        %v2319 = vld [vmem:[%s1886 + $0xaa8] sm:$0xff]
        %v2320 = vld [vmem:[%s1886 + $0xab0] sm:$0xff]
        %v2321 = vld [vmem:[%s1886 + $0xab8] sm:$0xff]
        %v2322 = vld [vmem:[%s1886 + $0xac0] sm:$0xff]
        %v2323 = vld [vmem:[%s1886 + $0xac8] sm:$0xff]
        %v2324 = vld [vmem:[%s1886 + $0xad0] sm:$0xff]
        %v2325 = vld [vmem:[%s1886 + $0xad8] sm:$0xff]
        %v2326 = vld [vmem:[%s1886 + $0xae0] sm:$0xff]
        %v2327 = vld [vmem:[%s1886 + $0xae8] sm:$0xff]
        %v2328 = vld [vmem:[%s1886 + $0xaf0] sm:$0xff]
        %v2329 = vld [vmem:[%s1886 + $0xaf8] sm:$0xff]
        %v2330 = vld [vmem:[%s1886 + $0xb00] sm:$0xff]
        %v2331 = vld [vmem:[%s1886 + $0xb08] sm:$0xff]
        %v2332 = vld [vmem:[%s1886 + $0xb10] sm:$0xff]
        %v2333 = vld [vmem:[%s1886 + $0xb18] sm:$0xff]
        %v2334 = vld [vmem:[%s1886 + $0xb20] sm:$0xff]
        %v2335 = vld [vmem:[%s1886 + $0xb28] sm:$0xff]
        %v2336 = vld [vmem:[%s1886 + $0xb30] sm:$0xff]
        %v2337 = vld [vmem:[%s1886 + $0xb38] sm:$0xff]
        %v2338 = vld [vmem:[%s1886 + $0xb40] sm:$0xff]
        %v2339 = vld [vmem:[%s1886 + $0xb48] sm:$0xff]
        %v2340 = vld [vmem:[%s1886 + $0xb50] sm:$0xff]
        %v2341 = vld [vmem:[%s1886 + $0xb58] sm:$0xff]
        %v2342 = vld [vmem:[%s1886 + $0xb60] sm:$0xff]
        %v2343 = vld [vmem:[%s1886 + $0xb68] sm:$0xff]
        %v2344 = vld [vmem:[%s1886 + $0xb70] sm:$0xff]
        %v2345 = vld [vmem:[%s1886 + $0xb78] sm:$0xff]
        %v2346 = vld [vmem:[%s1886 + $0xb80] sm:$0xff]
        %v2347 = vld [vmem:[%s1886 + $0xb88] sm:$0xff]
        %v2348 = vld [vmem:[%s1886 + $0xb90] sm:$0xff]
        %v2349 = vld [vmem:[%s1886 + $0xb98] sm:$0xff]
        %v2350 = vld [vmem:[%s1886 + $0xba0] sm:$0xff]
        %v2351 = vld [vmem:[%s1886 + $0xba8] sm:$0xff]
        %v2352 = vld [vmem:[%s1886 + $0xbb0] sm:$0xff]
        %v2353 = vld [vmem:[%s1886 + $0xbb8] sm:$0xff]
        %v2354 = vld [vmem:[%s1886 + $0xbc0] sm:$0xff]
        %v2355 = vld [vmem:[%s1886 + $0xbc8] sm:$0xff]
        %v2356 = vld [vmem:[%s1886 + $0xbd0] sm:$0xff]
        %v2357 = vld [vmem:[%s1886 + $0xbd8] sm:$0xff]
        %v2358 = vld [vmem:[%s1886 + $0xbe0] sm:$0xff]
        %v2359 = vld [vmem:[%s1886 + $0xbe8] sm:$0xff]
        %v2360 = vld [vmem:[%s1886 + $0xbf0] sm:$0xff]
        %v2361 = vld [vmem:[%s1886 + $0xbf8] sm:$0xff]
        %v2362 = vld [vmem:[%s1886 + $0xc00] sm:$0xff]
        %v2363 = vld [vmem:[%s1886 + $0xc08] sm:$0xff]
        %v2364 = vld [vmem:[%s1886 + $0xc10] sm:$0xff]
        %v2365 = vld [vmem:[%s1886 + $0xc18] sm:$0xff]
        %v2366 = vld [vmem:[%s1886 + $0xc20] sm:$0xff]
        %v2367 = vld [vmem:[%s1886 + $0xc28] sm:$0xff]
        %v2368 = vld [vmem:[%s1886 + $0xc30] sm:$0xff]
        %v2369 = vld [vmem:[%s1886 + $0xc38] sm:$0xff]
        %v2370 = vld [vmem:[%s1886 + $0xc40] sm:$0xff]
        %v2371 = vld [vmem:[%s1886 + $0xc48] sm:$0xff]
        %v2372 = vld [vmem:[%s1886 + $0xc50] sm:$0xff]
        %v2373 = vld [vmem:[%s1886 + $0xc58] sm:$0xff]
        %v2374 = vld [vmem:[%s1886 + $0xc60] sm:$0xff]
        %v2375 = vld [vmem:[%s1886 + $0xc68] sm:$0xff]
        %v2376 = vld [vmem:[%s1886 + $0xc70] sm:$0xff]
        %v2377 = vld [vmem:[%s1886 + $0xc78] sm:$0xff]
        %v2391 = vunpack.c.l.b16 %v1965
        %v2392 = vunpack.c.h.b16 %v1965
        %v2393 = vunpack.c.l.b16 %v1966
        %v2394 = vunpack.c.h.b16 %v1966
        %v2395 = vunpack.c.l.b16 %v1967
        %v2396 = vunpack.c.h.b16 %v1967
        %v2397 = vunpack.c.l.b16 %v1968
        %v2398 = vunpack.c.h.b16 %v1968
        %v2399 = vunpack.c.l.b16 %v1969
        %v2400 = vunpack.c.h.b16 %v1969
        %v2401 = vunpack.c.l.b16 %v1970
        %v2402 = vunpack.c.h.b16 %v1970
        %v2403 = vunpack.c.l.b16 %v1971
        %v2404 = vunpack.c.h.b16 %v1971
        %v2405 = vunpack.c.l.b16 %v1972
        %v2406 = vunpack.c.h.b16 %v1972
        %v2407 = vunpack.c.l.b16 %v1973
        %v2408 = vunpack.c.h.b16 %v1973
        %v2409 = vunpack.c.l.b16 %v1974
        %v2410 = vunpack.c.h.b16 %v1974
        %v2411 = vunpack.c.l.b16 %v1975
        %v2412 = vunpack.c.h.b16 %v1975
        %v2413 = vunpack.c.l.b16 %v1976
        %v2414 = vunpack.c.h.b16 %v1976
        %v2415 = vunpack.c.l.b16 %v1977
        %v2416 = vpack.c.b16 %v2391, %v2391
        %v2417 = vpack.c.b16 %v2392, %v2392
        %v2418 = vpack.c.b16 %v2393, %v2393
        %v2419 = vpack.c.b16 %v2394, %v2394
        %v2420 = vpack.c.b16 %v2395, %v2395
        %v2421 = vpack.c.b16 %v2396, %v2396
        %v2422 = vpack.c.b16 %v2397, %v2397
        %v2423 = vpack.c.b16 %v2398, %v2398
        %v2424 = vpack.c.b16 %v2399, %v2399
        %v2425 = vpack.c.b16 %v2400, %v2400
        %v2426 = vpack.c.b16 %v2401, %v2401
        %v2427 = vpack.c.b16 %v2402, %v2402
        %v2428 = vpack.c.b16 %v2403, %v2403
        %v2429 = vpack.c.b16 %v2404, %v2404
        %v2430 = vpack.c.b16 %v2405, %v2405
        %v2431 = vpack.c.b16 %v2406, %v2406
        %v2432 = vpack.c.b16 %v2407, %v2407
        %v2433 = vpack.c.b16 %v2408, %v2408
        %v2434 = vpack.c.b16 %v2409, %v2409
        %v2435 = vpack.c.b16 %v2410, %v2410
        %v2436 = vpack.c.b16 %v2411, %v2411
        %v2437 = vpack.c.b16 %v2412, %v2412
        %v2438 = vpack.c.b16 %v2413, %v2413
        %v2439 = vpack.c.b16 %v2414, %v2414
        %v2440 = vpack.c.b16 %v2415, %v2415
        %v2866 = vunpack.c.l.b16 %v1978
        %v2867 = vunpack.c.h.b16 %v1978
        %v2868 = vunpack.c.l.b16 %v1979
        %v2869 = vunpack.c.h.b16 %v1979
        %v2870 = vunpack.c.l.b16 %v1980
        %v2871 = vunpack.c.h.b16 %v1980
        %v2872 = vunpack.c.l.b16 %v1981
        %v2873 = vunpack.c.h.b16 %v1981
        %v2874 = vunpack.c.l.b16 %v1982
        %v2875 = vunpack.c.h.b16 %v1982
        %v2876 = vunpack.c.l.b16 %v1983
        %v2877 = vunpack.c.h.b16 %v1983
        %v2878 = vunpack.c.l.b16 %v1984
        %v2879 = vunpack.c.h.b16 %v1984
        %v2880 = vunpack.c.l.b16 %v1985
        %v2881 = vunpack.c.h.b16 %v1985
        %v2882 = vunpack.c.l.b16 %v1986
        %v2883 = vunpack.c.h.b16 %v1986
        %v2884 = vunpack.c.l.b16 %v1987
        %v2885 = vunpack.c.h.b16 %v1987
        %v2886 = vunpack.c.l.b16 %v1988
        %v2887 = vunpack.c.h.b16 %v1988
        %v2888 = vunpack.c.l.b16 %v1989
        %v2889 = vunpack.c.h.b16 %v1989
        %v2890 = vunpack.c.l.b16 %v1990
        %v2891 = vunpack.c.h.b16 %v1990
        %v2892 = vunpack.c.l.b16 %v1991
        %v2893 = vunpack.c.h.b16 %v1991
        %v2894 = vunpack.c.l.b16 %v1992
        %v2895 = vunpack.c.h.b16 %v1992
        %v2896 = vunpack.c.l.b16 %v1993
        %v2897 = vunpack.c.h.b16 %v1993
        %v2898 = vunpack.c.l.b16 %v1994
        %v2899 = vunpack.c.h.b16 %v1994
        %v2900 = vunpack.c.l.b16 %v1995
        %v2901 = vunpack.c.h.b16 %v1995
        %v2902 = vunpack.c.l.b16 %v1996
        %v2903 = vunpack.c.h.b16 %v1996
        %v2904 = vunpack.c.l.b16 %v1997
        %v2905 = vunpack.c.h.b16 %v1997
        %v2906 = vunpack.c.l.b16 %v1998
        %v2907 = vunpack.c.h.b16 %v1998
        %v2908 = vunpack.c.l.b16 %v1999
        %v2909 = vunpack.c.h.b16 %v1999
        %v2910 = vunpack.c.l.b16 %v2000
        %v2911 = vunpack.c.h.b16 %v2000
        %v2912 = vunpack.c.l.b16 %v2001
        %v2913 = vunpack.c.h.b16 %v2001
        %v2914 = vunpack.c.l.b16 %v2002
        %v2915 = vunpack.c.h.b16 %v2002
        %v2916 = vunpack.c.l.b16 %v2003
        %v2917 = vunpack.c.h.b16 %v2003
        %v2918 = vunpack.c.l.b16 %v2004
        %v2919 = vunpack.c.h.b16 %v2004
        %v2920 = vunpack.c.l.b16 %v2005
        %v2921 = vunpack.c.h.b16 %v2005
        %v2922 = vunpack.c.l.b16 %v2006
        %v2923 = vunpack.c.h.b16 %v2006
        %v2924 = vunpack.c.l.b16 %v2007
        %v2925 = vunpack.c.h.b16 %v2007
        %v2926 = vunpack.c.l.b16 %v2008
        %v2927 = vunpack.c.h.b16 %v2008
        %v2928 = vunpack.c.l.b16 %v2009
        %v2929 = vunpack.c.h.b16 %v2009
        %v2930 = vunpack.c.l.b16 %v2010
        %v2931 = vunpack.c.h.b16 %v2010
        %v2932 = vunpack.c.l.b16 %v2011
        %v2933 = vunpack.c.h.b16 %v2011
        %v2934 = vunpack.c.l.b16 %v2012
        %v2935 = vunpack.c.h.b16 %v2012
        %v2936 = vunpack.c.l.b16 %v2013
        %v2937 = vunpack.c.h.b16 %v2013
        %v2938 = vunpack.c.l.b16 %v2014
        %v2939 = vunpack.c.h.b16 %v2014
        %v2940 = vunpack.c.l.b16 %v2015
        %v2941 = vunpack.c.h.b16 %v2015
        %v2942 = vunpack.c.l.b16 %v2016
        %v2943 = vunpack.c.h.b16 %v2016
        %v2944 = vunpack.c.l.b16 %v2017
        %v2945 = vunpack.c.h.b16 %v2017
        %v2946 = vunpack.c.l.b16 %v2018
        %v2947 = vunpack.c.h.b16 %v2018
        %v2948 = vunpack.c.l.b16 %v2019
        %v2949 = vunpack.c.h.b16 %v2019
        %v2950 = vunpack.c.l.b16 %v2020
        %v2951 = vunpack.c.h.b16 %v2020
        %v2952 = vunpack.c.l.b16 %v2021
        %v2953 = vunpack.c.h.b16 %v2021
        %v2954 = vunpack.c.l.b16 %v2022
        %v2955 = vunpack.c.h.b16 %v2022
        %v2956 = vunpack.c.l.b16 %v2023
        %v2957 = vunpack.c.h.b16 %v2023
        %v2958 = vunpack.c.l.b16 %v2024
        %v2959 = vunpack.c.h.b16 %v2024
        %v2960 = vunpack.c.l.b16 %v2025
        %v2961 = vunpack.c.h.b16 %v2025
        %v2962 = vunpack.c.l.b16 %v2026
        %v2963 = vunpack.c.h.b16 %v2026
        %v2964 = vunpack.c.l.b16 %v2027
        %v2965 = vunpack.c.h.b16 %v2027
        %v2966 = vunpack.c.l.b16 %v2028
        %v2967 = vunpack.c.h.b16 %v2028
        %v2968 = vunpack.c.l.b16 %v2029
        %v2969 = vunpack.c.h.b16 %v2029
        %v2970 = vunpack.c.l.b16 %v2030
        %v2971 = vunpack.c.h.b16 %v2030
        %v2972 = vunpack.c.l.b16 %v2031
        %v2973 = vunpack.c.h.b16 %v2031
        %v2974 = vunpack.c.l.b16 %v2032
        %v2975 = vunpack.c.h.b16 %v2032
        %v2976 = vunpack.c.l.b16 %v2033
        %v2977 = vunpack.c.h.b16 %v2033
        %v2978 = vunpack.c.l.b16 %v2034
        %v2979 = vunpack.c.h.b16 %v2034
        %v2980 = vunpack.c.l.b16 %v2035
        %v2981 = vunpack.c.h.b16 %v2035
        %v2982 = vunpack.c.l.b16 %v2036
        %v2983 = vunpack.c.h.b16 %v2036
        %v2984 = vunpack.c.l.b16 %v2037
        %v2985 = vunpack.c.h.b16 %v2037
        %v2986 = vunpack.c.l.b16 %v2038
        %v2987 = vunpack.c.h.b16 %v2038
        %v2988 = vunpack.c.l.b16 %v2039
        %v2989 = vunpack.c.h.b16 %v2039
        %v2990 = vunpack.c.l.b16 %v2040
        %v2991 = vunpack.c.h.b16 %v2040
        %v2992 = vunpack.c.l.b16 %v2041
        %v2993 = vunpack.c.h.b16 %v2041
        %v2994 = vunpack.c.l.b16 %v2042
        %v2995 = vunpack.c.h.b16 %v2042
        %v2996 = vunpack.c.l.b16 %v2043
        %v2997 = vunpack.c.h.b16 %v2043
        %v2998 = vunpack.c.l.b16 %v2044
        %v2999 = vunpack.c.h.b16 %v2044
        %v3000 = vunpack.c.l.b16 %v2045
        %v3001 = vunpack.c.h.b16 %v2045
        %v3002 = vunpack.c.l.b16 %v2046
        %v3003 = vunpack.c.h.b16 %v2046
        %v3004 = vunpack.c.l.b16 %v2047
        %v3005 = vunpack.c.h.b16 %v2047
        %v3006 = vunpack.c.l.b16 %v2048
        %v3007 = vunpack.c.h.b16 %v2048
        %v3008 = vunpack.c.l.b16 %v2049
        %v3009 = vunpack.c.h.b16 %v2049
        %v3010 = vunpack.c.l.b16 %v2050
        %v3011 = vunpack.c.h.b16 %v2050
        %v3012 = vunpack.c.l.b16 %v2051
        %v3013 = vunpack.c.h.b16 %v2051
        %v3014 = vunpack.c.l.b16 %v2052
        %v3015 = vunpack.c.h.b16 %v2052
        %v3016 = vunpack.c.l.b16 %v2053
        %v3017 = vunpack.c.h.b16 %v2053
        %v3018 = vunpack.c.l.b16 %v2054
        %v3019 = vunpack.c.h.b16 %v2054
        %v3020 = vunpack.c.l.b16 %v2055
        %v3021 = vunpack.c.h.b16 %v2055
        %v3022 = vunpack.c.l.b16 %v2056
        %v3023 = vunpack.c.h.b16 %v2056
        %v3024 = vunpack.c.l.b16 %v2057
        %v3025 = vunpack.c.h.b16 %v2057
        %v3026 = vunpack.c.l.b16 %v2058
        %v3027 = vunpack.c.h.b16 %v2058
        %v3028 = vunpack.c.l.b16 %v2059
        %v3029 = vunpack.c.h.b16 %v2059
        %v3030 = vunpack.c.l.b16 %v2060
        %v3031 = vunpack.c.h.b16 %v2060
        %v3032 = vunpack.c.l.b16 %v2061
        %v3033 = vunpack.c.h.b16 %v2061
        %v3034 = vunpack.c.l.b16 %v2062
        %v3035 = vunpack.c.h.b16 %v2062
        %v3036 = vunpack.c.l.b16 %v2063
        %v3037 = vunpack.c.h.b16 %v2063
        %v3038 = vunpack.c.l.b16 %v2064
        %v3039 = vunpack.c.h.b16 %v2064
        %v3040 = vunpack.c.l.b16 %v2065
        %v3041 = vunpack.c.h.b16 %v2065
        %v3042 = vunpack.c.l.b16 %v2066
        %v3043 = vunpack.c.h.b16 %v2066
        %v3044 = vunpack.c.l.b16 %v2067
        %v3045 = vunpack.c.h.b16 %v2067
        %v3046 = vunpack.c.l.b16 %v2068
        %v3047 = vunpack.c.h.b16 %v2068
        %v3048 = vunpack.c.l.b16 %v2069
        %v3049 = vunpack.c.h.b16 %v2069
        %v3050 = vunpack.c.l.b16 %v2070
        %v3051 = vunpack.c.h.b16 %v2070
        %v3052 = vunpack.c.l.b16 %v2071
        %v3053 = vunpack.c.h.b16 %v2071
        %v3054 = vunpack.c.l.b16 %v2072
        %v3055 = vunpack.c.h.b16 %v2072
        %v3056 = vunpack.c.l.b16 %v2073
        %v3057 = vunpack.c.h.b16 %v2073
        %v3058 = vunpack.c.l.b16 %v2074
        %v3059 = vunpack.c.h.b16 %v2074
        %v3060 = vunpack.c.l.b16 %v2075
        %v3061 = vunpack.c.h.b16 %v2075
        %v3062 = vunpack.c.l.b16 %v2076
        %v3063 = vunpack.c.h.b16 %v2076
        %v3064 = vunpack.c.l.b16 %v2077
        %v3065 = vunpack.c.h.b16 %v2077
        %v3066 = vunpack.c.l.b16 %v2078
        %v3067 = vunpack.c.h.b16 %v2078
        %v3068 = vunpack.c.l.b16 %v2079
        %v3069 = vunpack.c.h.b16 %v2079
        %v3070 = vunpack.c.l.b16 %v2080
        %v3071 = vunpack.c.h.b16 %v2080
        %v3072 = vunpack.c.l.b16 %v2081
        %v3073 = vunpack.c.h.b16 %v2081
        %v3074 = vunpack.c.l.b16 %v2082
        %v3075 = vunpack.c.h.b16 %v2082
        %v3076 = vunpack.c.l.b16 %v2083
        %v3077 = vunpack.c.h.b16 %v2083
        %v3078 = vunpack.c.l.b16 %v2084
        %v3079 = vunpack.c.h.b16 %v2084
        %v3080 = vunpack.c.l.b16 %v2085
        %v3081 = vunpack.c.h.b16 %v2085
        %v3082 = vunpack.c.l.b16 %v2086
        %v3083 = vunpack.c.h.b16 %v2086
        %v3084 = vunpack.c.l.b16 %v2087
        %v3085 = vunpack.c.h.b16 %v2087
        %v3086 = vunpack.c.l.b16 %v2088
        %v3087 = vunpack.c.h.b16 %v2088
        %v3088 = vunpack.c.l.b16 %v2089
        %v3089 = vunpack.c.h.b16 %v2089
        %v3090 = vunpack.c.l.b16 %v2090
        %v3091 = vunpack.c.h.b16 %v2090
        %v3092 = vunpack.c.l.b16 %v2091
        %v3093 = vunpack.c.h.b16 %v2091
        %v3094 = vunpack.c.l.b16 %v2092
        %v3095 = vunpack.c.h.b16 %v2092
        %v3096 = vunpack.c.l.b16 %v2093
        %v3097 = vunpack.c.h.b16 %v2093
        %v3098 = vunpack.c.l.b16 %v2094
        %v3099 = vunpack.c.h.b16 %v2094
        %v3100 = vunpack.c.l.b16 %v2095
        %v3101 = vunpack.c.h.b16 %v2095
        %v3102 = vunpack.c.l.b16 %v2096
        %v3103 = vunpack.c.h.b16 %v2096
        %v3104 = vunpack.c.l.b16 %v2097
        %v3105 = vunpack.c.h.b16 %v2097
        %v3106 = vunpack.c.l.b16 %v2098
        %v3107 = vunpack.c.h.b16 %v2098
        %v3108 = vunpack.c.l.b16 %v2099
        %v3109 = vunpack.c.h.b16 %v2099
        %v3110 = vunpack.c.l.b16 %v2100
        %v3111 = vunpack.c.h.b16 %v2100
        %v3112 = vunpack.c.l.b16 %v2101
        %v3113 = vunpack.c.h.b16 %v2101
        %v3114 = vunpack.c.l.b16 %v2102
        %v3115 = vunpack.c.h.b16 %v2102
        %v3116 = vunpack.c.l.b16 %v2103
        %v3117 = vunpack.c.h.b16 %v2103
        %v3118 = vunpack.c.l.b16 %v2104
        %v3119 = vunpack.c.h.b16 %v2104
        %v3120 = vunpack.c.l.b16 %v2105
        %v3121 = vunpack.c.h.b16 %v2105
        %v3122 = vunpack.c.l.b16 %v2106
        %v3123 = vunpack.c.h.b16 %v2106
        %v3124 = vunpack.c.l.b16 %v2107
        %v3125 = vunpack.c.h.b16 %v2107
        %v3126 = vunpack.c.l.b16 %v2108
        %v3127 = vunpack.c.h.b16 %v2108
        %v3128 = vunpack.c.l.b16 %v2109
        %v3129 = vunpack.c.h.b16 %v2109
        %v3130 = vunpack.c.l.b16 %v2110
        %v3131 = vunpack.c.h.b16 %v2110
        %v3132 = vunpack.c.l.b16 %v2111
        %v3133 = vunpack.c.h.b16 %v2111
        %v3134 = vunpack.c.l.b16 %v2112
        %v3135 = vunpack.c.h.b16 %v2112
        %v3136 = vunpack.c.l.b16 %v2113
        %v3137 = vunpack.c.h.b16 %v2113
        %v3138 = vunpack.c.l.b16 %v2114
        %v3139 = vunpack.c.h.b16 %v2114
        %v3140 = vunpack.c.l.b16 %v2115
        %v3141 = vunpack.c.h.b16 %v2115
        %v3142 = vunpack.c.l.b16 %v2116
        %v3143 = vunpack.c.h.b16 %v2116
        %v3144 = vunpack.c.l.b16 %v2117
        %v3145 = vunpack.c.h.b16 %v2117
        %v3146 = vunpack.c.l.b16 %v2118
        %v3147 = vunpack.c.h.b16 %v2118
        %v3148 = vunpack.c.l.b16 %v2119
        %v3149 = vunpack.c.h.b16 %v2119
        %v3150 = vunpack.c.l.b16 %v2120
        %v3151 = vunpack.c.h.b16 %v2120
        %v3152 = vunpack.c.l.b16 %v2121
        %v3153 = vunpack.c.h.b16 %v2121
        %v3154 = vunpack.c.l.b16 %v2122
        %v3155 = vunpack.c.h.b16 %v2122
        %v3156 = vunpack.c.l.b16 %v2123
        %v3157 = vunpack.c.h.b16 %v2123
        %v3158 = vunpack.c.l.b16 %v2124
        %v3159 = vunpack.c.h.b16 %v2124
        %v3160 = vunpack.c.l.b16 %v2125
        %v3161 = vunpack.c.h.b16 %v2125
        %v3162 = vunpack.c.l.b16 %v2126
        %v3163 = vunpack.c.h.b16 %v2126
        %v3164 = vunpack.c.l.b16 %v2127
        %v3165 = vunpack.c.h.b16 %v2127
        %v3166 = vunpack.c.l.b16 %v2128
        %v3167 = vunpack.c.h.b16 %v2128
        %v3168 = vunpack.c.l.b16 %v2129
        %v3169 = vunpack.c.h.b16 %v2129
        %v3170 = vunpack.c.l.b16 %v2130
        %v3171 = vunpack.c.h.b16 %v2130
        %v3172 = vunpack.c.l.b16 %v2131
        %v3173 = vunpack.c.h.b16 %v2131
        %v3174 = vunpack.c.l.b16 %v2132
        %v3175 = vunpack.c.h.b16 %v2132
        %v3176 = vunpack.c.l.b16 %v2133
        %v3177 = vunpack.c.h.b16 %v2133
        %v3178 = vunpack.c.l.b16 %v2134
        %v3179 = vunpack.c.h.b16 %v2134
        %v3180 = vunpack.c.l.b16 %v2135
        %v3181 = vunpack.c.h.b16 %v2135
        %v3182 = vunpack.c.l.b16 %v2136
        %v3183 = vunpack.c.h.b16 %v2136
        %v3184 = vunpack.c.l.b16 %v2137
        %v3185 = vunpack.c.h.b16 %v2137
        %v3186 = vunpack.c.l.b16 %v2138
        %v3187 = vunpack.c.h.b16 %v2138
        %v3188 = vunpack.c.l.b16 %v2139
        %v3189 = vunpack.c.h.b16 %v2139
        %v3190 = vunpack.c.l.b16 %v2140
        %v3191 = vunpack.c.h.b16 %v2140
        %v3192 = vunpack.c.l.b16 %v2141
        %v3193 = vunpack.c.h.b16 %v2141
        %v3194 = vunpack.c.l.b16 %v2142
        %v3195 = vunpack.c.h.b16 %v2142
        %v3196 = vunpack.c.l.b16 %v2143
        %v3197 = vunpack.c.h.b16 %v2143
        %v3198 = vunpack.c.l.b16 %v2144
        %v3199 = vunpack.c.h.b16 %v2144
        %v3200 = vunpack.c.l.b16 %v2145
        %v3201 = vunpack.c.h.b16 %v2145
        %v3202 = vunpack.c.l.b16 %v2146
        %v3203 = vunpack.c.h.b16 %v2146
        %v3204 = vunpack.c.l.b16 %v2147
        %v3205 = vunpack.c.h.b16 %v2147
        %v3206 = vunpack.c.l.b16 %v2148
        %v3207 = vunpack.c.h.b16 %v2148
        %v3208 = vunpack.c.l.b16 %v2149
        %v3209 = vunpack.c.h.b16 %v2149
        %v3210 = vunpack.c.l.b16 %v2150
        %v3211 = vunpack.c.h.b16 %v2150
        %v3212 = vunpack.c.l.b16 %v2151
        %v3213 = vunpack.c.h.b16 %v2151
        %v3214 = vunpack.c.l.b16 %v2152
        %v3215 = vunpack.c.h.b16 %v2152
        %v3216 = vunpack.c.l.b16 %v2153
        %v3217 = vunpack.c.h.b16 %v2153
        %v3218 = vunpack.c.l.b16 %v2154
        %v3219 = vunpack.c.h.b16 %v2154
        %v3220 = vunpack.c.l.b16 %v2155
        %v3221 = vunpack.c.h.b16 %v2155
        %v3222 = vunpack.c.l.b16 %v2156
        %v3223 = vunpack.c.h.b16 %v2156
        %v3224 = vunpack.c.l.b16 %v2157
        %v3225 = vunpack.c.h.b16 %v2157
        %v3226 = vunpack.c.l.b16 %v2158
        %v3227 = vunpack.c.h.b16 %v2158
        %v3228 = vunpack.c.l.b16 %v2159
        %v3229 = vunpack.c.h.b16 %v2159
        %v3230 = vunpack.c.l.b16 %v2160
        %v3231 = vunpack.c.h.b16 %v2160
        %v3232 = vunpack.c.l.b16 %v2161
        %v3233 = vunpack.c.h.b16 %v2161
        %v3234 = vunpack.c.l.b16 %v2162
        %v3235 = vunpack.c.h.b16 %v2162
        %v3236 = vunpack.c.l.b16 %v2163
        %v3237 = vunpack.c.h.b16 %v2163
        %v3238 = vunpack.c.l.b16 %v2164
        %v3239 = vunpack.c.h.b16 %v2164
        %v3240 = vunpack.c.l.b16 %v2165
        %v3241 = vunpack.c.h.b16 %v2165
        %v3242 = vunpack.c.l.b16 %v2166
        %v3243 = vunpack.c.h.b16 %v2166
        %v3244 = vunpack.c.l.b16 %v2167
        %v3245 = vunpack.c.h.b16 %v2167
        %v3246 = vunpack.c.l.b16 %v2168
        %v3247 = vunpack.c.h.b16 %v2168
        %v3248 = vunpack.c.l.b16 %v2169
        %v3249 = vunpack.c.h.b16 %v2169
        %v3250 = vunpack.c.l.b16 %v2170
        %v3251 = vunpack.c.h.b16 %v2170
        %v3252 = vunpack.c.l.b16 %v2171
        %v3253 = vunpack.c.h.b16 %v2171
        %v3254 = vunpack.c.l.b16 %v2172
        %v3255 = vunpack.c.h.b16 %v2172
        %v3256 = vunpack.c.l.b16 %v2173
        %v3257 = vunpack.c.h.b16 %v2173
        %v3258 = vunpack.c.l.b16 %v2174
        %v3259 = vunpack.c.h.b16 %v2174
        %v3260 = vunpack.c.l.b16 %v2175
        %v3261 = vunpack.c.h.b16 %v2175
        %v3262 = vunpack.c.l.b16 %v2176
        %v3263 = vunpack.c.h.b16 %v2176
        %v3264 = vunpack.c.l.b16 %v2177
        %v3265 = vunpack.c.h.b16 %v2177
        %v3266 = vunpack.c.l.b16 %v2178
        %v3267 = vunpack.c.h.b16 %v2178
        %v3268 = vunpack.c.l.b16 %v2179
        %v3269 = vunpack.c.h.b16 %v2179
        %v3270 = vunpack.c.l.b16 %v2180
        %v3271 = vunpack.c.h.b16 %v2180
        %v3272 = vunpack.c.l.b16 %v2181
        %v3273 = vunpack.c.h.b16 %v2181
        %v3274 = vunpack.c.l.b16 %v2182
        %v3275 = vunpack.c.h.b16 %v2182
        %v3276 = vunpack.c.l.b16 %v2183
        %v3277 = vunpack.c.h.b16 %v2183
        %v3278 = vunpack.c.l.b16 %v2184
        %v3279 = vunpack.c.h.b16 %v2184
        %v3280 = vunpack.c.l.b16 %v2185
        %v3281 = vunpack.c.h.b16 %v2185
        %v3282 = vunpack.c.l.b16 %v2186
        %v3283 = vunpack.c.h.b16 %v2186
        %v3284 = vunpack.c.l.b16 %v2187
        %v3285 = vunpack.c.h.b16 %v2187
        %v3286 = vunpack.c.l.b16 %v2188
        %v3287 = vunpack.c.h.b16 %v2188
        %v3288 = vunpack.c.l.b16 %v2189
        %v3289 = vunpack.c.h.b16 %v2189
        %v3290 = vunpack.c.l.b16 %v2190
        %v3291 = vunpack.c.h.b16 %v2190
        %v3292 = vunpack.c.l.b16 %v2191
        %v3293 = vunpack.c.h.b16 %v2191
        %v3294 = vunpack.c.l.b16 %v2192
        %v3295 = vunpack.c.h.b16 %v2192
        %v3296 = vunpack.c.l.b16 %v2193
        %v3297 = vunpack.c.h.b16 %v2193
        %v3298 = vunpack.c.l.b16 %v2194
        %v3299 = vunpack.c.h.b16 %v2194
        %v3300 = vunpack.c.l.b16 %v2195
        %v3301 = vunpack.c.h.b16 %v2195
        %v3302 = vunpack.c.l.b16 %v2196
        %v3303 = vunpack.c.h.b16 %v2196
        %v3304 = vunpack.c.l.b16 %v2197
        %v3305 = vunpack.c.h.b16 %v2197
        %v3306 = vunpack.c.l.b16 %v2198
        %v3307 = vunpack.c.h.b16 %v2198
        %v3308 = vunpack.c.l.b16 %v2199
        %v3309 = vunpack.c.h.b16 %v2199
        %v3310 = vunpack.c.l.b16 %v2200
        %v3311 = vunpack.c.h.b16 %v2200
        %v3312 = vunpack.c.l.b16 %v2201
        %v3313 = vunpack.c.h.b16 %v2201
        %v3314 = vunpack.c.l.b16 %v2202
        %v3315 = vunpack.c.h.b16 %v2202
        %v3316 = vunpack.c.l.b16 %v2203
        %v3317 = vunpack.c.h.b16 %v2203
        %v3318 = vunpack.c.l.b16 %v2204
        %v3319 = vunpack.c.h.b16 %v2204
        %v3320 = vunpack.c.l.b16 %v2205
        %v3321 = vunpack.c.h.b16 %v2205
        %v3322 = vunpack.c.l.b16 %v2206
        %v3323 = vunpack.c.h.b16 %v2206
        %v3324 = vunpack.c.l.b16 %v2207
        %v3325 = vunpack.c.h.b16 %v2207
        %v3326 = vunpack.c.l.b16 %v2208
        %v3327 = vunpack.c.h.b16 %v2208
        %v3328 = vunpack.c.l.b16 %v2209
        %v3329 = vunpack.c.h.b16 %v2209
        %v3330 = vunpack.c.l.b16 %v2210
        %v3331 = vunpack.c.h.b16 %v2210
        %v3332 = vunpack.c.l.b16 %v2211
        %v3333 = vunpack.c.h.b16 %v2211
        %v3334 = vunpack.c.l.b16 %v2212
        %v3335 = vunpack.c.h.b16 %v2212
        %v3336 = vunpack.c.l.b16 %v2213
        %v3337 = vunpack.c.h.b16 %v2213
        %v3338 = vunpack.c.l.b16 %v2214
        %v3339 = vunpack.c.h.b16 %v2214
        %v3340 = vunpack.c.l.b16 %v2215
        %v3341 = vunpack.c.h.b16 %v2215
        %v3342 = vunpack.c.l.b16 %v2216
        %v3343 = vunpack.c.h.b16 %v2216
        %v3344 = vunpack.c.l.b16 %v2217
        %v3345 = vunpack.c.h.b16 %v2217
        %v3346 = vunpack.c.l.b16 %v2218
        %v3347 = vunpack.c.h.b16 %v2218
        %v3348 = vunpack.c.l.b16 %v2219
        %v3349 = vunpack.c.h.b16 %v2219
        %v3350 = vunpack.c.l.b16 %v2220
        %v3351 = vunpack.c.h.b16 %v2220
        %v3352 = vunpack.c.l.b16 %v2221
        %v3353 = vunpack.c.h.b16 %v2221
        %v3354 = vunpack.c.l.b16 %v2222
        %v3355 = vunpack.c.h.b16 %v2222
        %v3356 = vunpack.c.l.b16 %v2223
        %v3357 = vunpack.c.h.b16 %v2223
        %v3358 = vunpack.c.l.b16 %v2224
        %v3359 = vunpack.c.h.b16 %v2224
        %v3360 = vunpack.c.l.b16 %v2225
        %v3361 = vunpack.c.h.b16 %v2225
        %v3362 = vunpack.c.l.b16 %v2226
        %v3363 = vunpack.c.h.b16 %v2226
        %v3364 = vunpack.c.l.b16 %v2227
        %v3365 = vunpack.c.h.b16 %v2227
        %v3366 = vunpack.c.l.b16 %v2228
        %v3367 = vunpack.c.h.b16 %v2228
        %v3368 = vunpack.c.l.b16 %v2229
        %v3369 = vunpack.c.h.b16 %v2229
        %v3370 = vunpack.c.l.b16 %v2230
        %v3371 = vunpack.c.h.b16 %v2230
        %v3372 = vunpack.c.l.b16 %v2231
        %v3373 = vunpack.c.h.b16 %v2231
        %v3374 = vunpack.c.l.b16 %v2232
        %v3375 = vunpack.c.h.b16 %v2232
        %v3376 = vunpack.c.l.b16 %v2233
        %v3377 = vunpack.c.h.b16 %v2233
        %v3378 = vunpack.c.l.b16 %v2234
        %v3379 = vunpack.c.h.b16 %v2234
        %v3380 = vunpack.c.l.b16 %v2235
        %v3381 = vunpack.c.h.b16 %v2235
        %v3382 = vunpack.c.l.b16 %v2236
        %v3383 = vunpack.c.h.b16 %v2236
        %v3384 = vunpack.c.l.b16 %v2237
        %v3385 = vunpack.c.h.b16 %v2237
        %v3386 = vunpack.c.l.b16 %v2238
        %v3387 = vunpack.c.h.b16 %v2238
        %v3388 = vunpack.c.l.b16 %v2239
        %v3389 = vunpack.c.h.b16 %v2239
        %v3390 = vunpack.c.l.b16 %v2240
        %v3391 = vunpack.c.h.b16 %v2240
        %v3392 = vunpack.c.l.b16 %v2241
        %v3393 = vunpack.c.h.b16 %v2241
        %v3394 = vunpack.c.l.b16 %v2242
        %v3395 = vunpack.c.h.b16 %v2242
        %v3396 = vunpack.c.l.b16 %v2243
        %v3397 = vunpack.c.h.b16 %v2243
        %v3398 = vunpack.c.l.b16 %v2244
        %v3399 = vunpack.c.h.b16 %v2244
        %v3400 = vunpack.c.l.b16 %v2245
        %v3401 = vunpack.c.h.b16 %v2245
        %v3402 = vunpack.c.l.b16 %v2246
        %v3403 = vunpack.c.h.b16 %v2246
        %v3404 = vunpack.c.l.b16 %v2247
        %v3405 = vunpack.c.h.b16 %v2247
        %v3406 = vunpack.c.l.b16 %v2248
        %v3407 = vunpack.c.h.b16 %v2248
        %v3408 = vunpack.c.l.b16 %v2249
        %v3409 = vunpack.c.h.b16 %v2249
        %v3410 = vunpack.c.l.b16 %v2250
        %v3411 = vunpack.c.h.b16 %v2250
        %v3412 = vunpack.c.l.b16 %v2251
        %v3413 = vunpack.c.h.b16 %v2251
        %v3414 = vunpack.c.l.b16 %v2252
        %v3415 = vunpack.c.h.b16 %v2252
        %v3416 = vunpack.c.l.b16 %v2253
        %v3417 = vunpack.c.h.b16 %v2253
        %v3418 = vunpack.c.l.b16 %v2254
        %v3419 = vunpack.c.h.b16 %v2254
        %v3420 = vunpack.c.l.b16 %v2255
        %v3421 = vunpack.c.h.b16 %v2255
        %v3422 = vunpack.c.l.b16 %v2256
        %v3423 = vunpack.c.h.b16 %v2256
        %v3424 = vunpack.c.l.b16 %v2257
        %v3425 = vunpack.c.h.b16 %v2257
        %v3426 = vunpack.c.l.b16 %v2258
        %v3427 = vunpack.c.h.b16 %v2258
        %v3428 = vunpack.c.l.b16 %v2259
        %v3429 = vunpack.c.h.b16 %v2259
        %v3430 = vunpack.c.l.b16 %v2260
        %v3431 = vunpack.c.h.b16 %v2260
        %v3432 = vunpack.c.l.b16 %v2261
        %v3433 = vunpack.c.h.b16 %v2261
        %v3434 = vunpack.c.l.b16 %v2262
        %v3435 = vunpack.c.h.b16 %v2262
        %v3436 = vunpack.c.l.b16 %v2263
        %v3437 = vunpack.c.h.b16 %v2263
        %v3438 = vunpack.c.l.b16 %v2264
        %v3439 = vunpack.c.h.b16 %v2264
        %v3440 = vunpack.c.l.b16 %v2265
        %v3441 = vunpack.c.h.b16 %v2265
        %v3442 = vunpack.c.l.b16 %v2266
        %v3443 = vunpack.c.h.b16 %v2266
        %v3444 = vunpack.c.l.b16 %v2267
        %v3445 = vunpack.c.h.b16 %v2267
        %v3446 = vunpack.c.l.b16 %v2268
        %v3447 = vunpack.c.h.b16 %v2268
        %v3448 = vunpack.c.l.b16 %v2269
        %v3449 = vunpack.c.h.b16 %v2269
        %v3450 = vunpack.c.l.b16 %v2270
        %v3451 = vunpack.c.h.b16 %v2270
        %v3452 = vunpack.c.l.b16 %v2271
        %v3453 = vunpack.c.h.b16 %v2271
        %v3454 = vunpack.c.l.b16 %v2272
        %v3455 = vunpack.c.h.b16 %v2272
        %v3456 = vunpack.c.l.b16 %v2273
        %v3457 = vunpack.c.h.b16 %v2273
        %v3458 = vunpack.c.l.b16 %v2274
        %v3459 = vunpack.c.h.b16 %v2274
        %v3460 = vunpack.c.l.b16 %v2275
        %v3461 = vunpack.c.h.b16 %v2275
        %v3462 = vunpack.c.l.b16 %v2276
        %v3463 = vunpack.c.h.b16 %v2276
        %v3464 = vunpack.c.l.b16 %v2277
        %v3465 = vunpack.c.h.b16 %v2277
        %v3466 = vunpack.c.l.b16 %v2278
        %v3467 = vunpack.c.h.b16 %v2278
        %v3468 = vunpack.c.l.b16 %v2279
        %v3469 = vunpack.c.h.b16 %v2279
        %v3470 = vunpack.c.l.b16 %v2280
        %v3471 = vunpack.c.h.b16 %v2280
        %v3472 = vunpack.c.l.b16 %v2281
        %v3473 = vunpack.c.h.b16 %v2281
        %v3474 = vunpack.c.l.b16 %v2282
        %v3475 = vunpack.c.h.b16 %v2282
        %v3476 = vunpack.c.l.b16 %v2283
        %v3477 = vunpack.c.h.b16 %v2283
        %v3478 = vunpack.c.l.b16 %v2284
        %v3479 = vunpack.c.h.b16 %v2284
        %v3480 = vunpack.c.l.b16 %v2285
        %v3481 = vunpack.c.h.b16 %v2285
        %v3482 = vunpack.c.l.b16 %v2286
        %v3483 = vunpack.c.h.b16 %v2286
        %v3484 = vunpack.c.l.b16 %v2287
        %v3485 = vunpack.c.h.b16 %v2287
        %v3486 = vunpack.c.l.b16 %v2288
        %v3487 = vunpack.c.h.b16 %v2288
        %v3488 = vunpack.c.l.b16 %v2289
        %v3489 = vunpack.c.h.b16 %v2289
        %v3490 = vunpack.c.l.b16 %v2290
        %v3491 = vunpack.c.h.b16 %v2290
        %v3492 = vunpack.c.l.b16 %v2291
        %v3493 = vunpack.c.h.b16 %v2291
        %v3494 = vunpack.c.l.b16 %v2292
        %v3495 = vunpack.c.h.b16 %v2292
        %v3496 = vunpack.c.l.b16 %v2293
        %v3497 = vunpack.c.h.b16 %v2293
        %v3498 = vunpack.c.l.b16 %v2294
        %v3499 = vunpack.c.h.b16 %v2294
        %v3500 = vunpack.c.l.b16 %v2295
        %v3501 = vunpack.c.h.b16 %v2295
        %v3502 = vunpack.c.l.b16 %v2296
        %v3503 = vunpack.c.h.b16 %v2296
        %v3504 = vunpack.c.l.b16 %v2297
        %v3505 = vunpack.c.h.b16 %v2297
        %v3506 = vunpack.c.l.b16 %v2298
        %v3507 = vunpack.c.h.b16 %v2298
        %v3508 = vunpack.c.l.b16 %v2299
        %v3509 = vunpack.c.h.b16 %v2299
        %v3510 = vunpack.c.l.b16 %v2300
        %v3511 = vunpack.c.h.b16 %v2300
        %v3512 = vunpack.c.l.b16 %v2301
        %v3513 = vunpack.c.h.b16 %v2301
        %v3514 = vunpack.c.l.b16 %v2302
        %v3515 = vunpack.c.h.b16 %v2302
        %v3516 = vunpack.c.l.b16 %v2303
        %v3517 = vunpack.c.h.b16 %v2303
        %v3518 = vunpack.c.l.b16 %v2304
        %v3519 = vunpack.c.h.b16 %v2304
        %v3520 = vunpack.c.l.b16 %v2305
        %v3521 = vunpack.c.h.b16 %v2305
        %v3522 = vunpack.c.l.b16 %v2306
        %v3523 = vunpack.c.h.b16 %v2306
        %v3524 = vunpack.c.l.b16 %v2307
        %v3525 = vunpack.c.h.b16 %v2307
        %v3526 = vunpack.c.l.b16 %v2308
        %v3527 = vunpack.c.h.b16 %v2308
        %v3528 = vunpack.c.l.b16 %v2309
        %v3529 = vunpack.c.h.b16 %v2309
        %v3530 = vunpack.c.l.b16 %v2310
        %v3531 = vunpack.c.h.b16 %v2310
        %v3532 = vunpack.c.l.b16 %v2311
        %v3533 = vunpack.c.h.b16 %v2311
        %v3534 = vunpack.c.l.b16 %v2312
        %v3535 = vunpack.c.h.b16 %v2312
        %v3536 = vunpack.c.l.b16 %v2313
        %v3537 = vunpack.c.h.b16 %v2313
        %v3538 = vunpack.c.l.b16 %v2314
        %v3539 = vunpack.c.h.b16 %v2314
        %v3540 = vunpack.c.l.b16 %v2315
        %v3541 = vunpack.c.h.b16 %v2315
        %v3542 = vunpack.c.l.b16 %v2316
        %v3543 = vunpack.c.h.b16 %v2316
        %v3544 = vunpack.c.l.b16 %v2317
        %v3545 = vunpack.c.h.b16 %v2317
        %v3546 = vunpack.c.l.b16 %v2318
        %v3547 = vunpack.c.h.b16 %v2318
        %v3548 = vunpack.c.l.b16 %v2319
        %v3549 = vunpack.c.h.b16 %v2319
        %v3550 = vunpack.c.l.b16 %v2320
        %v3551 = vunpack.c.h.b16 %v2320
        %v3552 = vunpack.c.l.b16 %v2321
        %v3553 = vunpack.c.h.b16 %v2321
        %v3554 = vunpack.c.l.b16 %v2322
        %v3555 = vunpack.c.h.b16 %v2322
        %v3556 = vunpack.c.l.b16 %v2323
        %v3557 = vunpack.c.h.b16 %v2323
        %v3558 = vunpack.c.l.b16 %v2324
        %v3559 = vunpack.c.h.b16 %v2324
        %v3560 = vunpack.c.l.b16 %v2325
        %v3561 = vunpack.c.h.b16 %v2325
        %v3562 = vunpack.c.l.b16 %v2326
        %v3563 = vunpack.c.h.b16 %v2326
        %v3564 = vunpack.c.l.b16 %v2327
        %v3565 = vunpack.c.h.b16 %v2327
        %v3566 = vunpack.c.l.b16 %v2328
        %v3567 = vunpack.c.h.b16 %v2328
        %v3568 = vunpack.c.l.b16 %v2329
        %v3569 = vunpack.c.h.b16 %v2329
        %v3570 = vunpack.c.l.b16 %v2330
        %v3571 = vunpack.c.h.b16 %v2330
        %v3572 = vunpack.c.l.b16 %v2331
        %v3573 = vunpack.c.h.b16 %v2331
        %v3574 = vunpack.c.l.b16 %v2332
        %v3575 = vunpack.c.h.b16 %v2332
        %v3576 = vunpack.c.l.b16 %v2333
        %v3577 = vunpack.c.h.b16 %v2333
        %v3578 = vunpack.c.l.b16 %v2334
        %v3579 = vunpack.c.h.b16 %v2334
        %v3580 = vunpack.c.l.b16 %v2335
        %v3581 = vunpack.c.h.b16 %v2335
        %v3582 = vunpack.c.l.b16 %v2336
        %v3583 = vunpack.c.h.b16 %v2336
        %v3584 = vunpack.c.l.b16 %v2337
        %v3585 = vunpack.c.h.b16 %v2337
        %v3586 = vunpack.c.l.b16 %v2338
        %v3587 = vunpack.c.h.b16 %v2338
        %v3588 = vunpack.c.l.b16 %v2339
        %v3589 = vunpack.c.h.b16 %v2339
        %v3590 = vunpack.c.l.b16 %v2340
        %v3591 = vunpack.c.h.b16 %v2340
        %v3592 = vunpack.c.l.b16 %v2341
        %v3593 = vunpack.c.h.b16 %v2341
        %v3594 = vunpack.c.l.b16 %v2342
        %v3595 = vunpack.c.h.b16 %v2342
        %v3596 = vunpack.c.l.b16 %v2343
        %v3597 = vunpack.c.h.b16 %v2343
        %v3598 = vunpack.c.l.b16 %v2344
        %v3599 = vunpack.c.h.b16 %v2344
        %v3600 = vunpack.c.l.b16 %v2345
        %v3601 = vunpack.c.h.b16 %v2345
        %v3602 = vunpack.c.l.b16 %v2346
        %v3603 = vunpack.c.h.b16 %v2346
        %v3604 = vunpack.c.l.b16 %v2347
        %v3605 = vunpack.c.h.b16 %v2347
        %v3606 = vunpack.c.l.b16 %v2348
        %v3607 = vunpack.c.h.b16 %v2348
        %v3608 = vunpack.c.l.b16 %v2349
        %v3609 = vunpack.c.h.b16 %v2349
        %v3610 = vunpack.c.l.b16 %v2350
        %v3611 = vunpack.c.h.b16 %v2350
        %v3612 = vunpack.c.l.b16 %v2351
        %v3613 = vunpack.c.h.b16 %v2351
        %v3614 = vunpack.c.l.b16 %v2352
        %v3615 = vunpack.c.h.b16 %v2352
        %v3616 = vunpack.c.l.b16 %v2353
        %v3617 = vunpack.c.h.b16 %v2353
        %v3618 = vunpack.c.l.b16 %v2354
        %v3619 = vunpack.c.h.b16 %v2354
        %v3620 = vunpack.c.l.b16 %v2355
        %v3621 = vunpack.c.h.b16 %v2355
        %v3622 = vunpack.c.l.b16 %v2356
        %v3623 = vunpack.c.h.b16 %v2356
        %v3624 = vunpack.c.l.b16 %v2357
        %v3625 = vunpack.c.h.b16 %v2357
        %v3626 = vunpack.c.l.b16 %v2358
        %v3627 = vunpack.c.h.b16 %v2358
        %v3628 = vunpack.c.l.b16 %v2359
        %v3629 = vunpack.c.h.b16 %v2359
        %v3630 = vunpack.c.l.b16 %v2360
        %v3631 = vunpack.c.h.b16 %v2360
        %v3632 = vunpack.c.l.b16 %v2361
        %v3633 = vunpack.c.h.b16 %v2361
        %v3634 = vunpack.c.l.b16 %v2362
        %v3635 = vunpack.c.h.b16 %v2362
        %v3636 = vunpack.c.l.b16 %v2363
        %v3637 = vunpack.c.h.b16 %v2363
        %v3638 = vunpack.c.l.b16 %v2364
        %v3639 = vunpack.c.h.b16 %v2364
        %v3640 = vunpack.c.l.b16 %v2365
        %v3641 = vunpack.c.h.b16 %v2365
        %v3642 = vunpack.c.l.b16 %v2366
        %v3643 = vunpack.c.h.b16 %v2366
        %v3644 = vunpack.c.l.b16 %v2367
        %v3645 = vunpack.c.h.b16 %v2367
        %v3646 = vunpack.c.l.b16 %v2368
        %v3647 = vunpack.c.h.b16 %v2368
        %v3648 = vunpack.c.l.b16 %v2369
        %v3649 = vunpack.c.h.b16 %v2369
        %v3650 = vunpack.c.l.b16 %v2370
        %v3651 = vunpack.c.h.b16 %v2370
        %v3652 = vunpack.c.l.b16 %v2371
        %v3653 = vunpack.c.h.b16 %v2371
        %v3654 = vunpack.c.l.b16 %v2372
        %v3655 = vunpack.c.h.b16 %v2372
        %v3656 = vunpack.c.l.b16 %v2373
        %v3657 = vunpack.c.h.b16 %v2373
        %v3658 = vunpack.c.l.b16 %v2374
        %v3659 = vunpack.c.h.b16 %v2374
        %v3660 = vunpack.c.l.b16 %v2375
        %v3661 = vunpack.c.h.b16 %v2375
        %v3662 = vunpack.c.l.b16 %v2376
        %v3663 = vunpack.c.h.b16 %v2376
        %v3664 = vunpack.c.l.b16 %v2377
        %v3665 = vunpack.c.h.b16 %v2377
        %v3666 = vpack.c.b16 %v2868, %v2866
        %v3667 = vpack.c.b16 %v2869, %v2867
        %v3668 = vpack.c.b16 %v2872, %v2870
        %v3669 = vpack.c.b16 %v2873, %v2871
        %v3670 = vpack.c.b16 %v2876, %v2874
        %v3671 = vpack.c.b16 %v2877, %v2875
        %v3672 = vpack.c.b16 %v2880, %v2878
        %v3673 = vpack.c.b16 %v2881, %v2879
        %v3674 = vpack.c.b16 %v2884, %v2882
        %v3675 = vpack.c.b16 %v2885, %v2883
        %v3676 = vpack.c.b16 %v2888, %v2886
        %v3677 = vpack.c.b16 %v2889, %v2887
        %v3678 = vpack.c.b16 %v2892, %v2890
        %v3679 = vpack.c.b16 %v2893, %v2891
        %v3680 = vpack.c.b16 %v2896, %v2894
        %v3681 = vpack.c.b16 %v2897, %v2895
        %v3682 = vpack.c.b16 %v2900, %v2898
        %v3683 = vpack.c.b16 %v2901, %v2899
        %v3684 = vpack.c.b16 %v2904, %v2902
        %v3685 = vpack.c.b16 %v2905, %v2903
        %v3686 = vpack.c.b16 %v2908, %v2906
        %v3687 = vpack.c.b16 %v2909, %v2907
        %v3688 = vpack.c.b16 %v2912, %v2910
        %v3689 = vpack.c.b16 %v2913, %v2911
        %v3690 = vpack.c.b16 %v2916, %v2914
        %v3691 = vpack.c.b16 %v2917, %v2915
        %v3692 = vpack.c.b16 %v2920, %v2918
        %v3693 = vpack.c.b16 %v2921, %v2919
        %v3694 = vpack.c.b16 %v2924, %v2922
        %v3695 = vpack.c.b16 %v2925, %v2923
        %v3696 = vpack.c.b16 %v2928, %v2926
        %v3697 = vpack.c.b16 %v2929, %v2927
        %v3698 = vpack.c.b16 %v2932, %v2930
        %v3699 = vpack.c.b16 %v2933, %v2931
        %v3700 = vpack.c.b16 %v2936, %v2934
        %v3701 = vpack.c.b16 %v2937, %v2935
        %v3702 = vpack.c.b16 %v2940, %v2938
        %v3703 = vpack.c.b16 %v2941, %v2939
        %v3704 = vpack.c.b16 %v2944, %v2942
        %v3705 = vpack.c.b16 %v2945, %v2943
        %v3706 = vpack.c.b16 %v2948, %v2946
        %v3707 = vpack.c.b16 %v2949, %v2947
        %v3708 = vpack.c.b16 %v2952, %v2950
        %v3709 = vpack.c.b16 %v2953, %v2951
        %v3710 = vpack.c.b16 %v2956, %v2954
        %v3711 = vpack.c.b16 %v2957, %v2955
        %v3712 = vpack.c.b16 %v2960, %v2958
        %v3713 = vpack.c.b16 %v2961, %v2959
        %v3714 = vpack.c.b16 %v2964, %v2962
        %v3715 = vpack.c.b16 %v2965, %v2963
        %v3716 = vpack.c.b16 %v2968, %v2966
        %v3717 = vpack.c.b16 %v2969, %v2967
        %v3718 = vpack.c.b16 %v2972, %v2970
        %v3719 = vpack.c.b16 %v2973, %v2971
        %v3720 = vpack.c.b16 %v2976, %v2974
        %v3721 = vpack.c.b16 %v2977, %v2975
        %v3722 = vpack.c.b16 %v2980, %v2978
        %v3723 = vpack.c.b16 %v2981, %v2979
        %v3724 = vpack.c.b16 %v2984, %v2982
        %v3725 = vpack.c.b16 %v2985, %v2983
        %v3726 = vpack.c.b16 %v2988, %v2986
        %v3727 = vpack.c.b16 %v2989, %v2987
        %v3728 = vpack.c.b16 %v2992, %v2990
        %v3729 = vpack.c.b16 %v2993, %v2991
        %v3730 = vpack.c.b16 %v2996, %v2994
        %v3731 = vpack.c.b16 %v2997, %v2995
        %v3732 = vpack.c.b16 %v3000, %v2998
        %v3733 = vpack.c.b16 %v3001, %v2999
        %v3734 = vpack.c.b16 %v3004, %v3002
        %v3735 = vpack.c.b16 %v3005, %v3003
        %v3736 = vpack.c.b16 %v3008, %v3006
        %v3737 = vpack.c.b16 %v3009, %v3007
        %v3738 = vpack.c.b16 %v3012, %v3010
        %v3739 = vpack.c.b16 %v3013, %v3011
        %v3740 = vpack.c.b16 %v3016, %v3014
        %v3741 = vpack.c.b16 %v3017, %v3015
        %v3742 = vpack.c.b16 %v3020, %v3018
        %v3743 = vpack.c.b16 %v3021, %v3019
        %v3744 = vpack.c.b16 %v3024, %v3022
        %v3745 = vpack.c.b16 %v3025, %v3023
        %v3746 = vpack.c.b16 %v3028, %v3026
        %v3747 = vpack.c.b16 %v3029, %v3027
        %v3748 = vpack.c.b16 %v3032, %v3030
        %v3749 = vpack.c.b16 %v3033, %v3031
        %v3750 = vpack.c.b16 %v3036, %v3034
        %v3751 = vpack.c.b16 %v3037, %v3035
        %v3752 = vpack.c.b16 %v3040, %v3038
        %v3753 = vpack.c.b16 %v3041, %v3039
        %v3754 = vpack.c.b16 %v3044, %v3042
        %v3755 = vpack.c.b16 %v3045, %v3043
        %v3756 = vpack.c.b16 %v3048, %v3046
        %v3757 = vpack.c.b16 %v3049, %v3047
        %v3758 = vpack.c.b16 %v3052, %v3050
        %v3759 = vpack.c.b16 %v3053, %v3051
        %v3760 = vpack.c.b16 %v3056, %v3054
        %v3761 = vpack.c.b16 %v3057, %v3055
        %v3762 = vpack.c.b16 %v3060, %v3058
        %v3763 = vpack.c.b16 %v3061, %v3059
        %v3764 = vpack.c.b16 %v3064, %v3062
        %v3765 = vpack.c.b16 %v3065, %v3063
        %v3766 = vpack.c.b16 %v3068, %v3066
        %v3767 = vpack.c.b16 %v3069, %v3067
        %v3768 = vpack.c.b16 %v3072, %v3070
        %v3769 = vpack.c.b16 %v3073, %v3071
        %v3770 = vpack.c.b16 %v3076, %v3074
        %v3771 = vpack.c.b16 %v3077, %v3075
        %v3772 = vpack.c.b16 %v3080, %v3078
        %v3773 = vpack.c.b16 %v3081, %v3079
        %v3774 = vpack.c.b16 %v3084, %v3082
        %v3775 = vpack.c.b16 %v3085, %v3083
        %v3776 = vpack.c.b16 %v3088, %v3086
        %v3777 = vpack.c.b16 %v3089, %v3087
        %v3778 = vpack.c.b16 %v3092, %v3090
        %v3779 = vpack.c.b16 %v3093, %v3091
        %v3780 = vpack.c.b16 %v3096, %v3094
        %v3781 = vpack.c.b16 %v3097, %v3095
        %v3782 = vpack.c.b16 %v3100, %v3098
        %v3783 = vpack.c.b16 %v3101, %v3099
        %v3784 = vpack.c.b16 %v3104, %v3102
        %v3785 = vpack.c.b16 %v3105, %v3103
        %v3786 = vpack.c.b16 %v3108, %v3106
        %v3787 = vpack.c.b16 %v3109, %v3107
        %v3788 = vpack.c.b16 %v3112, %v3110
        %v3789 = vpack.c.b16 %v3113, %v3111
        %v3790 = vpack.c.b16 %v3116, %v3114
        %v3791 = vpack.c.b16 %v3117, %v3115
        %v3792 = vpack.c.b16 %v3120, %v3118
        %v3793 = vpack.c.b16 %v3121, %v3119
        %v3794 = vpack.c.b16 %v3124, %v3122
        %v3795 = vpack.c.b16 %v3125, %v3123
        %v3796 = vpack.c.b16 %v3128, %v3126
        %v3797 = vpack.c.b16 %v3129, %v3127
        %v3798 = vpack.c.b16 %v3132, %v3130
        %v3799 = vpack.c.b16 %v3133, %v3131
        %v3800 = vpack.c.b16 %v3136, %v3134
        %v3801 = vpack.c.b16 %v3137, %v3135
        %v3802 = vpack.c.b16 %v3140, %v3138
        %v3803 = vpack.c.b16 %v3141, %v3139
        %v3804 = vpack.c.b16 %v3144, %v3142
        %v3805 = vpack.c.b16 %v3145, %v3143
        %v3806 = vpack.c.b16 %v3148, %v3146
        %v3807 = vpack.c.b16 %v3149, %v3147
        %v3808 = vpack.c.b16 %v3152, %v3150
        %v3809 = vpack.c.b16 %v3153, %v3151
        %v3810 = vpack.c.b16 %v3156, %v3154
        %v3811 = vpack.c.b16 %v3157, %v3155
        %v3812 = vpack.c.b16 %v3160, %v3158
        %v3813 = vpack.c.b16 %v3161, %v3159
        %v3814 = vpack.c.b16 %v3164, %v3162
        %v3815 = vpack.c.b16 %v3165, %v3163
        %v3816 = vpack.c.b16 %v3168, %v3166
        %v3817 = vpack.c.b16 %v3169, %v3167
        %v3818 = vpack.c.b16 %v3172, %v3170
        %v3819 = vpack.c.b16 %v3173, %v3171
        %v3820 = vpack.c.b16 %v3176, %v3174
        %v3821 = vpack.c.b16 %v3177, %v3175
        %v3822 = vpack.c.b16 %v3180, %v3178
        %v3823 = vpack.c.b16 %v3181, %v3179
        %v3824 = vpack.c.b16 %v3184, %v3182
        %v3825 = vpack.c.b16 %v3185, %v3183
        %v3826 = vpack.c.b16 %v3188, %v3186
        %v3827 = vpack.c.b16 %v3189, %v3187
        %v3828 = vpack.c.b16 %v3192, %v3190
        %v3829 = vpack.c.b16 %v3193, %v3191
        %v3830 = vpack.c.b16 %v3196, %v3194
        %v3831 = vpack.c.b16 %v3197, %v3195
        %v3832 = vpack.c.b16 %v3200, %v3198
        %v3833 = vpack.c.b16 %v3201, %v3199
        %v3834 = vpack.c.b16 %v3204, %v3202
        %v3835 = vpack.c.b16 %v3205, %v3203
        %v3836 = vpack.c.b16 %v3208, %v3206
        %v3837 = vpack.c.b16 %v3209, %v3207
        %v3838 = vpack.c.b16 %v3212, %v3210
        %v3839 = vpack.c.b16 %v3213, %v3211
        %v3840 = vpack.c.b16 %v3216, %v3214
        %v3841 = vpack.c.b16 %v3217, %v3215
        %v3842 = vpack.c.b16 %v3220, %v3218
        %v3843 = vpack.c.b16 %v3221, %v3219
        %v3844 = vpack.c.b16 %v3224, %v3222
        %v3845 = vpack.c.b16 %v3225, %v3223
        %v3846 = vpack.c.b16 %v3228, %v3226
        %v3847 = vpack.c.b16 %v3229, %v3227
        %v3848 = vpack.c.b16 %v3232, %v3230
        %v3849 = vpack.c.b16 %v3233, %v3231
        %v3850 = vpack.c.b16 %v3236, %v3234
        %v3851 = vpack.c.b16 %v3237, %v3235
        %v3852 = vpack.c.b16 %v3240, %v3238
        %v3853 = vpack.c.b16 %v3241, %v3239
        %v3854 = vpack.c.b16 %v3244, %v3242
        %v3855 = vpack.c.b16 %v3245, %v3243
        %v3856 = vpack.c.b16 %v3248, %v3246
        %v3857 = vpack.c.b16 %v3249, %v3247
        %v3858 = vpack.c.b16 %v3252, %v3250
        %v3859 = vpack.c.b16 %v3253, %v3251
        %v3860 = vpack.c.b16 %v3256, %v3254
        %v3861 = vpack.c.b16 %v3257, %v3255
        %v3862 = vpack.c.b16 %v3260, %v3258
        %v3863 = vpack.c.b16 %v3261, %v3259
        %v3864 = vpack.c.b16 %v3264, %v3262
        %v3865 = vpack.c.b16 %v3265, %v3263
        %v3866 = vpack.c.b16 %v3268, %v3266
        %v3867 = vpack.c.b16 %v3269, %v3267
        %v3868 = vpack.c.b16 %v3272, %v3270
        %v3869 = vpack.c.b16 %v3273, %v3271
        %v3870 = vpack.c.b16 %v3276, %v3274
        %v3871 = vpack.c.b16 %v3277, %v3275
        %v3872 = vpack.c.b16 %v3280, %v3278
        %v3873 = vpack.c.b16 %v3281, %v3279
        %v3874 = vpack.c.b16 %v3284, %v3282
        %v3875 = vpack.c.b16 %v3285, %v3283
        %v3876 = vpack.c.b16 %v3288, %v3286
        %v3877 = vpack.c.b16 %v3289, %v3287
        %v3878 = vpack.c.b16 %v3292, %v3290
        %v3879 = vpack.c.b16 %v3293, %v3291
        %v3880 = vpack.c.b16 %v3296, %v3294
        %v3881 = vpack.c.b16 %v3297, %v3295
        %v3882 = vpack.c.b16 %v3300, %v3298
        %v3883 = vpack.c.b16 %v3301, %v3299
        %v3884 = vpack.c.b16 %v3304, %v3302
        %v3885 = vpack.c.b16 %v3305, %v3303
        %v3886 = vpack.c.b16 %v3308, %v3306
        %v3887 = vpack.c.b16 %v3309, %v3307
        %v3888 = vpack.c.b16 %v3312, %v3310
        %v3889 = vpack.c.b16 %v3313, %v3311
        %v3890 = vpack.c.b16 %v3316, %v3314
        %v3891 = vpack.c.b16 %v3317, %v3315
        %v3892 = vpack.c.b16 %v3320, %v3318
        %v3893 = vpack.c.b16 %v3321, %v3319
        %v3894 = vpack.c.b16 %v3324, %v3322
        %v3895 = vpack.c.b16 %v3325, %v3323
        %v3896 = vpack.c.b16 %v3328, %v3326
        %v3897 = vpack.c.b16 %v3329, %v3327
        %v3898 = vpack.c.b16 %v3332, %v3330
        %v3899 = vpack.c.b16 %v3333, %v3331
        %v3900 = vpack.c.b16 %v3336, %v3334
        %v3901 = vpack.c.b16 %v3337, %v3335
        %v3902 = vpack.c.b16 %v3340, %v3338
        %v3903 = vpack.c.b16 %v3341, %v3339
        %v3904 = vpack.c.b16 %v3344, %v3342
        %v3905 = vpack.c.b16 %v3345, %v3343
        %v3906 = vpack.c.b16 %v3348, %v3346
        %v3907 = vpack.c.b16 %v3349, %v3347
        %v3908 = vpack.c.b16 %v3352, %v3350
        %v3909 = vpack.c.b16 %v3353, %v3351
        %v3910 = vpack.c.b16 %v3356, %v3354
        %v3911 = vpack.c.b16 %v3357, %v3355
        %v3912 = vpack.c.b16 %v3360, %v3358
        %v3913 = vpack.c.b16 %v3361, %v3359
        %v3914 = vpack.c.b16 %v3364, %v3362
        %v3915 = vpack.c.b16 %v3365, %v3363
        %v3916 = vpack.c.b16 %v3368, %v3366
        %v3917 = vpack.c.b16 %v3369, %v3367
        %v3918 = vpack.c.b16 %v3372, %v3370
        %v3919 = vpack.c.b16 %v3373, %v3371
        %v3920 = vpack.c.b16 %v3376, %v3374
        %v3921 = vpack.c.b16 %v3377, %v3375
        %v3922 = vpack.c.b16 %v3380, %v3378
        %v3923 = vpack.c.b16 %v3381, %v3379
        %v3924 = vpack.c.b16 %v3384, %v3382
        %v3925 = vpack.c.b16 %v3385, %v3383
        %v3926 = vpack.c.b16 %v3388, %v3386
        %v3927 = vpack.c.b16 %v3389, %v3387
        %v3928 = vpack.c.b16 %v3392, %v3390
        %v3929 = vpack.c.b16 %v3393, %v3391
        %v3930 = vpack.c.b16 %v3396, %v3394
        %v3931 = vpack.c.b16 %v3397, %v3395
        %v3932 = vpack.c.b16 %v3400, %v3398
        %v3933 = vpack.c.b16 %v3401, %v3399
        %v3934 = vpack.c.b16 %v3404, %v3402
        %v3935 = vpack.c.b16 %v3405, %v3403
        %v3936 = vpack.c.b16 %v3408, %v3406
        %v3937 = vpack.c.b16 %v3409, %v3407
        %v3938 = vpack.c.b16 %v3412, %v3410
        %v3939 = vpack.c.b16 %v3413, %v3411
        %v3940 = vpack.c.b16 %v3416, %v3414
        %v3941 = vpack.c.b16 %v3417, %v3415
        %v3942 = vpack.c.b16 %v3420, %v3418
        %v3943 = vpack.c.b16 %v3421, %v3419
        %v3944 = vpack.c.b16 %v3424, %v3422
        %v3945 = vpack.c.b16 %v3425, %v3423
        %v3946 = vpack.c.b16 %v3428, %v3426
        %v3947 = vpack.c.b16 %v3429, %v3427
        %v3948 = vpack.c.b16 %v3432, %v3430
        %v3949 = vpack.c.b16 %v3433, %v3431
        %v3950 = vpack.c.b16 %v3436, %v3434
        %v3951 = vpack.c.b16 %v3437, %v3435
        %v3952 = vpack.c.b16 %v3440, %v3438
        %v3953 = vpack.c.b16 %v3441, %v3439
        %v3954 = vpack.c.b16 %v3444, %v3442
        %v3955 = vpack.c.b16 %v3445, %v3443
        %v3956 = vpack.c.b16 %v3448, %v3446
        %v3957 = vpack.c.b16 %v3449, %v3447
        %v3958 = vpack.c.b16 %v3452, %v3450
        %v3959 = vpack.c.b16 %v3453, %v3451
        %v3960 = vpack.c.b16 %v3456, %v3454
        %v3961 = vpack.c.b16 %v3457, %v3455
        %v3962 = vpack.c.b16 %v3460, %v3458
        %v3963 = vpack.c.b16 %v3461, %v3459
        %v3964 = vpack.c.b16 %v3464, %v3462
        %v3965 = vpack.c.b16 %v3465, %v3463
        %v3966 = vpack.c.b16 %v3468, %v3466
        %v3967 = vpack.c.b16 %v3469, %v3467
        %v3968 = vpack.c.b16 %v3472, %v3470
        %v3969 = vpack.c.b16 %v3473, %v3471
        %v3970 = vpack.c.b16 %v3476, %v3474
        %v3971 = vpack.c.b16 %v3477, %v3475
        %v3972 = vpack.c.b16 %v3480, %v3478
        %v3973 = vpack.c.b16 %v3481, %v3479
        %v3974 = vpack.c.b16 %v3484, %v3482
        %v3975 = vpack.c.b16 %v3485, %v3483
        %v3976 = vpack.c.b16 %v3488, %v3486
        %v3977 = vpack.c.b16 %v3489, %v3487
        %v3978 = vpack.c.b16 %v3492, %v3490
        %v3979 = vpack.c.b16 %v3493, %v3491
        %v3980 = vpack.c.b16 %v3496, %v3494
        %v3981 = vpack.c.b16 %v3497, %v3495
        %v3982 = vpack.c.b16 %v3500, %v3498
        %v3983 = vpack.c.b16 %v3501, %v3499
        %v3984 = vpack.c.b16 %v3504, %v3502
        %v3985 = vpack.c.b16 %v3505, %v3503
        %v3986 = vpack.c.b16 %v3508, %v3506
        %v3987 = vpack.c.b16 %v3509, %v3507
        %v3988 = vpack.c.b16 %v3512, %v3510
        %v3989 = vpack.c.b16 %v3513, %v3511
        %v3990 = vpack.c.b16 %v3516, %v3514
        %v3991 = vpack.c.b16 %v3517, %v3515
        %v3992 = vpack.c.b16 %v3520, %v3518
        %v3993 = vpack.c.b16 %v3521, %v3519
        %v3994 = vpack.c.b16 %v3524, %v3522
        %v3995 = vpack.c.b16 %v3525, %v3523
        %v3996 = vpack.c.b16 %v3528, %v3526
        %v3997 = vpack.c.b16 %v3529, %v3527
        %v3998 = vpack.c.b16 %v3532, %v3530
        %v3999 = vpack.c.b16 %v3533, %v3531
        %v4000 = vpack.c.b16 %v3536, %v3534
        %v4001 = vpack.c.b16 %v3537, %v3535
        %v4002 = vpack.c.b16 %v3540, %v3538
        %v4003 = vpack.c.b16 %v3541, %v3539
        %v4004 = vpack.c.b16 %v3544, %v3542
        %v4005 = vpack.c.b16 %v3545, %v3543
        %v4006 = vpack.c.b16 %v3548, %v3546
        %v4007 = vpack.c.b16 %v3549, %v3547
        %v4008 = vpack.c.b16 %v3552, %v3550
        %v4009 = vpack.c.b16 %v3553, %v3551
        %v4010 = vpack.c.b16 %v3556, %v3554
        %v4011 = vpack.c.b16 %v3557, %v3555
        %v4012 = vpack.c.b16 %v3560, %v3558
        %v4013 = vpack.c.b16 %v3561, %v3559
        %v4014 = vpack.c.b16 %v3564, %v3562
        %v4015 = vpack.c.b16 %v3565, %v3563
        %v4016 = vpack.c.b16 %v3568, %v3566
        %v4017 = vpack.c.b16 %v3569, %v3567
        %v4018 = vpack.c.b16 %v3572, %v3570
        %v4019 = vpack.c.b16 %v3573, %v3571
        %v4020 = vpack.c.b16 %v3576, %v3574
        %v4021 = vpack.c.b16 %v3577, %v3575
        %v4022 = vpack.c.b16 %v3580, %v3578
        %v4023 = vpack.c.b16 %v3581, %v3579
        %v4024 = vpack.c.b16 %v3584, %v3582
        %v4025 = vpack.c.b16 %v3585, %v3583
        %v4026 = vpack.c.b16 %v3588, %v3586
        %v4027 = vpack.c.b16 %v3589, %v3587
        %v4028 = vpack.c.b16 %v3592, %v3590
        %v4029 = vpack.c.b16 %v3593, %v3591
        %v4030 = vpack.c.b16 %v3596, %v3594
        %v4031 = vpack.c.b16 %v3597, %v3595
        %v4032 = vpack.c.b16 %v3600, %v3598
        %v4033 = vpack.c.b16 %v3601, %v3599
        %v4034 = vpack.c.b16 %v3604, %v3602
        %v4035 = vpack.c.b16 %v3605, %v3603
        %v4036 = vpack.c.b16 %v3608, %v3606
        %v4037 = vpack.c.b16 %v3609, %v3607
        %v4038 = vpack.c.b16 %v3612, %v3610
        %v4039 = vpack.c.b16 %v3613, %v3611
        %v4040 = vpack.c.b16 %v3616, %v3614
        %v4041 = vpack.c.b16 %v3617, %v3615
        %v4042 = vpack.c.b16 %v3620, %v3618
        %v4043 = vpack.c.b16 %v3621, %v3619
        %v4044 = vpack.c.b16 %v3624, %v3622
        %v4045 = vpack.c.b16 %v3625, %v3623
        %v4046 = vpack.c.b16 %v3628, %v3626
        %v4047 = vpack.c.b16 %v3629, %v3627
        %v4048 = vpack.c.b16 %v3632, %v3630
        %v4049 = vpack.c.b16 %v3633, %v3631
        %v4050 = vpack.c.b16 %v3636, %v3634
        %v4051 = vpack.c.b16 %v3637, %v3635
        %v4052 = vpack.c.b16 %v3640, %v3638
        %v4053 = vpack.c.b16 %v3641, %v3639
        %v4054 = vpack.c.b16 %v3644, %v3642
        %v4055 = vpack.c.b16 %v3645, %v3643
        %v4056 = vpack.c.b16 %v3648, %v3646
        %v4057 = vpack.c.b16 %v3649, %v3647
        %v4058 = vpack.c.b16 %v3652, %v3650
        %v4059 = vpack.c.b16 %v3653, %v3651
        %v4060 = vpack.c.b16 %v3656, %v3654
        %v4061 = vpack.c.b16 %v3657, %v3655
        %v4062 = vpack.c.b16 %v3660, %v3658
        %v4063 = vpack.c.b16 %v3661, %v3659
        %v4064 = vpack.c.b16 %v3664, %v3662
        %v4065 = vpack.c.b16 %v3665, %v3663
        %4466 = vmatprep.subr.bf16.mxu0 %v3681
        %4467 = vmatpush1.bf16.msra.mxu0 %v3680
        %4468 = vmatprep.subr.bf16.mxu0 %v3679
        %4469 = vmatpush1.bf16.msra.mxu0 %v3678
        %4470 = vmatprep.subr.bf16.mxu0 %v3677
        %4471 = vmatpush1.bf16.msra.mxu0 %v3676
        %4472 = vmatprep.subr.bf16.mxu0 %v3675
        %4473 = vmatpush1.bf16.msra.mxu0 %v3674
        %4474 = vmatprep.subr.bf16.mxu0 %v3673
        %4475 = vmatpush1.bf16.msra.mxu0 %v3672
        %4476 = vmatprep.subr.bf16.mxu0 %v3671
        %4477 = vmatpush1.bf16.msra.mxu0 %v3670
        %4478 = vmatprep.subr.bf16.mxu0 %v3669
        %4479 = vmatpush1.bf16.msra.mxu0 %v3668
        %4480 = vmatprep.subr.bf16.mxu0 %v3667
        %4481 = vmatpush1.bf16.msra.mxu0 %v3666
        %4482 = vmatprep.subr.bf16.mxu0 %v3697
        %4483 = vmatpush2.bf16.msra.mxu0 %v3696
        %4484 = vmatprep.subr.bf16.mxu0 %v3695
        %4485 = vmatpush2.bf16.msra.mxu0 %v3694
        %4486 = vmatprep.subr.bf16.mxu0 %v3693
        %4487 = vmatpush2.bf16.msra.mxu0 %v3692
        %4488 = vmatprep.subr.bf16.mxu0 %v3691
        %4489 = vmatpush2.bf16.msra.mxu0 %v3690
        %4490 = vmatprep.subr.bf16.mxu0 %v3689
        %4491 = vmatpush2.bf16.msra.mxu0 %v3688
        %4492 = vmatprep.subr.bf16.mxu0 %v3687
        %4493 = vmatpush2.bf16.msra.mxu0 %v3686
        %4494 = vmatprep.subr.bf16.mxu0 %v3685
        %4495 = vmatpush2.bf16.msra.mxu0 %v3684
        %4496 = vmatprep.subr.bf16.mxu0 %v3683
        %4497 = vmatpush2.bf16.msra.mxu0 %v3682
        %4498 = vmatprep.mubr.bf16.mxu0 %v2417
        %4499 = vmatmul.mubr.bf16.gmra.mxu0 %v2416
        %v4500 = vpop.f32.mrf.mxu0
        %v4501 = vadd.f32 0.0, %v4500
        %v4502 = vpop.f32.mrf.mxu0
        %v4503 = vadd.f32 0.0, %v4502
        %v4504 = vpop.f32.mrf.mxu0
        %v4505 = vpop.f32.mrf.mxu0
        %4506 = vdwg.mxu0
        %4507 = vmatprep.subr.bf16.mxu0 %v3713
        %4508 = vmatpush1.bf16.msra.mxu0 %v3712
        %4509 = vmatprep.subr.bf16.mxu0 %v3711
        %4510 = vmatpush1.bf16.msra.mxu0 %v3710
        %4511 = vmatprep.subr.bf16.mxu0 %v3709
        %4512 = vmatpush1.bf16.msra.mxu0 %v3708
        %4513 = vmatprep.subr.bf16.mxu0 %v3707
        %4514 = vmatpush1.bf16.msra.mxu0 %v3706
        %4515 = vmatprep.subr.bf16.mxu0 %v3705
        %4516 = vmatpush1.bf16.msra.mxu0 %v3704
        %4517 = vmatprep.subr.bf16.mxu0 %v3703
        %4518 = vmatpush1.bf16.msra.mxu0 %v3702
        %4519 = vmatprep.subr.bf16.mxu0 %v3701
        %4520 = vmatpush1.bf16.msra.mxu0 %v3700
        %4521 = vmatprep.subr.bf16.mxu0 %v3699
        %4522 = vmatpush1.bf16.msra.mxu0 %v3698
        %4523 = vmatprep.subr.bf16.mxu0 %v3729
        %4524 = vmatpush2.bf16.msra.mxu0 %v3728
        %4525 = vmatprep.subr.bf16.mxu0 %v3727
        %4526 = vmatpush2.bf16.msra.mxu0 %v3726
        %4527 = vmatprep.subr.bf16.mxu0 %v3725
        %4528 = vmatpush2.bf16.msra.mxu0 %v3724
        %4529 = vmatprep.subr.bf16.mxu0 %v3723
        %4530 = vmatpush2.bf16.msra.mxu0 %v3722
        %4531 = vmatprep.subr.bf16.mxu0 %v3721
        %4532 = vmatpush2.bf16.msra.mxu0 %v3720
        %4533 = vmatprep.subr.bf16.mxu0 %v3719
        %4534 = vmatpush2.bf16.msra.mxu0 %v3718
        %4535 = vmatprep.subr.bf16.mxu0 %v3717
        %4536 = vmatpush2.bf16.msra.mxu0 %v3716
        %4537 = vmatprep.subr.bf16.mxu0 %v3715
        %4538 = vmatpush2.bf16.msra.mxu0 %v3714
        %4539 = vmatprep.mubr.bf16.mxu0 %v2419
        %4540 = vmatmul.mubr.bf16.gmra.mxu0 %v2418
        %v4541 = vpop.f32.mrf.mxu0
        %v4542 = vadd.f32 %v4501, %v4541
        %v4543 = vpop.f32.mrf.mxu0
        %v4544 = vadd.f32 %v4503, %v4543
        %v4545 = vpop.f32.mrf.mxu0
        %v4546 = vpop.f32.mrf.mxu0
        %4547 = vdwg.mxu0
        %4548 = vmatprep.subr.bf16.mxu0 %v3745
        %4549 = vmatpush1.bf16.msra.mxu0 %v3744
        %4550 = vmatprep.subr.bf16.mxu0 %v3743
        %4551 = vmatpush1.bf16.msra.mxu0 %v3742
        %4552 = vmatprep.subr.bf16.mxu0 %v3741
        %4553 = vmatpush1.bf16.msra.mxu0 %v3740
        %4554 = vmatprep.subr.bf16.mxu0 %v3739
        %4555 = vmatpush1.bf16.msra.mxu0 %v3738
        %4556 = vmatprep.subr.bf16.mxu0 %v3737
        %4557 = vmatpush1.bf16.msra.mxu0 %v3736
        %4558 = vmatprep.subr.bf16.mxu0 %v3735
        %4559 = vmatpush1.bf16.msra.mxu0 %v3734
        %4560 = vmatprep.subr.bf16.mxu0 %v3733
        %4561 = vmatpush1.bf16.msra.mxu0 %v3732
        %4562 = vmatprep.subr.bf16.mxu0 %v3731
        %4563 = vmatpush1.bf16.msra.mxu0 %v3730
        %4564 = vmatprep.subr.bf16.mxu0 %v3761
        %4565 = vmatpush2.bf16.msra.mxu0 %v3760
        %4566 = vmatprep.subr.bf16.mxu0 %v3759
        %4567 = vmatpush2.bf16.msra.mxu0 %v3758
        %4568 = vmatprep.subr.bf16.mxu0 %v3757
        %4569 = vmatpush2.bf16.msra.mxu0 %v3756
        %4570 = vmatprep.subr.bf16.mxu0 %v3755
        %4571 = vmatpush2.bf16.msra.mxu0 %v3754
        %4572 = vmatprep.subr.bf16.mxu0 %v3753
        %4573 = vmatpush2.bf16.msra.mxu0 %v3752
        %4574 = vmatprep.subr.bf16.mxu0 %v3751
        %4575 = vmatpush2.bf16.msra.mxu0 %v3750
        %4576 = vmatprep.subr.bf16.mxu0 %v3749
        %4577 = vmatpush2.bf16.msra.mxu0 %v3748
        %4578 = vmatprep.subr.bf16.mxu0 %v3747
        %4579 = vmatpush2.bf16.msra.mxu0 %v3746
        %4580 = vmatprep.mubr.bf16.mxu0 %v2421
        %4581 = vmatmul.mubr.bf16.gmra.mxu0 %v2420
        %v4582 = vpop.f32.mrf.mxu0
        %v4583 = vadd.f32 %v4542, %v4582
        %v4584 = vpop.f32.mrf.mxu0
        %v4585 = vadd.f32 %v4544, %v4584
        %v4586 = vpop.f32.mrf.mxu0
        %v4587 = vpop.f32.mrf.mxu0
        %4588 = vdwg.mxu0
        %4589 = vmatprep.subr.bf16.mxu0 %v3777
        %4590 = vmatpush1.bf16.msra.mxu0 %v3776
        %4591 = vmatprep.subr.bf16.mxu0 %v3775
        %4592 = vmatpush1.bf16.msra.mxu0 %v3774
        %4593 = vmatprep.subr.bf16.mxu0 %v3773
        %4594 = vmatpush1.bf16.msra.mxu0 %v3772
        %4595 = vmatprep.subr.bf16.mxu0 %v3771
        %4596 = vmatpush1.bf16.msra.mxu0 %v3770
        %4597 = vmatprep.subr.bf16.mxu0 %v3769
        %4598 = vmatpush1.bf16.msra.mxu0 %v3768
        %4599 = vmatprep.subr.bf16.mxu0 %v3767
        %4600 = vmatpush1.bf16.msra.mxu0 %v3766
        %4601 = vmatprep.subr.bf16.mxu0 %v3765
        %4602 = vmatpush1.bf16.msra.mxu0 %v3764
        %4603 = vmatprep.subr.bf16.mxu0 %v3763
        %4604 = vmatpush1.bf16.msra.mxu0 %v3762
        %4605 = vmatprep.subr.bf16.mxu0 %v3793
        %4606 = vmatpush2.bf16.msra.mxu0 %v3792
        %4607 = vmatprep.subr.bf16.mxu0 %v3791
        %4608 = vmatpush2.bf16.msra.mxu0 %v3790
        %4609 = vmatprep.subr.bf16.mxu0 %v3789
        %4610 = vmatpush2.bf16.msra.mxu0 %v3788
        %4611 = vmatprep.subr.bf16.mxu0 %v3787
        %4612 = vmatpush2.bf16.msra.mxu0 %v3786
        %4613 = vmatprep.subr.bf16.mxu0 %v3785
        %4614 = vmatpush2.bf16.msra.mxu0 %v3784
        %4615 = vmatprep.subr.bf16.mxu0 %v3783
        %4616 = vmatpush2.bf16.msra.mxu0 %v3782
        %4617 = vmatprep.subr.bf16.mxu0 %v3781
        %4618 = vmatpush2.bf16.msra.mxu0 %v3780
        %4619 = vmatprep.subr.bf16.mxu0 %v3779
        %4620 = vmatpush2.bf16.msra.mxu0 %v3778
        %4621 = vmatprep.mubr.bf16.mxu0 %v2423
        %4622 = vmatmul.mubr.bf16.gmra.mxu0 %v2422
        %v4623 = vpop.f32.mrf.mxu0
        %v4624 = vadd.f32 %v4583, %v4623
        %v4625 = vpop.f32.mrf.mxu0
        %v4626 = vadd.f32 %v4585, %v4625
        %v4627 = vpop.f32.mrf.mxu0
        %v4628 = vpop.f32.mrf.mxu0
        %4629 = vdwg.mxu0
        %4630 = vmatprep.subr.bf16.mxu0 %v3809
        %4631 = vmatpush1.bf16.msra.mxu0 %v3808
        %4632 = vmatprep.subr.bf16.mxu0 %v3807
        %4633 = vmatpush1.bf16.msra.mxu0 %v3806
        %4634 = vmatprep.subr.bf16.mxu0 %v3805
        %4635 = vmatpush1.bf16.msra.mxu0 %v3804
        %4636 = vmatprep.subr.bf16.mxu0 %v3803
        %4637 = vmatpush1.bf16.msra.mxu0 %v3802
        %4638 = vmatprep.subr.bf16.mxu0 %v3801
        %4639 = vmatpush1.bf16.msra.mxu0 %v3800
        %4640 = vmatprep.subr.bf16.mxu0 %v3799
        %4641 = vmatpush1.bf16.msra.mxu0 %v3798
        %4642 = vmatprep.subr.bf16.mxu0 %v3797
        %4643 = vmatpush1.bf16.msra.mxu0 %v3796
        %4644 = vmatprep.subr.bf16.mxu0 %v3795
        %4645 = vmatpush1.bf16.msra.mxu0 %v3794
        %4646 = vmatprep.subr.bf16.mxu0 %v3825
        %4647 = vmatpush2.bf16.msra.mxu0 %v3824
        %4648 = vmatprep.subr.bf16.mxu0 %v3823
        %4649 = vmatpush2.bf16.msra.mxu0 %v3822
        %4650 = vmatprep.subr.bf16.mxu0 %v3821
        %4651 = vmatpush2.bf16.msra.mxu0 %v3820
        %4652 = vmatprep.subr.bf16.mxu0 %v3819
        %4653 = vmatpush2.bf16.msra.mxu0 %v3818
        %4654 = vmatprep.subr.bf16.mxu0 %v3817
        %4655 = vmatpush2.bf16.msra.mxu0 %v3816
        %4656 = vmatprep.subr.bf16.mxu0 %v3815
        %4657 = vmatpush2.bf16.msra.mxu0 %v3814
        %4658 = vmatprep.subr.bf16.mxu0 %v3813
        %4659 = vmatpush2.bf16.msra.mxu0 %v3812
        %4660 = vmatprep.subr.bf16.mxu0 %v3811
        %4661 = vmatpush2.bf16.msra.mxu0 %v3810
        %4662 = vmatprep.mubr.bf16.mxu0 %v2425
        %4663 = vmatmul.mubr.bf16.gmra.mxu0 %v2424
        %v4664 = vpop.f32.mrf.mxu0
        %v4665 = vadd.f32 %v4624, %v4664
        %v4666 = vpop.f32.mrf.mxu0
        %v4667 = vadd.f32 %v4626, %v4666
        %v4668 = vpop.f32.mrf.mxu0
        %v4669 = vpop.f32.mrf.mxu0
        %4670 = vdwg.mxu0
        %4671 = vmatprep.subr.bf16.mxu0 %v3841
        %4672 = vmatpush1.bf16.msra.mxu0 %v3840
        %4673 = vmatprep.subr.bf16.mxu0 %v3839
        %4674 = vmatpush1.bf16.msra.mxu0 %v3838
        %4675 = vmatprep.subr.bf16.mxu0 %v3837
        %4676 = vmatpush1.bf16.msra.mxu0 %v3836
        %4677 = vmatprep.subr.bf16.mxu0 %v3835
        %4678 = vmatpush1.bf16.msra.mxu0 %v3834
        %4679 = vmatprep.subr.bf16.mxu0 %v3833
        %4680 = vmatpush1.bf16.msra.mxu0 %v3832
        %4681 = vmatprep.subr.bf16.mxu0 %v3831
        %4682 = vmatpush1.bf16.msra.mxu0 %v3830
        %4683 = vmatprep.subr.bf16.mxu0 %v3829
        %4684 = vmatpush1.bf16.msra.mxu0 %v3828
        %4685 = vmatprep.subr.bf16.mxu0 %v3827
        %4686 = vmatpush1.bf16.msra.mxu0 %v3826
        %4687 = vmatprep.subr.bf16.mxu0 %v3857
        %4688 = vmatpush2.bf16.msra.mxu0 %v3856
        %4689 = vmatprep.subr.bf16.mxu0 %v3855
        %4690 = vmatpush2.bf16.msra.mxu0 %v3854
        %4691 = vmatprep.subr.bf16.mxu0 %v3853
        %4692 = vmatpush2.bf16.msra.mxu0 %v3852
        %4693 = vmatprep.subr.bf16.mxu0 %v3851
        %4694 = vmatpush2.bf16.msra.mxu0 %v3850
        %4695 = vmatprep.subr.bf16.mxu0 %v3849
        %4696 = vmatpush2.bf16.msra.mxu0 %v3848
        %4697 = vmatprep.subr.bf16.mxu0 %v3847
        %4698 = vmatpush2.bf16.msra.mxu0 %v3846
        %4699 = vmatprep.subr.bf16.mxu0 %v3845
        %4700 = vmatpush2.bf16.msra.mxu0 %v3844
        %4701 = vmatprep.subr.bf16.mxu0 %v3843
        %4702 = vmatpush2.bf16.msra.mxu0 %v3842
        %4703 = vmatprep.mubr.bf16.mxu0 %v2427
        %4704 = vmatmul.mubr.bf16.gmra.mxu0 %v2426
        %v4705 = vpop.f32.mrf.mxu0
        %v4706 = vadd.f32 %v4665, %v4705
        %v4707 = vpop.f32.mrf.mxu0
        %v4708 = vadd.f32 %v4667, %v4707
        %v4709 = vpop.f32.mrf.mxu0
        %v4710 = vpop.f32.mrf.mxu0
        %4711 = vdwg.mxu0
        %4712 = vmatprep.subr.bf16.mxu0 %v3873
        %4713 = vmatpush1.bf16.msra.mxu0 %v3872
        %4714 = vmatprep.subr.bf16.mxu0 %v3871
        %4715 = vmatpush1.bf16.msra.mxu0 %v3870
        %4716 = vmatprep.subr.bf16.mxu0 %v3869
        %4717 = vmatpush1.bf16.msra.mxu0 %v3868
        %4718 = vmatprep.subr.bf16.mxu0 %v3867
        %4719 = vmatpush1.bf16.msra.mxu0 %v3866
        %4720 = vmatprep.subr.bf16.mxu0 %v3865
        %4721 = vmatpush1.bf16.msra.mxu0 %v3864
        %4722 = vmatprep.subr.bf16.mxu0 %v3863
        %4723 = vmatpush1.bf16.msra.mxu0 %v3862
        %4724 = vmatprep.subr.bf16.mxu0 %v3861
        %4725 = vmatpush1.bf16.msra.mxu0 %v3860
        %4726 = vmatprep.subr.bf16.mxu0 %v3859
        %4727 = vmatpush1.bf16.msra.mxu0 %v3858
        %4728 = vmatprep.subr.bf16.mxu0 %v3889
        %4729 = vmatpush2.bf16.msra.mxu0 %v3888
        %4730 = vmatprep.subr.bf16.mxu0 %v3887
        %4731 = vmatpush2.bf16.msra.mxu0 %v3886
        %4732 = vmatprep.subr.bf16.mxu0 %v3885
        %4733 = vmatpush2.bf16.msra.mxu0 %v3884
        %4734 = vmatprep.subr.bf16.mxu0 %v3883
        %4735 = vmatpush2.bf16.msra.mxu0 %v3882
        %4736 = vmatprep.subr.bf16.mxu0 %v3881
        %4737 = vmatpush2.bf16.msra.mxu0 %v3880
        %4738 = vmatprep.subr.bf16.mxu0 %v3879
        %4739 = vmatpush2.bf16.msra.mxu0 %v3878
        %4740 = vmatprep.subr.bf16.mxu0 %v3877
        %4741 = vmatpush2.bf16.msra.mxu0 %v3876
        %4742 = vmatprep.subr.bf16.mxu0 %v3875
        %4743 = vmatpush2.bf16.msra.mxu0 %v3874
        %4744 = vmatprep.mubr.bf16.mxu0 %v2429
        %4745 = vmatmul.mubr.bf16.gmra.mxu0 %v2428
        %v4746 = vpop.f32.mrf.mxu0
        %v4747 = vadd.f32 %v4706, %v4746
        %v4748 = vpop.f32.mrf.mxu0
        %v4749 = vadd.f32 %v4708, %v4748
        %v4750 = vpop.f32.mrf.mxu0
        %v4751 = vpop.f32.mrf.mxu0
        %4752 = vdwg.mxu0
        %4753 = vmatprep.subr.bf16.mxu0 %v3905
        %4754 = vmatpush1.bf16.msra.mxu0 %v3904
        %4755 = vmatprep.subr.bf16.mxu0 %v3903
        %4756 = vmatpush1.bf16.msra.mxu0 %v3902
        %4757 = vmatprep.subr.bf16.mxu0 %v3901
        %4758 = vmatpush1.bf16.msra.mxu0 %v3900
        %4759 = vmatprep.subr.bf16.mxu0 %v3899
        %4760 = vmatpush1.bf16.msra.mxu0 %v3898
        %4761 = vmatprep.subr.bf16.mxu0 %v3897
        %4762 = vmatpush1.bf16.msra.mxu0 %v3896
        %4763 = vmatprep.subr.bf16.mxu0 %v3895
        %4764 = vmatpush1.bf16.msra.mxu0 %v3894
        %4765 = vmatprep.subr.bf16.mxu0 %v3893
        %4766 = vmatpush1.bf16.msra.mxu0 %v3892
        %4767 = vmatprep.subr.bf16.mxu0 %v3891
        %4768 = vmatpush1.bf16.msra.mxu0 %v3890
        %4769 = vmatprep.subr.bf16.mxu0 %v3921
        %4770 = vmatpush2.bf16.msra.mxu0 %v3920
        %4771 = vmatprep.subr.bf16.mxu0 %v3919
        %4772 = vmatpush2.bf16.msra.mxu0 %v3918
        %4773 = vmatprep.subr.bf16.mxu0 %v3917
        %4774 = vmatpush2.bf16.msra.mxu0 %v3916
        %4775 = vmatprep.subr.bf16.mxu0 %v3915
        %4776 = vmatpush2.bf16.msra.mxu0 %v3914
        %4777 = vmatprep.subr.bf16.mxu0 %v3913
        %4778 = vmatpush2.bf16.msra.mxu0 %v3912
        %4779 = vmatprep.subr.bf16.mxu0 %v3911
        %4780 = vmatpush2.bf16.msra.mxu0 %v3910
        %4781 = vmatprep.subr.bf16.mxu0 %v3909
        %4782 = vmatpush2.bf16.msra.mxu0 %v3908
        %4783 = vmatprep.subr.bf16.mxu0 %v3907
        %4784 = vmatpush2.bf16.msra.mxu0 %v3906
        %4785 = vmatprep.mubr.bf16.mxu0 %v2431
        %4786 = vmatmul.mubr.bf16.gmra.mxu0 %v2430
        %v4787 = vpop.f32.mrf.mxu0
        %v4788 = vadd.f32 %v4747, %v4787
        %v4789 = vpop.f32.mrf.mxu0
        %v4790 = vadd.f32 %v4749, %v4789
        %v4791 = vpop.f32.mrf.mxu0
        %v4792 = vpop.f32.mrf.mxu0
        %4793 = vdwg.mxu0
        %4794 = vmatprep.subr.bf16.mxu0 %v3937
        %4795 = vmatpush1.bf16.msra.mxu0 %v3936
        %4796 = vmatprep.subr.bf16.mxu0 %v3935
        %4797 = vmatpush1.bf16.msra.mxu0 %v3934
        %4798 = vmatprep.subr.bf16.mxu0 %v3933
        %4799 = vmatpush1.bf16.msra.mxu0 %v3932
        %4800 = vmatprep.subr.bf16.mxu0 %v3931
        %4801 = vmatpush1.bf16.msra.mxu0 %v3930
        %4802 = vmatprep.subr.bf16.mxu0 %v3929
        %4803 = vmatpush1.bf16.msra.mxu0 %v3928
        %4804 = vmatprep.subr.bf16.mxu0 %v3927
        %4805 = vmatpush1.bf16.msra.mxu0 %v3926
        %4806 = vmatprep.subr.bf16.mxu0 %v3925
        %4807 = vmatpush1.bf16.msra.mxu0 %v3924
        %4808 = vmatprep.subr.bf16.mxu0 %v3923
        %4809 = vmatpush1.bf16.msra.mxu0 %v3922
        %4810 = vmatprep.subr.bf16.mxu0 %v3953
        %4811 = vmatpush2.bf16.msra.mxu0 %v3952
        %4812 = vmatprep.subr.bf16.mxu0 %v3951
        %4813 = vmatpush2.bf16.msra.mxu0 %v3950
        %4814 = vmatprep.subr.bf16.mxu0 %v3949
        %4815 = vmatpush2.bf16.msra.mxu0 %v3948
        %4816 = vmatprep.subr.bf16.mxu0 %v3947
        %4817 = vmatpush2.bf16.msra.mxu0 %v3946
        %4818 = vmatprep.subr.bf16.mxu0 %v3945
        %4819 = vmatpush2.bf16.msra.mxu0 %v3944
        %4820 = vmatprep.subr.bf16.mxu0 %v3943
        %4821 = vmatpush2.bf16.msra.mxu0 %v3942
        %4822 = vmatprep.subr.bf16.mxu0 %v3941
        %4823 = vmatpush2.bf16.msra.mxu0 %v3940
        %4824 = vmatprep.subr.bf16.mxu0 %v3939
        %4825 = vmatpush2.bf16.msra.mxu0 %v3938
        %4826 = vmatprep.mubr.bf16.mxu0 %v2433
        %4827 = vmatmul.mubr.bf16.gmra.mxu0 %v2432
        %v4828 = vpop.f32.mrf.mxu0
        %v4829 = vadd.f32 %v4788, %v4828
        %v4830 = vpop.f32.mrf.mxu0
        %v4831 = vadd.f32 %v4790, %v4830
        %v4832 = vpop.f32.mrf.mxu0
        %v4833 = vpop.f32.mrf.mxu0
        %4834 = vdwg.mxu0
        %4835 = vmatprep.subr.bf16.mxu0 %v3969
        %4836 = vmatpush1.bf16.msra.mxu0 %v3968
        %4837 = vmatprep.subr.bf16.mxu0 %v3967
        %4838 = vmatpush1.bf16.msra.mxu0 %v3966
        %4839 = vmatprep.subr.bf16.mxu0 %v3965
        %4840 = vmatpush1.bf16.msra.mxu0 %v3964
        %4841 = vmatprep.subr.bf16.mxu0 %v3963
        %4842 = vmatpush1.bf16.msra.mxu0 %v3962
        %4843 = vmatprep.subr.bf16.mxu0 %v3961
        %4844 = vmatpush1.bf16.msra.mxu0 %v3960
        %4845 = vmatprep.subr.bf16.mxu0 %v3959
        %4846 = vmatpush1.bf16.msra.mxu0 %v3958
        %4847 = vmatprep.subr.bf16.mxu0 %v3957
        %4848 = vmatpush1.bf16.msra.mxu0 %v3956
        %4849 = vmatprep.subr.bf16.mxu0 %v3955
        %4850 = vmatpush1.bf16.msra.mxu0 %v3954
        %4851 = vmatprep.subr.bf16.mxu0 %v3985
        %4852 = vmatpush2.bf16.msra.mxu0 %v3984
        %4853 = vmatprep.subr.bf16.mxu0 %v3983
        %4854 = vmatpush2.bf16.msra.mxu0 %v3982
        %4855 = vmatprep.subr.bf16.mxu0 %v3981
        %4856 = vmatpush2.bf16.msra.mxu0 %v3980
        %4857 = vmatprep.subr.bf16.mxu0 %v3979
        %4858 = vmatpush2.bf16.msra.mxu0 %v3978
        %4859 = vmatprep.subr.bf16.mxu0 %v3977
        %4860 = vmatpush2.bf16.msra.mxu0 %v3976
        %4861 = vmatprep.subr.bf16.mxu0 %v3975
        %4862 = vmatpush2.bf16.msra.mxu0 %v3974
        %4863 = vmatprep.subr.bf16.mxu0 %v3973
        %4864 = vmatpush2.bf16.msra.mxu0 %v3972
        %4865 = vmatprep.subr.bf16.mxu0 %v3971
        %4866 = vmatpush2.bf16.msra.mxu0 %v3970
        %4867 = vmatprep.mubr.bf16.mxu0 %v2435
        %4868 = vmatmul.mubr.bf16.gmra.mxu0 %v2434
        %v4869 = vpop.f32.mrf.mxu0
        %v4870 = vadd.f32 %v4829, %v4869
        %v4871 = vpop.f32.mrf.mxu0
        %v4872 = vadd.f32 %v4831, %v4871
        %v4873 = vpop.f32.mrf.mxu0
        %v4874 = vpop.f32.mrf.mxu0
        %4875 = vdwg.mxu0
        %4876 = vmatprep.subr.bf16.mxu0 %v4001
        %4877 = vmatpush1.bf16.msra.mxu0 %v4000
        %4878 = vmatprep.subr.bf16.mxu0 %v3999
        %4879 = vmatpush1.bf16.msra.mxu0 %v3998
        %4880 = vmatprep.subr.bf16.mxu0 %v3997
        %4881 = vmatpush1.bf16.msra.mxu0 %v3996
        %4882 = vmatprep.subr.bf16.mxu0 %v3995
        %4883 = vmatpush1.bf16.msra.mxu0 %v3994
        %4884 = vmatprep.subr.bf16.mxu0 %v3993
        %4885 = vmatpush1.bf16.msra.mxu0 %v3992
        %4886 = vmatprep.subr.bf16.mxu0 %v3991
        %4887 = vmatpush1.bf16.msra.mxu0 %v3990
        %4888 = vmatprep.subr.bf16.mxu0 %v3989
        %4889 = vmatpush1.bf16.msra.mxu0 %v3988
        %4890 = vmatprep.subr.bf16.mxu0 %v3987
        %4891 = vmatpush1.bf16.msra.mxu0 %v3986
        %4892 = vmatprep.subr.bf16.mxu0 %v4017
        %4893 = vmatpush2.bf16.msra.mxu0 %v4016
        %4894 = vmatprep.subr.bf16.mxu0 %v4015
        %4895 = vmatpush2.bf16.msra.mxu0 %v4014
        %4896 = vmatprep.subr.bf16.mxu0 %v4013
        %4897 = vmatpush2.bf16.msra.mxu0 %v4012
        %4898 = vmatprep.subr.bf16.mxu0 %v4011
        %4899 = vmatpush2.bf16.msra.mxu0 %v4010
        %4900 = vmatprep.subr.bf16.mxu0 %v4009
        %4901 = vmatpush2.bf16.msra.mxu0 %v4008
        %4902 = vmatprep.subr.bf16.mxu0 %v4007
        %4903 = vmatpush2.bf16.msra.mxu0 %v4006
        %4904 = vmatprep.subr.bf16.mxu0 %v4005
        %4905 = vmatpush2.bf16.msra.mxu0 %v4004
        %4906 = vmatprep.subr.bf16.mxu0 %v4003
        %4907 = vmatpush2.bf16.msra.mxu0 %v4002
        %4908 = vmatprep.mubr.bf16.mxu0 %v2437
        %4909 = vmatmul.mubr.bf16.gmra.mxu0 %v2436
        %v4910 = vpop.f32.mrf.mxu0
        %v4911 = vadd.f32 %v4870, %v4910
        %v4912 = vpop.f32.mrf.mxu0
        %v4913 = vadd.f32 %v4872, %v4912
        %v4914 = vpop.f32.mrf.mxu0
        %v4915 = vpop.f32.mrf.mxu0
        %4916 = vdwg.mxu0
        %4917 = vmatprep.subr.bf16.mxu0 %v4033
        %4918 = vmatpush1.bf16.msra.mxu0 %v4032
        %4919 = vmatprep.subr.bf16.mxu0 %v4031
        %4920 = vmatpush1.bf16.msra.mxu0 %v4030
        %4921 = vmatprep.subr.bf16.mxu0 %v4029
        %4922 = vmatpush1.bf16.msra.mxu0 %v4028
        %4923 = vmatprep.subr.bf16.mxu0 %v4027
        %4924 = vmatpush1.bf16.msra.mxu0 %v4026
        %4925 = vmatprep.subr.bf16.mxu0 %v4025
        %4926 = vmatpush1.bf16.msra.mxu0 %v4024
        %4927 = vmatprep.subr.bf16.mxu0 %v4023
        %4928 = vmatpush1.bf16.msra.mxu0 %v4022
        %4929 = vmatprep.subr.bf16.mxu0 %v4021
        %4930 = vmatpush1.bf16.msra.mxu0 %v4020
        %4931 = vmatprep.subr.bf16.mxu0 %v4019
        %4932 = vmatpush1.bf16.msra.mxu0 %v4018
        %4933 = vmatprep.subr.bf16.mxu0 %v4049
        %4934 = vmatpush2.bf16.msra.mxu0 %v4048
        %4935 = vmatprep.subr.bf16.mxu0 %v4047
        %4936 = vmatpush2.bf16.msra.mxu0 %v4046
        %4937 = vmatprep.subr.bf16.mxu0 %v4045
        %4938 = vmatpush2.bf16.msra.mxu0 %v4044
        %4939 = vmatprep.subr.bf16.mxu0 %v4043
        %4940 = vmatpush2.bf16.msra.mxu0 %v4042
        %4941 = vmatprep.subr.bf16.mxu0 %v4041
        %4942 = vmatpush2.bf16.msra.mxu0 %v4040
        %4943 = vmatprep.subr.bf16.mxu0 %v4039
        %4944 = vmatpush2.bf16.msra.mxu0 %v4038
        %4945 = vmatprep.subr.bf16.mxu0 %v4037
        %4946 = vmatpush2.bf16.msra.mxu0 %v4036
        %4947 = vmatprep.subr.bf16.mxu0 %v4035
        %4948 = vmatpush2.bf16.msra.mxu0 %v4034
        %4949 = vmatprep.mubr.bf16.mxu0 %v2439
        %4950 = vmatmul.mubr.bf16.gmra.mxu0 %v2438
        %v4951 = vpop.f32.mrf.mxu0
        %v4952 = vadd.f32 %v4911, %v4951
        %v4953 = vpop.f32.mrf.mxu0
        %v4954 = vadd.f32 %v4913, %v4953
        %v4955 = vpop.f32.mrf.mxu0
        %v4956 = vpop.f32.mrf.mxu0
        %4957 = vdwg.mxu0
        %4958 = vmatprep.subr.bf16.mxu0 %v4065
        %4959 = vmatpush1.bf16.msra.mxu0 %v4064
        %4960 = vmatprep.subr.bf16.mxu0 %v4063
        %4961 = vmatpush1.bf16.msra.mxu0 %v4062
        %4962 = vmatprep.subr.bf16.mxu0 %v4061
        %4963 = vmatpush1.bf16.msra.mxu0 %v4060
        %4964 = vmatprep.subr.bf16.mxu0 %v4059
        %4965 = vmatpush1.bf16.msra.mxu0 %v4058
        %4966 = vmatprep.subr.bf16.mxu0 %v4057
        %4967 = vmatpush1.bf16.msra.mxu0 %v4056
        %4968 = vmatprep.subr.bf16.mxu0 %v4055
        %4969 = vmatpush1.bf16.msra.mxu0 %v4054
        %4970 = vmatprep.subr.bf16.mxu0 %v4053
        %4971 = vmatpush1.bf16.msra.mxu0 %v4052
        %4972 = vmatprep.subr.bf16.mxu0 %v4051
        %4973 = vmatpush1.bf16.msra.mxu0 %v4050
        %4974 = vmatprep.subr.bf16.mxu0 0
        %4975 = vmatpush2.bf16.msra.mxu0 0
        %4976 = vmatprep.subr.bf16.mxu0 0
        %4977 = vmatpush2.bf16.msra.mxu0 0
        %4978 = vmatprep.subr.bf16.mxu0 0
        %4979 = vmatpush2.bf16.msra.mxu0 0
        %4980 = vmatprep.subr.bf16.mxu0 0
        %4981 = vmatpush2.bf16.msra.mxu0 0
        %4982 = vmatprep.subr.bf16.mxu0 0
        %4983 = vmatpush2.bf16.msra.mxu0 0
        %4984 = vmatprep.subr.bf16.mxu0 0
        %4985 = vmatpush2.bf16.msra.mxu0 0
        %4986 = vmatprep.subr.bf16.mxu0 0
        %4987 = vmatpush2.bf16.msra.mxu0 0
        %4988 = vmatprep.subr.bf16.mxu0 0
        %4989 = vmatpush2.bf16.msra.mxu0 0
        %4990 = vmatprep.mubr.bf16.mxu0 0
        %4991 = vmatmul.mubr.bf16.gmra.mxu0 %v2440
        %v4992 = vpop.f32.mrf.mxu0
        %v4993 = vadd.f32 %v4952, %v4992
        %v4994 = vpop.f32.mrf.mxu0
        %v4995 = vadd.f32 %v4954, %v4994
        %v4996 = vpop.f32.mrf.mxu0
        %v4997 = vpop.f32.mrf.mxu0
        %4998 = vdwg.mxu0
        %v4999 = vadd.f32 %v1963, %v4993
        %v5000 = vadd.f32 %v1964, %v4995
        %5001 = vst [vmem:[#allocation2] sm:$0xff] %v4999
        %5002 = vst [vmem:[#allocation2 + $0x8] sm:$0xff] %v5000
        %p5003 = scmp.eq.s32.totalorder %s21, 1
        // Predicated region
        $region83: #{forward.7} parent=73 // pred_check
          %p5004 = pneg %p5003
        $region84: #{forward.7} parent=73 // pred_check_branch
          %5006 = sbr.rel (%p5004) target = $region86
        $region85: #{forward.7} parent=73 // pred_region
          %v5007 = vld [vmem:[#allocation2] sm:$0xff]
          %v5008 = vld [vmem:[#allocation2 + $0x8] sm:$0xff]
          %v5009 = vld [vmem:[%s1939] sm:$0x3]
          %v5011 = vlaneseq
          %v5012 = vshrl.u32 %v5011, 7
          %v5013 = vsub.s32 0, %v5012
          %v5014 = vrot.slane %v5009, %v5013
          %v5015 = vlaneseq
          %v5016 = vshrl.u32 %v5015, 7
          %v5017 = vsub.s32 1, %v5016
          %v5018 = vrot.slane %v5009, %v5017
          %v5021 = vmul.f32 %v5007, %v5014
          %v5022 = vmul.f32 %v5008, %v5018
          %v5023 = vld [vmem:[%s1944] sm:$0x3]
          %v5025 = vlaneseq
          %v5026 = vshrl.u32 %v5025, 7
          %v5027 = vsub.s32 0, %v5026
          %v5028 = vrot.slane %v5023, %v5027
          %v5029 = vlaneseq
          %v5030 = vshrl.u32 %v5029, 7
          %v5031 = vsub.s32 1, %v5030
          %v5032 = vrot.slane %v5023, %v5031
          %v5035 = vadd.f32 %v5021, %v5028
          %v5036 = vadd.f32 %v5022, %v5032
          %v5037 = vmax.f32 %v5035, 0.0
          %v5038 = vmax.f32 %v5036, 0.0
          %v5039 = vpack.c.bf16 %v5037, %v5037
          %v5040 = vpack.c.bf16 %v5038, %v5038
          %v5041 = vld [vmem:[%s1950] sm:$0xf]
          %v5042 = vld [vmem:[%s1950 + $0x4] sm:$0xf]
          %v5043 = vld [vmem:[%s1950 + $0x8] sm:$0xf]
          %v5044 = vld [vmem:[%s1950 + $0xc] sm:$0xf]
          %v5045 = vld [vmem:[%s1950 + $0x10] sm:$0xf]
          %v5046 = vld [vmem:[%s1950 + $0x14] sm:$0xf]
          %v5047 = vld [vmem:[%s1950 + $0x18] sm:$0xf]
          %v5048 = vld [vmem:[%s1950 + $0x1c] sm:$0xf]
          %v5049 = vld [vmem:[%s1950 + $0x20] sm:$0xf]
          %v5050 = vld [vmem:[%s1950 + $0x24] sm:$0xf]
          %v5051 = vld [vmem:[%s1950 + $0x28] sm:$0xf]
          %v5052 = vld [vmem:[%s1950 + $0x2c] sm:$0xf]
          %v5053 = vld [vmem:[%s1950 + $0x30] sm:$0xf]
          %v5054 = vld [vmem:[%s1950 + $0x34] sm:$0xf]
          %v5055 = vld [vmem:[%s1950 + $0x38] sm:$0xf]
          %v5056 = vld [vmem:[%s1950 + $0x3c] sm:$0xf]
          %v5057 = vld [vmem:[%s1950 + $0x40] sm:$0xf]
          %v5058 = vld [vmem:[%s1950 + $0x44] sm:$0xf]
          %v5059 = vld [vmem:[%s1950 + $0x48] sm:$0xf]
          %v5060 = vld [vmem:[%s1950 + $0x4c] sm:$0xf]
          %v5061 = vld [vmem:[%s1950 + $0x50] sm:$0xf]
          %v5062 = vld [vmem:[%s1950 + $0x54] sm:$0xf]
          %v5063 = vld [vmem:[%s1950 + $0x58] sm:$0xf]
          %v5064 = vld [vmem:[%s1950 + $0x5c] sm:$0xf]
          %v5065 = vld [vmem:[%s1950 + $0x60] sm:$0xf]
          %v5066 = vld [vmem:[%s1950 + $0x64] sm:$0xf]
          %v5067 = vld [vmem:[%s1950 + $0x68] sm:$0xf]
          %v5068 = vld [vmem:[%s1950 + $0x6c] sm:$0xf]
          %v5069 = vld [vmem:[%s1950 + $0x70] sm:$0xf]
          %v5070 = vld [vmem:[%s1950 + $0x74] sm:$0xf]
          %v5071 = vld [vmem:[%s1950 + $0x78] sm:$0xf]
          %v5072 = vld [vmem:[%s1950 + $0x7c] sm:$0xf]
          %v5105 = vunpack.c.l.b16 %v5041
          %v5106 = vunpack.c.l.b16 %v5042
          %v5107 = vunpack.c.l.b16 %v5043
          %v5108 = vunpack.c.l.b16 %v5044
          %v5109 = vunpack.c.l.b16 %v5045
          %v5110 = vunpack.c.l.b16 %v5046
          %v5111 = vunpack.c.l.b16 %v5047
          %v5112 = vunpack.c.l.b16 %v5048
          %v5113 = vunpack.c.l.b16 %v5049
          %v5114 = vunpack.c.l.b16 %v5050
          %v5115 = vunpack.c.l.b16 %v5051
          %v5116 = vunpack.c.l.b16 %v5052
          %v5117 = vunpack.c.l.b16 %v5053
          %v5118 = vunpack.c.l.b16 %v5054
          %v5119 = vunpack.c.l.b16 %v5055
          %v5120 = vunpack.c.l.b16 %v5056
          %v5121 = vunpack.c.l.b16 %v5057
          %v5122 = vunpack.c.l.b16 %v5058
          %v5123 = vunpack.c.l.b16 %v5059
          %v5124 = vunpack.c.l.b16 %v5060
          %v5125 = vunpack.c.l.b16 %v5061
          %v5126 = vunpack.c.l.b16 %v5062
          %v5127 = vunpack.c.l.b16 %v5063
          %v5128 = vunpack.c.l.b16 %v5064
          %v5129 = vunpack.c.l.b16 %v5065
          %v5130 = vunpack.c.l.b16 %v5066
          %v5131 = vunpack.c.l.b16 %v5067
          %v5132 = vunpack.c.l.b16 %v5068
          %v5133 = vunpack.c.l.b16 %v5069
          %v5134 = vunpack.c.l.b16 %v5070
          %v5135 = vunpack.c.l.b16 %v5071
          %v5136 = vunpack.c.l.b16 %v5072
          %v5137 = vpack.c.b16 %v5106, %v5105
          %v5138 = vpack.c.b16 %v5108, %v5107
          %v5139 = vpack.c.b16 %v5110, %v5109
          %v5140 = vpack.c.b16 %v5112, %v5111
          %v5141 = vpack.c.b16 %v5114, %v5113
          %v5142 = vpack.c.b16 %v5116, %v5115
          %v5143 = vpack.c.b16 %v5118, %v5117
          %v5144 = vpack.c.b16 %v5120, %v5119
          %v5145 = vpack.c.b16 %v5122, %v5121
          %v5146 = vpack.c.b16 %v5124, %v5123
          %v5147 = vpack.c.b16 %v5126, %v5125
          %v5148 = vpack.c.b16 %v5128, %v5127
          %v5149 = vpack.c.b16 %v5130, %v5129
          %v5150 = vpack.c.b16 %v5132, %v5131
          %v5151 = vpack.c.b16 %v5134, %v5133
          %v5152 = vpack.c.b16 %v5136, %v5135
          %5169 = vmatprep.subr.bf16.mxu0 0
          %5170 = vmatpush1.bf16.msra.mxu0 %v5144
          %5171 = vmatprep.subr.bf16.mxu0 0
          %5172 = vmatpush1.bf16.msra.mxu0 %v5143
          %5173 = vmatprep.subr.bf16.mxu0 0
          %5174 = vmatpush1.bf16.msra.mxu0 %v5142
          %5175 = vmatprep.subr.bf16.mxu0 0
          %5176 = vmatpush1.bf16.msra.mxu0 %v5141
          %5177 = vmatprep.subr.bf16.mxu0 0
          %5178 = vmatpush1.bf16.msra.mxu0 %v5140
          %5179 = vmatprep.subr.bf16.mxu0 0
          %5180 = vmatpush1.bf16.msra.mxu0 %v5139
          %5181 = vmatprep.subr.bf16.mxu0 0
          %5182 = vmatpush1.bf16.msra.mxu0 %v5138
          %5183 = vmatprep.subr.bf16.mxu0 0
          %5184 = vmatpush1.bf16.msra.mxu0 %v5137
          %5185 = vmatprep.subr.bf16.mxu0 0
          %5186 = vmatpush2.bf16.msra.mxu0 %v5152
          %5187 = vmatprep.subr.bf16.mxu0 0
          %5188 = vmatpush2.bf16.msra.mxu0 %v5151
          %5189 = vmatprep.subr.bf16.mxu0 0
          %5190 = vmatpush2.bf16.msra.mxu0 %v5150
          %5191 = vmatprep.subr.bf16.mxu0 0
          %5192 = vmatpush2.bf16.msra.mxu0 %v5149
          %5193 = vmatprep.subr.bf16.mxu0 0
          %5194 = vmatpush2.bf16.msra.mxu0 %v5148
          %5195 = vmatprep.subr.bf16.mxu0 0
          %5196 = vmatpush2.bf16.msra.mxu0 %v5147
          %5197 = vmatprep.subr.bf16.mxu0 0
          %5198 = vmatpush2.bf16.msra.mxu0 %v5146
          %5199 = vmatprep.subr.bf16.mxu0 0
          %5200 = vmatpush2.bf16.msra.mxu0 %v5145
          %5201 = vmatprep.mubr.bf16.mxu0 %v5040
          %5202 = vmatmul.mubr.bf16.gmra.mxu0 %v5039
          %v5203 = vpop.f32.mrf.mxu0
          %v5204 = vadd.f32 0.0, %v5203
          %v5205 = vpop.f32.mrf.mxu0
          %v5206 = vpop.f32.mrf.mxu0
          %v5207 = vpop.f32.mrf.mxu0
          %5208 = vdwg.mxu0
          %5209 = vst [vmem:[%s1955] sm:$0xff] %v5204
        $region86: #{forward.7} parent=73 // pred_fallthru
          _
        %p5210 = scmp.lt.s32.totalorder %s20, 1
        %s5211 = scalar_select %p5210, %s20, 1
        %s5212 = smul.addr %s5211, 8
        %s5213 = scalar_lea.vmem %s5, %s5212
        // Predicated region
        $region87: #{forward.7} parent=73 // pred_check
          %p5214 = pneg %p178
        $region88: #{forward.7} parent=73 // pred_check_branch
          %5216 = sbr.rel (%p5214) target = $region90
        $region89: #{forward.7} parent=73 // pred_region
          _
        $region90: #{forward.7} parent=73 // pred_fallthru
          _
      $region74: #{forward.7} parent=5 // pred_fallthru
        _
      %p5217 = scmp.le.s32.totalorder 2, %s11
      // Predicated region
      $region91: #{forward.7} parent=5 // pred_check
        %p5218 = pneg %p5217
      $region92: #{forward.7} parent=5 // pred_check_branch
        %5220 = sbr.rel (%p5218) target = $region94
      $region93: #{forward.7} parent=5 // pred_region
        %s5221 = ssub.s32 %s11, 2
        // Predicated region
        $region95: #{forward.7} parent=93 // pred_check
          %p5222 = pneg %p184
        $region96: #{forward.7} parent=93 // pred_check_branch
          %5224 = sbr.rel (%p5222) target = $region98
        $region97: #{forward.7} parent=93 // pred_region
          %p5225 = scmp.lt.s32.totalorder %s22, 1
          %s5226 = scalar_select %p5225, %s22, 1
          %s5227 = smul.addr %s5226, 8
          %s5228 = scalar_lea.vmem %s5, %s5227
        $region98: #{forward.7} parent=93 // pred_fallthru
          _
      $region94: #{forward.7} parent=5 // pred_fallthru
        _
    $region6: #{forward.7} parent=1 // loop_footer
      %s15 = sadd.s32 1, %s11
    $region7: #{forward.7} parent=1 // loop_footer_branch
      %10 = sbr.rel target = $region3
    $region8: #{forward.7} parent=1 // loop_exit
      _

</llo_original>
